<compile_context>
chip_gen: v5e
topology: v5e:2x2
jax: 0.10.0
libtpu: 0.0.40
codegen_flags: <defaults>
</compile_context>

<pallas_src>
import jax
import jax.numpy as jnp
from jax.experimental import pallas as pl
from jax.experimental.pallas import tpu as pltpu

IMAGE_SPACE = 3 * 64 * 64   # 12288
LATENT_SPACE = 128
HIDDEN = 512


def decoder_kernel(x_ref, w3_ref, b3_ref, w4_ref, s4_ref, b4_ref, out_ref):
    """Fused decoder forward for one fc4-output column tile.

    fc3 is recomputed every grid step (tiny, completely hidden under the
    multi-MiB W4 tile DMA); no cross-step scratch -> the single grid axis is
    safely parallel / core-parallel (v7x 2-TC sharding).
    """
    # h = relu(x @ W3 + b3)   -- (B, 128) @ (128, 512) -> (B, 512), f32
    h = jnp.dot(x_ref[...], w3_ref[...], preferred_element_type=jnp.float32)
    h = jnp.maximum(h + b3_ref[...], 0.0)

    # acc = h @ W4_tile  -- (B, 512) @ (512, tn), f32 accumulation.
    w4 = w4_ref[...]
    if w4.dtype == jnp.int8:
        # int8 weights: dequant is deferred — matmul on raw integer values
        # (cast to f32 for the MXU), per-column scale folded into the epilogue.
        acc = jnp.dot(h, w4.astype(jnp.float32),
                      preferred_element_type=jnp.float32)
    else:
        acc = jnp.dot(h.astype(w4.dtype), w4,
                      preferred_element_type=jnp.float32)

    # Epilogue: per-column scale (ones for bf16/f32 weights), bias, sigmoid.
    # At small B this is ~100 vregs of free filler under the W4 DMA; only at
    # B in the hundreds would an explicit exp + pl.reciprocal(approx) matter.
    logits = acc * s4_ref[...] + b4_ref[...]          # (1, tn) broadcasts over B
    out_ref[...] = jax.nn.sigmoid(logits).astype(out_ref.dtype)


def _tpu_defaults():
    """Generation-aware (tn, dimension_semantics)."""
    kind = ""
    try:
        kind = jax.devices()[0].device_kind.lower()
    except Exception:
        pass
    if "7" in kind:
        # v7x: 2 TCs/chip, 64 MiB VMEM -> finer tiles (>=4 steps per core
        # after sharding) + explicit cross-core split of the N axis.
        sem = getattr(pltpu, "CORE_PARALLEL", "parallel")
        return 1536, (sem,)
    # v5e / v6e: single TC, 128 MiB VMEM -> wider tiles cut per-step overhead.
    return 4096, ("parallel",)


def quantize_w4_int8(w4_f32):
    """Symmetric per-output-column int8 quantization of W4 (512, N)."""
    amax = jnp.max(jnp.abs(w4_f32), axis=0)                  # (N,)
    scale = jnp.maximum(amax, 1e-8) / 127.0
    w_q = jnp.clip(jnp.round(w4_f32 / scale), -127, 127).astype(jnp.int8)
    return w_q, scale.astype(jnp.float32)


def decoder_forward(x, w3, b3, w4, b4, *, tn=None, weight_dtype=jnp.bfloat16):
    """x: (B, 128) float32 -> (B, 3, 64, 64) float32.

    weight_dtype: jnp.bfloat16 (default), jnp.float32 (bit-parity with the
    torch f32 reference), or jnp.int8 (per-column-scaled compression).
    W4 HBM traffic is batch-independent: amortize it by decoding many latents
    per call when possible.
    """
    B = x.shape[0]
    N = IMAGE_SPACE

    auto_tn, dim_sem = _tpu_defaults()
    if tn is None:
        tn = auto_tn
    assert N % tn == 0 and tn % 128 == 0

    # Pad batch to a multiple of 8 (f32 sublane) -> unmasked vector stores.
    B_pad = max(8, ((B + 7) // 8) * 8)
    x_p = x if B_pad == B else jnp.pad(x, ((0, B_pad - B), (0, 0)))

    w3_f32 = w3.astype(jnp.float32)               # tiny (256 KiB), keep f32
    b3_2d = b3.reshape(1, HIDDEN).astype(jnp.float32)
    b4_2d = b4.reshape(1, N).astype(jnp.float32)

    wdt = jnp.dtype(weight_dtype)
    if wdt == jnp.dtype(jnp.int8):
        # Dominant stream -> int8 + per-column scales (quantize offline in prod).
        w4_c, s4 = quantize_w4_int8(w4.astype(jnp.float32))
        s4_2d = s4.reshape(1, N)
    else:
        w4_c = w4.astype(wdt)                     # dominant bytes -> bf16 (or f32)
        s4_2d = jnp.ones((1, N), jnp.float32)

    cost = pl.CostEstimate(
        flops=2 * B_pad * (LATENT_SPACE * HIDDEN + HIDDEN * N),
        transcendentals=B_pad * N,                # sigmoid
        bytes_accessed=(HIDDEN * N * wdt.itemsize         # W4 stream (dominant)
                        + LATENT_SPACE * HIDDEN * 4       # W3
                        + (HIDDEN + 2 * N) * 4            # biases + scales
                        + B_pad * LATENT_SPACE * 4        # x
                        + B_pad * N * 4),                 # output
    )

    flat = pl.pallas_call(
        decoder_kernel,
        out_shape=jax.ShapeDtypeStruct((B_pad, N), jnp.float32),
        grid_spec=pltpu.PrefetchScalarGridSpec(
            num_scalar_prefetch=0,
            grid=(N // tn,),
            in_specs=[
                pl.BlockSpec((B_pad, LATENT_SPACE), lambda j: (0, 0)),   # x
                pl.BlockSpec((LATENT_SPACE, HIDDEN), lambda j: (0, 0)),  # W3
                pl.BlockSpec((1, HIDDEN), lambda j: (0, 0)),             # b3
                pl.BlockSpec((HIDDEN, tn), lambda j: (0, j)),            # W4 tile
                pl.BlockSpec((1, tn), lambda j: (0, j)),                 # col scale
                pl.BlockSpec((1, tn), lambda j: (0, j)),                 # b4 tile
            ],
            out_specs=pl.BlockSpec((B_pad, tn), lambda j: (0, j)),
        ),
        compiler_params=pltpu.CompilerParams(
            # Disjoint output tiles, no cross-step state: parallel everywhere,
            # explicit CORE_PARALLEL on v7x so both TCs stream half of W4.
            dimension_semantics=dim_sem,
            # Headroom for double-buffered 4 MiB tiles even on v5e's 16 MiB
            # scoped default (physical VMEM is far larger on every generation).
            vmem_limit_bytes=32 * 1024 * 1024,
        ),
        cost_estimate=cost,
    )(x_p, w3_f32, b3_2d, w4_c, s4_2d, b4_2d)

    # TODO(synk): for B >= ~256 add a second parallel grid axis over batch rows
    # (tile ~128) and consider bf16 output to keep VMEM / writeback bounded.

    # Drop batch padding; matches torch: x.view(B, 3, 64, 64).
    return flat[:B].reshape(B, 3, 64, 64)


def init_params(key):
    """Deterministic parameter init (uniform, like torch's default Linear init)."""
    k3w, k3b, k4w, k4b = jax.random.split(key, 4)
    bound3 = 1.0 / jnp.sqrt(LATENT_SPACE)
    bound4 = 1.0 / jnp.sqrt(HIDDEN)
    # Stored as (in_features, out_features) for x @ W.
    w3 = jax.random.uniform(k3w, (LATENT_SPACE, HIDDEN), jnp.float32,
                            -bound3, bound3)
    b3 = jax.random.uniform(k3b, (HIDDEN,), jnp.float32, -bound3, bound3)
    w4 = jax.random.uniform(k4w, (HIDDEN, IMAGE_SPACE), jnp.float32,
                            -bound4, bound4)
    b4 = jax.random.uniform(k4b, (IMAGE_SPACE,), jnp.float32, -bound4, bound4)
    return w3, b3, w4, b4


def decoder_ref_f32(x, w3, b3, w4, b4):
    """Pure-JAX f32 reference (torch module semantics)."""
    h = jnp.maximum(x @ w3 + b3, 0.0)
    y = jax.nn.sigmoid(h @ w4 + b4)
    return y.reshape(x.shape[0], 3, 64, 64)


def decoder_ref_bf16w(x, w3, b3, w4, b4):
    """Reference with the same bf16 weight quantization as the default kernel."""
    h = jnp.maximum(x @ w3 + b3, 0.0)
    logits = jnp.dot(h.astype(jnp.bfloat16), w4.astype(jnp.bfloat16),
                     preferred_element_type=jnp.float32) + b4
    return jax.nn.sigmoid(logits).reshape(x.shape[0], 3, 64, 64)


def decoder_ref_int8w(x, w3, b3, w4, b4):
    """Reference with the same int8 per-column weight quantization as the kernel."""
    h = jnp.maximum(x @ w3 + b3, 0.0)
    w_q, s = quantize_w4_int8(w4.astype(jnp.float32))
    acc = jnp.dot(h, w_q.astype(jnp.float32), preferred_element_type=jnp.float32)
    return jax.nn.sigmoid(acc * s + b4).reshape(x.shape[0], 3, 64, 64)


if __name__ == "__main__":
    key = jax.random.PRNGKey(0)
    kx, kp = jax.random.split(key)

    B = 2
    x = jax.random.normal(kx, (B, LATENT_SPACE), jnp.float32)
    w3, b3, w4, b4 = init_params(kp)

    ref_f = decoder_ref_f32(x, w3, b3, w4, b4)

    # Default path: bf16 W4 stream.
    out = jax.block_until_ready(decoder_forward(x, w3, b3, w4, b4))
    assert out.shape == (B, 3, 64, 64), out.shape
    ref_q = decoder_ref_bf16w(x, w3, b3, w4, b4)
    assert jnp.allclose(out, ref_q, atol=1e-3, rtol=1e-3), \
        float(jnp.max(jnp.abs(out - ref_q)))
    assert jnp.allclose(out, ref_f, atol=3e-2), \
        float(jnp.max(jnp.abs(out - ref_f)))

    # Opt-in int8 weight compression (half the bf16 HBM stream).
    out_q8 = jax.block_until_ready(
        decoder_forward(x, w3, b3, w4, b4, weight_dtype=jnp.int8))
    assert out_q8.shape == (B, 3, 64, 64), out_q8.shape
    ref_q8 = decoder_ref_int8w(x, w3, b3, w4, b4)
    assert jnp.allclose(out_q8, ref_q8, atol=2e-3, rtol=1e-3), \
        float(jnp.max(jnp.abs(out_q8 - ref_q8)))
    assert jnp.allclose(out_q8, ref_f, atol=3e-2), \
        float(jnp.max(jnp.abs(out_q8 - ref_f)))

    print("KERNEL_OK")
</pallas_src>

<mosaic_0001>
module attributes {stable_mosaic.version = 11 : i64} {
  func.func @decoder_kernel(%arg0: i32, %arg1: memref<8x128xf32, #tpu.memory_space<vmem>>, %arg2: memref<128x512xf32, #tpu.memory_space<vmem>>, %arg3: memref<1x512xf32, #tpu.memory_space<vmem>>, %arg4: memref<512x4096xbf16, #tpu.memory_space<vmem>>, %arg5: memref<1x4096xf32, #tpu.memory_space<vmem>>, %arg6: memref<1x4096xf32, #tpu.memory_space<vmem>>, %arg7: memref<8x4096xf32, #tpu.memory_space<vmem>>) attributes {dimension_semantics = [#tpu.dimension_semantics<parallel>], iteration_bounds = array<i64: 3>, scalar_prefetch = 0 : i64, scratch_operands = 0 : i64, tpu.core_type = #tpu.core_type<tc>, window_params = [{pipeline_mode = #tpu.pipeline_mode<synchronous>, transform_indices = @transform_0, window_bounds = array<i64: 8, 128>}, {pipeline_mode = #tpu.pipeline_mode<synchronous>, transform_indices = @transform_1, window_bounds = array<i64: 128, 512>}, {pipeline_mode = #tpu.pipeline_mode<synchronous>, transform_indices = @transform_2, window_bounds = array<i64: 1, 512>}, {transform_indices = @transform_3, window_bounds = array<i64: 512, 4096>}, {transform_indices = @transform_4, window_bounds = array<i64: 1, 4096>}, {transform_indices = @transform_5, window_bounds = array<i64: 1, 4096>}, {transform_indices = @transform_6, window_bounds = array<i64: 8, 4096>}]} {
    %c0 = arith.constant 0 : index
    %c0_0 = arith.constant 0 : index
    %0 = vector.load %arg1[%c0, %c0_0] : memref<8x128xf32, #tpu.memory_space<vmem>>, vector<8x128xf32>
    %c0_1 = arith.constant 0 : index
    %c0_2 = arith.constant 0 : index
    %1 = vector.load %arg2[%c0_1, %c0_2] : memref<128x512xf32, #tpu.memory_space<vmem>>, vector<128x512xf32>
    %cst = arith.constant dense<0.000000e+00> : vector<8x512xf32>
    %2 = tpu.matmul %0, %1, %cst {dimension_numbers = #tpu.dot_dimension_numbers<[1], [0], [0], [1], [0, 0, 1, 1], [], []>} : vector<8x128xf32>, vector<128x512xf32>, vector<8x512xf32> -> vector<8x512xf32>
    %c0_3 = arith.constant 0 : index
    %c0_4 = arith.constant 0 : index
    %3 = vector.load %arg3[%c0_3, %c0_4] : memref<1x512xf32, #tpu.memory_space<vmem>>, vector<1x512xf32>
    %4 = vector.broadcast %3 : vector<1x512xf32> to vector<8x512xf32>
    %5 = arith.addf %2, %4 : vector<8x512xf32>
    %cst_5 = arith.constant 0.000000e+00 : f32
    %6 = vector.broadcast %cst_5 : f32 to vector<8x512xf32>
    %7 = arith.maximumf %5, %6 : vector<8x512xf32>
    %c0_6 = arith.constant 0 : index
    %c0_7 = arith.constant 0 : index
    %8 = vector.load %arg4[%c0_6, %c0_7] : memref<512x4096xbf16, #tpu.memory_space<vmem>>, vector<512x4096xbf16>
    %9 = arith.truncf %7 : vector<8x512xf32> to vector<8x512xbf16>
    %cst_8 = arith.constant dense<0.000000e+00> : vector<8x4096xf32>
    %10 = tpu.matmul %9, %8, %cst_8 {dimension_numbers = #tpu.dot_dimension_numbers<[1], [0], [0], [1], [0, 0, 1, 1], [], []>} : vector<8x512xbf16>, vector<512x4096xbf16>, vector<8x4096xf32> -> vector<8x4096xf32>
    %c0_9 = arith.constant 0 : index
    %c0_10 = arith.constant 0 : index
    %11 = vector.load %arg5[%c0_9, %c0_10] : memref<1x4096xf32, #tpu.memory_space<vmem>>, vector<1x4096xf32>
    %12 = vector.broadcast %11 : vector<1x4096xf32> to vector<8x4096xf32>
    %13 = arith.mulf %10, %12 : vector<8x4096xf32>
    %c0_11 = arith.constant 0 : index
    %c0_12 = arith.constant 0 : index
    %14 = vector.load %arg6[%c0_11, %c0_12] : memref<1x4096xf32, #tpu.memory_space<vmem>>, vector<1x4096xf32>
    %15 = vector.broadcast %14 : vector<1x4096xf32> to vector<8x4096xf32>
    %16 = arith.addf %13, %15 : vector<8x4096xf32>
    %17 = arith.negf %16 : vector<8x4096xf32>
    %18 = math.exp %17 : vector<8x4096xf32>
    %cst_13 = arith.constant 1.000000e+00 : f32
    %19 = vector.broadcast %cst_13 : f32 to vector<8x4096xf32>
    %20 = arith.addf %19, %18 : vector<8x4096xf32>
    %21 = arith.divf %19, %20 : vector<8x4096xf32>
    %c0_14 = arith.constant 0 : index
    %c0_15 = arith.constant 0 : index
    %22 = vector.load %arg7[%c0_14, %c0_15] : memref<8x4096xf32, #tpu.memory_space<vmem>>, vector<8x4096xf32>
    tpu.vector_store %arg7[%c0_14, %c0_15], %21 {strides = array<i32>} : memref<8x4096xf32, #tpu.memory_space<vmem>>, vector<8x4096xf32>,
    return
  }
  func.func @transform_0(%arg0: i32) -> (i32, i32) {
    %c0_i32 = arith.constant 0 : i32
    %c0_i32_0 = arith.constant 0 : i32
    %c0_i32_1 = arith.constant 0 : i32
    return %c0_i32, %c0_i32_0 : i32, i32
  }
  func.func @transform_1(%arg0: i32) -> (i32, i32) {
    %c0_i32 = arith.constant 0 : i32
    %c0_i32_0 = arith.constant 0 : i32
    %c0_i32_1 = arith.constant 0 : i32
    return %c0_i32, %c0_i32_0 : i32, i32
  }
  func.func @transform_2(%arg0: i32) -> (i32, i32) {
    %c0_i32 = arith.constant 0 : i32
    %c0_i32_0 = arith.constant 0 : i32
    %c0_i32_1 = arith.constant 0 : i32
    return %c0_i32, %c0_i32_0 : i32, i32
  }
  func.func @transform_3(%arg0: i32) -> (i32, i32) {
    %c0_i32 = arith.constant 0 : i32
    %c0_i32_0 = arith.constant 0 : i32
    return %c0_i32, %arg0 : i32, i32
  }
  func.func @transform_4(%arg0: i32) -> (i32, i32) {
    %c0_i32 = arith.constant 0 : i32
    %c0_i32_0 = arith.constant 0 : i32
    return %c0_i32, %arg0 : i32, i32
  }
  func.func @transform_5(%arg0: i32) -> (i32, i32) {
    %c0_i32 = arith.constant 0 : i32
    %c0_i32_0 = arith.constant 0 : i32
    return %c0_i32, %arg0 : i32, i32
  }
  func.func @transform_6(%arg0: i32) -> (i32, i32) {
    %c0_i32 = arith.constant 0 : i32
    %c0_i32_0 = arith.constant 0 : i32
    return %c0_i32, %arg0 : i32, i32
  }
}

</mosaic_0001>

<llo_original>
// kernel: tpu_custom_call.1
$region0: #{tpu_custom_call.1}
  #allocation0 [shape = 'u32[]', space=smem, size = 0x4, offset = 0x4, fixed_abs, tag = 'smem constant byte address 0x4 - core index']
  #allocation1 [shape = 'u32[72,128]{1,0:T(1,128)}', space=vmem, size = 0x9000, scoped, tag = 'internal scratch']
  %s0 = inlined_call_operand.hbm [shape: f32[8,128], index: 0, kind: input, shape index: {}]
  %s1 = inlined_call_operand.hbm [shape: f32[128,512], index: 1, kind: input, shape index: {}]
  %s2 = inlined_call_operand.hbm [shape: f32[1,512], index: 2, kind: input, shape index: {}]
  %s3 = inlined_call_operand.hbm [shape: bf16[512,12288], index: 3, kind: input, shape index: {}]
  %s4 = inlined_call_operand.hbm [shape: f32[1,12288], index: 4, kind: input, shape index: {}]
  %s5 = inlined_call_operand.hbm [shape: f32[1,12288], index: 5, kind: input, shape index: {}]
  %s6 = inlined_call_operand.hbm [shape: f32[8,12288], index: 6, kind: output, shape index: {}]
  %s7 = sld [smem:[#allocation0]]
  $region81: #{tpu_custom_call.1} parent=0
    _
  %s9 = ssub.s32 1, %s7
  %s10 = scalar_select 0, %s9, %s7
  $region1: #{tpu_custom_call.1} parent=0
    #allocation2 [shape = 'u8[4096]{0}', space=vmem, size = 0x1000, scoped, tag = 'input window, operand 0, single buffered']
    #allocation3 [shape = 's32[2]{0}', space=sflag, size = 0x8, scoped, tag = 'scoped memory for tpu_custom_call.1']
    #allocation4 [shape = 's32[2]{0}', space=sflag, size = 0x8, scoped, tag = 'scoped memory for tpu_custom_call.1']
    #allocation5 [shape = 'u8[262144]{0}', space=vmem, size = 0x40000, scoped, tag = 'input window, operand 1, single buffered']
    #allocation6 [shape = 's32[1]{0}', space=sflag, size = 0x4, scoped, tag = 'scoped memory for tpu_custom_call.1']
    #allocation7 [shape = 'u8[2048]{0}', space=vmem, size = 0x800, scoped, tag = 'input window, operand 2, single buffered']
    #allocation8 [shape = 'u8[8388608]{0}', space=vmem, size = 0x800000, scoped, tag = 'input window, operand 3']
    #allocation9 [shape = 's32[2]{0}', space=sflag, size = 0x8, scoped, tag = 'scoped memory for tpu_custom_call.1']
    #allocation10 [shape = 'u8[32768]{0}', space=vmem, size = 0x8000, scoped, tag = 'input window, operand 4']
    #allocation11 [shape = 'u8[32768]{0}', space=vmem, size = 0x8000, scoped, tag = 'input window, operand 5']
    #allocation12 [shape = 's32[2]{0}', space=sflag, size = 0x8, scoped, tag = 'scoped memory for tpu_custom_call.1']
    #allocation13 [shape = 'u8[262144]{0}', space=vmem, size = 0x40000, scoped, tag = 'output window, operand 0']
    %11 = vsyncpa [#allocation3], 0
    %12 = vsyncpa [#allocation6], 0
    %13 = vsyncpa [#allocation9], 0
    %s14 = scalar_lea.sflag [#allocation9], 1
    %15 = vsyncpa %s14, 0
    %16 = vsyncpa [#allocation12], 0
    %s17 = scalar_lea.sflag [#allocation12], 1
    %18 = vsyncpa %s17, 0
    %19 = vsyncpa [#allocation4], 0
    %s20 = scalar_lea.sflag [#allocation4], 1
    %21 = vsyncpa %s20, 0
    loop: start=0, step=1, limit=5
    $region2: #{tpu_custom_call.1} parent=1 // loop_pre_header
      _
    $region3: #{tpu_custom_call.1} parent=1 // loop_header
      %s23 = sphi 0, %s27
      %p24 = scmp.ge.s32.totalorder %s23, 5
      %s31 = sphi 0, %s31
      %s33 = sphi 0, %s31
      %s34 = sphi 0, %s33
      %s48 = sphi 0, %s34
      %s52 = sphi 0, %s52
      %s54 = sphi 0, %s52
      %s55 = sphi 0, %s54
      %s69 = sphi 0, %s55
      %s73 = sphi 0, %s73
      %s75 = sphi 0, %s73
      %s76 = sphi 0, %s75
      %s90 = sphi 0, %s76
      %s96 = sphi 0, %s98
      %s99 = sphi 0, %s96
      %s100 = sphi 0, %s99
      %s116 = sphi 0, %s100
      %s122 = sphi 0, %s124
      %s125 = sphi 0, %s122
      %s126 = sphi 0, %s125
      %s142 = sphi 0, %s126
      %s148 = sphi 0, %s150
      %s151 = sphi 0, %s148
      %s152 = sphi 0, %s151
      %s168 = sphi 0, %s152
      %s174 = sphi 0, %s176
      %s177 = sphi 0, %s174
      %s178 = sphi 0, %s177
      %s194 = sphi 0, %s178
    $region4: #{tpu_custom_call.1} parent=1 // loop_header_branch
      %26 = sbr.rel (%p24) target = $region8
    $region5: #{tpu_custom_call.1} parent=1 // loop_body
      %s28 = ssub.s32 %s23, 1
      %s29 = ssub.s32 %s23, 2
      %s30 = sadd.s32 %s23, 1
      %s32 = sadd.s32 %s31, 1
      %p35 = scmp.eq.s32.totalorder %s23, 2
      %p36 = scmp.ne.s32.totalorder %s31, %s33
      %p37 = scmp.eq.s32.totalorder %s23, 0
      %p38 = por %p36, %p37
      %p39 = scmp.ne.s32.totalorder %s31, %s33
      %p40 = scmp.eq.s32.totalorder %s28, 2
      %p41 = por %p39, %p40
      %p42 = scmp.ne.s32.totalorder %s33, %s34
      %p43 = scmp.eq.s32.totalorder %s28, 0
      %p44 = por %p42, %p43
      %p45 = scmp.ne.s32.totalorder %s33, %s34
      %p46 = scmp.eq.s32.totalorder %s29, 2
      %p47 = por %p45, %p46
      %p49 = scmp.ne.s32.totalorder %s34, %s48
      %p50 = scmp.eq.s32.totalorder %s29, 0
      %p51 = por %p49, %p50
      %s53 = sadd.s32 %s52, 1
      %p56 = scmp.eq.s32.totalorder %s23, 2
      %p57 = scmp.ne.s32.totalorder %s52, %s54
      %p58 = scmp.eq.s32.totalorder %s23, 0
      %p59 = por %p57, %p58
      %p60 = scmp.ne.s32.totalorder %s52, %s54
      %p61 = scmp.eq.s32.totalorder %s28, 2
      %p62 = por %p60, %p61
      %p63 = scmp.ne.s32.totalorder %s54, %s55
      %p64 = scmp.eq.s32.totalorder %s28, 0
      %p65 = por %p63, %p64
      %p66 = scmp.ne.s32.totalorder %s54, %s55
      %p67 = scmp.eq.s32.totalorder %s29, 2
      %p68 = por %p66, %p67
      %p70 = scmp.ne.s32.totalorder %s55, %s69
      %p71 = scmp.eq.s32.totalorder %s29, 0
      %p72 = por %p70, %p71
      %s74 = sadd.s32 %s73, 1
      %p77 = scmp.eq.s32.totalorder %s23, 2
      %p78 = scmp.ne.s32.totalorder %s73, %s75
      %p79 = scmp.eq.s32.totalorder %s23, 0
      %p80 = por %p78, %p79
      %p81 = scmp.ne.s32.totalorder %s73, %s75
      %p82 = scmp.eq.s32.totalorder %s28, 2
      %p83 = por %p81, %p82
      %p84 = scmp.ne.s32.totalorder %s75, %s76
      %p85 = scmp.eq.s32.totalorder %s28, 0
      %p86 = por %p84, %p85
      %p87 = scmp.ne.s32.totalorder %s75, %s76
      %p88 = scmp.eq.s32.totalorder %s29, 2
      %p89 = por %p87, %p88
      %p91 = scmp.ne.s32.totalorder %s76, %s90
      %p92 = scmp.eq.s32.totalorder %s29, 0
      %p93 = por %p91, %p92
      %s94 = ssub.s32 %s23, %s30
      %p95 = scmp.eq.s32.totalorder %s94, 0
      %s97 = sadd.s32 %s96, 1
      %s98 = scalar_select %p95, %s96, %s97
      %p101 = pneg %p95
      %p102 = scmp.eq.s32.totalorder %s23, 2
      %p103 = por %p101, %p102
      %p104 = scmp.ne.s32.totalorder %s96, %s99
      %p105 = scmp.eq.s32.totalorder %s23, 0
      %p106 = por %p104, %p105
      %p107 = scmp.ne.s32.totalorder %s96, %s99
      %p108 = scmp.eq.s32.totalorder %s28, 2
      %p109 = por %p107, %p108
      %p110 = scmp.ne.s32.totalorder %s99, %s100
      %p111 = scmp.eq.s32.totalorder %s28, 0
      %p112 = por %p110, %p111
      %p113 = scmp.ne.s32.totalorder %s99, %s100
      %p114 = scmp.eq.s32.totalorder %s29, 2
      %p115 = por %p113, %p114
      %p117 = scmp.ne.s32.totalorder %s100, %s116
      %p118 = scmp.eq.s32.totalorder %s29, 0
      %p119 = por %p117, %p118
      %s120 = ssub.s32 %s23, %s30
      %p121 = scmp.eq.s32.totalorder %s120, 0
      %s123 = sadd.s32 %s122, 1
      %s124 = scalar_select %p121, %s122, %s123
      %p127 = pneg %p121
      %p128 = scmp.eq.s32.totalorder %s23, 2
      %p129 = por %p127, %p128
      %p130 = scmp.ne.s32.totalorder %s122, %s125
      %p131 = scmp.eq.s32.totalorder %s23, 0
      %p132 = por %p130, %p131
      %p133 = scmp.ne.s32.totalorder %s122, %s125
      %p134 = scmp.eq.s32.totalorder %s28, 2
      %p135 = por %p133, %p134
      %p136 = scmp.ne.s32.totalorder %s125, %s126
      %p137 = scmp.eq.s32.totalorder %s28, 0
      %p138 = por %p136, %p137
      %p139 = scmp.ne.s32.totalorder %s125, %s126
      %p140 = scmp.eq.s32.totalorder %s29, 2
      %p141 = por %p139, %p140
      %p143 = scmp.ne.s32.totalorder %s126, %s142
      %p144 = scmp.eq.s32.totalorder %s29, 0
      %p145 = por %p143, %p144
      %s146 = ssub.s32 %s23, %s30
      %p147 = scmp.eq.s32.totalorder %s146, 0
      %s149 = sadd.s32 %s148, 1
      %s150 = scalar_select %p147, %s148, %s149
      %p153 = pneg %p147
      %p154 = scmp.eq.s32.totalorder %s23, 2
      %p155 = por %p153, %p154
      %p156 = scmp.ne.s32.totalorder %s148, %s151
      %p157 = scmp.eq.s32.totalorder %s23, 0
      %p158 = por %p156, %p157
      %p159 = scmp.ne.s32.totalorder %s148, %s151
      %p160 = scmp.eq.s32.totalorder %s28, 2
      %p161 = por %p159, %p160
      %p162 = scmp.ne.s32.totalorder %s151, %s152
      %p163 = scmp.eq.s32.totalorder %s28, 0
      %p164 = por %p162, %p163
      %p165 = scmp.ne.s32.totalorder %s151, %s152
      %p166 = scmp.eq.s32.totalorder %s29, 2
      %p167 = por %p165, %p166
      %p169 = scmp.ne.s32.totalorder %s152, %s168
      %p170 = scmp.eq.s32.totalorder %s29, 0
      %p171 = por %p169, %p170
      %s172 = ssub.s32 %s23, %s30
      %p173 = scmp.eq.s32.totalorder %s172, 0
      %s175 = sadd.s32 %s174, 1
      %s176 = scalar_select %p173, %s174, %s175
      %p179 = pneg %p173
      %p180 = scmp.eq.s32.totalorder %s23, 2
      %p181 = por %p179, %p180
      %p182 = scmp.ne.s32.totalorder %s174, %s177
      %p183 = scmp.eq.s32.totalorder %s23, 0
      %p184 = por %p182, %p183
      %p185 = scmp.ne.s32.totalorder %s174, %s177
      %p186 = scmp.eq.s32.totalorder %s28, 2
      %p187 = por %p185, %p186
      %p188 = scmp.ne.s32.totalorder %s177, %s178
      %p189 = scmp.eq.s32.totalorder %s28, 0
      %p190 = por %p188, %p189
      %p191 = scmp.ne.s32.totalorder %s177, %s178
      %p192 = scmp.eq.s32.totalorder %s29, 2
      %p193 = por %p191, %p192
      %p195 = scmp.ne.s32.totalorder %s178, %s194
      %p196 = scmp.eq.s32.totalorder %s29, 0
      %p197 = por %p195, %p196
      %p198 = scmp.le.s32.totalorder 1, %s23
      %p199 = scmp.lt.s32.totalorder %s23, 4
      %p200 = pnand %p198, %p199
      %p201 = pneg %p200
      // Predicated region
      $region9: #{tpu_custom_call.1} parent=5 // pred_check
        _
      $region10: #{tpu_custom_call.1} parent=5 // pred_check_branch
        %203 = sbr.rel (%p200) target = $region12
      $region11: #{tpu_custom_call.1} parent=5 // pred_region
        %s204 = ssub.s32 %s23, 1
        // Predicated region
        $region13: #{tpu_custom_call.1} parent=11 // pred_check
          %p205 = pneg %p44
        $region14: #{tpu_custom_call.1} parent=11 // pred_check_branch
          %207 = sbr.rel (%p205) target = $region16
        $region15: #{tpu_custom_call.1} parent=11 // pred_region
          %209 = vsyncadd [#allocation3], 0
          %s211 = sshll.u32 %s0, 4
          %s212 = int_to_ptr.hbm [resolvable:$true] %s211
          %s213 = sshll.u32 [#allocation2], 4
          %s214 = int_to_ptr.vmem [resolvable:$true] %s213
          %216 = dma.hbm_to_vmem [thread:$0]  %s212, 128, %s214, [#allocation3]
        $region16: #{tpu_custom_call.1} parent=11 // pred_fallthru
          _
        // Predicated region
        $region17: #{tpu_custom_call.1} parent=11 // pred_check
          %p217 = pneg %p65
        $region18: #{tpu_custom_call.1} parent=11 // pred_check_branch
          %219 = sbr.rel (%p217) target = $region20
        $region19: #{tpu_custom_call.1} parent=11 // pred_region
          %221 = vsyncadd [#allocation6], 0
          %s222 = sshll.u32 %s1, 4
          %s223 = int_to_ptr.hbm [resolvable:$true] %s222
          %s224 = sshll.u32 [#allocation5], 4
          %s225 = int_to_ptr.vmem [resolvable:$true] %s224
          %230 = dma.hbm_to_vmem [thread:$0]  %s223, 8192, %s225, [#allocation6], 512, 512, 32
        $region20: #{tpu_custom_call.1} parent=11 // pred_fallthru
          _
        // Predicated region
        $region21: #{tpu_custom_call.1} parent=11 // pred_check
          %p231 = pneg %p86
        $region22: #{tpu_custom_call.1} parent=11 // pred_check_branch
          %233 = sbr.rel (%p231) target = $region24
        $region23: #{tpu_custom_call.1} parent=11 // pred_region
          %235 = vsyncadd [#allocation6], 0
          %s237 = sshll.u32 %s2, 4
          %s238 = int_to_ptr.hbm [resolvable:$true] %s237
          %s239 = sshll.u32 [#allocation7], 4
          %s240 = int_to_ptr.vmem [resolvable:$true] %s239
          %242 = dma.hbm_to_vmem [thread:$0]  %s238, 64, %s240, [#allocation6]
        $region24: #{tpu_custom_call.1} parent=11 // pred_fallthru
          _
      $region12: #{tpu_custom_call.1} parent=5 // pred_fallthru
        _
      %p243 = scmp.lt.s32.totalorder %s23, 3
      // Predicated region
      $region25: #{tpu_custom_call.1} parent=5 // pred_check
        %p244 = pneg %p243
      $region26: #{tpu_custom_call.1} parent=5 // pred_check_branch
        %246 = sbr.rel (%p244) target = $region28
      $region27: #{tpu_custom_call.1} parent=5 // pred_region
        // Predicated region
        $region29: #{tpu_custom_call.1} parent=27 // pred_check
          %p247 = pneg %p106
        $region30: #{tpu_custom_call.1} parent=27 // pred_check_branch
          %249 = sbr.rel (%p247) target = $region32
        $region31: #{tpu_custom_call.1} parent=27 // pred_region
          %s250 = sand.u32 %s23, 1
          %s251 = scalar_lea.sflag [#allocation9], %s250
          %s252 = sand.u32 %s96, 1
          %s253 = smul.addr %s252, 8192
          %s254 = scalar_lea.vmem [#allocation8], %s253
          %s255 = smul.u32 32, %s23
          %257 = vsyncadd %s251, 0
          %s258 = smul.addr %s255, 4
          %s259 = scalar_lea.hbm %s3, %s258
          %s260 = sshll.u32 %s259, 4
          %s261 = int_to_ptr.hbm [resolvable:$true] %s260
          %s262 = sshll.u32 %s254, 4
          %s263 = int_to_ptr.vmem [resolvable:$true] %s262
          %268 = dma.hbm_to_vmem [thread:$0]  %s261, 131072, %s263, %s251, 6144, 2048, 128
        $region32: #{tpu_custom_call.1} parent=27 // pred_fallthru
          _
        // Predicated region
        $region33: #{tpu_custom_call.1} parent=27 // pred_check
          %p269 = pneg %p132
        $region34: #{tpu_custom_call.1} parent=27 // pred_check_branch
          %271 = sbr.rel (%p269) target = $region36
        $region35: #{tpu_custom_call.1} parent=27 // pred_region
          %s272 = sand.u32 %s23, 1
          %s273 = scalar_lea.sflag [#allocation9], %s272
          %s274 = sand.u32 %s122, 1
          %s275 = smul.addr %s274, 32
          %s276 = scalar_lea.vmem [#allocation10], %s275
          %s277 = smul.u32 32, %s23
          %279 = vsyncadd %s273, 0
          %s280 = scalar_lea.hbm %s4, %s277
          %s282 = sshll.u32 %s280, 4
          %s283 = int_to_ptr.hbm [resolvable:$true] %s282
          %s284 = sshll.u32 %s276, 4
          %s285 = int_to_ptr.vmem [resolvable:$true] %s284
          %287 = dma.hbm_to_vmem [thread:$0]  %s283, 512, %s285, %s273
        $region36: #{tpu_custom_call.1} parent=27 // pred_fallthru
          _
        // Predicated region
        $region37: #{tpu_custom_call.1} parent=27 // pred_check
          %p288 = pneg %p158
        $region38: #{tpu_custom_call.1} parent=27 // pred_check_branch
          %290 = sbr.rel (%p288) target = $region40
        $region39: #{tpu_custom_call.1} parent=27 // pred_region
          %s291 = sand.u32 %s148, 1
          %s292 = scalar_lea.sflag [#allocation12], %s291
          %s293 = sand.u32 %s148, 1
          %s294 = smul.addr %s293, 32
          %s295 = scalar_lea.vmem [#allocation11], %s294
          %s296 = smul.u32 32, %s23
          %298 = vsyncadd %s292, 0
          %s299 = scalar_lea.hbm %s5, %s296
          %s301 = sshll.u32 %s299, 4
          %s302 = int_to_ptr.hbm [resolvable:$true] %s301
          %s303 = sshll.u32 %s295, 4
          %s304 = int_to_ptr.vmem [resolvable:$true] %s303
          %306 = dma.hbm_to_vmem [thread:$0]  %s302, 512, %s304, %s292
        $region40: #{tpu_custom_call.1} parent=27 // pred_fallthru
          _
      $region28: #{tpu_custom_call.1} parent=5 // pred_fallthru
        _
      %p307 = scmp.le.s32.totalorder 1, %s23
      %p308 = scmp.lt.s32.totalorder %s23, 4
      %p309 = pnand %p307, %p308
      %p310 = pneg %p309
      // Predicated region
      $region41: #{tpu_custom_call.1} parent=5 // pred_check
        _
      $region42: #{tpu_custom_call.1} parent=5 // pred_check_branch
        %312 = sbr.rel (%p309) target = $region44
      $region43: #{tpu_custom_call.1} parent=5 // pred_region
        %s313 = ssub.s32 %s23, 1
        // Predicated region
        $region45: #{tpu_custom_call.1} parent=43 // pred_check
          %p314 = pneg %p44
        $region46: #{tpu_custom_call.1} parent=43 // pred_check_branch
          %316 = sbr.rel (%p314) target = $region48
        $region47: #{tpu_custom_call.1} parent=43 // pred_region
          %318 = dma.done [#allocation3], 128
        $region48: #{tpu_custom_call.1} parent=43 // pred_fallthru
          _
        // Predicated region
        $region49: #{tpu_custom_call.1} parent=43 // pred_check
          %p319 = pneg %p65
        $region50: #{tpu_custom_call.1} parent=43 // pred_check_branch
          %321 = sbr.rel (%p319) target = $region52
        $region51: #{tpu_custom_call.1} parent=43 // pred_region
          %323 = dma.done [#allocation6], 8192
        $region52: #{tpu_custom_call.1} parent=43 // pred_fallthru
          _
        // Predicated region
        $region53: #{tpu_custom_call.1} parent=43 // pred_check
          %p324 = pneg %p86
        $region54: #{tpu_custom_call.1} parent=43 // pred_check_branch
          %326 = sbr.rel (%p324) target = $region56
        $region55: #{tpu_custom_call.1} parent=43 // pred_region
          %328 = dma.done [#allocation6], 64
        $region56: #{tpu_custom_call.1} parent=43 // pred_fallthru
          _
        %s329 = sand.u32 %s28, 1
        %s330 = scalar_lea.sflag [#allocation9], %s329
        %s331 = sand.u32 %s99, 1
        %s332 = smul.addr %s331, 8192
        %s333 = scalar_lea.vmem [#allocation8], %s332
        // Predicated region
        $region57: #{tpu_custom_call.1} parent=43 // pred_check
          %p334 = pneg %p112
        $region58: #{tpu_custom_call.1} parent=43 // pred_check_branch
          %336 = sbr.rel (%p334) target = $region60
        $region59: #{tpu_custom_call.1} parent=43 // pred_region
          %338 = dma.done %s330, 131072
        $region60: #{tpu_custom_call.1} parent=43 // pred_fallthru
          _
        %s339 = sand.u32 %s28, 1
        %s340 = scalar_lea.sflag [#allocation9], %s339
        %s341 = sand.u32 %s125, 1
        %s342 = smul.addr %s341, 32
        %s343 = scalar_lea.vmem [#allocation10], %s342
        // Predicated region
        $region61: #{tpu_custom_call.1} parent=43 // pred_check
          %p344 = pneg %p138
        $region62: #{tpu_custom_call.1} parent=43 // pred_check_branch
          %346 = sbr.rel (%p344) target = $region64
        $region63: #{tpu_custom_call.1} parent=43 // pred_region
          %348 = dma.done %s340, 512
        $region64: #{tpu_custom_call.1} parent=43 // pred_fallthru
          _
        %s349 = sand.u32 %s151, 1
        %s350 = scalar_lea.sflag [#allocation12], %s349
        %s351 = sand.u32 %s151, 1
        %s352 = smul.addr %s351, 32
        %s353 = scalar_lea.vmem [#allocation11], %s352
        // Predicated region
        $region65: #{tpu_custom_call.1} parent=43 // pred_check
          %p354 = pneg %p164
        $region66: #{tpu_custom_call.1} parent=43 // pred_check_branch
          %356 = sbr.rel (%p354) target = $region68
        $region67: #{tpu_custom_call.1} parent=43 // pred_region
          %358 = dma.done %s350, 512
        $region68: #{tpu_custom_call.1} parent=43 // pred_fallthru
          _
        %p359 = pneg %p44
        %p360 = pneg %p41
        %p361 = pneg %p65
        %p362 = pneg %p62
        %p363 = pneg %p86
        %p364 = pneg %p83
        %s365 = sand.u32 %s28, 1
        %s366 = scalar_lea.sflag [#allocation9], %s365
        %s367 = sand.u32 %s99, 1
        %s368 = smul.addr %s367, 8192
        %s369 = scalar_lea.vmem [#allocation8], %s368
        %p370 = pneg %p112
        %p371 = pneg %p109
        %s372 = sand.u32 %s28, 1
        %s373 = scalar_lea.sflag [#allocation9], %s372
        %s374 = sand.u32 %s125, 1
        %s375 = smul.addr %s374, 32
        %s376 = scalar_lea.vmem [#allocation10], %s375
        %p377 = pneg %p138
        %p378 = pneg %p135
        %s379 = sand.u32 %s151, 1
        %s380 = scalar_lea.sflag [#allocation12], %s379
        %s381 = sand.u32 %s151, 1
        %s382 = smul.addr %s381, 32
        %s383 = scalar_lea.vmem [#allocation11], %s382
        %p384 = pneg %p164
        %p385 = pneg %p161
        %p386 = pneg %p190
        %p387 = pneg %p187
        %s388 = sand.u32 %s177, 1
        %s389 = scalar_lea.sflag [#allocation4], %s388
        %s390 = sand.u32 %s177, 1
        %s391 = smul.addr %s390, 256
        %s392 = scalar_lea.vmem [#allocation13], %s391
        %s393 = smul.u32 32, %s28
        %s394 = smul.u32 32, %s28
        %s395 = smul.u32 32, %s28
        %s396 = smul.u32 32, %s28
        %v397 = vld [vmem:[#allocation2] sm:$0xff]
        %v398 = vld [vmem:[#allocation5] sm:$0xff]
        %v399 = vld [vmem:[#allocation5 + $0x8] sm:$0xff]
        %v400 = vld [vmem:[#allocation5 + $0x10] sm:$0xff]
        %v401 = vld [vmem:[#allocation5 + $0x18] sm:$0xff]
        %v402 = vld [vmem:[#allocation5 + $0x20] sm:$0xff]
        %v403 = vld [vmem:[#allocation5 + $0x28] sm:$0xff]
        %v404 = vld [vmem:[#allocation5 + $0x30] sm:$0xff]
        %v405 = vld [vmem:[#allocation5 + $0x38] sm:$0xff]
        %v406 = vld [vmem:[#allocation5 + $0x40] sm:$0xff]
        %v407 = vld [vmem:[#allocation5 + $0x48] sm:$0xff]
        %v408 = vld [vmem:[#allocation5 + $0x50] sm:$0xff]
        %v409 = vld [vmem:[#allocation5 + $0x58] sm:$0xff]
        %v410 = vld [vmem:[#allocation5 + $0x60] sm:$0xff]
        %v411 = vld [vmem:[#allocation5 + $0x68] sm:$0xff]
        %v412 = vld [vmem:[#allocation5 + $0x70] sm:$0xff]
        %v413 = vld [vmem:[#allocation5 + $0x78] sm:$0xff]
        %v414 = vld [vmem:[#allocation5 + $0x80] sm:$0xff]
        %v415 = vld [vmem:[#allocation5 + $0x88] sm:$0xff]
        %v416 = vld [vmem:[#allocation5 + $0x90] sm:$0xff]
        %v417 = vld [vmem:[#allocation5 + $0x98] sm:$0xff]
        %v418 = vld [vmem:[#allocation5 + $0xa0] sm:$0xff]
        %v419 = vld [vmem:[#allocation5 + $0xa8] sm:$0xff]
        %v420 = vld [vmem:[#allocation5 + $0xb0] sm:$0xff]
        %v421 = vld [vmem:[#allocation5 + $0xb8] sm:$0xff]
        %v422 = vld [vmem:[#allocation5 + $0xc0] sm:$0xff]
        %v423 = vld [vmem:[#allocation5 + $0xc8] sm:$0xff]
        %v424 = vld [vmem:[#allocation5 + $0xd0] sm:$0xff]
        %v425 = vld [vmem:[#allocation5 + $0xd8] sm:$0xff]
        %v426 = vld [vmem:[#allocation5 + $0xe0] sm:$0xff]
        %v427 = vld [vmem:[#allocation5 + $0xe8] sm:$0xff]
        %v428 = vld [vmem:[#allocation5 + $0xf0] sm:$0xff]
        %v429 = vld [vmem:[#allocation5 + $0xf8] sm:$0xff]
        %v430 = vld [vmem:[#allocation5 + $0x100] sm:$0xff]
        %v431 = vld [vmem:[#allocation5 + $0x108] sm:$0xff]
        %v432 = vld [vmem:[#allocation5 + $0x110] sm:$0xff]
        %v433 = vld [vmem:[#allocation5 + $0x118] sm:$0xff]
        %v434 = vld [vmem:[#allocation5 + $0x120] sm:$0xff]
        %v435 = vld [vmem:[#allocation5 + $0x128] sm:$0xff]
        %v436 = vld [vmem:[#allocation5 + $0x130] sm:$0xff]
        %v437 = vld [vmem:[#allocation5 + $0x138] sm:$0xff]
        %v438 = vld [vmem:[#allocation5 + $0x140] sm:$0xff]
        %v439 = vld [vmem:[#allocation5 + $0x148] sm:$0xff]
        %v440 = vld [vmem:[#allocation5 + $0x150] sm:$0xff]
        %v441 = vld [vmem:[#allocation5 + $0x158] sm:$0xff]
        %v442 = vld [vmem:[#allocation5 + $0x160] sm:$0xff]
        %v443 = vld [vmem:[#allocation5 + $0x168] sm:$0xff]
        %v444 = vld [vmem:[#allocation5 + $0x170] sm:$0xff]
        %v445 = vld [vmem:[#allocation5 + $0x178] sm:$0xff]
        %v446 = vld [vmem:[#allocation5 + $0x180] sm:$0xff]
        %v447 = vld [vmem:[#allocation5 + $0x188] sm:$0xff]
        %v448 = vld [vmem:[#allocation5 + $0x190] sm:$0xff]
        %v449 = vld [vmem:[#allocation5 + $0x198] sm:$0xff]
        %v450 = vld [vmem:[#allocation5 + $0x1a0] sm:$0xff]
        %v451 = vld [vmem:[#allocation5 + $0x1a8] sm:$0xff]
        %v452 = vld [vmem:[#allocation5 + $0x1b0] sm:$0xff]
        %v453 = vld [vmem:[#allocation5 + $0x1b8] sm:$0xff]
        %v454 = vld [vmem:[#allocation5 + $0x1c0] sm:$0xff]
        %v455 = vld [vmem:[#allocation5 + $0x1c8] sm:$0xff]
        %v456 = vld [vmem:[#allocation5 + $0x1d0] sm:$0xff]
        %v457 = vld [vmem:[#allocation5 + $0x1d8] sm:$0xff]
        %v458 = vld [vmem:[#allocation5 + $0x1e0] sm:$0xff]
        %v459 = vld [vmem:[#allocation5 + $0x1e8] sm:$0xff]
        %v460 = vld [vmem:[#allocation5 + $0x1f0] sm:$0xff]
        %v461 = vld [vmem:[#allocation5 + $0x1f8] sm:$0xff]
        %v462 = vld [vmem:[#allocation7] sm:$0xf]
        %v464 = vperm.slane %v462, 0
        %v465 = vperm.slane %v462, 1
        %v466 = vperm.slane %v462, 2
        %v467 = vperm.slane %v462, 3
        %472 = vmatpush.msra.mxu0 %v458
        %473 = vmatpush.msra.mxu0 %v454
        %474 = vmatpush.msra.mxu0 %v450
        %475 = vmatpush.msra.mxu0 %v446
        %476 = vmatpush.msra.mxu0 %v442
        %477 = vmatpush.msra.mxu0 %v438
        %478 = vmatpush.msra.mxu0 %v434
        %479 = vmatpush.msra.mxu0 %v430
        %480 = vmatpush.msra.mxu0 %v426
        %481 = vmatpush.msra.mxu0 %v422
        %482 = vmatpush.msra.mxu0 %v418
        %483 = vmatpush.msra.mxu0 %v414
        %484 = vmatpush.msra.mxu0 %v410
        %485 = vmatpush.msra.mxu0 %v406
        %486 = vmatpush.msra.mxu0 %v402
        %487 = vmatpush.msra.mxu0 %v398
        %488 = vmatmul.f32.gmra.mxu0 %v397
        %v489 = vpop.f32.mrf.mxu0
        %v490 = vadd.f32 %v464, %v489
        %491 = vdwg.mxu0
        %492 = vmatpush.msra.mxu0 %v459
        %493 = vmatpush.msra.mxu0 %v455
        %494 = vmatpush.msra.mxu0 %v451
        %495 = vmatpush.msra.mxu0 %v447
        %496 = vmatpush.msra.mxu0 %v443
        %497 = vmatpush.msra.mxu0 %v439
        %498 = vmatpush.msra.mxu0 %v435
        %499 = vmatpush.msra.mxu0 %v431
        %500 = vmatpush.msra.mxu0 %v427
        %501 = vmatpush.msra.mxu0 %v423
        %502 = vmatpush.msra.mxu0 %v419
        %503 = vmatpush.msra.mxu0 %v415
        %504 = vmatpush.msra.mxu0 %v411
        %505 = vmatpush.msra.mxu0 %v407
        %506 = vmatpush.msra.mxu0 %v403
        %507 = vmatpush.msra.mxu0 %v399
        %508 = vmatmul.f32.gmra.mxu0 %v397
        %v509 = vpop.f32.mrf.mxu0
        %v510 = vadd.f32 %v465, %v509
        %511 = vdwg.mxu0
        %512 = vmatpush.msra.mxu0 %v460
        %513 = vmatpush.msra.mxu0 %v456
        %514 = vmatpush.msra.mxu0 %v452
        %515 = vmatpush.msra.mxu0 %v448
        %516 = vmatpush.msra.mxu0 %v444
        %517 = vmatpush.msra.mxu0 %v440
        %518 = vmatpush.msra.mxu0 %v436
        %519 = vmatpush.msra.mxu0 %v432
        %520 = vmatpush.msra.mxu0 %v428
        %521 = vmatpush.msra.mxu0 %v424
        %522 = vmatpush.msra.mxu0 %v420
        %523 = vmatpush.msra.mxu0 %v416
        %524 = vmatpush.msra.mxu0 %v412
        %525 = vmatpush.msra.mxu0 %v408
        %526 = vmatpush.msra.mxu0 %v404
        %527 = vmatpush.msra.mxu0 %v400
        %528 = vmatmul.f32.gmra.mxu0 %v397
        %v529 = vpop.f32.mrf.mxu0
        %v530 = vadd.f32 %v466, %v529
        %531 = vdwg.mxu0
        %532 = vmatpush.msra.mxu0 %v461
        %533 = vmatpush.msra.mxu0 %v457
        %534 = vmatpush.msra.mxu0 %v453
        %535 = vmatpush.msra.mxu0 %v449
        %536 = vmatpush.msra.mxu0 %v445
        %537 = vmatpush.msra.mxu0 %v441
        %538 = vmatpush.msra.mxu0 %v437
        %539 = vmatpush.msra.mxu0 %v433
        %540 = vmatpush.msra.mxu0 %v429
        %541 = vmatpush.msra.mxu0 %v425
        %542 = vmatpush.msra.mxu0 %v421
        %543 = vmatpush.msra.mxu0 %v417
        %544 = vmatpush.msra.mxu0 %v413
        %545 = vmatpush.msra.mxu0 %v409
        %546 = vmatpush.msra.mxu0 %v405
        %547 = vmatpush.msra.mxu0 %v401
        %548 = vmatmul.f32.gmra.mxu0 %v397
        %v549 = vpop.f32.mrf.mxu0
        %v550 = vadd.f32 %v467, %v549
        %551 = vdwg.mxu0
        %v552 = vmax.f32 %v490, 0.0
        %v553 = vmax.f32 %v510, 0.0
        %v554 = vmax.f32 %v530, 0.0
        %v555 = vmax.f32 %v550, 0.0
        %v556 = vld [vmem:[%s333] sm:$0xff]
        %v557 = vld [vmem:[%s333 + $0x8] sm:$0xff]
        %v558 = vld [vmem:[%s333 + $0x10] sm:$0xff]
        %v559 = vld [vmem:[%s333 + $0x18] sm:$0xff]
        %v560 = vld [vmem:[%s333 + $0x20] sm:$0xff]
        %v561 = vld [vmem:[%s333 + $0x28] sm:$0xff]
        %v562 = vld [vmem:[%s333 + $0x30] sm:$0xff]
        %v563 = vld [vmem:[%s333 + $0x38] sm:$0xff]
        %v564 = vld [vmem:[%s333 + $0x40] sm:$0xff]
        %v565 = vld [vmem:[%s333 + $0x48] sm:$0xff]
        %v566 = vld [vmem:[%s333 + $0x50] sm:$0xff]
        %v567 = vld [vmem:[%s333 + $0x58] sm:$0xff]
        %v568 = vld [vmem:[%s333 + $0x60] sm:$0xff]
        %v569 = vld [vmem:[%s333 + $0x68] sm:$0xff]
        %v570 = vld [vmem:[%s333 + $0x70] sm:$0xff]
        %v571 = vld [vmem:[%s333 + $0x78] sm:$0xff]
        %v572 = vld [vmem:[%s333 + $0x80] sm:$0xff]
        %v573 = vld [vmem:[%s333 + $0x88] sm:$0xff]
        %v574 = vld [vmem:[%s333 + $0x90] sm:$0xff]
        %v575 = vld [vmem:[%s333 + $0x98] sm:$0xff]
        %v576 = vld [vmem:[%s333 + $0xa0] sm:$0xff]
        %v577 = vld [vmem:[%s333 + $0xa8] sm:$0xff]
        %v578 = vld [vmem:[%s333 + $0xb0] sm:$0xff]
        %v579 = vld [vmem:[%s333 + $0xb8] sm:$0xff]
        %v580 = vld [vmem:[%s333 + $0xc0] sm:$0xff]
        %v581 = vld [vmem:[%s333 + $0xc8] sm:$0xff]
        %v582 = vld [vmem:[%s333 + $0xd0] sm:$0xff]
        %v583 = vld [vmem:[%s333 + $0xd8] sm:$0xff]
        %v584 = vld [vmem:[%s333 + $0xe0] sm:$0xff]
        %v585 = vld [vmem:[%s333 + $0xe8] sm:$0xff]
        %v586 = vld [vmem:[%s333 + $0xf0] sm:$0xff]
        %v587 = vld [vmem:[%s333 + $0xf8] sm:$0xff]
        %v588 = vld [vmem:[%s333 + $0x100] sm:$0xff]
        %v589 = vld [vmem:[%s333 + $0x108] sm:$0xff]
        %v590 = vld [vmem:[%s333 + $0x110] sm:$0xff]
        %v591 = vld [vmem:[%s333 + $0x118] sm:$0xff]
        %v592 = vld [vmem:[%s333 + $0x120] sm:$0xff]
        %v593 = vld [vmem:[%s333 + $0x128] sm:$0xff]
        %v594 = vld [vmem:[%s333 + $0x130] sm:$0xff]
        %v595 = vld [vmem:[%s333 + $0x138] sm:$0xff]
        %v596 = vld [vmem:[%s333 + $0x140] sm:$0xff]
        %v597 = vld [vmem:[%s333 + $0x148] sm:$0xff]
        %v598 = vld [vmem:[%s333 + $0x150] sm:$0xff]
        %v599 = vld [vmem:[%s333 + $0x158] sm:$0xff]
        %v600 = vld [vmem:[%s333 + $0x160] sm:$0xff]
        %v601 = vld [vmem:[%s333 + $0x168] sm:$0xff]
        %v602 = vld [vmem:[%s333 + $0x170] sm:$0xff]
        %v603 = vld [vmem:[%s333 + $0x178] sm:$0xff]
        %v604 = vld [vmem:[%s333 + $0x180] sm:$0xff]
        %v605 = vld [vmem:[%s333 + $0x188] sm:$0xff]
        %v606 = vld [vmem:[%s333 + $0x190] sm:$0xff]
        %v607 = vld [vmem:[%s333 + $0x198] sm:$0xff]
        %v608 = vld [vmem:[%s333 + $0x1a0] sm:$0xff]
        %v609 = vld [vmem:[%s333 + $0x1a8] sm:$0xff]
        %v610 = vld [vmem:[%s333 + $0x1b0] sm:$0xff]
        %v611 = vld [vmem:[%s333 + $0x1b8] sm:$0xff]
        %v612 = vld [vmem:[%s333 + $0x1c0] sm:$0xff]
        %v613 = vld [vmem:[%s333 + $0x1c8] sm:$0xff]
        %v614 = vld [vmem:[%s333 + $0x1d0] sm:$0xff]
        %v615 = vld [vmem:[%s333 + $0x1d8] sm:$0xff]
        %v616 = vld [vmem:[%s333 + $0x1e0] sm:$0xff]
        %v617 = vld [vmem:[%s333 + $0x1e8] sm:$0xff]
        %v618 = vld [vmem:[%s333 + $0x1f0] sm:$0xff]
        %v619 = vld [vmem:[%s333 + $0x1f8] sm:$0xff]
        %v620 = vld [vmem:[%s333 + $0x200] sm:$0xff]
        %v621 = vld [vmem:[%s333 + $0x208] sm:$0xff]
        %v622 = vld [vmem:[%s333 + $0x210] sm:$0xff]
        %v623 = vld [vmem:[%s333 + $0x218] sm:$0xff]
        %v624 = vld [vmem:[%s333 + $0x220] sm:$0xff]
        %v625 = vld [vmem:[%s333 + $0x228] sm:$0xff]
        %v626 = vld [vmem:[%s333 + $0x230] sm:$0xff]
        %v627 = vld [vmem:[%s333 + $0x238] sm:$0xff]
        %v628 = vld [vmem:[%s333 + $0x240] sm:$0xff]
        %v629 = vld [vmem:[%s333 + $0x248] sm:$0xff]
        %v630 = vld [vmem:[%s333 + $0x250] sm:$0xff]
        %v631 = vld [vmem:[%s333 + $0x258] sm:$0xff]
        %v632 = vld [vmem:[%s333 + $0x260] sm:$0xff]
        %v633 = vld [vmem:[%s333 + $0x268] sm:$0xff]
        %v634 = vld [vmem:[%s333 + $0x270] sm:$0xff]
        %v635 = vld [vmem:[%s333 + $0x278] sm:$0xff]
        %v636 = vld [vmem:[%s333 + $0x280] sm:$0xff]
        %v637 = vld [vmem:[%s333 + $0x288] sm:$0xff]
        %v638 = vld [vmem:[%s333 + $0x290] sm:$0xff]
        %v639 = vld [vmem:[%s333 + $0x298] sm:$0xff]
        %v640 = vld [vmem:[%s333 + $0x2a0] sm:$0xff]
        %v641 = vld [vmem:[%s333 + $0x2a8] sm:$0xff]
        %v642 = vld [vmem:[%s333 + $0x2b0] sm:$0xff]
        %v643 = vld [vmem:[%s333 + $0x2b8] sm:$0xff]
        %v644 = vld [vmem:[%s333 + $0x2c0] sm:$0xff]
        %v645 = vld [vmem:[%s333 + $0x2c8] sm:$0xff]
        %v646 = vld [vmem:[%s333 + $0x2d0] sm:$0xff]
        %v647 = vld [vmem:[%s333 + $0x2d8] sm:$0xff]
        %v648 = vld [vmem:[%s333 + $0x2e0] sm:$0xff]
        %v649 = vld [vmem:[%s333 + $0x2e8] sm:$0xff]
        %v650 = vld [vmem:[%s333 + $0x2f0] sm:$0xff]
        %v651 = vld [vmem:[%s333 + $0x2f8] sm:$0xff]
        %v652 = vld [vmem:[%s333 + $0x300] sm:$0xff]
        %v653 = vld [vmem:[%s333 + $0x308] sm:$0xff]
        %v654 = vld [vmem:[%s333 + $0x310] sm:$0xff]
        %v655 = vld [vmem:[%s333 + $0x318] sm:$0xff]
        %v656 = vld [vmem:[%s333 + $0x320] sm:$0xff]
        %v657 = vld [vmem:[%s333 + $0x328] sm:$0xff]
        %v658 = vld [vmem:[%s333 + $0x330] sm:$0xff]
        %v659 = vld [vmem:[%s333 + $0x338] sm:$0xff]
        %v660 = vld [vmem:[%s333 + $0x340] sm:$0xff]
        %v661 = vld [vmem:[%s333 + $0x348] sm:$0xff]
        %v662 = vld [vmem:[%s333 + $0x350] sm:$0xff]
        %v663 = vld [vmem:[%s333 + $0x358] sm:$0xff]
        %v664 = vld [vmem:[%s333 + $0x360] sm:$0xff]
        %v665 = vld [vmem:[%s333 + $0x368] sm:$0xff]
        %v666 = vld [vmem:[%s333 + $0x370] sm:$0xff]
        %v667 = vld [vmem:[%s333 + $0x378] sm:$0xff]
        %v668 = vld [vmem:[%s333 + $0x380] sm:$0xff]
        %v669 = vld [vmem:[%s333 + $0x388] sm:$0xff]
        %v670 = vld [vmem:[%s333 + $0x390] sm:$0xff]
        %v671 = vld [vmem:[%s333 + $0x398] sm:$0xff]
        %v672 = vld [vmem:[%s333 + $0x3a0] sm:$0xff]
        %v673 = vld [vmem:[%s333 + $0x3a8] sm:$0xff]
        %v674 = vld [vmem:[%s333 + $0x3b0] sm:$0xff]
        %v675 = vld [vmem:[%s333 + $0x3b8] sm:$0xff]
        %v676 = vld [vmem:[%s333 + $0x3c0] sm:$0xff]
        %v677 = vld [vmem:[%s333 + $0x3c8] sm:$0xff]
        %v678 = vld [vmem:[%s333 + $0x3d0] sm:$0xff]
        %v679 = vld [vmem:[%s333 + $0x3d8] sm:$0xff]
        %v680 = vld [vmem:[%s333 + $0x3e0] sm:$0xff]
        %v681 = vld [vmem:[%s333 + $0x3e8] sm:$0xff]
        %v682 = vld [vmem:[%s333 + $0x3f0] sm:$0xff]
        %v683 = vld [vmem:[%s333 + $0x3f8] sm:$0xff]
        %v684 = vld [vmem:[%s333 + $0x400] sm:$0xff]
        %v685 = vld [vmem:[%s333 + $0x408] sm:$0xff]
        %v686 = vld [vmem:[%s333 + $0x410] sm:$0xff]
        %v687 = vld [vmem:[%s333 + $0x418] sm:$0xff]
        %v688 = vld [vmem:[%s333 + $0x420] sm:$0xff]
        %v689 = vld [vmem:[%s333 + $0x428] sm:$0xff]
        %v690 = vld [vmem:[%s333 + $0x430] sm:$0xff]
        %v691 = vld [vmem:[%s333 + $0x438] sm:$0xff]
        %v692 = vld [vmem:[%s333 + $0x440] sm:$0xff]
        %v693 = vld [vmem:[%s333 + $0x448] sm:$0xff]
        %v694 = vld [vmem:[%s333 + $0x450] sm:$0xff]
        %v695 = vld [vmem:[%s333 + $0x458] sm:$0xff]
        %v696 = vld [vmem:[%s333 + $0x460] sm:$0xff]
        %v697 = vld [vmem:[%s333 + $0x468] sm:$0xff]
        %v698 = vld [vmem:[%s333 + $0x470] sm:$0xff]
        %v699 = vld [vmem:[%s333 + $0x478] sm:$0xff]
        %v700 = vld [vmem:[%s333 + $0x480] sm:$0xff]
        %v701 = vld [vmem:[%s333 + $0x488] sm:$0xff]
        %v702 = vld [vmem:[%s333 + $0x490] sm:$0xff]
        %v703 = vld [vmem:[%s333 + $0x498] sm:$0xff]
        %v704 = vld [vmem:[%s333 + $0x4a0] sm:$0xff]
        %v705 = vld [vmem:[%s333 + $0x4a8] sm:$0xff]
        %v706 = vld [vmem:[%s333 + $0x4b0] sm:$0xff]
        %v707 = vld [vmem:[%s333 + $0x4b8] sm:$0xff]
        %v708 = vld [vmem:[%s333 + $0x4c0] sm:$0xff]
        %v709 = vld [vmem:[%s333 + $0x4c8] sm:$0xff]
        %v710 = vld [vmem:[%s333 + $0x4d0] sm:$0xff]
        %v711 = vld [vmem:[%s333 + $0x4d8] sm:$0xff]
        %v712 = vld [vmem:[%s333 + $0x4e0] sm:$0xff]
        %v713 = vld [vmem:[%s333 + $0x4e8] sm:$0xff]
        %v714 = vld [vmem:[%s333 + $0x4f0] sm:$0xff]
        %v715 = vld [vmem:[%s333 + $0x4f8] sm:$0xff]
        %v716 = vld [vmem:[%s333 + $0x500] sm:$0xff]
        %v717 = vld [vmem:[%s333 + $0x508] sm:$0xff]
        %v718 = vld [vmem:[%s333 + $0x510] sm:$0xff]
        %v719 = vld [vmem:[%s333 + $0x518] sm:$0xff]
        %v720 = vld [vmem:[%s333 + $0x520] sm:$0xff]
        %v721 = vld [vmem:[%s333 + $0x528] sm:$0xff]
        %v722 = vld [vmem:[%s333 + $0x530] sm:$0xff]
        %v723 = vld [vmem:[%s333 + $0x538] sm:$0xff]
        %v724 = vld [vmem:[%s333 + $0x540] sm:$0xff]
        %v725 = vld [vmem:[%s333 + $0x548] sm:$0xff]
        %v726 = vld [vmem:[%s333 + $0x550] sm:$0xff]
        %v727 = vld [vmem:[%s333 + $0x558] sm:$0xff]
        %v728 = vld [vmem:[%s333 + $0x560] sm:$0xff]
        %v729 = vld [vmem:[%s333 + $0x568] sm:$0xff]
        %v730 = vld [vmem:[%s333 + $0x570] sm:$0xff]
        %v731 = vld [vmem:[%s333 + $0x578] sm:$0xff]
        %v732 = vld [vmem:[%s333 + $0x580] sm:$0xff]
        %v733 = vld [vmem:[%s333 + $0x588] sm:$0xff]
        %v734 = vld [vmem:[%s333 + $0x590] sm:$0xff]
        %v735 = vld [vmem:[%s333 + $0x598] sm:$0xff]
        %v736 = vld [vmem:[%s333 + $0x5a0] sm:$0xff]
        %v737 = vld [vmem:[%s333 + $0x5a8] sm:$0xff]
        %v738 = vld [vmem:[%s333 + $0x5b0] sm:$0xff]
        %v739 = vld [vmem:[%s333 + $0x5b8] sm:$0xff]
        %v740 = vld [vmem:[%s333 + $0x5c0] sm:$0xff]
        %v741 = vld [vmem:[%s333 + $0x5c8] sm:$0xff]
        %v742 = vld [vmem:[%s333 + $0x5d0] sm:$0xff]
        %v743 = vld [vmem:[%s333 + $0x5d8] sm:$0xff]
        %v744 = vld [vmem:[%s333 + $0x5e0] sm:$0xff]
        %v745 = vld [vmem:[%s333 + $0x5e8] sm:$0xff]
        %v746 = vld [vmem:[%s333 + $0x5f0] sm:$0xff]
        %v747 = vld [vmem:[%s333 + $0x5f8] sm:$0xff]
        %v748 = vld [vmem:[%s333 + $0x600] sm:$0xff]
        %v749 = vld [vmem:[%s333 + $0x608] sm:$0xff]
        %v750 = vld [vmem:[%s333 + $0x610] sm:$0xff]
        %v751 = vld [vmem:[%s333 + $0x618] sm:$0xff]
        %v752 = vld [vmem:[%s333 + $0x620] sm:$0xff]
        %v753 = vld [vmem:[%s333 + $0x628] sm:$0xff]
        %v754 = vld [vmem:[%s333 + $0x630] sm:$0xff]
        %v755 = vld [vmem:[%s333 + $0x638] sm:$0xff]
        %v756 = vld [vmem:[%s333 + $0x640] sm:$0xff]
        %v757 = vld [vmem:[%s333 + $0x648] sm:$0xff]
        %v758 = vld [vmem:[%s333 + $0x650] sm:$0xff]
        %v759 = vld [vmem:[%s333 + $0x658] sm:$0xff]
        %v760 = vld [vmem:[%s333 + $0x660] sm:$0xff]
        %v761 = vld [vmem:[%s333 + $0x668] sm:$0xff]
        %v762 = vld [vmem:[%s333 + $0x670] sm:$0xff]
        %v763 = vld [vmem:[%s333 + $0x678] sm:$0xff]
        %v764 = vld [vmem:[%s333 + $0x680] sm:$0xff]
        %v765 = vld [vmem:[%s333 + $0x688] sm:$0xff]
        %v766 = vld [vmem:[%s333 + $0x690] sm:$0xff]
        %v767 = vld [vmem:[%s333 + $0x698] sm:$0xff]
        %v768 = vld [vmem:[%s333 + $0x6a0] sm:$0xff]
        %v769 = vld [vmem:[%s333 + $0x6a8] sm:$0xff]
        %v770 = vld [vmem:[%s333 + $0x6b0] sm:$0xff]
        %v771 = vld [vmem:[%s333 + $0x6b8] sm:$0xff]
        %v772 = vld [vmem:[%s333 + $0x6c0] sm:$0xff]
        %v773 = vld [vmem:[%s333 + $0x6c8] sm:$0xff]
        %v774 = vld [vmem:[%s333 + $0x6d0] sm:$0xff]
        %v775 = vld [vmem:[%s333 + $0x6d8] sm:$0xff]
        %v776 = vld [vmem:[%s333 + $0x6e0] sm:$0xff]
        %v777 = vld [vmem:[%s333 + $0x6e8] sm:$0xff]
        %v778 = vld [vmem:[%s333 + $0x6f0] sm:$0xff]
        %v779 = vld [vmem:[%s333 + $0x6f8] sm:$0xff]
        %v780 = vld [vmem:[%s333 + $0x700] sm:$0xff]
        %v781 = vld [vmem:[%s333 + $0x708] sm:$0xff]
        %v782 = vld [vmem:[%s333 + $0x710] sm:$0xff]
        %v783 = vld [vmem:[%s333 + $0x718] sm:$0xff]
        %v784 = vld [vmem:[%s333 + $0x720] sm:$0xff]
        %v785 = vld [vmem:[%s333 + $0x728] sm:$0xff]
        %v786 = vld [vmem:[%s333 + $0x730] sm:$0xff]
        %v787 = vld [vmem:[%s333 + $0x738] sm:$0xff]
        %v788 = vld [vmem:[%s333 + $0x740] sm:$0xff]
        %v789 = vld [vmem:[%s333 + $0x748] sm:$0xff]
        %v790 = vld [vmem:[%s333 + $0x750] sm:$0xff]
        %v791 = vld [vmem:[%s333 + $0x758] sm:$0xff]
        %v792 = vld [vmem:[%s333 + $0x760] sm:$0xff]
        %v793 = vld [vmem:[%s333 + $0x768] sm:$0xff]
        %v794 = vld [vmem:[%s333 + $0x770] sm:$0xff]
        %v795 = vld [vmem:[%s333 + $0x778] sm:$0xff]
        %v796 = vld [vmem:[%s333 + $0x780] sm:$0xff]
        %v797 = vld [vmem:[%s333 + $0x788] sm:$0xff]
        %v798 = vld [vmem:[%s333 + $0x790] sm:$0xff]
        %v799 = vld [vmem:[%s333 + $0x798] sm:$0xff]
        %v800 = vld [vmem:[%s333 + $0x7a0] sm:$0xff]
        %v801 = vld [vmem:[%s333 + $0x7a8] sm:$0xff]
        %v802 = vld [vmem:[%s333 + $0x7b0] sm:$0xff]
        %v803 = vld [vmem:[%s333 + $0x7b8] sm:$0xff]
        %v804 = vld [vmem:[%s333 + $0x7c0] sm:$0xff]
        %v805 = vld [vmem:[%s333 + $0x7c8] sm:$0xff]
        %v806 = vld [vmem:[%s333 + $0x7d0] sm:$0xff]
        %v807 = vld [vmem:[%s333 + $0x7d8] sm:$0xff]
        %v808 = vld [vmem:[%s333 + $0x7e0] sm:$0xff]
        %v809 = vld [vmem:[%s333 + $0x7e8] sm:$0xff]
        %v810 = vld [vmem:[%s333 + $0x7f0] sm:$0xff]
        %v811 = vld [vmem:[%s333 + $0x7f8] sm:$0xff]
        %v812 = vld [vmem:[%s333 + $0x800] sm:$0xff]
        %v813 = vld [vmem:[%s333 + $0x808] sm:$0xff]
        %v814 = vld [vmem:[%s333 + $0x810] sm:$0xff]
        %v815 = vld [vmem:[%s333 + $0x818] sm:$0xff]
        %v816 = vld [vmem:[%s333 + $0x820] sm:$0xff]
        %v817 = vld [vmem:[%s333 + $0x828] sm:$0xff]
        %v818 = vld [vmem:[%s333 + $0x830] sm:$0xff]
        %v819 = vld [vmem:[%s333 + $0x838] sm:$0xff]
        %v820 = vld [vmem:[%s333 + $0x840] sm:$0xff]
        %v821 = vld [vmem:[%s333 + $0x848] sm:$0xff]
        %v822 = vld [vmem:[%s333 + $0x850] sm:$0xff]
        %v823 = vld [vmem:[%s333 + $0x858] sm:$0xff]
        %v824 = vld [vmem:[%s333 + $0x860] sm:$0xff]
        %v825 = vld [vmem:[%s333 + $0x868] sm:$0xff]
        %v826 = vld [vmem:[%s333 + $0x870] sm:$0xff]
        %v827 = vld [vmem:[%s333 + $0x878] sm:$0xff]
        %v828 = vld [vmem:[%s333 + $0x880] sm:$0xff]
        %v829 = vld [vmem:[%s333 + $0x888] sm:$0xff]
        %v830 = vld [vmem:[%s333 + $0x890] sm:$0xff]
        %v831 = vld [vmem:[%s333 + $0x898] sm:$0xff]
        %v832 = vld [vmem:[%s333 + $0x8a0] sm:$0xff]
        %v833 = vld [vmem:[%s333 + $0x8a8] sm:$0xff]
        %v834 = vld [vmem:[%s333 + $0x8b0] sm:$0xff]
        %v835 = vld [vmem:[%s333 + $0x8b8] sm:$0xff]
        %v836 = vld [vmem:[%s333 + $0x8c0] sm:$0xff]
        %v837 = vld [vmem:[%s333 + $0x8c8] sm:$0xff]
        %v838 = vld [vmem:[%s333 + $0x8d0] sm:$0xff]
        %v839 = vld [vmem:[%s333 + $0x8d8] sm:$0xff]
        %v840 = vld [vmem:[%s333 + $0x8e0] sm:$0xff]
        %v841 = vld [vmem:[%s333 + $0x8e8] sm:$0xff]
        %v842 = vld [vmem:[%s333 + $0x8f0] sm:$0xff]
        %v843 = vld [vmem:[%s333 + $0x8f8] sm:$0xff]
        %v844 = vld [vmem:[%s333 + $0x900] sm:$0xff]
        %v845 = vld [vmem:[%s333 + $0x908] sm:$0xff]
        %v846 = vld [vmem:[%s333 + $0x910] sm:$0xff]
        %v847 = vld [vmem:[%s333 + $0x918] sm:$0xff]
        %v848 = vld [vmem:[%s333 + $0x920] sm:$0xff]
        %v849 = vld [vmem:[%s333 + $0x928] sm:$0xff]
        %v850 = vld [vmem:[%s333 + $0x930] sm:$0xff]
        %v851 = vld [vmem:[%s333 + $0x938] sm:$0xff]
        %v852 = vld [vmem:[%s333 + $0x940] sm:$0xff]
        %v853 = vld [vmem:[%s333 + $0x948] sm:$0xff]
        %v854 = vld [vmem:[%s333 + $0x950] sm:$0xff]
        %v855 = vld [vmem:[%s333 + $0x958] sm:$0xff]
        %v856 = vld [vmem:[%s333 + $0x960] sm:$0xff]
        %v857 = vld [vmem:[%s333 + $0x968] sm:$0xff]
        %v858 = vld [vmem:[%s333 + $0x970] sm:$0xff]
        %v859 = vld [vmem:[%s333 + $0x978] sm:$0xff]
        %v860 = vld [vmem:[%s333 + $0x980] sm:$0xff]
        %v861 = vld [vmem:[%s333 + $0x988] sm:$0xff]
        %v862 = vld [vmem:[%s333 + $0x990] sm:$0xff]
        %v863 = vld [vmem:[%s333 + $0x998] sm:$0xff]
        %v864 = vld [vmem:[%s333 + $0x9a0] sm:$0xff]
        %v865 = vld [vmem:[%s333 + $0x9a8] sm:$0xff]
        %v866 = vld [vmem:[%s333 + $0x9b0] sm:$0xff]
        %v867 = vld [vmem:[%s333 + $0x9b8] sm:$0xff]
        %v868 = vld [vmem:[%s333 + $0x9c0] sm:$0xff]
        %v869 = vld [vmem:[%s333 + $0x9c8] sm:$0xff]
        %v870 = vld [vmem:[%s333 + $0x9d0] sm:$0xff]
        %v871 = vld [vmem:[%s333 + $0x9d8] sm:$0xff]
        %v872 = vld [vmem:[%s333 + $0x9e0] sm:$0xff]
        %v873 = vld [vmem:[%s333 + $0x9e8] sm:$0xff]
        %v874 = vld [vmem:[%s333 + $0x9f0] sm:$0xff]
        %v875 = vld [vmem:[%s333 + $0x9f8] sm:$0xff]
        %v876 = vld [vmem:[%s333 + $0xa00] sm:$0xff]
        %v877 = vld [vmem:[%s333 + $0xa08] sm:$0xff]
        %v878 = vld [vmem:[%s333 + $0xa10] sm:$0xff]
        %v879 = vld [vmem:[%s333 + $0xa18] sm:$0xff]
        %v880 = vld [vmem:[%s333 + $0xa20] sm:$0xff]
        %v881 = vld [vmem:[%s333 + $0xa28] sm:$0xff]
        %v882 = vld [vmem:[%s333 + $0xa30] sm:$0xff]
        %v883 = vld [vmem:[%s333 + $0xa38] sm:$0xff]
        %v884 = vld [vmem:[%s333 + $0xa40] sm:$0xff]
        %v885 = vld [vmem:[%s333 + $0xa48] sm:$0xff]
        %v886 = vld [vmem:[%s333 + $0xa50] sm:$0xff]
        %v887 = vld [vmem:[%s333 + $0xa58] sm:$0xff]
        %v888 = vld [vmem:[%s333 + $0xa60] sm:$0xff]
        %v889 = vld [vmem:[%s333 + $0xa68] sm:$0xff]
        %v890 = vld [vmem:[%s333 + $0xa70] sm:$0xff]
        %v891 = vld [vmem:[%s333 + $0xa78] sm:$0xff]
        %v892 = vld [vmem:[%s333 + $0xa80] sm:$0xff]
        %v893 = vld [vmem:[%s333 + $0xa88] sm:$0xff]
        %v894 = vld [vmem:[%s333 + $0xa90] sm:$0xff]
        %v895 = vld [vmem:[%s333 + $0xa98] sm:$0xff]
        %v896 = vld [vmem:[%s333 + $0xaa0] sm:$0xff]
        %v897 = vld [vmem:[%s333 + $0xaa8] sm:$0xff]
        %v898 = vld [vmem:[%s333 + $0xab0] sm:$0xff]
        %v899 = vld [vmem:[%s333 + $0xab8] sm:$0xff]
        %v900 = vld [vmem:[%s333 + $0xac0] sm:$0xff]
        %v901 = vld [vmem:[%s333 + $0xac8] sm:$0xff]
        %v902 = vld [vmem:[%s333 + $0xad0] sm:$0xff]
        %v903 = vld [vmem:[%s333 + $0xad8] sm:$0xff]
        %v904 = vld [vmem:[%s333 + $0xae0] sm:$0xff]
        %v905 = vld [vmem:[%s333 + $0xae8] sm:$0xff]
        %v906 = vld [vmem:[%s333 + $0xaf0] sm:$0xff]
        %v907 = vld [vmem:[%s333 + $0xaf8] sm:$0xff]
        %v908 = vld [vmem:[%s333 + $0xb00] sm:$0xff]
        %v909 = vld [vmem:[%s333 + $0xb08] sm:$0xff]
        %v910 = vld [vmem:[%s333 + $0xb10] sm:$0xff]
        %v911 = vld [vmem:[%s333 + $0xb18] sm:$0xff]
        %v912 = vld [vmem:[%s333 + $0xb20] sm:$0xff]
        %v913 = vld [vmem:[%s333 + $0xb28] sm:$0xff]
        %v914 = vld [vmem:[%s333 + $0xb30] sm:$0xff]
        %v915 = vld [vmem:[%s333 + $0xb38] sm:$0xff]
        %v916 = vld [vmem:[%s333 + $0xb40] sm:$0xff]
        %v917 = vld [vmem:[%s333 + $0xb48] sm:$0xff]
        %v918 = vld [vmem:[%s333 + $0xb50] sm:$0xff]
        %v919 = vld [vmem:[%s333 + $0xb58] sm:$0xff]
        %v920 = vld [vmem:[%s333 + $0xb60] sm:$0xff]
        %v921 = vld [vmem:[%s333 + $0xb68] sm:$0xff]
        %v922 = vld [vmem:[%s333 + $0xb70] sm:$0xff]
        %v923 = vld [vmem:[%s333 + $0xb78] sm:$0xff]
        %v924 = vld [vmem:[%s333 + $0xb80] sm:$0xff]
        %v925 = vld [vmem:[%s333 + $0xb88] sm:$0xff]
        %v926 = vld [vmem:[%s333 + $0xb90] sm:$0xff]
        %v927 = vld [vmem:[%s333 + $0xb98] sm:$0xff]
        %v928 = vld [vmem:[%s333 + $0xba0] sm:$0xff]
        %v929 = vld [vmem:[%s333 + $0xba8] sm:$0xff]
        %v930 = vld [vmem:[%s333 + $0xbb0] sm:$0xff]
        %v931 = vld [vmem:[%s333 + $0xbb8] sm:$0xff]
        %v932 = vld [vmem:[%s333 + $0xbc0] sm:$0xff]
        %v933 = vld [vmem:[%s333 + $0xbc8] sm:$0xff]
        %v934 = vld [vmem:[%s333 + $0xbd0] sm:$0xff]
        %v935 = vld [vmem:[%s333 + $0xbd8] sm:$0xff]
        %v936 = vld [vmem:[%s333 + $0xbe0] sm:$0xff]
        %v937 = vld [vmem:[%s333 + $0xbe8] sm:$0xff]
        %v938 = vld [vmem:[%s333 + $0xbf0] sm:$0xff]
        %v939 = vld [vmem:[%s333 + $0xbf8] sm:$0xff]
        %v940 = vld [vmem:[%s333 + $0xc00] sm:$0xff]
        %v941 = vld [vmem:[%s333 + $0xc08] sm:$0xff]
        %v942 = vld [vmem:[%s333 + $0xc10] sm:$0xff]
        %v943 = vld [vmem:[%s333 + $0xc18] sm:$0xff]
        %v944 = vld [vmem:[%s333 + $0xc20] sm:$0xff]
        %v945 = vld [vmem:[%s333 + $0xc28] sm:$0xff]
        %v946 = vld [vmem:[%s333 + $0xc30] sm:$0xff]
        %v947 = vld [vmem:[%s333 + $0xc38] sm:$0xff]
        %v948 = vld [vmem:[%s333 + $0xc40] sm:$0xff]
        %v949 = vld [vmem:[%s333 + $0xc48] sm:$0xff]
        %v950 = vld [vmem:[%s333 + $0xc50] sm:$0xff]
        %v951 = vld [vmem:[%s333 + $0xc58] sm:$0xff]
        %v952 = vld [vmem:[%s333 + $0xc60] sm:$0xff]
        %v953 = vld [vmem:[%s333 + $0xc68] sm:$0xff]
        %v954 = vld [vmem:[%s333 + $0xc70] sm:$0xff]
        %v955 = vld [vmem:[%s333 + $0xc78] sm:$0xff]
        %v956 = vld [vmem:[%s333 + $0xc80] sm:$0xff]
        %v957 = vld [vmem:[%s333 + $0xc88] sm:$0xff]
        %v958 = vld [vmem:[%s333 + $0xc90] sm:$0xff]
        %v959 = vld [vmem:[%s333 + $0xc98] sm:$0xff]
        %v960 = vld [vmem:[%s333 + $0xca0] sm:$0xff]
        %v961 = vld [vmem:[%s333 + $0xca8] sm:$0xff]
        %v962 = vld [vmem:[%s333 + $0xcb0] sm:$0xff]
        %v963 = vld [vmem:[%s333 + $0xcb8] sm:$0xff]
        %v964 = vld [vmem:[%s333 + $0xcc0] sm:$0xff]
        %v965 = vld [vmem:[%s333 + $0xcc8] sm:$0xff]
        %v966 = vld [vmem:[%s333 + $0xcd0] sm:$0xff]
        %v967 = vld [vmem:[%s333 + $0xcd8] sm:$0xff]
        %v968 = vld [vmem:[%s333 + $0xce0] sm:$0xff]
        %v969 = vld [vmem:[%s333 + $0xce8] sm:$0xff]
        %v970 = vld [vmem:[%s333 + $0xcf0] sm:$0xff]
        %v971 = vld [vmem:[%s333 + $0xcf8] sm:$0xff]
        %v972 = vld [vmem:[%s333 + $0xd00] sm:$0xff]
        %v973 = vld [vmem:[%s333 + $0xd08] sm:$0xff]
        %v974 = vld [vmem:[%s333 + $0xd10] sm:$0xff]
        %v975 = vld [vmem:[%s333 + $0xd18] sm:$0xff]
        %v976 = vld [vmem:[%s333 + $0xd20] sm:$0xff]
        %v977 = vld [vmem:[%s333 + $0xd28] sm:$0xff]
        %v978 = vld [vmem:[%s333 + $0xd30] sm:$0xff]
        %v979 = vld [vmem:[%s333 + $0xd38] sm:$0xff]
        %v980 = vld [vmem:[%s333 + $0xd40] sm:$0xff]
        %v981 = vld [vmem:[%s333 + $0xd48] sm:$0xff]
        %v982 = vld [vmem:[%s333 + $0xd50] sm:$0xff]
        %v983 = vld [vmem:[%s333 + $0xd58] sm:$0xff]
        %v984 = vld [vmem:[%s333 + $0xd60] sm:$0xff]
        %v985 = vld [vmem:[%s333 + $0xd68] sm:$0xff]
        %v986 = vld [vmem:[%s333 + $0xd70] sm:$0xff]
        %v987 = vld [vmem:[%s333 + $0xd78] sm:$0xff]
        %v988 = vld [vmem:[%s333 + $0xd80] sm:$0xff]
        %v989 = vld [vmem:[%s333 + $0xd88] sm:$0xff]
        %v990 = vld [vmem:[%s333 + $0xd90] sm:$0xff]
        %v991 = vld [vmem:[%s333 + $0xd98] sm:$0xff]
        %v992 = vld [vmem:[%s333 + $0xda0] sm:$0xff]
        %v993 = vld [vmem:[%s333 + $0xda8] sm:$0xff]
        %v994 = vld [vmem:[%s333 + $0xdb0] sm:$0xff]
        %v995 = vld [vmem:[%s333 + $0xdb8] sm:$0xff]
        %v996 = vld [vmem:[%s333 + $0xdc0] sm:$0xff]
        %v997 = vld [vmem:[%s333 + $0xdc8] sm:$0xff]
        %v998 = vld [vmem:[%s333 + $0xdd0] sm:$0xff]
        %v999 = vld [vmem:[%s333 + $0xdd8] sm:$0xff]
        %v1000 = vld [vmem:[%s333 + $0xde0] sm:$0xff]
        %v1001 = vld [vmem:[%s333 + $0xde8] sm:$0xff]
        %v1002 = vld [vmem:[%s333 + $0xdf0] sm:$0xff]
        %v1003 = vld [vmem:[%s333 + $0xdf8] sm:$0xff]
        %v1004 = vld [vmem:[%s333 + $0xe00] sm:$0xff]
        %v1005 = vld [vmem:[%s333 + $0xe08] sm:$0xff]
        %v1006 = vld [vmem:[%s333 + $0xe10] sm:$0xff]
        %v1007 = vld [vmem:[%s333 + $0xe18] sm:$0xff]
        %v1008 = vld [vmem:[%s333 + $0xe20] sm:$0xff]
        %v1009 = vld [vmem:[%s333 + $0xe28] sm:$0xff]
        %v1010 = vld [vmem:[%s333 + $0xe30] sm:$0xff]
        %v1011 = vld [vmem:[%s333 + $0xe38] sm:$0xff]
        %v1012 = vld [vmem:[%s333 + $0xe40] sm:$0xff]
        %v1013 = vld [vmem:[%s333 + $0xe48] sm:$0xff]
        %v1014 = vld [vmem:[%s333 + $0xe50] sm:$0xff]
        %v1015 = vld [vmem:[%s333 + $0xe58] sm:$0xff]
        %v1016 = vld [vmem:[%s333 + $0xe60] sm:$0xff]
        %v1017 = vld [vmem:[%s333 + $0xe68] sm:$0xff]
        %v1018 = vld [vmem:[%s333 + $0xe70] sm:$0xff]
        %v1019 = vld [vmem:[%s333 + $0xe78] sm:$0xff]
        %v1020 = vld [vmem:[%s333 + $0xe80] sm:$0xff]
        %v1021 = vld [vmem:[%s333 + $0xe88] sm:$0xff]
        %v1022 = vld [vmem:[%s333 + $0xe90] sm:$0xff]
        %v1023 = vld [vmem:[%s333 + $0xe98] sm:$0xff]
        %v1024 = vld [vmem:[%s333 + $0xea0] sm:$0xff]
        %v1025 = vld [vmem:[%s333 + $0xea8] sm:$0xff]
        %v1026 = vld [vmem:[%s333 + $0xeb0] sm:$0xff]
        %v1027 = vld [vmem:[%s333 + $0xeb8] sm:$0xff]
        %v1028 = vld [vmem:[%s333 + $0xec0] sm:$0xff]
        %v1029 = vld [vmem:[%s333 + $0xec8] sm:$0xff]
        %v1030 = vld [vmem:[%s333 + $0xed0] sm:$0xff]
        %v1031 = vld [vmem:[%s333 + $0xed8] sm:$0xff]
        %v1032 = vld [vmem:[%s333 + $0xee0] sm:$0xff]
        %v1033 = vld [vmem:[%s333 + $0xee8] sm:$0xff]
        %v1034 = vld [vmem:[%s333 + $0xef0] sm:$0xff]
        %v1035 = vld [vmem:[%s333 + $0xef8] sm:$0xff]
        %v1036 = vld [vmem:[%s333 + $0xf00] sm:$0xff]
        %v1037 = vld [vmem:[%s333 + $0xf08] sm:$0xff]
        %v1038 = vld [vmem:[%s333 + $0xf10] sm:$0xff]
        %v1039 = vld [vmem:[%s333 + $0xf18] sm:$0xff]
        %v1040 = vld [vmem:[%s333 + $0xf20] sm:$0xff]
        %v1041 = vld [vmem:[%s333 + $0xf28] sm:$0xff]
        %v1042 = vld [vmem:[%s333 + $0xf30] sm:$0xff]
        %v1043 = vld [vmem:[%s333 + $0xf38] sm:$0xff]
        %v1044 = vld [vmem:[%s333 + $0xf40] sm:$0xff]
        %v1045 = vld [vmem:[%s333 + $0xf48] sm:$0xff]
        %v1046 = vld [vmem:[%s333 + $0xf50] sm:$0xff]
        %v1047 = vld [vmem:[%s333 + $0xf58] sm:$0xff]
        %v1048 = vld [vmem:[%s333 + $0xf60] sm:$0xff]
        %v1049 = vld [vmem:[%s333 + $0xf68] sm:$0xff]
        %v1050 = vld [vmem:[%s333 + $0xf70] sm:$0xff]
        %v1051 = vld [vmem:[%s333 + $0xf78] sm:$0xff]
        %v1052 = vld [vmem:[%s333 + $0xf80] sm:$0xff]
        %v1053 = vld [vmem:[%s333 + $0xf88] sm:$0xff]
        %v1054 = vld [vmem:[%s333 + $0xf90] sm:$0xff]
        %v1055 = vld [vmem:[%s333 + $0xf98] sm:$0xff]
        %v1056 = vld [vmem:[%s333 + $0xfa0] sm:$0xff]
        %v1057 = vld [vmem:[%s333 + $0xfa8] sm:$0xff]
        %v1058 = vld [vmem:[%s333 + $0xfb0] sm:$0xff]
        %v1059 = vld [vmem:[%s333 + $0xfb8] sm:$0xff]
        %v1060 = vld [vmem:[%s333 + $0xfc0] sm:$0xff]
        %v1061 = vld [vmem:[%s333 + $0xfc8] sm:$0xff]
        %v1062 = vld [vmem:[%s333 + $0xfd0] sm:$0xff]
        %v1063 = vld [vmem:[%s333 + $0xfd8] sm:$0xff]
        %v1064 = vld [vmem:[%s333 + $0xfe0] sm:$0xff]
        %v1065 = vld [vmem:[%s333 + $0xfe8] sm:$0xff]
        %v1066 = vld [vmem:[%s333 + $0xff0] sm:$0xff]
        %v1067 = vld [vmem:[%s333 + $0xff8] sm:$0xff]
        %v1068 = vld [vmem:[%s333 + $0x1000] sm:$0xff]
        %v1069 = vld [vmem:[%s333 + $0x1008] sm:$0xff]
        %v1070 = vld [vmem:[%s333 + $0x1010] sm:$0xff]
        %v1071 = vld [vmem:[%s333 + $0x1018] sm:$0xff]
        %v1072 = vld [vmem:[%s333 + $0x1020] sm:$0xff]
        %v1073 = vld [vmem:[%s333 + $0x1028] sm:$0xff]
        %v1074 = vld [vmem:[%s333 + $0x1030] sm:$0xff]
        %v1075 = vld [vmem:[%s333 + $0x1038] sm:$0xff]
        %v1076 = vld [vmem:[%s333 + $0x1040] sm:$0xff]
        %v1077 = vld [vmem:[%s333 + $0x1048] sm:$0xff]
        %v1078 = vld [vmem:[%s333 + $0x1050] sm:$0xff]
        %v1079 = vld [vmem:[%s333 + $0x1058] sm:$0xff]
        %v1080 = vld [vmem:[%s333 + $0x1060] sm:$0xff]
        %v1081 = vld [vmem:[%s333 + $0x1068] sm:$0xff]
        %v1082 = vld [vmem:[%s333 + $0x1070] sm:$0xff]
        %v1083 = vld [vmem:[%s333 + $0x1078] sm:$0xff]
        %v1084 = vld [vmem:[%s333 + $0x1080] sm:$0xff]
        %v1085 = vld [vmem:[%s333 + $0x1088] sm:$0xff]
        %v1086 = vld [vmem:[%s333 + $0x1090] sm:$0xff]
        %v1087 = vld [vmem:[%s333 + $0x1098] sm:$0xff]
        %v1088 = vld [vmem:[%s333 + $0x10a0] sm:$0xff]
        %v1089 = vld [vmem:[%s333 + $0x10a8] sm:$0xff]
        %v1090 = vld [vmem:[%s333 + $0x10b0] sm:$0xff]
        %v1091 = vld [vmem:[%s333 + $0x10b8] sm:$0xff]
        %v1092 = vld [vmem:[%s333 + $0x10c0] sm:$0xff]
        %v1093 = vld [vmem:[%s333 + $0x10c8] sm:$0xff]
        %v1094 = vld [vmem:[%s333 + $0x10d0] sm:$0xff]
        %v1095 = vld [vmem:[%s333 + $0x10d8] sm:$0xff]
        %v1096 = vld [vmem:[%s333 + $0x10e0] sm:$0xff]
        %v1097 = vld [vmem:[%s333 + $0x10e8] sm:$0xff]
        %v1098 = vld [vmem:[%s333 + $0x10f0] sm:$0xff]
        %v1099 = vld [vmem:[%s333 + $0x10f8] sm:$0xff]
        %v1100 = vld [vmem:[%s333 + $0x1100] sm:$0xff]
        %v1101 = vld [vmem:[%s333 + $0x1108] sm:$0xff]
        %v1102 = vld [vmem:[%s333 + $0x1110] sm:$0xff]
        %v1103 = vld [vmem:[%s333 + $0x1118] sm:$0xff]
        %v1104 = vld [vmem:[%s333 + $0x1120] sm:$0xff]
        %v1105 = vld [vmem:[%s333 + $0x1128] sm:$0xff]
        %v1106 = vld [vmem:[%s333 + $0x1130] sm:$0xff]
        %v1107 = vld [vmem:[%s333 + $0x1138] sm:$0xff]
        %v1108 = vld [vmem:[%s333 + $0x1140] sm:$0xff]
        %v1109 = vld [vmem:[%s333 + $0x1148] sm:$0xff]
        %v1110 = vld [vmem:[%s333 + $0x1150] sm:$0xff]
        %v1111 = vld [vmem:[%s333 + $0x1158] sm:$0xff]
        %v1112 = vld [vmem:[%s333 + $0x1160] sm:$0xff]
        %v1113 = vld [vmem:[%s333 + $0x1168] sm:$0xff]
        %v1114 = vld [vmem:[%s333 + $0x1170] sm:$0xff]
        %v1115 = vld [vmem:[%s333 + $0x1178] sm:$0xff]
        %v1116 = vld [vmem:[%s333 + $0x1180] sm:$0xff]
        %v1117 = vld [vmem:[%s333 + $0x1188] sm:$0xff]
        %v1118 = vld [vmem:[%s333 + $0x1190] sm:$0xff]
        %v1119 = vld [vmem:[%s333 + $0x1198] sm:$0xff]
        %v1120 = vld [vmem:[%s333 + $0x11a0] sm:$0xff]
        %v1121 = vld [vmem:[%s333 + $0x11a8] sm:$0xff]
        %v1122 = vld [vmem:[%s333 + $0x11b0] sm:$0xff]
        %v1123 = vld [vmem:[%s333 + $0x11b8] sm:$0xff]
        %v1124 = vld [vmem:[%s333 + $0x11c0] sm:$0xff]
        %v1125 = vld [vmem:[%s333 + $0x11c8] sm:$0xff]
        %v1126 = vld [vmem:[%s333 + $0x11d0] sm:$0xff]
        %v1127 = vld [vmem:[%s333 + $0x11d8] sm:$0xff]
        %v1128 = vld [vmem:[%s333 + $0x11e0] sm:$0xff]
        %v1129 = vld [vmem:[%s333 + $0x11e8] sm:$0xff]
        %v1130 = vld [vmem:[%s333 + $0x11f0] sm:$0xff]
        %v1131 = vld [vmem:[%s333 + $0x11f8] sm:$0xff]
        %v1132 = vld [vmem:[%s333 + $0x1200] sm:$0xff]
        %v1133 = vld [vmem:[%s333 + $0x1208] sm:$0xff]
        %v1134 = vld [vmem:[%s333 + $0x1210] sm:$0xff]
        %v1135 = vld [vmem:[%s333 + $0x1218] sm:$0xff]
        %v1136 = vld [vmem:[%s333 + $0x1220] sm:$0xff]
        %v1137 = vld [vmem:[%s333 + $0x1228] sm:$0xff]
        %v1138 = vld [vmem:[%s333 + $0x1230] sm:$0xff]
        %v1139 = vld [vmem:[%s333 + $0x1238] sm:$0xff]
        %v1140 = vld [vmem:[%s333 + $0x1240] sm:$0xff]
        %v1141 = vld [vmem:[%s333 + $0x1248] sm:$0xff]
        %v1142 = vld [vmem:[%s333 + $0x1250] sm:$0xff]
        %v1143 = vld [vmem:[%s333 + $0x1258] sm:$0xff]
        %v1144 = vld [vmem:[%s333 + $0x1260] sm:$0xff]
        %v1145 = vld [vmem:[%s333 + $0x1268] sm:$0xff]
        %v1146 = vld [vmem:[%s333 + $0x1270] sm:$0xff]
        %v1147 = vld [vmem:[%s333 + $0x1278] sm:$0xff]
        %v1148 = vld [vmem:[%s333 + $0x1280] sm:$0xff]
        %v1149 = vld [vmem:[%s333 + $0x1288] sm:$0xff]
        %v1150 = vld [vmem:[%s333 + $0x1290] sm:$0xff]
        %v1151 = vld [vmem:[%s333 + $0x1298] sm:$0xff]
        %v1152 = vld [vmem:[%s333 + $0x12a0] sm:$0xff]
        %v1153 = vld [vmem:[%s333 + $0x12a8] sm:$0xff]
        %v1154 = vld [vmem:[%s333 + $0x12b0] sm:$0xff]
        %v1155 = vld [vmem:[%s333 + $0x12b8] sm:$0xff]
        %v1156 = vld [vmem:[%s333 + $0x12c0] sm:$0xff]
        %v1157 = vld [vmem:[%s333 + $0x12c8] sm:$0xff]
        %v1158 = vld [vmem:[%s333 + $0x12d0] sm:$0xff]
        %v1159 = vld [vmem:[%s333 + $0x12d8] sm:$0xff]
        %v1160 = vld [vmem:[%s333 + $0x12e0] sm:$0xff]
        %v1161 = vld [vmem:[%s333 + $0x12e8] sm:$0xff]
        %v1162 = vld [vmem:[%s333 + $0x12f0] sm:$0xff]
        %v1163 = vld [vmem:[%s333 + $0x12f8] sm:$0xff]
        %v1164 = vld [vmem:[%s333 + $0x1300] sm:$0xff]
        %v1165 = vld [vmem:[%s333 + $0x1308] sm:$0xff]
        %v1166 = vld [vmem:[%s333 + $0x1310] sm:$0xff]
        %v1167 = vld [vmem:[%s333 + $0x1318] sm:$0xff]
        %v1168 = vld [vmem:[%s333 + $0x1320] sm:$0xff]
        %v1169 = vld [vmem:[%s333 + $0x1328] sm:$0xff]
        %v1170 = vld [vmem:[%s333 + $0x1330] sm:$0xff]
        %v1171 = vld [vmem:[%s333 + $0x1338] sm:$0xff]
        %v1172 = vld [vmem:[%s333 + $0x1340] sm:$0xff]
        %v1173 = vld [vmem:[%s333 + $0x1348] sm:$0xff]
        %v1174 = vld [vmem:[%s333 + $0x1350] sm:$0xff]
        %v1175 = vld [vmem:[%s333 + $0x1358] sm:$0xff]
        %v1176 = vld [vmem:[%s333 + $0x1360] sm:$0xff]
        %v1177 = vld [vmem:[%s333 + $0x1368] sm:$0xff]
        %v1178 = vld [vmem:[%s333 + $0x1370] sm:$0xff]
        %v1179 = vld [vmem:[%s333 + $0x1378] sm:$0xff]
        %v1180 = vld [vmem:[%s333 + $0x1380] sm:$0xff]
        %v1181 = vld [vmem:[%s333 + $0x1388] sm:$0xff]
        %v1182 = vld [vmem:[%s333 + $0x1390] sm:$0xff]
        %v1183 = vld [vmem:[%s333 + $0x1398] sm:$0xff]
        %v1184 = vld [vmem:[%s333 + $0x13a0] sm:$0xff]
        %v1185 = vld [vmem:[%s333 + $0x13a8] sm:$0xff]
        %v1186 = vld [vmem:[%s333 + $0x13b0] sm:$0xff]
        %v1187 = vld [vmem:[%s333 + $0x13b8] sm:$0xff]
        %v1188 = vld [vmem:[%s333 + $0x13c0] sm:$0xff]
        %v1189 = vld [vmem:[%s333 + $0x13c8] sm:$0xff]
        %v1190 = vld [vmem:[%s333 + $0x13d0] sm:$0xff]
        %v1191 = vld [vmem:[%s333 + $0x13d8] sm:$0xff]
        %v1192 = vld [vmem:[%s333 + $0x13e0] sm:$0xff]
        %v1193 = vld [vmem:[%s333 + $0x13e8] sm:$0xff]
        %v1194 = vld [vmem:[%s333 + $0x13f0] sm:$0xff]
        %v1195 = vld [vmem:[%s333 + $0x13f8] sm:$0xff]
        %v1196 = vld [vmem:[%s333 + $0x1400] sm:$0xff]
        %v1197 = vld [vmem:[%s333 + $0x1408] sm:$0xff]
        %v1198 = vld [vmem:[%s333 + $0x1410] sm:$0xff]
        %v1199 = vld [vmem:[%s333 + $0x1418] sm:$0xff]
        %v1200 = vld [vmem:[%s333 + $0x1420] sm:$0xff]
        %v1201 = vld [vmem:[%s333 + $0x1428] sm:$0xff]
        %v1202 = vld [vmem:[%s333 + $0x1430] sm:$0xff]
        %v1203 = vld [vmem:[%s333 + $0x1438] sm:$0xff]
        %v1204 = vld [vmem:[%s333 + $0x1440] sm:$0xff]
        %v1205 = vld [vmem:[%s333 + $0x1448] sm:$0xff]
        %v1206 = vld [vmem:[%s333 + $0x1450] sm:$0xff]
        %v1207 = vld [vmem:[%s333 + $0x1458] sm:$0xff]
        %v1208 = vld [vmem:[%s333 + $0x1460] sm:$0xff]
        %v1209 = vld [vmem:[%s333 + $0x1468] sm:$0xff]
        %v1210 = vld [vmem:[%s333 + $0x1470] sm:$0xff]
        %v1211 = vld [vmem:[%s333 + $0x1478] sm:$0xff]
        %v1212 = vld [vmem:[%s333 + $0x1480] sm:$0xff]
        %v1213 = vld [vmem:[%s333 + $0x1488] sm:$0xff]
        %v1214 = vld [vmem:[%s333 + $0x1490] sm:$0xff]
        %v1215 = vld [vmem:[%s333 + $0x1498] sm:$0xff]
        %v1216 = vld [vmem:[%s333 + $0x14a0] sm:$0xff]
        %v1217 = vld [vmem:[%s333 + $0x14a8] sm:$0xff]
        %v1218 = vld [vmem:[%s333 + $0x14b0] sm:$0xff]
        %v1219 = vld [vmem:[%s333 + $0x14b8] sm:$0xff]
        %v1220 = vld [vmem:[%s333 + $0x14c0] sm:$0xff]
        %v1221 = vld [vmem:[%s333 + $0x14c8] sm:$0xff]
        %v1222 = vld [vmem:[%s333 + $0x14d0] sm:$0xff]
        %v1223 = vld [vmem:[%s333 + $0x14d8] sm:$0xff]
        %v1224 = vld [vmem:[%s333 + $0x14e0] sm:$0xff]
        %v1225 = vld [vmem:[%s333 + $0x14e8] sm:$0xff]
        %v1226 = vld [vmem:[%s333 + $0x14f0] sm:$0xff]
        %v1227 = vld [vmem:[%s333 + $0x14f8] sm:$0xff]
        %v1228 = vld [vmem:[%s333 + $0x1500] sm:$0xff]
        %v1229 = vld [vmem:[%s333 + $0x1508] sm:$0xff]
        %v1230 = vld [vmem:[%s333 + $0x1510] sm:$0xff]
        %v1231 = vld [vmem:[%s333 + $0x1518] sm:$0xff]
        %v1232 = vld [vmem:[%s333 + $0x1520] sm:$0xff]
        %v1233 = vld [vmem:[%s333 + $0x1528] sm:$0xff]
        %v1234 = vld [vmem:[%s333 + $0x1530] sm:$0xff]
        %v1235 = vld [vmem:[%s333 + $0x1538] sm:$0xff]
        %v1236 = vld [vmem:[%s333 + $0x1540] sm:$0xff]
        %v1237 = vld [vmem:[%s333 + $0x1548] sm:$0xff]
        %v1238 = vld [vmem:[%s333 + $0x1550] sm:$0xff]
        %v1239 = vld [vmem:[%s333 + $0x1558] sm:$0xff]
        %v1240 = vld [vmem:[%s333 + $0x1560] sm:$0xff]
        %v1241 = vld [vmem:[%s333 + $0x1568] sm:$0xff]
        %v1242 = vld [vmem:[%s333 + $0x1570] sm:$0xff]
        %v1243 = vld [vmem:[%s333 + $0x1578] sm:$0xff]
        %v1244 = vld [vmem:[%s333 + $0x1580] sm:$0xff]
        %v1245 = vld [vmem:[%s333 + $0x1588] sm:$0xff]
        %v1246 = vld [vmem:[%s333 + $0x1590] sm:$0xff]
        %v1247 = vld [vmem:[%s333 + $0x1598] sm:$0xff]
        %v1248 = vld [vmem:[%s333 + $0x15a0] sm:$0xff]
        %v1249 = vld [vmem:[%s333 + $0x15a8] sm:$0xff]
        %v1250 = vld [vmem:[%s333 + $0x15b0] sm:$0xff]
        %v1251 = vld [vmem:[%s333 + $0x15b8] sm:$0xff]
        %v1252 = vld [vmem:[%s333 + $0x15c0] sm:$0xff]
        %v1253 = vld [vmem:[%s333 + $0x15c8] sm:$0xff]
        %v1254 = vld [vmem:[%s333 + $0x15d0] sm:$0xff]
        %v1255 = vld [vmem:[%s333 + $0x15d8] sm:$0xff]
        %v1256 = vld [vmem:[%s333 + $0x15e0] sm:$0xff]
        %v1257 = vld [vmem:[%s333 + $0x15e8] sm:$0xff]
        %v1258 = vld [vmem:[%s333 + $0x15f0] sm:$0xff]
        %v1259 = vld [vmem:[%s333 + $0x15f8] sm:$0xff]
        %v1260 = vld [vmem:[%s333 + $0x1600] sm:$0xff]
        %v1261 = vld [vmem:[%s333 + $0x1608] sm:$0xff]
        %v1262 = vld [vmem:[%s333 + $0x1610] sm:$0xff]
        %v1263 = vld [vmem:[%s333 + $0x1618] sm:$0xff]
        %v1264 = vld [vmem:[%s333 + $0x1620] sm:$0xff]
        %v1265 = vld [vmem:[%s333 + $0x1628] sm:$0xff]
        %v1266 = vld [vmem:[%s333 + $0x1630] sm:$0xff]
        %v1267 = vld [vmem:[%s333 + $0x1638] sm:$0xff]
        %v1268 = vld [vmem:[%s333 + $0x1640] sm:$0xff]
        %v1269 = vld [vmem:[%s333 + $0x1648] sm:$0xff]
        %v1270 = vld [vmem:[%s333 + $0x1650] sm:$0xff]
        %v1271 = vld [vmem:[%s333 + $0x1658] sm:$0xff]
        %v1272 = vld [vmem:[%s333 + $0x1660] sm:$0xff]
        %v1273 = vld [vmem:[%s333 + $0x1668] sm:$0xff]
        %v1274 = vld [vmem:[%s333 + $0x1670] sm:$0xff]
        %v1275 = vld [vmem:[%s333 + $0x1678] sm:$0xff]
        %v1276 = vld [vmem:[%s333 + $0x1680] sm:$0xff]
        %v1277 = vld [vmem:[%s333 + $0x1688] sm:$0xff]
        %v1278 = vld [vmem:[%s333 + $0x1690] sm:$0xff]
        %v1279 = vld [vmem:[%s333 + $0x1698] sm:$0xff]
        %v1280 = vld [vmem:[%s333 + $0x16a0] sm:$0xff]
        %v1281 = vld [vmem:[%s333 + $0x16a8] sm:$0xff]
        %v1282 = vld [vmem:[%s333 + $0x16b0] sm:$0xff]
        %v1283 = vld [vmem:[%s333 + $0x16b8] sm:$0xff]
        %v1284 = vld [vmem:[%s333 + $0x16c0] sm:$0xff]
        %v1285 = vld [vmem:[%s333 + $0x16c8] sm:$0xff]
        %v1286 = vld [vmem:[%s333 + $0x16d0] sm:$0xff]
        %v1287 = vld [vmem:[%s333 + $0x16d8] sm:$0xff]
        %v1288 = vld [vmem:[%s333 + $0x16e0] sm:$0xff]
        %v1289 = vld [vmem:[%s333 + $0x16e8] sm:$0xff]
        %v1290 = vld [vmem:[%s333 + $0x16f0] sm:$0xff]
        %v1291 = vld [vmem:[%s333 + $0x16f8] sm:$0xff]
        %v1292 = vld [vmem:[%s333 + $0x1700] sm:$0xff]
        %v1293 = vld [vmem:[%s333 + $0x1708] sm:$0xff]
        %v1294 = vld [vmem:[%s333 + $0x1710] sm:$0xff]
        %v1295 = vld [vmem:[%s333 + $0x1718] sm:$0xff]
        %v1296 = vld [vmem:[%s333 + $0x1720] sm:$0xff]
        %v1297 = vld [vmem:[%s333 + $0x1728] sm:$0xff]
        %v1298 = vld [vmem:[%s333 + $0x1730] sm:$0xff]
        %v1299 = vld [vmem:[%s333 + $0x1738] sm:$0xff]
        %v1300 = vld [vmem:[%s333 + $0x1740] sm:$0xff]
        %v1301 = vld [vmem:[%s333 + $0x1748] sm:$0xff]
        %v1302 = vld [vmem:[%s333 + $0x1750] sm:$0xff]
        %v1303 = vld [vmem:[%s333 + $0x1758] sm:$0xff]
        %v1304 = vld [vmem:[%s333 + $0x1760] sm:$0xff]
        %v1305 = vld [vmem:[%s333 + $0x1768] sm:$0xff]
        %v1306 = vld [vmem:[%s333 + $0x1770] sm:$0xff]
        %v1307 = vld [vmem:[%s333 + $0x1778] sm:$0xff]
        %v1308 = vld [vmem:[%s333 + $0x1780] sm:$0xff]
        %v1309 = vld [vmem:[%s333 + $0x1788] sm:$0xff]
        %v1310 = vld [vmem:[%s333 + $0x1790] sm:$0xff]
        %v1311 = vld [vmem:[%s333 + $0x1798] sm:$0xff]
        %v1312 = vld [vmem:[%s333 + $0x17a0] sm:$0xff]
        %v1313 = vld [vmem:[%s333 + $0x17a8] sm:$0xff]
        %v1314 = vld [vmem:[%s333 + $0x17b0] sm:$0xff]
        %v1315 = vld [vmem:[%s333 + $0x17b8] sm:$0xff]
        %v1316 = vld [vmem:[%s333 + $0x17c0] sm:$0xff]
        %v1317 = vld [vmem:[%s333 + $0x17c8] sm:$0xff]
        %v1318 = vld [vmem:[%s333 + $0x17d0] sm:$0xff]
        %v1319 = vld [vmem:[%s333 + $0x17d8] sm:$0xff]
        %v1320 = vld [vmem:[%s333 + $0x17e0] sm:$0xff]
        %v1321 = vld [vmem:[%s333 + $0x17e8] sm:$0xff]
        %v1322 = vld [vmem:[%s333 + $0x17f0] sm:$0xff]
        %v1323 = vld [vmem:[%s333 + $0x17f8] sm:$0xff]
        %v1324 = vld [vmem:[%s333 + $0x1800] sm:$0xff]
        %v1325 = vld [vmem:[%s333 + $0x1808] sm:$0xff]
        %v1326 = vld [vmem:[%s333 + $0x1810] sm:$0xff]
        %v1327 = vld [vmem:[%s333 + $0x1818] sm:$0xff]
        %v1328 = vld [vmem:[%s333 + $0x1820] sm:$0xff]
        %v1329 = vld [vmem:[%s333 + $0x1828] sm:$0xff]
        %v1330 = vld [vmem:[%s333 + $0x1830] sm:$0xff]
        %v1331 = vld [vmem:[%s333 + $0x1838] sm:$0xff]
        %v1332 = vld [vmem:[%s333 + $0x1840] sm:$0xff]
        %v1333 = vld [vmem:[%s333 + $0x1848] sm:$0xff]
        %v1334 = vld [vmem:[%s333 + $0x1850] sm:$0xff]
        %v1335 = vld [vmem:[%s333 + $0x1858] sm:$0xff]
        %v1336 = vld [vmem:[%s333 + $0x1860] sm:$0xff]
        %v1337 = vld [vmem:[%s333 + $0x1868] sm:$0xff]
        %v1338 = vld [vmem:[%s333 + $0x1870] sm:$0xff]
        %v1339 = vld [vmem:[%s333 + $0x1878] sm:$0xff]
        %v1340 = vld [vmem:[%s333 + $0x1880] sm:$0xff]
        %v1341 = vld [vmem:[%s333 + $0x1888] sm:$0xff]
        %v1342 = vld [vmem:[%s333 + $0x1890] sm:$0xff]
        %v1343 = vld [vmem:[%s333 + $0x1898] sm:$0xff]
        %v1344 = vld [vmem:[%s333 + $0x18a0] sm:$0xff]
        %v1345 = vld [vmem:[%s333 + $0x18a8] sm:$0xff]
        %v1346 = vld [vmem:[%s333 + $0x18b0] sm:$0xff]
        %v1347 = vld [vmem:[%s333 + $0x18b8] sm:$0xff]
        %v1348 = vld [vmem:[%s333 + $0x18c0] sm:$0xff]
        %v1349 = vld [vmem:[%s333 + $0x18c8] sm:$0xff]
        %v1350 = vld [vmem:[%s333 + $0x18d0] sm:$0xff]
        %v1351 = vld [vmem:[%s333 + $0x18d8] sm:$0xff]
        %v1352 = vld [vmem:[%s333 + $0x18e0] sm:$0xff]
        %v1353 = vld [vmem:[%s333 + $0x18e8] sm:$0xff]
        %v1354 = vld [vmem:[%s333 + $0x18f0] sm:$0xff]
        %v1355 = vld [vmem:[%s333 + $0x18f8] sm:$0xff]
        %v1356 = vld [vmem:[%s333 + $0x1900] sm:$0xff]
        %v1357 = vld [vmem:[%s333 + $0x1908] sm:$0xff]
        %v1358 = vld [vmem:[%s333 + $0x1910] sm:$0xff]
        %v1359 = vld [vmem:[%s333 + $0x1918] sm:$0xff]
        %v1360 = vld [vmem:[%s333 + $0x1920] sm:$0xff]
        %v1361 = vld [vmem:[%s333 + $0x1928] sm:$0xff]
        %v1362 = vld [vmem:[%s333 + $0x1930] sm:$0xff]
        %v1363 = vld [vmem:[%s333 + $0x1938] sm:$0xff]
        %v1364 = vld [vmem:[%s333 + $0x1940] sm:$0xff]
        %v1365 = vld [vmem:[%s333 + $0x1948] sm:$0xff]
        %v1366 = vld [vmem:[%s333 + $0x1950] sm:$0xff]
        %v1367 = vld [vmem:[%s333 + $0x1958] sm:$0xff]
        %v1368 = vld [vmem:[%s333 + $0x1960] sm:$0xff]
        %v1369 = vld [vmem:[%s333 + $0x1968] sm:$0xff]
        %v1370 = vld [vmem:[%s333 + $0x1970] sm:$0xff]
        %v1371 = vld [vmem:[%s333 + $0x1978] sm:$0xff]
        %v1372 = vld [vmem:[%s333 + $0x1980] sm:$0xff]
        %v1373 = vld [vmem:[%s333 + $0x1988] sm:$0xff]
        %v1374 = vld [vmem:[%s333 + $0x1990] sm:$0xff]
        %v1375 = vld [vmem:[%s333 + $0x1998] sm:$0xff]
        %v1376 = vld [vmem:[%s333 + $0x19a0] sm:$0xff]
        %v1377 = vld [vmem:[%s333 + $0x19a8] sm:$0xff]
        %v1378 = vld [vmem:[%s333 + $0x19b0] sm:$0xff]
        %v1379 = vld [vmem:[%s333 + $0x19b8] sm:$0xff]
        %v1380 = vld [vmem:[%s333 + $0x19c0] sm:$0xff]
        %v1381 = vld [vmem:[%s333 + $0x19c8] sm:$0xff]
        %v1382 = vld [vmem:[%s333 + $0x19d0] sm:$0xff]
        %v1383 = vld [vmem:[%s333 + $0x19d8] sm:$0xff]
        %v1384 = vld [vmem:[%s333 + $0x19e0] sm:$0xff]
        %v1385 = vld [vmem:[%s333 + $0x19e8] sm:$0xff]
        %v1386 = vld [vmem:[%s333 + $0x19f0] sm:$0xff]
        %v1387 = vld [vmem:[%s333 + $0x19f8] sm:$0xff]
        %v1388 = vld [vmem:[%s333 + $0x1a00] sm:$0xff]
        %v1389 = vld [vmem:[%s333 + $0x1a08] sm:$0xff]
        %v1390 = vld [vmem:[%s333 + $0x1a10] sm:$0xff]
        %v1391 = vld [vmem:[%s333 + $0x1a18] sm:$0xff]
        %v1392 = vld [vmem:[%s333 + $0x1a20] sm:$0xff]
        %v1393 = vld [vmem:[%s333 + $0x1a28] sm:$0xff]
        %v1394 = vld [vmem:[%s333 + $0x1a30] sm:$0xff]
        %v1395 = vld [vmem:[%s333 + $0x1a38] sm:$0xff]
        %v1396 = vld [vmem:[%s333 + $0x1a40] sm:$0xff]
        %v1397 = vld [vmem:[%s333 + $0x1a48] sm:$0xff]
        %v1398 = vld [vmem:[%s333 + $0x1a50] sm:$0xff]
        %v1399 = vld [vmem:[%s333 + $0x1a58] sm:$0xff]
        %v1400 = vld [vmem:[%s333 + $0x1a60] sm:$0xff]
        %v1401 = vld [vmem:[%s333 + $0x1a68] sm:$0xff]
        %v1402 = vld [vmem:[%s333 + $0x1a70] sm:$0xff]
        %v1403 = vld [vmem:[%s333 + $0x1a78] sm:$0xff]
        %v1404 = vld [vmem:[%s333 + $0x1a80] sm:$0xff]
        %v1405 = vld [vmem:[%s333 + $0x1a88] sm:$0xff]
        %v1406 = vld [vmem:[%s333 + $0x1a90] sm:$0xff]
        %v1407 = vld [vmem:[%s333 + $0x1a98] sm:$0xff]
        %v1408 = vld [vmem:[%s333 + $0x1aa0] sm:$0xff]
        %v1409 = vld [vmem:[%s333 + $0x1aa8] sm:$0xff]
        %v1410 = vld [vmem:[%s333 + $0x1ab0] sm:$0xff]
        %v1411 = vld [vmem:[%s333 + $0x1ab8] sm:$0xff]
        %v1412 = vld [vmem:[%s333 + $0x1ac0] sm:$0xff]
        %v1413 = vld [vmem:[%s333 + $0x1ac8] sm:$0xff]
        %v1414 = vld [vmem:[%s333 + $0x1ad0] sm:$0xff]
        %v1415 = vld [vmem:[%s333 + $0x1ad8] sm:$0xff]
        %v1416 = vld [vmem:[%s333 + $0x1ae0] sm:$0xff]
        %v1417 = vld [vmem:[%s333 + $0x1ae8] sm:$0xff]
        %v1418 = vld [vmem:[%s333 + $0x1af0] sm:$0xff]
        %v1419 = vld [vmem:[%s333 + $0x1af8] sm:$0xff]
        %v1420 = vld [vmem:[%s333 + $0x1b00] sm:$0xff]
        %v1421 = vld [vmem:[%s333 + $0x1b08] sm:$0xff]
        %v1422 = vld [vmem:[%s333 + $0x1b10] sm:$0xff]
        %v1423 = vld [vmem:[%s333 + $0x1b18] sm:$0xff]
        %v1424 = vld [vmem:[%s333 + $0x1b20] sm:$0xff]
        %v1425 = vld [vmem:[%s333 + $0x1b28] sm:$0xff]
        %v1426 = vld [vmem:[%s333 + $0x1b30] sm:$0xff]
        %v1427 = vld [vmem:[%s333 + $0x1b38] sm:$0xff]
        %v1428 = vld [vmem:[%s333 + $0x1b40] sm:$0xff]
        %v1429 = vld [vmem:[%s333 + $0x1b48] sm:$0xff]
        %v1430 = vld [vmem:[%s333 + $0x1b50] sm:$0xff]
        %v1431 = vld [vmem:[%s333 + $0x1b58] sm:$0xff]
        %v1432 = vld [vmem:[%s333 + $0x1b60] sm:$0xff]
        %v1433 = vld [vmem:[%s333 + $0x1b68] sm:$0xff]
        %v1434 = vld [vmem:[%s333 + $0x1b70] sm:$0xff]
        %v1435 = vld [vmem:[%s333 + $0x1b78] sm:$0xff]
        %v1436 = vld [vmem:[%s333 + $0x1b80] sm:$0xff]
        %v1437 = vld [vmem:[%s333 + $0x1b88] sm:$0xff]
        %v1438 = vld [vmem:[%s333 + $0x1b90] sm:$0xff]
        %v1439 = vld [vmem:[%s333 + $0x1b98] sm:$0xff]
        %v1440 = vld [vmem:[%s333 + $0x1ba0] sm:$0xff]
        %v1441 = vld [vmem:[%s333 + $0x1ba8] sm:$0xff]
        %v1442 = vld [vmem:[%s333 + $0x1bb0] sm:$0xff]
        %v1443 = vld [vmem:[%s333 + $0x1bb8] sm:$0xff]
        %v1444 = vld [vmem:[%s333 + $0x1bc0] sm:$0xff]
        %v1445 = vld [vmem:[%s333 + $0x1bc8] sm:$0xff]
        %v1446 = vld [vmem:[%s333 + $0x1bd0] sm:$0xff]
        %v1447 = vld [vmem:[%s333 + $0x1bd8] sm:$0xff]
        %v1448 = vld [vmem:[%s333 + $0x1be0] sm:$0xff]
        %v1449 = vld [vmem:[%s333 + $0x1be8] sm:$0xff]
        %v1450 = vld [vmem:[%s333 + $0x1bf0] sm:$0xff]
        %v1451 = vld [vmem:[%s333 + $0x1bf8] sm:$0xff]
        %v1452 = vld [vmem:[%s333 + $0x1c00] sm:$0xff]
        %v1453 = vld [vmem:[%s333 + $0x1c08] sm:$0xff]
        %v1454 = vld [vmem:[%s333 + $0x1c10] sm:$0xff]
        %v1455 = vld [vmem:[%s333 + $0x1c18] sm:$0xff]
        %v1456 = vld [vmem:[%s333 + $0x1c20] sm:$0xff]
        %v1457 = vld [vmem:[%s333 + $0x1c28] sm:$0xff]
        %v1458 = vld [vmem:[%s333 + $0x1c30] sm:$0xff]
        %v1459 = vld [vmem:[%s333 + $0x1c38] sm:$0xff]
        %v1460 = vld [vmem:[%s333 + $0x1c40] sm:$0xff]
        %v1461 = vld [vmem:[%s333 + $0x1c48] sm:$0xff]
        %v1462 = vld [vmem:[%s333 + $0x1c50] sm:$0xff]
        %v1463 = vld [vmem:[%s333 + $0x1c58] sm:$0xff]
        %v1464 = vld [vmem:[%s333 + $0x1c60] sm:$0xff]
        %v1465 = vld [vmem:[%s333 + $0x1c68] sm:$0xff]
        %v1466 = vld [vmem:[%s333 + $0x1c70] sm:$0xff]
        %v1467 = vld [vmem:[%s333 + $0x1c78] sm:$0xff]
        %v1468 = vld [vmem:[%s333 + $0x1c80] sm:$0xff]
        %v1469 = vld [vmem:[%s333 + $0x1c88] sm:$0xff]
        %v1470 = vld [vmem:[%s333 + $0x1c90] sm:$0xff]
        %v1471 = vld [vmem:[%s333 + $0x1c98] sm:$0xff]
        %v1472 = vld [vmem:[%s333 + $0x1ca0] sm:$0xff]
        %v1473 = vld [vmem:[%s333 + $0x1ca8] sm:$0xff]
        %v1474 = vld [vmem:[%s333 + $0x1cb0] sm:$0xff]
        %v1475 = vld [vmem:[%s333 + $0x1cb8] sm:$0xff]
        %v1476 = vld [vmem:[%s333 + $0x1cc0] sm:$0xff]
        %v1477 = vld [vmem:[%s333 + $0x1cc8] sm:$0xff]
        %v1478 = vld [vmem:[%s333 + $0x1cd0] sm:$0xff]
        %v1479 = vld [vmem:[%s333 + $0x1cd8] sm:$0xff]
        %v1480 = vld [vmem:[%s333 + $0x1ce0] sm:$0xff]
        %v1481 = vld [vmem:[%s333 + $0x1ce8] sm:$0xff]
        %v1482 = vld [vmem:[%s333 + $0x1cf0] sm:$0xff]
        %v1483 = vld [vmem:[%s333 + $0x1cf8] sm:$0xff]
        %v1484 = vld [vmem:[%s333 + $0x1d00] sm:$0xff]
        %v1485 = vld [vmem:[%s333 + $0x1d08] sm:$0xff]
        %v1486 = vld [vmem:[%s333 + $0x1d10] sm:$0xff]
        %v1487 = vld [vmem:[%s333 + $0x1d18] sm:$0xff]
        %v1488 = vld [vmem:[%s333 + $0x1d20] sm:$0xff]
        %v1489 = vld [vmem:[%s333 + $0x1d28] sm:$0xff]
        %v1490 = vld [vmem:[%s333 + $0x1d30] sm:$0xff]
        %v1491 = vld [vmem:[%s333 + $0x1d38] sm:$0xff]
        %v1492 = vld [vmem:[%s333 + $0x1d40] sm:$0xff]
        %v1493 = vld [vmem:[%s333 + $0x1d48] sm:$0xff]
        %v1494 = vld [vmem:[%s333 + $0x1d50] sm:$0xff]
        %v1495 = vld [vmem:[%s333 + $0x1d58] sm:$0xff]
        %v1496 = vld [vmem:[%s333 + $0x1d60] sm:$0xff]
        %v1497 = vld [vmem:[%s333 + $0x1d68] sm:$0xff]
        %v1498 = vld [vmem:[%s333 + $0x1d70] sm:$0xff]
        %v1499 = vld [vmem:[%s333 + $0x1d78] sm:$0xff]
        %v1500 = vld [vmem:[%s333 + $0x1d80] sm:$0xff]
        %v1501 = vld [vmem:[%s333 + $0x1d88] sm:$0xff]
        %v1502 = vld [vmem:[%s333 + $0x1d90] sm:$0xff]
        %v1503 = vld [vmem:[%s333 + $0x1d98] sm:$0xff]
        %v1504 = vld [vmem:[%s333 + $0x1da0] sm:$0xff]
        %v1505 = vld [vmem:[%s333 + $0x1da8] sm:$0xff]
        %v1506 = vld [vmem:[%s333 + $0x1db0] sm:$0xff]
        %v1507 = vld [vmem:[%s333 + $0x1db8] sm:$0xff]
        %v1508 = vld [vmem:[%s333 + $0x1dc0] sm:$0xff]
        %v1509 = vld [vmem:[%s333 + $0x1dc8] sm:$0xff]
        %v1510 = vld [vmem:[%s333 + $0x1dd0] sm:$0xff]
        %v1511 = vld [vmem:[%s333 + $0x1dd8] sm:$0xff]
        %v1512 = vld [vmem:[%s333 + $0x1de0] sm:$0xff]
        %v1513 = vld [vmem:[%s333 + $0x1de8] sm:$0xff]
        %v1514 = vld [vmem:[%s333 + $0x1df0] sm:$0xff]
        %v1515 = vld [vmem:[%s333 + $0x1df8] sm:$0xff]
        %v1516 = vld [vmem:[%s333 + $0x1e00] sm:$0xff]
        %v1517 = vld [vmem:[%s333 + $0x1e08] sm:$0xff]
        %v1518 = vld [vmem:[%s333 + $0x1e10] sm:$0xff]
        %v1519 = vld [vmem:[%s333 + $0x1e18] sm:$0xff]
        %v1520 = vld [vmem:[%s333 + $0x1e20] sm:$0xff]
        %v1521 = vld [vmem:[%s333 + $0x1e28] sm:$0xff]
        %v1522 = vld [vmem:[%s333 + $0x1e30] sm:$0xff]
        %v1523 = vld [vmem:[%s333 + $0x1e38] sm:$0xff]
        %v1524 = vld [vmem:[%s333 + $0x1e40] sm:$0xff]
        %v1525 = vld [vmem:[%s333 + $0x1e48] sm:$0xff]
        %v1526 = vld [vmem:[%s333 + $0x1e50] sm:$0xff]
        %v1527 = vld [vmem:[%s333 + $0x1e58] sm:$0xff]
        %v1528 = vld [vmem:[%s333 + $0x1e60] sm:$0xff]
        %v1529 = vld [vmem:[%s333 + $0x1e68] sm:$0xff]
        %v1530 = vld [vmem:[%s333 + $0x1e70] sm:$0xff]
        %v1531 = vld [vmem:[%s333 + $0x1e78] sm:$0xff]
        %v1532 = vld [vmem:[%s333 + $0x1e80] sm:$0xff]
        %v1533 = vld [vmem:[%s333 + $0x1e88] sm:$0xff]
        %v1534 = vld [vmem:[%s333 + $0x1e90] sm:$0xff]
        %v1535 = vld [vmem:[%s333 + $0x1e98] sm:$0xff]
        %v1536 = vld [vmem:[%s333 + $0x1ea0] sm:$0xff]
        %v1537 = vld [vmem:[%s333 + $0x1ea8] sm:$0xff]
        %v1538 = vld [vmem:[%s333 + $0x1eb0] sm:$0xff]
        %v1539 = vld [vmem:[%s333 + $0x1eb8] sm:$0xff]
        %v1540 = vld [vmem:[%s333 + $0x1ec0] sm:$0xff]
        %v1541 = vld [vmem:[%s333 + $0x1ec8] sm:$0xff]
        %v1542 = vld [vmem:[%s333 + $0x1ed0] sm:$0xff]
        %v1543 = vld [vmem:[%s333 + $0x1ed8] sm:$0xff]
        %v1544 = vld [vmem:[%s333 + $0x1ee0] sm:$0xff]
        %v1545 = vld [vmem:[%s333 + $0x1ee8] sm:$0xff]
        %v1546 = vld [vmem:[%s333 + $0x1ef0] sm:$0xff]
        %v1547 = vld [vmem:[%s333 + $0x1ef8] sm:$0xff]
        %v1548 = vld [vmem:[%s333 + $0x1f00] sm:$0xff]
        %v1549 = vld [vmem:[%s333 + $0x1f08] sm:$0xff]
        %v1550 = vld [vmem:[%s333 + $0x1f10] sm:$0xff]
        %v1551 = vld [vmem:[%s333 + $0x1f18] sm:$0xff]
        %v1552 = vld [vmem:[%s333 + $0x1f20] sm:$0xff]
        %v1553 = vld [vmem:[%s333 + $0x1f28] sm:$0xff]
        %v1554 = vld [vmem:[%s333 + $0x1f30] sm:$0xff]
        %v1555 = vld [vmem:[%s333 + $0x1f38] sm:$0xff]
        %v1556 = vld [vmem:[%s333 + $0x1f40] sm:$0xff]
        %v1557 = vld [vmem:[%s333 + $0x1f48] sm:$0xff]
        %v1558 = vld [vmem:[%s333 + $0x1f50] sm:$0xff]
        %v1559 = vld [vmem:[%s333 + $0x1f58] sm:$0xff]
        %v1560 = vld [vmem:[%s333 + $0x1f60] sm:$0xff]
        %v1561 = vld [vmem:[%s333 + $0x1f68] sm:$0xff]
        %v1562 = vld [vmem:[%s333 + $0x1f70] sm:$0xff]
        %v1563 = vld [vmem:[%s333 + $0x1f78] sm:$0xff]
        %v1564 = vld [vmem:[%s333 + $0x1f80] sm:$0xff]
        %v1565 = vld [vmem:[%s333 + $0x1f88] sm:$0xff]
        %v1566 = vld [vmem:[%s333 + $0x1f90] sm:$0xff]
        %v1567 = vld [vmem:[%s333 + $0x1f98] sm:$0xff]
        %v1568 = vld [vmem:[%s333 + $0x1fa0] sm:$0xff]
        %v1569 = vld [vmem:[%s333 + $0x1fa8] sm:$0xff]
        %v1570 = vld [vmem:[%s333 + $0x1fb0] sm:$0xff]
        %v1571 = vld [vmem:[%s333 + $0x1fb8] sm:$0xff]
        %v1572 = vld [vmem:[%s333 + $0x1fc0] sm:$0xff]
        %v1573 = vld [vmem:[%s333 + $0x1fc8] sm:$0xff]
        %v1574 = vld [vmem:[%s333 + $0x1fd0] sm:$0xff]
        %v1575 = vld [vmem:[%s333 + $0x1fd8] sm:$0xff]
        %v1576 = vld [vmem:[%s333 + $0x1fe0] sm:$0xff]
        %v1577 = vld [vmem:[%s333 + $0x1fe8] sm:$0xff]
        %v1578 = vld [vmem:[%s333 + $0x1ff0] sm:$0xff]
        %v1579 = vld [vmem:[%s333 + $0x1ff8] sm:$0xff]
        %v1580 = vpack.c.bf16 %v552, %v552
        %v1581 = vpack.c.bf16 %v553, %v553
        %v1582 = vpack.c.bf16 %v554, %v554
        %v1583 = vpack.c.bf16 %v555, %v555
        %v2608 = vunpack.c.l.b16 %v556
        %v2609 = vunpack.c.h.b16 %v556
        %v2610 = vunpack.c.l.b16 %v557
        %v2611 = vunpack.c.h.b16 %v557
        %v2612 = vunpack.c.l.b16 %v558
        %v2613 = vunpack.c.h.b16 %v558
        %v2614 = vunpack.c.l.b16 %v559
        %v2615 = vunpack.c.h.b16 %v559
        %v2616 = vunpack.c.l.b16 %v560
        %v2617 = vunpack.c.h.b16 %v560
        %v2618 = vunpack.c.l.b16 %v561
        %v2619 = vunpack.c.h.b16 %v561
        %v2620 = vunpack.c.l.b16 %v562
        %v2621 = vunpack.c.h.b16 %v562
        %v2622 = vunpack.c.l.b16 %v563
        %v2623 = vunpack.c.h.b16 %v563
        %v2624 = vunpack.c.l.b16 %v564
        %v2625 = vunpack.c.h.b16 %v564
        %v2626 = vunpack.c.l.b16 %v565
        %v2627 = vunpack.c.h.b16 %v565
        %v2628 = vunpack.c.l.b16 %v566
        %v2629 = vunpack.c.h.b16 %v566
        %v2630 = vunpack.c.l.b16 %v567
        %v2631 = vunpack.c.h.b16 %v567
        %v2632 = vunpack.c.l.b16 %v568
        %v2633 = vunpack.c.h.b16 %v568
        %v2634 = vunpack.c.l.b16 %v569
        %v2635 = vunpack.c.h.b16 %v569
        %v2636 = vunpack.c.l.b16 %v570
        %v2637 = vunpack.c.h.b16 %v570
        %v2638 = vunpack.c.l.b16 %v571
        %v2639 = vunpack.c.h.b16 %v571
        %v2640 = vunpack.c.l.b16 %v572
        %v2641 = vunpack.c.h.b16 %v572
        %v2642 = vunpack.c.l.b16 %v573
        %v2643 = vunpack.c.h.b16 %v573
        %v2644 = vunpack.c.l.b16 %v574
        %v2645 = vunpack.c.h.b16 %v574
        %v2646 = vunpack.c.l.b16 %v575
        %v2647 = vunpack.c.h.b16 %v575
        %v2648 = vunpack.c.l.b16 %v576
        %v2649 = vunpack.c.h.b16 %v576
        %v2650 = vunpack.c.l.b16 %v577
        %v2651 = vunpack.c.h.b16 %v577
        %v2652 = vunpack.c.l.b16 %v578
        %v2653 = vunpack.c.h.b16 %v578
        %v2654 = vunpack.c.l.b16 %v579
        %v2655 = vunpack.c.h.b16 %v579
        %v2656 = vunpack.c.l.b16 %v580
        %v2657 = vunpack.c.h.b16 %v580
        %v2658 = vunpack.c.l.b16 %v581
        %v2659 = vunpack.c.h.b16 %v581
        %v2660 = vunpack.c.l.b16 %v582
        %v2661 = vunpack.c.h.b16 %v582
        %v2662 = vunpack.c.l.b16 %v583
        %v2663 = vunpack.c.h.b16 %v583
        %v2664 = vunpack.c.l.b16 %v584
        %v2665 = vunpack.c.h.b16 %v584
        %v2666 = vunpack.c.l.b16 %v585
        %v2667 = vunpack.c.h.b16 %v585
        %v2668 = vunpack.c.l.b16 %v586
        %v2669 = vunpack.c.h.b16 %v586
        %v2670 = vunpack.c.l.b16 %v587
        %v2671 = vunpack.c.h.b16 %v587
        %v2672 = vunpack.c.l.b16 %v588
        %v2673 = vunpack.c.h.b16 %v588
        %v2674 = vunpack.c.l.b16 %v589
        %v2675 = vunpack.c.h.b16 %v589
        %v2676 = vunpack.c.l.b16 %v590
        %v2677 = vunpack.c.h.b16 %v590
        %v2678 = vunpack.c.l.b16 %v591
        %v2679 = vunpack.c.h.b16 %v591
        %v2680 = vunpack.c.l.b16 %v592
        %v2681 = vunpack.c.h.b16 %v592
        %v2682 = vunpack.c.l.b16 %v593
        %v2683 = vunpack.c.h.b16 %v593
        %v2684 = vunpack.c.l.b16 %v594
        %v2685 = vunpack.c.h.b16 %v594
        %v2686 = vunpack.c.l.b16 %v595
        %v2687 = vunpack.c.h.b16 %v595
        %v2688 = vunpack.c.l.b16 %v596
        %v2689 = vunpack.c.h.b16 %v596
        %v2690 = vunpack.c.l.b16 %v597
        %v2691 = vunpack.c.h.b16 %v597
        %v2692 = vunpack.c.l.b16 %v598
        %v2693 = vunpack.c.h.b16 %v598
        %v2694 = vunpack.c.l.b16 %v599
        %v2695 = vunpack.c.h.b16 %v599
        %v2696 = vunpack.c.l.b16 %v600
        %v2697 = vunpack.c.h.b16 %v600
        %v2698 = vunpack.c.l.b16 %v601
        %v2699 = vunpack.c.h.b16 %v601
        %v2700 = vunpack.c.l.b16 %v602
        %v2701 = vunpack.c.h.b16 %v602
        %v2702 = vunpack.c.l.b16 %v603
        %v2703 = vunpack.c.h.b16 %v603
        %v2704 = vunpack.c.l.b16 %v604
        %v2705 = vunpack.c.h.b16 %v604
        %v2706 = vunpack.c.l.b16 %v605
        %v2707 = vunpack.c.h.b16 %v605
        %v2708 = vunpack.c.l.b16 %v606
        %v2709 = vunpack.c.h.b16 %v606
        %v2710 = vunpack.c.l.b16 %v607
        %v2711 = vunpack.c.h.b16 %v607
        %v2712 = vunpack.c.l.b16 %v608
        %v2713 = vunpack.c.h.b16 %v608
        %v2714 = vunpack.c.l.b16 %v609
        %v2715 = vunpack.c.h.b16 %v609
        %v2716 = vunpack.c.l.b16 %v610
        %v2717 = vunpack.c.h.b16 %v610
        %v2718 = vunpack.c.l.b16 %v611
        %v2719 = vunpack.c.h.b16 %v611
        %v2720 = vunpack.c.l.b16 %v612
        %v2721 = vunpack.c.h.b16 %v612
        %v2722 = vunpack.c.l.b16 %v613
        %v2723 = vunpack.c.h.b16 %v613
        %v2724 = vunpack.c.l.b16 %v614
        %v2725 = vunpack.c.h.b16 %v614
        %v2726 = vunpack.c.l.b16 %v615
        %v2727 = vunpack.c.h.b16 %v615
        %v2728 = vunpack.c.l.b16 %v616
        %v2729 = vunpack.c.h.b16 %v616
        %v2730 = vunpack.c.l.b16 %v617
        %v2731 = vunpack.c.h.b16 %v617
        %v2732 = vunpack.c.l.b16 %v618
        %v2733 = vunpack.c.h.b16 %v618
        %v2734 = vunpack.c.l.b16 %v619
        %v2735 = vunpack.c.h.b16 %v619
        %v2736 = vunpack.c.l.b16 %v620
        %v2737 = vunpack.c.h.b16 %v620
        %v2738 = vunpack.c.l.b16 %v621
        %v2739 = vunpack.c.h.b16 %v621
        %v2740 = vunpack.c.l.b16 %v622
        %v2741 = vunpack.c.h.b16 %v622
        %v2742 = vunpack.c.l.b16 %v623
        %v2743 = vunpack.c.h.b16 %v623
        %v2744 = vunpack.c.l.b16 %v624
        %v2745 = vunpack.c.h.b16 %v624
        %v2746 = vunpack.c.l.b16 %v625
        %v2747 = vunpack.c.h.b16 %v625
        %v2748 = vunpack.c.l.b16 %v626
        %v2749 = vunpack.c.h.b16 %v626
        %v2750 = vunpack.c.l.b16 %v627
        %v2751 = vunpack.c.h.b16 %v627
        %v2752 = vunpack.c.l.b16 %v628
        %v2753 = vunpack.c.h.b16 %v628
        %v2754 = vunpack.c.l.b16 %v629
        %v2755 = vunpack.c.h.b16 %v629
        %v2756 = vunpack.c.l.b16 %v630
        %v2757 = vunpack.c.h.b16 %v630
        %v2758 = vunpack.c.l.b16 %v631
        %v2759 = vunpack.c.h.b16 %v631
        %v2760 = vunpack.c.l.b16 %v632
        %v2761 = vunpack.c.h.b16 %v632
        %v2762 = vunpack.c.l.b16 %v633
        %v2763 = vunpack.c.h.b16 %v633
        %v2764 = vunpack.c.l.b16 %v634
        %v2765 = vunpack.c.h.b16 %v634
        %v2766 = vunpack.c.l.b16 %v635
        %v2767 = vunpack.c.h.b16 %v635
        %v2768 = vunpack.c.l.b16 %v636
        %v2769 = vunpack.c.h.b16 %v636
        %v2770 = vunpack.c.l.b16 %v637
        %v2771 = vunpack.c.h.b16 %v637
        %v2772 = vunpack.c.l.b16 %v638
        %v2773 = vunpack.c.h.b16 %v638
        %v2774 = vunpack.c.l.b16 %v639
        %v2775 = vunpack.c.h.b16 %v639
        %v2776 = vunpack.c.l.b16 %v640
        %v2777 = vunpack.c.h.b16 %v640
        %v2778 = vunpack.c.l.b16 %v641
        %v2779 = vunpack.c.h.b16 %v641
        %v2780 = vunpack.c.l.b16 %v642
        %v2781 = vunpack.c.h.b16 %v642
        %v2782 = vunpack.c.l.b16 %v643
        %v2783 = vunpack.c.h.b16 %v643
        %v2784 = vunpack.c.l.b16 %v644
        %v2785 = vunpack.c.h.b16 %v644
        %v2786 = vunpack.c.l.b16 %v645
        %v2787 = vunpack.c.h.b16 %v645
        %v2788 = vunpack.c.l.b16 %v646
        %v2789 = vunpack.c.h.b16 %v646
        %v2790 = vunpack.c.l.b16 %v647
        %v2791 = vunpack.c.h.b16 %v647
        %v2792 = vunpack.c.l.b16 %v648
        %v2793 = vunpack.c.h.b16 %v648
        %v2794 = vunpack.c.l.b16 %v649
        %v2795 = vunpack.c.h.b16 %v649
        %v2796 = vunpack.c.l.b16 %v650
        %v2797 = vunpack.c.h.b16 %v650
        %v2798 = vunpack.c.l.b16 %v651
        %v2799 = vunpack.c.h.b16 %v651
        %v2800 = vunpack.c.l.b16 %v652
        %v2801 = vunpack.c.h.b16 %v652
        %v2802 = vunpack.c.l.b16 %v653
        %v2803 = vunpack.c.h.b16 %v653
        %v2804 = vunpack.c.l.b16 %v654
        %v2805 = vunpack.c.h.b16 %v654
        %v2806 = vunpack.c.l.b16 %v655
        %v2807 = vunpack.c.h.b16 %v655
        %v2808 = vunpack.c.l.b16 %v656
        %v2809 = vunpack.c.h.b16 %v656
        %v2810 = vunpack.c.l.b16 %v657
        %v2811 = vunpack.c.h.b16 %v657
        %v2812 = vunpack.c.l.b16 %v658
        %v2813 = vunpack.c.h.b16 %v658
        %v2814 = vunpack.c.l.b16 %v659
        %v2815 = vunpack.c.h.b16 %v659
        %v2816 = vunpack.c.l.b16 %v660
        %v2817 = vunpack.c.h.b16 %v660
        %v2818 = vunpack.c.l.b16 %v661
        %v2819 = vunpack.c.h.b16 %v661
        %v2820 = vunpack.c.l.b16 %v662
        %v2821 = vunpack.c.h.b16 %v662
        %v2822 = vunpack.c.l.b16 %v663
        %v2823 = vunpack.c.h.b16 %v663
        %v2824 = vunpack.c.l.b16 %v664
        %v2825 = vunpack.c.h.b16 %v664
        %v2826 = vunpack.c.l.b16 %v665
        %v2827 = vunpack.c.h.b16 %v665
        %v2828 = vunpack.c.l.b16 %v666
        %v2829 = vunpack.c.h.b16 %v666
        %v2830 = vunpack.c.l.b16 %v667
        %v2831 = vunpack.c.h.b16 %v667
        %v2832 = vunpack.c.l.b16 %v668
        %v2833 = vunpack.c.h.b16 %v668
        %v2834 = vunpack.c.l.b16 %v669
        %v2835 = vunpack.c.h.b16 %v669
        %v2836 = vunpack.c.l.b16 %v670
        %v2837 = vunpack.c.h.b16 %v670
        %v2838 = vunpack.c.l.b16 %v671
        %v2839 = vunpack.c.h.b16 %v671
        %v2840 = vunpack.c.l.b16 %v672
        %v2841 = vunpack.c.h.b16 %v672
        %v2842 = vunpack.c.l.b16 %v673
        %v2843 = vunpack.c.h.b16 %v673
        %v2844 = vunpack.c.l.b16 %v674
        %v2845 = vunpack.c.h.b16 %v674
        %v2846 = vunpack.c.l.b16 %v675
        %v2847 = vunpack.c.h.b16 %v675
        %v2848 = vunpack.c.l.b16 %v676
        %v2849 = vunpack.c.h.b16 %v676
        %v2850 = vunpack.c.l.b16 %v677
        %v2851 = vunpack.c.h.b16 %v677
        %v2852 = vunpack.c.l.b16 %v678
        %v2853 = vunpack.c.h.b16 %v678
        %v2854 = vunpack.c.l.b16 %v679
        %v2855 = vunpack.c.h.b16 %v679
        %v2856 = vunpack.c.l.b16 %v680
        %v2857 = vunpack.c.h.b16 %v680
        %v2858 = vunpack.c.l.b16 %v681
        %v2859 = vunpack.c.h.b16 %v681
        %v2860 = vunpack.c.l.b16 %v682
        %v2861 = vunpack.c.h.b16 %v682
        %v2862 = vunpack.c.l.b16 %v683
        %v2863 = vunpack.c.h.b16 %v683
        %v2864 = vunpack.c.l.b16 %v684
        %v2865 = vunpack.c.h.b16 %v684
        %v2866 = vunpack.c.l.b16 %v685
        %v2867 = vunpack.c.h.b16 %v685
        %v2868 = vunpack.c.l.b16 %v686
        %v2869 = vunpack.c.h.b16 %v686
        %v2870 = vunpack.c.l.b16 %v687
        %v2871 = vunpack.c.h.b16 %v687
        %v2872 = vunpack.c.l.b16 %v688
        %v2873 = vunpack.c.h.b16 %v688
        %v2874 = vunpack.c.l.b16 %v689
        %v2875 = vunpack.c.h.b16 %v689
        %v2876 = vunpack.c.l.b16 %v690
        %v2877 = vunpack.c.h.b16 %v690
        %v2878 = vunpack.c.l.b16 %v691
        %v2879 = vunpack.c.h.b16 %v691
        %v2880 = vunpack.c.l.b16 %v692
        %v2881 = vunpack.c.h.b16 %v692
        %v2882 = vunpack.c.l.b16 %v693
        %v2883 = vunpack.c.h.b16 %v693
        %v2884 = vunpack.c.l.b16 %v694
        %v2885 = vunpack.c.h.b16 %v694
        %v2886 = vunpack.c.l.b16 %v695
        %v2887 = vunpack.c.h.b16 %v695
        %v2888 = vunpack.c.l.b16 %v696
        %v2889 = vunpack.c.h.b16 %v696
        %v2890 = vunpack.c.l.b16 %v697
        %v2891 = vunpack.c.h.b16 %v697
        %v2892 = vunpack.c.l.b16 %v698
        %v2893 = vunpack.c.h.b16 %v698
        %v2894 = vunpack.c.l.b16 %v699
        %v2895 = vunpack.c.h.b16 %v699
        %v2896 = vunpack.c.l.b16 %v700
        %v2897 = vunpack.c.h.b16 %v700
        %v2898 = vunpack.c.l.b16 %v701
        %v2899 = vunpack.c.h.b16 %v701
        %v2900 = vunpack.c.l.b16 %v702
        %v2901 = vunpack.c.h.b16 %v702
        %v2902 = vunpack.c.l.b16 %v703
        %v2903 = vunpack.c.h.b16 %v703
        %v2904 = vunpack.c.l.b16 %v704
        %v2905 = vunpack.c.h.b16 %v704
        %v2906 = vunpack.c.l.b16 %v705
        %v2907 = vunpack.c.h.b16 %v705
        %v2908 = vunpack.c.l.b16 %v706
        %v2909 = vunpack.c.h.b16 %v706
        %v2910 = vunpack.c.l.b16 %v707
        %v2911 = vunpack.c.h.b16 %v707
        %v2912 = vunpack.c.l.b16 %v708
        %v2913 = vunpack.c.h.b16 %v708
        %v2914 = vunpack.c.l.b16 %v709
        %v2915 = vunpack.c.h.b16 %v709
        %v2916 = vunpack.c.l.b16 %v710
        %v2917 = vunpack.c.h.b16 %v710
        %v2918 = vunpack.c.l.b16 %v711
        %v2919 = vunpack.c.h.b16 %v711
        %v2920 = vunpack.c.l.b16 %v712
        %v2921 = vunpack.c.h.b16 %v712
        %v2922 = vunpack.c.l.b16 %v713
        %v2923 = vunpack.c.h.b16 %v713
        %v2924 = vunpack.c.l.b16 %v714
        %v2925 = vunpack.c.h.b16 %v714
        %v2926 = vunpack.c.l.b16 %v715
        %v2927 = vunpack.c.h.b16 %v715
        %v2928 = vunpack.c.l.b16 %v716
        %v2929 = vunpack.c.h.b16 %v716
        %v2930 = vunpack.c.l.b16 %v717
        %v2931 = vunpack.c.h.b16 %v717
        %v2932 = vunpack.c.l.b16 %v718
        %v2933 = vunpack.c.h.b16 %v718
        %v2934 = vunpack.c.l.b16 %v719
        %v2935 = vunpack.c.h.b16 %v719
        %v2936 = vunpack.c.l.b16 %v720
        %v2937 = vunpack.c.h.b16 %v720
        %v2938 = vunpack.c.l.b16 %v721
        %v2939 = vunpack.c.h.b16 %v721
        %v2940 = vunpack.c.l.b16 %v722
        %v2941 = vunpack.c.h.b16 %v722
        %v2942 = vunpack.c.l.b16 %v723
        %v2943 = vunpack.c.h.b16 %v723
        %v2944 = vunpack.c.l.b16 %v724
        %v2945 = vunpack.c.h.b16 %v724
        %v2946 = vunpack.c.l.b16 %v725
        %v2947 = vunpack.c.h.b16 %v725
        %v2948 = vunpack.c.l.b16 %v726
        %v2949 = vunpack.c.h.b16 %v726
        %v2950 = vunpack.c.l.b16 %v727
        %v2951 = vunpack.c.h.b16 %v727
        %v2952 = vunpack.c.l.b16 %v728
        %v2953 = vunpack.c.h.b16 %v728
        %v2954 = vunpack.c.l.b16 %v729
        %v2955 = vunpack.c.h.b16 %v729
        %v2956 = vunpack.c.l.b16 %v730
        %v2957 = vunpack.c.h.b16 %v730
        %v2958 = vunpack.c.l.b16 %v731
        %v2959 = vunpack.c.h.b16 %v731
        %v2960 = vunpack.c.l.b16 %v732
        %v2961 = vunpack.c.h.b16 %v732
        %v2962 = vunpack.c.l.b16 %v733
        %v2963 = vunpack.c.h.b16 %v733
        %v2964 = vunpack.c.l.b16 %v734
        %v2965 = vunpack.c.h.b16 %v734
        %v2966 = vunpack.c.l.b16 %v735
        %v2967 = vunpack.c.h.b16 %v735
        %v2968 = vunpack.c.l.b16 %v736
        %v2969 = vunpack.c.h.b16 %v736
        %v2970 = vunpack.c.l.b16 %v737
        %v2971 = vunpack.c.h.b16 %v737
        %v2972 = vunpack.c.l.b16 %v738
        %v2973 = vunpack.c.h.b16 %v738
        %v2974 = vunpack.c.l.b16 %v739
        %v2975 = vunpack.c.h.b16 %v739
        %v2976 = vunpack.c.l.b16 %v740
        %v2977 = vunpack.c.h.b16 %v740
        %v2978 = vunpack.c.l.b16 %v741
        %v2979 = vunpack.c.h.b16 %v741
        %v2980 = vunpack.c.l.b16 %v742
        %v2981 = vunpack.c.h.b16 %v742
        %v2982 = vunpack.c.l.b16 %v743
        %v2983 = vunpack.c.h.b16 %v743
        %v2984 = vunpack.c.l.b16 %v744
        %v2985 = vunpack.c.h.b16 %v744
        %v2986 = vunpack.c.l.b16 %v745
        %v2987 = vunpack.c.h.b16 %v745
        %v2988 = vunpack.c.l.b16 %v746
        %v2989 = vunpack.c.h.b16 %v746
        %v2990 = vunpack.c.l.b16 %v747
        %v2991 = vunpack.c.h.b16 %v747
        %v2992 = vunpack.c.l.b16 %v748
        %v2993 = vunpack.c.h.b16 %v748
        %v2994 = vunpack.c.l.b16 %v749
        %v2995 = vunpack.c.h.b16 %v749
        %v2996 = vunpack.c.l.b16 %v750
        %v2997 = vunpack.c.h.b16 %v750
        %v2998 = vunpack.c.l.b16 %v751
        %v2999 = vunpack.c.h.b16 %v751
        %v3000 = vunpack.c.l.b16 %v752
        %v3001 = vunpack.c.h.b16 %v752
        %v3002 = vunpack.c.l.b16 %v753
        %v3003 = vunpack.c.h.b16 %v753
        %v3004 = vunpack.c.l.b16 %v754
        %v3005 = vunpack.c.h.b16 %v754
        %v3006 = vunpack.c.l.b16 %v755
        %v3007 = vunpack.c.h.b16 %v755
        %v3008 = vunpack.c.l.b16 %v756
        %v3009 = vunpack.c.h.b16 %v756
        %v3010 = vunpack.c.l.b16 %v757
        %v3011 = vunpack.c.h.b16 %v757
        %v3012 = vunpack.c.l.b16 %v758
        %v3013 = vunpack.c.h.b16 %v758
        %v3014 = vunpack.c.l.b16 %v759
        %v3015 = vunpack.c.h.b16 %v759
        %v3016 = vunpack.c.l.b16 %v760
        %v3017 = vunpack.c.h.b16 %v760
        %v3018 = vunpack.c.l.b16 %v761
        %v3019 = vunpack.c.h.b16 %v761
        %v3020 = vunpack.c.l.b16 %v762
        %v3021 = vunpack.c.h.b16 %v762
        %v3022 = vunpack.c.l.b16 %v763
        %v3023 = vunpack.c.h.b16 %v763
        %v3024 = vunpack.c.l.b16 %v764
        %v3025 = vunpack.c.h.b16 %v764
        %v3026 = vunpack.c.l.b16 %v765
        %v3027 = vunpack.c.h.b16 %v765
        %v3028 = vunpack.c.l.b16 %v766
        %v3029 = vunpack.c.h.b16 %v766
        %v3030 = vunpack.c.l.b16 %v767
        %v3031 = vunpack.c.h.b16 %v767
        %v3032 = vunpack.c.l.b16 %v768
        %v3033 = vunpack.c.h.b16 %v768
        %v3034 = vunpack.c.l.b16 %v769
        %v3035 = vunpack.c.h.b16 %v769
        %v3036 = vunpack.c.l.b16 %v770
        %v3037 = vunpack.c.h.b16 %v770
        %v3038 = vunpack.c.l.b16 %v771
        %v3039 = vunpack.c.h.b16 %v771
        %v3040 = vunpack.c.l.b16 %v772
        %v3041 = vunpack.c.h.b16 %v772
        %v3042 = vunpack.c.l.b16 %v773
        %v3043 = vunpack.c.h.b16 %v773
        %v3044 = vunpack.c.l.b16 %v774
        %v3045 = vunpack.c.h.b16 %v774
        %v3046 = vunpack.c.l.b16 %v775
        %v3047 = vunpack.c.h.b16 %v775
        %v3048 = vunpack.c.l.b16 %v776
        %v3049 = vunpack.c.h.b16 %v776
        %v3050 = vunpack.c.l.b16 %v777
        %v3051 = vunpack.c.h.b16 %v777
        %v3052 = vunpack.c.l.b16 %v778
        %v3053 = vunpack.c.h.b16 %v778
        %v3054 = vunpack.c.l.b16 %v779
        %v3055 = vunpack.c.h.b16 %v779
        %v3056 = vunpack.c.l.b16 %v780
        %v3057 = vunpack.c.h.b16 %v780
        %v3058 = vunpack.c.l.b16 %v781
        %v3059 = vunpack.c.h.b16 %v781
        %v3060 = vunpack.c.l.b16 %v782
        %v3061 = vunpack.c.h.b16 %v782
        %v3062 = vunpack.c.l.b16 %v783
        %v3063 = vunpack.c.h.b16 %v783
        %v3064 = vunpack.c.l.b16 %v784
        %v3065 = vunpack.c.h.b16 %v784
        %v3066 = vunpack.c.l.b16 %v785
        %v3067 = vunpack.c.h.b16 %v785
        %v3068 = vunpack.c.l.b16 %v786
        %v3069 = vunpack.c.h.b16 %v786
        %v3070 = vunpack.c.l.b16 %v787
        %v3071 = vunpack.c.h.b16 %v787
        %v3072 = vunpack.c.l.b16 %v788
        %v3073 = vunpack.c.h.b16 %v788
        %v3074 = vunpack.c.l.b16 %v789
        %v3075 = vunpack.c.h.b16 %v789
        %v3076 = vunpack.c.l.b16 %v790
        %v3077 = vunpack.c.h.b16 %v790
        %v3078 = vunpack.c.l.b16 %v791
        %v3079 = vunpack.c.h.b16 %v791
        %v3080 = vunpack.c.l.b16 %v792
        %v3081 = vunpack.c.h.b16 %v792
        %v3082 = vunpack.c.l.b16 %v793
        %v3083 = vunpack.c.h.b16 %v793
        %v3084 = vunpack.c.l.b16 %v794
        %v3085 = vunpack.c.h.b16 %v794
        %v3086 = vunpack.c.l.b16 %v795
        %v3087 = vunpack.c.h.b16 %v795
        %v3088 = vunpack.c.l.b16 %v796
        %v3089 = vunpack.c.h.b16 %v796
        %v3090 = vunpack.c.l.b16 %v797
        %v3091 = vunpack.c.h.b16 %v797
        %v3092 = vunpack.c.l.b16 %v798
        %v3093 = vunpack.c.h.b16 %v798
        %v3094 = vunpack.c.l.b16 %v799
        %v3095 = vunpack.c.h.b16 %v799
        %v3096 = vunpack.c.l.b16 %v800
        %v3097 = vunpack.c.h.b16 %v800
        %v3098 = vunpack.c.l.b16 %v801
        %v3099 = vunpack.c.h.b16 %v801
        %v3100 = vunpack.c.l.b16 %v802
        %v3101 = vunpack.c.h.b16 %v802
        %v3102 = vunpack.c.l.b16 %v803
        %v3103 = vunpack.c.h.b16 %v803
        %v3104 = vunpack.c.l.b16 %v804
        %v3105 = vunpack.c.h.b16 %v804
        %v3106 = vunpack.c.l.b16 %v805
        %v3107 = vunpack.c.h.b16 %v805
        %v3108 = vunpack.c.l.b16 %v806
        %v3109 = vunpack.c.h.b16 %v806
        %v3110 = vunpack.c.l.b16 %v807
        %v3111 = vunpack.c.h.b16 %v807
        %v3112 = vunpack.c.l.b16 %v808
        %v3113 = vunpack.c.h.b16 %v808
        %v3114 = vunpack.c.l.b16 %v809
        %v3115 = vunpack.c.h.b16 %v809
        %v3116 = vunpack.c.l.b16 %v810
        %v3117 = vunpack.c.h.b16 %v810
        %v3118 = vunpack.c.l.b16 %v811
        %v3119 = vunpack.c.h.b16 %v811
        %v3120 = vunpack.c.l.b16 %v812
        %v3121 = vunpack.c.h.b16 %v812
        %v3122 = vunpack.c.l.b16 %v813
        %v3123 = vunpack.c.h.b16 %v813
        %v3124 = vunpack.c.l.b16 %v814
        %v3125 = vunpack.c.h.b16 %v814
        %v3126 = vunpack.c.l.b16 %v815
        %v3127 = vunpack.c.h.b16 %v815
        %v3128 = vunpack.c.l.b16 %v816
        %v3129 = vunpack.c.h.b16 %v816
        %v3130 = vunpack.c.l.b16 %v817
        %v3131 = vunpack.c.h.b16 %v817
        %v3132 = vunpack.c.l.b16 %v818
        %v3133 = vunpack.c.h.b16 %v818
        %v3134 = vunpack.c.l.b16 %v819
        %v3135 = vunpack.c.h.b16 %v819
        %v3136 = vunpack.c.l.b16 %v820
        %v3137 = vunpack.c.h.b16 %v820
        %v3138 = vunpack.c.l.b16 %v821
        %v3139 = vunpack.c.h.b16 %v821
        %v3140 = vunpack.c.l.b16 %v822
        %v3141 = vunpack.c.h.b16 %v822
        %v3142 = vunpack.c.l.b16 %v823
        %v3143 = vunpack.c.h.b16 %v823
        %v3144 = vunpack.c.l.b16 %v824
        %v3145 = vunpack.c.h.b16 %v824
        %v3146 = vunpack.c.l.b16 %v825
        %v3147 = vunpack.c.h.b16 %v825
        %v3148 = vunpack.c.l.b16 %v826
        %v3149 = vunpack.c.h.b16 %v826
        %v3150 = vunpack.c.l.b16 %v827
        %v3151 = vunpack.c.h.b16 %v827
        %v3152 = vunpack.c.l.b16 %v828
        %v3153 = vunpack.c.h.b16 %v828
        %v3154 = vunpack.c.l.b16 %v829
        %v3155 = vunpack.c.h.b16 %v829
        %v3156 = vunpack.c.l.b16 %v830
        %v3157 = vunpack.c.h.b16 %v830
        %v3158 = vunpack.c.l.b16 %v831
        %v3159 = vunpack.c.h.b16 %v831
        %v3160 = vunpack.c.l.b16 %v832
        %v3161 = vunpack.c.h.b16 %v832
        %v3162 = vunpack.c.l.b16 %v833
        %v3163 = vunpack.c.h.b16 %v833
        %v3164 = vunpack.c.l.b16 %v834
        %v3165 = vunpack.c.h.b16 %v834
        %v3166 = vunpack.c.l.b16 %v835
        %v3167 = vunpack.c.h.b16 %v835
        %v3168 = vunpack.c.l.b16 %v836
        %v3169 = vunpack.c.h.b16 %v836
        %v3170 = vunpack.c.l.b16 %v837
        %v3171 = vunpack.c.h.b16 %v837
        %v3172 = vunpack.c.l.b16 %v838
        %v3173 = vunpack.c.h.b16 %v838
        %v3174 = vunpack.c.l.b16 %v839
        %v3175 = vunpack.c.h.b16 %v839
        %v3176 = vunpack.c.l.b16 %v840
        %v3177 = vunpack.c.h.b16 %v840
        %v3178 = vunpack.c.l.b16 %v841
        %v3179 = vunpack.c.h.b16 %v841
        %v3180 = vunpack.c.l.b16 %v842
        %v3181 = vunpack.c.h.b16 %v842
        %v3182 = vunpack.c.l.b16 %v843
        %v3183 = vunpack.c.h.b16 %v843
        %v3184 = vunpack.c.l.b16 %v844
        %v3185 = vunpack.c.h.b16 %v844
        %v3186 = vunpack.c.l.b16 %v845
        %v3187 = vunpack.c.h.b16 %v845
        %v3188 = vunpack.c.l.b16 %v846
        %v3189 = vunpack.c.h.b16 %v846
        %v3190 = vunpack.c.l.b16 %v847
        %v3191 = vunpack.c.h.b16 %v847
        %v3192 = vunpack.c.l.b16 %v848
        %v3193 = vunpack.c.h.b16 %v848
        %v3194 = vunpack.c.l.b16 %v849
        %v3195 = vunpack.c.h.b16 %v849
        %v3196 = vunpack.c.l.b16 %v850
        %v3197 = vunpack.c.h.b16 %v850
        %v3198 = vunpack.c.l.b16 %v851
        %v3199 = vunpack.c.h.b16 %v851
        %v3200 = vunpack.c.l.b16 %v852
        %v3201 = vunpack.c.h.b16 %v852
        %v3202 = vunpack.c.l.b16 %v853
        %v3203 = vunpack.c.h.b16 %v853
        %v3204 = vunpack.c.l.b16 %v854
        %v3205 = vunpack.c.h.b16 %v854
        %v3206 = vunpack.c.l.b16 %v855
        %v3207 = vunpack.c.h.b16 %v855
        %v3208 = vunpack.c.l.b16 %v856
        %v3209 = vunpack.c.h.b16 %v856
        %v3210 = vunpack.c.l.b16 %v857
        %v3211 = vunpack.c.h.b16 %v857
        %v3212 = vunpack.c.l.b16 %v858
        %v3213 = vunpack.c.h.b16 %v858
        %v3214 = vunpack.c.l.b16 %v859
        %v3215 = vunpack.c.h.b16 %v859
        %v3216 = vunpack.c.l.b16 %v860
        %v3217 = vunpack.c.h.b16 %v860
        %v3218 = vunpack.c.l.b16 %v861
        %v3219 = vunpack.c.h.b16 %v861
        %v3220 = vunpack.c.l.b16 %v862
        %v3221 = vunpack.c.h.b16 %v862
        %v3222 = vunpack.c.l.b16 %v863
        %v3223 = vunpack.c.h.b16 %v863
        %v3224 = vunpack.c.l.b16 %v864
        %v3225 = vunpack.c.h.b16 %v864
        %v3226 = vunpack.c.l.b16 %v865
        %v3227 = vunpack.c.h.b16 %v865
        %v3228 = vunpack.c.l.b16 %v866
        %v3229 = vunpack.c.h.b16 %v866
        %v3230 = vunpack.c.l.b16 %v867
        %v3231 = vunpack.c.h.b16 %v867
        %v3232 = vunpack.c.l.b16 %v868
        %v3233 = vunpack.c.h.b16 %v868
        %v3234 = vunpack.c.l.b16 %v869
        %v3235 = vunpack.c.h.b16 %v869
        %v3236 = vunpack.c.l.b16 %v870
        %v3237 = vunpack.c.h.b16 %v870
        %v3238 = vunpack.c.l.b16 %v871
        %v3239 = vunpack.c.h.b16 %v871
        %v3240 = vunpack.c.l.b16 %v872
        %v3241 = vunpack.c.h.b16 %v872
        %v3242 = vunpack.c.l.b16 %v873
        %v3243 = vunpack.c.h.b16 %v873
        %v3244 = vunpack.c.l.b16 %v874
        %v3245 = vunpack.c.h.b16 %v874
        %v3246 = vunpack.c.l.b16 %v875
        %v3247 = vunpack.c.h.b16 %v875
        %v3248 = vunpack.c.l.b16 %v876
        %v3249 = vunpack.c.h.b16 %v876
        %v3250 = vunpack.c.l.b16 %v877
        %v3251 = vunpack.c.h.b16 %v877
        %v3252 = vunpack.c.l.b16 %v878
        %v3253 = vunpack.c.h.b16 %v878
        %v3254 = vunpack.c.l.b16 %v879
        %v3255 = vunpack.c.h.b16 %v879
        %v3256 = vunpack.c.l.b16 %v880
        %v3257 = vunpack.c.h.b16 %v880
        %v3258 = vunpack.c.l.b16 %v881
        %v3259 = vunpack.c.h.b16 %v881
        %v3260 = vunpack.c.l.b16 %v882
        %v3261 = vunpack.c.h.b16 %v882
        %v3262 = vunpack.c.l.b16 %v883
        %v3263 = vunpack.c.h.b16 %v883
        %v3264 = vunpack.c.l.b16 %v884
        %v3265 = vunpack.c.h.b16 %v884
        %v3266 = vunpack.c.l.b16 %v885
        %v3267 = vunpack.c.h.b16 %v885
        %v3268 = vunpack.c.l.b16 %v886
        %v3269 = vunpack.c.h.b16 %v886
        %v3270 = vunpack.c.l.b16 %v887
        %v3271 = vunpack.c.h.b16 %v887
        %v3272 = vunpack.c.l.b16 %v888
        %v3273 = vunpack.c.h.b16 %v888
        %v3274 = vunpack.c.l.b16 %v889
        %v3275 = vunpack.c.h.b16 %v889
        %v3276 = vunpack.c.l.b16 %v890
        %v3277 = vunpack.c.h.b16 %v890
        %v3278 = vunpack.c.l.b16 %v891
        %v3279 = vunpack.c.h.b16 %v891
        %v3280 = vunpack.c.l.b16 %v892
        %v3281 = vunpack.c.h.b16 %v892
        %v3282 = vunpack.c.l.b16 %v893
        %v3283 = vunpack.c.h.b16 %v893
        %v3284 = vunpack.c.l.b16 %v894
        %v3285 = vunpack.c.h.b16 %v894
        %v3286 = vunpack.c.l.b16 %v895
        %v3287 = vunpack.c.h.b16 %v895
        %v3288 = vunpack.c.l.b16 %v896
        %v3289 = vunpack.c.h.b16 %v896
        %v3290 = vunpack.c.l.b16 %v897
        %v3291 = vunpack.c.h.b16 %v897
        %v3292 = vunpack.c.l.b16 %v898
        %v3293 = vunpack.c.h.b16 %v898
        %v3294 = vunpack.c.l.b16 %v899
        %v3295 = vunpack.c.h.b16 %v899
        %v3296 = vunpack.c.l.b16 %v900
        %v3297 = vunpack.c.h.b16 %v900
        %v3298 = vunpack.c.l.b16 %v901
        %v3299 = vunpack.c.h.b16 %v901
        %v3300 = vunpack.c.l.b16 %v902
        %v3301 = vunpack.c.h.b16 %v902
        %v3302 = vunpack.c.l.b16 %v903
        %v3303 = vunpack.c.h.b16 %v903
        %v3304 = vunpack.c.l.b16 %v904
        %v3305 = vunpack.c.h.b16 %v904
        %v3306 = vunpack.c.l.b16 %v905
        %v3307 = vunpack.c.h.b16 %v905
        %v3308 = vunpack.c.l.b16 %v906
        %v3309 = vunpack.c.h.b16 %v906
        %v3310 = vunpack.c.l.b16 %v907
        %v3311 = vunpack.c.h.b16 %v907
        %v3312 = vunpack.c.l.b16 %v908
        %v3313 = vunpack.c.h.b16 %v908
        %v3314 = vunpack.c.l.b16 %v909
        %v3315 = vunpack.c.h.b16 %v909
        %v3316 = vunpack.c.l.b16 %v910
        %v3317 = vunpack.c.h.b16 %v910
        %v3318 = vunpack.c.l.b16 %v911
        %v3319 = vunpack.c.h.b16 %v911
        %v3320 = vunpack.c.l.b16 %v912
        %v3321 = vunpack.c.h.b16 %v912
        %v3322 = vunpack.c.l.b16 %v913
        %v3323 = vunpack.c.h.b16 %v913
        %v3324 = vunpack.c.l.b16 %v914
        %v3325 = vunpack.c.h.b16 %v914
        %v3326 = vunpack.c.l.b16 %v915
        %v3327 = vunpack.c.h.b16 %v915
        %v3328 = vunpack.c.l.b16 %v916
        %v3329 = vunpack.c.h.b16 %v916
        %v3330 = vunpack.c.l.b16 %v917
        %v3331 = vunpack.c.h.b16 %v917
        %v3332 = vunpack.c.l.b16 %v918
        %v3333 = vunpack.c.h.b16 %v918
        %v3334 = vunpack.c.l.b16 %v919
        %v3335 = vunpack.c.h.b16 %v919
        %v3336 = vunpack.c.l.b16 %v920
        %v3337 = vunpack.c.h.b16 %v920
        %v3338 = vunpack.c.l.b16 %v921
        %v3339 = vunpack.c.h.b16 %v921
        %v3340 = vunpack.c.l.b16 %v922
        %v3341 = vunpack.c.h.b16 %v922
        %v3342 = vunpack.c.l.b16 %v923
        %v3343 = vunpack.c.h.b16 %v923
        %v3344 = vunpack.c.l.b16 %v924
        %v3345 = vunpack.c.h.b16 %v924
        %v3346 = vunpack.c.l.b16 %v925
        %v3347 = vunpack.c.h.b16 %v925
        %v3348 = vunpack.c.l.b16 %v926
        %v3349 = vunpack.c.h.b16 %v926
        %v3350 = vunpack.c.l.b16 %v927
        %v3351 = vunpack.c.h.b16 %v927
        %v3352 = vunpack.c.l.b16 %v928
        %v3353 = vunpack.c.h.b16 %v928
        %v3354 = vunpack.c.l.b16 %v929
        %v3355 = vunpack.c.h.b16 %v929
        %v3356 = vunpack.c.l.b16 %v930
        %v3357 = vunpack.c.h.b16 %v930
        %v3358 = vunpack.c.l.b16 %v931
        %v3359 = vunpack.c.h.b16 %v931
        %v3360 = vunpack.c.l.b16 %v932
        %v3361 = vunpack.c.h.b16 %v932
        %v3362 = vunpack.c.l.b16 %v933
        %v3363 = vunpack.c.h.b16 %v933
        %v3364 = vunpack.c.l.b16 %v934
        %v3365 = vunpack.c.h.b16 %v934
        %v3366 = vunpack.c.l.b16 %v935
        %v3367 = vunpack.c.h.b16 %v935
        %v3368 = vunpack.c.l.b16 %v936
        %v3369 = vunpack.c.h.b16 %v936
        %v3370 = vunpack.c.l.b16 %v937
        %v3371 = vunpack.c.h.b16 %v937
        %v3372 = vunpack.c.l.b16 %v938
        %v3373 = vunpack.c.h.b16 %v938
        %v3374 = vunpack.c.l.b16 %v939
        %v3375 = vunpack.c.h.b16 %v939
        %v3376 = vunpack.c.l.b16 %v940
        %v3377 = vunpack.c.h.b16 %v940
        %v3378 = vunpack.c.l.b16 %v941
        %v3379 = vunpack.c.h.b16 %v941
        %v3380 = vunpack.c.l.b16 %v942
        %v3381 = vunpack.c.h.b16 %v942
        %v3382 = vunpack.c.l.b16 %v943
        %v3383 = vunpack.c.h.b16 %v943
        %v3384 = vunpack.c.l.b16 %v944
        %v3385 = vunpack.c.h.b16 %v944
        %v3386 = vunpack.c.l.b16 %v945
        %v3387 = vunpack.c.h.b16 %v945
        %v3388 = vunpack.c.l.b16 %v946
        %v3389 = vunpack.c.h.b16 %v946
        %v3390 = vunpack.c.l.b16 %v947
        %v3391 = vunpack.c.h.b16 %v947
        %v3392 = vunpack.c.l.b16 %v948
        %v3393 = vunpack.c.h.b16 %v948
        %v3394 = vunpack.c.l.b16 %v949
        %v3395 = vunpack.c.h.b16 %v949
        %v3396 = vunpack.c.l.b16 %v950
        %v3397 = vunpack.c.h.b16 %v950
        %v3398 = vunpack.c.l.b16 %v951
        %v3399 = vunpack.c.h.b16 %v951
        %v3400 = vunpack.c.l.b16 %v952
        %v3401 = vunpack.c.h.b16 %v952
        %v3402 = vunpack.c.l.b16 %v953
        %v3403 = vunpack.c.h.b16 %v953
        %v3404 = vunpack.c.l.b16 %v954
        %v3405 = vunpack.c.h.b16 %v954
        %v3406 = vunpack.c.l.b16 %v955
        %v3407 = vunpack.c.h.b16 %v955
        %v3408 = vunpack.c.l.b16 %v956
        %v3409 = vunpack.c.h.b16 %v956
        %v3410 = vunpack.c.l.b16 %v957
        %v3411 = vunpack.c.h.b16 %v957
        %v3412 = vunpack.c.l.b16 %v958
        %v3413 = vunpack.c.h.b16 %v958
        %v3414 = vunpack.c.l.b16 %v959
        %v3415 = vunpack.c.h.b16 %v959
        %v3416 = vunpack.c.l.b16 %v960
        %v3417 = vunpack.c.h.b16 %v960
        %v3418 = vunpack.c.l.b16 %v961
        %v3419 = vunpack.c.h.b16 %v961
        %v3420 = vunpack.c.l.b16 %v962
        %v3421 = vunpack.c.h.b16 %v962
        %v3422 = vunpack.c.l.b16 %v963
        %v3423 = vunpack.c.h.b16 %v963
        %v3424 = vunpack.c.l.b16 %v964
        %v3425 = vunpack.c.h.b16 %v964
        %v3426 = vunpack.c.l.b16 %v965
        %v3427 = vunpack.c.h.b16 %v965
        %v3428 = vunpack.c.l.b16 %v966
        %v3429 = vunpack.c.h.b16 %v966
        %v3430 = vunpack.c.l.b16 %v967
        %v3431 = vunpack.c.h.b16 %v967
        %v3432 = vunpack.c.l.b16 %v968
        %v3433 = vunpack.c.h.b16 %v968
        %v3434 = vunpack.c.l.b16 %v969
        %v3435 = vunpack.c.h.b16 %v969
        %v3436 = vunpack.c.l.b16 %v970
        %v3437 = vunpack.c.h.b16 %v970
        %v3438 = vunpack.c.l.b16 %v971
        %v3439 = vunpack.c.h.b16 %v971
        %v3440 = vunpack.c.l.b16 %v972
        %v3441 = vunpack.c.h.b16 %v972
        %v3442 = vunpack.c.l.b16 %v973
        %v3443 = vunpack.c.h.b16 %v973
        %v3444 = vunpack.c.l.b16 %v974
        %v3445 = vunpack.c.h.b16 %v974
        %v3446 = vunpack.c.l.b16 %v975
        %v3447 = vunpack.c.h.b16 %v975
        %v3448 = vunpack.c.l.b16 %v976
        %v3449 = vunpack.c.h.b16 %v976
        %v3450 = vunpack.c.l.b16 %v977
        %v3451 = vunpack.c.h.b16 %v977
        %v3452 = vunpack.c.l.b16 %v978
        %v3453 = vunpack.c.h.b16 %v978
        %v3454 = vunpack.c.l.b16 %v979
        %v3455 = vunpack.c.h.b16 %v979
        %v3456 = vunpack.c.l.b16 %v980
        %v3457 = vunpack.c.h.b16 %v980
        %v3458 = vunpack.c.l.b16 %v981
        %v3459 = vunpack.c.h.b16 %v981
        %v3460 = vunpack.c.l.b16 %v982
        %v3461 = vunpack.c.h.b16 %v982
        %v3462 = vunpack.c.l.b16 %v983
        %v3463 = vunpack.c.h.b16 %v983
        %v3464 = vunpack.c.l.b16 %v984
        %v3465 = vunpack.c.h.b16 %v984
        %v3466 = vunpack.c.l.b16 %v985
        %v3467 = vunpack.c.h.b16 %v985
        %v3468 = vunpack.c.l.b16 %v986
        %v3469 = vunpack.c.h.b16 %v986
        %v3470 = vunpack.c.l.b16 %v987
        %v3471 = vunpack.c.h.b16 %v987
        %v3472 = vunpack.c.l.b16 %v988
        %v3473 = vunpack.c.h.b16 %v988
        %v3474 = vunpack.c.l.b16 %v989
        %v3475 = vunpack.c.h.b16 %v989
        %v3476 = vunpack.c.l.b16 %v990
        %v3477 = vunpack.c.h.b16 %v990
        %v3478 = vunpack.c.l.b16 %v991
        %v3479 = vunpack.c.h.b16 %v991
        %v3480 = vunpack.c.l.b16 %v992
        %v3481 = vunpack.c.h.b16 %v992
        %v3482 = vunpack.c.l.b16 %v993
        %v3483 = vunpack.c.h.b16 %v993
        %v3484 = vunpack.c.l.b16 %v994
        %v3485 = vunpack.c.h.b16 %v994
        %v3486 = vunpack.c.l.b16 %v995
        %v3487 = vunpack.c.h.b16 %v995
        %v3488 = vunpack.c.l.b16 %v996
        %v3489 = vunpack.c.h.b16 %v996
        %v3490 = vunpack.c.l.b16 %v997
        %v3491 = vunpack.c.h.b16 %v997
        %v3492 = vunpack.c.l.b16 %v998
        %v3493 = vunpack.c.h.b16 %v998
        %v3494 = vunpack.c.l.b16 %v999
        %v3495 = vunpack.c.h.b16 %v999
        %v3496 = vunpack.c.l.b16 %v1000
        %v3497 = vunpack.c.h.b16 %v1000
        %v3498 = vunpack.c.l.b16 %v1001
        %v3499 = vunpack.c.h.b16 %v1001
        %v3500 = vunpack.c.l.b16 %v1002
        %v3501 = vunpack.c.h.b16 %v1002
        %v3502 = vunpack.c.l.b16 %v1003
        %v3503 = vunpack.c.h.b16 %v1003
        %v3504 = vunpack.c.l.b16 %v1004
        %v3505 = vunpack.c.h.b16 %v1004
        %v3506 = vunpack.c.l.b16 %v1005
        %v3507 = vunpack.c.h.b16 %v1005
        %v3508 = vunpack.c.l.b16 %v1006
        %v3509 = vunpack.c.h.b16 %v1006
        %v3510 = vunpack.c.l.b16 %v1007
        %v3511 = vunpack.c.h.b16 %v1007
        %v3512 = vunpack.c.l.b16 %v1008
        %v3513 = vunpack.c.h.b16 %v1008
        %v3514 = vunpack.c.l.b16 %v1009
        %v3515 = vunpack.c.h.b16 %v1009
        %v3516 = vunpack.c.l.b16 %v1010
        %v3517 = vunpack.c.h.b16 %v1010
        %v3518 = vunpack.c.l.b16 %v1011
        %v3519 = vunpack.c.h.b16 %v1011
        %v3520 = vunpack.c.l.b16 %v1012
        %v3521 = vunpack.c.h.b16 %v1012
        %v3522 = vunpack.c.l.b16 %v1013
        %v3523 = vunpack.c.h.b16 %v1013
        %v3524 = vunpack.c.l.b16 %v1014
        %v3525 = vunpack.c.h.b16 %v1014
        %v3526 = vunpack.c.l.b16 %v1015
        %v3527 = vunpack.c.h.b16 %v1015
        %v3528 = vunpack.c.l.b16 %v1016
        %v3529 = vunpack.c.h.b16 %v1016
        %v3530 = vunpack.c.l.b16 %v1017
        %v3531 = vunpack.c.h.b16 %v1017
        %v3532 = vunpack.c.l.b16 %v1018
        %v3533 = vunpack.c.h.b16 %v1018
        %v3534 = vunpack.c.l.b16 %v1019
        %v3535 = vunpack.c.h.b16 %v1019
        %v3536 = vunpack.c.l.b16 %v1020
        %v3537 = vunpack.c.h.b16 %v1020
        %v3538 = vunpack.c.l.b16 %v1021
        %v3539 = vunpack.c.h.b16 %v1021
        %v3540 = vunpack.c.l.b16 %v1022
        %v3541 = vunpack.c.h.b16 %v1022
        %v3542 = vunpack.c.l.b16 %v1023
        %v3543 = vunpack.c.h.b16 %v1023
        %v3544 = vunpack.c.l.b16 %v1024
        %v3545 = vunpack.c.h.b16 %v1024
        %v3546 = vunpack.c.l.b16 %v1025
        %v3547 = vunpack.c.h.b16 %v1025
        %v3548 = vunpack.c.l.b16 %v1026
        %v3549 = vunpack.c.h.b16 %v1026
        %v3550 = vunpack.c.l.b16 %v1027
        %v3551 = vunpack.c.h.b16 %v1027
        %v3552 = vunpack.c.l.b16 %v1028
        %v3553 = vunpack.c.h.b16 %v1028
        %v3554 = vunpack.c.l.b16 %v1029
        %v3555 = vunpack.c.h.b16 %v1029
        %v3556 = vunpack.c.l.b16 %v1030
        %v3557 = vunpack.c.h.b16 %v1030
        %v3558 = vunpack.c.l.b16 %v1031
        %v3559 = vunpack.c.h.b16 %v1031
        %v3560 = vunpack.c.l.b16 %v1032
        %v3561 = vunpack.c.h.b16 %v1032
        %v3562 = vunpack.c.l.b16 %v1033
        %v3563 = vunpack.c.h.b16 %v1033
        %v3564 = vunpack.c.l.b16 %v1034
        %v3565 = vunpack.c.h.b16 %v1034
        %v3566 = vunpack.c.l.b16 %v1035
        %v3567 = vunpack.c.h.b16 %v1035
        %v3568 = vunpack.c.l.b16 %v1036
        %v3569 = vunpack.c.h.b16 %v1036
        %v3570 = vunpack.c.l.b16 %v1037
        %v3571 = vunpack.c.h.b16 %v1037
        %v3572 = vunpack.c.l.b16 %v1038
        %v3573 = vunpack.c.h.b16 %v1038
        %v3574 = vunpack.c.l.b16 %v1039
        %v3575 = vunpack.c.h.b16 %v1039
        %v3576 = vunpack.c.l.b16 %v1040
        %v3577 = vunpack.c.h.b16 %v1040
        %v3578 = vunpack.c.l.b16 %v1041
        %v3579 = vunpack.c.h.b16 %v1041
        %v3580 = vunpack.c.l.b16 %v1042
        %v3581 = vunpack.c.h.b16 %v1042
        %v3582 = vunpack.c.l.b16 %v1043
        %v3583 = vunpack.c.h.b16 %v1043
        %v3584 = vunpack.c.l.b16 %v1044
        %v3585 = vunpack.c.h.b16 %v1044
        %v3586 = vunpack.c.l.b16 %v1045
        %v3587 = vunpack.c.h.b16 %v1045
        %v3588 = vunpack.c.l.b16 %v1046
        %v3589 = vunpack.c.h.b16 %v1046
        %v3590 = vunpack.c.l.b16 %v1047
        %v3591 = vunpack.c.h.b16 %v1047
        %v3592 = vunpack.c.l.b16 %v1048
        %v3593 = vunpack.c.h.b16 %v1048
        %v3594 = vunpack.c.l.b16 %v1049
        %v3595 = vunpack.c.h.b16 %v1049
        %v3596 = vunpack.c.l.b16 %v1050
        %v3597 = vunpack.c.h.b16 %v1050
        %v3598 = vunpack.c.l.b16 %v1051
        %v3599 = vunpack.c.h.b16 %v1051
        %v3600 = vunpack.c.l.b16 %v1052
        %v3601 = vunpack.c.h.b16 %v1052
        %v3602 = vunpack.c.l.b16 %v1053
        %v3603 = vunpack.c.h.b16 %v1053
        %v3604 = vunpack.c.l.b16 %v1054
        %v3605 = vunpack.c.h.b16 %v1054
        %v3606 = vunpack.c.l.b16 %v1055
        %v3607 = vunpack.c.h.b16 %v1055
        %v3608 = vunpack.c.l.b16 %v1056
        %v3609 = vunpack.c.h.b16 %v1056
        %v3610 = vunpack.c.l.b16 %v1057
        %v3611 = vunpack.c.h.b16 %v1057
        %v3612 = vunpack.c.l.b16 %v1058
        %v3613 = vunpack.c.h.b16 %v1058
        %v3614 = vunpack.c.l.b16 %v1059
        %v3615 = vunpack.c.h.b16 %v1059
        %v3616 = vunpack.c.l.b16 %v1060
        %v3617 = vunpack.c.h.b16 %v1060
        %v3618 = vunpack.c.l.b16 %v1061
        %v3619 = vunpack.c.h.b16 %v1061
        %v3620 = vunpack.c.l.b16 %v1062
        %v3621 = vunpack.c.h.b16 %v1062
        %v3622 = vunpack.c.l.b16 %v1063
        %v3623 = vunpack.c.h.b16 %v1063
        %v3624 = vunpack.c.l.b16 %v1064
        %v3625 = vunpack.c.h.b16 %v1064
        %v3626 = vunpack.c.l.b16 %v1065
        %v3627 = vunpack.c.h.b16 %v1065
        %v3628 = vunpack.c.l.b16 %v1066
        %v3629 = vunpack.c.h.b16 %v1066
        %v3630 = vunpack.c.l.b16 %v1067
        %v3631 = vunpack.c.h.b16 %v1067
        %v3632 = vunpack.c.l.b16 %v1068
        %v3633 = vunpack.c.h.b16 %v1068
        %v3634 = vunpack.c.l.b16 %v1069
        %v3635 = vunpack.c.h.b16 %v1069
        %v3636 = vunpack.c.l.b16 %v1070
        %v3637 = vunpack.c.h.b16 %v1070
        %v3638 = vunpack.c.l.b16 %v1071
        %v3639 = vunpack.c.h.b16 %v1071
        %v3640 = vunpack.c.l.b16 %v1072
        %v3641 = vunpack.c.h.b16 %v1072
        %v3642 = vunpack.c.l.b16 %v1073
        %v3643 = vunpack.c.h.b16 %v1073
        %v3644 = vunpack.c.l.b16 %v1074
        %v3645 = vunpack.c.h.b16 %v1074
        %v3646 = vunpack.c.l.b16 %v1075
        %v3647 = vunpack.c.h.b16 %v1075
        %v3648 = vunpack.c.l.b16 %v1076
        %v3649 = vunpack.c.h.b16 %v1076
        %v3650 = vunpack.c.l.b16 %v1077
        %v3651 = vunpack.c.h.b16 %v1077
        %v3652 = vunpack.c.l.b16 %v1078
        %v3653 = vunpack.c.h.b16 %v1078
        %v3654 = vunpack.c.l.b16 %v1079
        %v3655 = vunpack.c.h.b16 %v1079
        %v3656 = vunpack.c.l.b16 %v1080
        %v3657 = vunpack.c.h.b16 %v1080
        %v3658 = vunpack.c.l.b16 %v1081
        %v3659 = vunpack.c.h.b16 %v1081
        %v3660 = vunpack.c.l.b16 %v1082
        %v3661 = vunpack.c.h.b16 %v1082
        %v3662 = vunpack.c.l.b16 %v1083
        %v3663 = vunpack.c.h.b16 %v1083
        %v3664 = vunpack.c.l.b16 %v1084
        %v3665 = vunpack.c.h.b16 %v1084
        %v3666 = vunpack.c.l.b16 %v1085
        %v3667 = vunpack.c.h.b16 %v1085
        %v3668 = vunpack.c.l.b16 %v1086
        %v3669 = vunpack.c.h.b16 %v1086
        %v3670 = vunpack.c.l.b16 %v1087
        %v3671 = vunpack.c.h.b16 %v1087
        %v3672 = vunpack.c.l.b16 %v1088
        %v3673 = vunpack.c.h.b16 %v1088
        %v3674 = vunpack.c.l.b16 %v1089
        %v3675 = vunpack.c.h.b16 %v1089
        %v3676 = vunpack.c.l.b16 %v1090
        %v3677 = vunpack.c.h.b16 %v1090
        %v3678 = vunpack.c.l.b16 %v1091
        %v3679 = vunpack.c.h.b16 %v1091
        %v3680 = vunpack.c.l.b16 %v1092
        %v3681 = vunpack.c.h.b16 %v1092
        %v3682 = vunpack.c.l.b16 %v1093
        %v3683 = vunpack.c.h.b16 %v1093
        %v3684 = vunpack.c.l.b16 %v1094
        %v3685 = vunpack.c.h.b16 %v1094
        %v3686 = vunpack.c.l.b16 %v1095
        %v3687 = vunpack.c.h.b16 %v1095
        %v3688 = vunpack.c.l.b16 %v1096
        %v3689 = vunpack.c.h.b16 %v1096
        %v3690 = vunpack.c.l.b16 %v1097
        %v3691 = vunpack.c.h.b16 %v1097
        %v3692 = vunpack.c.l.b16 %v1098
        %v3693 = vunpack.c.h.b16 %v1098
        %v3694 = vunpack.c.l.b16 %v1099
        %v3695 = vunpack.c.h.b16 %v1099
        %v3696 = vunpack.c.l.b16 %v1100
        %v3697 = vunpack.c.h.b16 %v1100
        %v3698 = vunpack.c.l.b16 %v1101
        %v3699 = vunpack.c.h.b16 %v1101
        %v3700 = vunpack.c.l.b16 %v1102
        %v3701 = vunpack.c.h.b16 %v1102
        %v3702 = vunpack.c.l.b16 %v1103
        %v3703 = vunpack.c.h.b16 %v1103
        %v3704 = vunpack.c.l.b16 %v1104
        %v3705 = vunpack.c.h.b16 %v1104
        %v3706 = vunpack.c.l.b16 %v1105
        %v3707 = vunpack.c.h.b16 %v1105
        %v3708 = vunpack.c.l.b16 %v1106
        %v3709 = vunpack.c.h.b16 %v1106
        %v3710 = vunpack.c.l.b16 %v1107
        %v3711 = vunpack.c.h.b16 %v1107
        %v3712 = vunpack.c.l.b16 %v1108
        %v3713 = vunpack.c.h.b16 %v1108
        %v3714 = vunpack.c.l.b16 %v1109
        %v3715 = vunpack.c.h.b16 %v1109
        %v3716 = vunpack.c.l.b16 %v1110
        %v3717 = vunpack.c.h.b16 %v1110
        %v3718 = vunpack.c.l.b16 %v1111
        %v3719 = vunpack.c.h.b16 %v1111
        %v3720 = vunpack.c.l.b16 %v1112
        %v3721 = vunpack.c.h.b16 %v1112
        %v3722 = vunpack.c.l.b16 %v1113
        %v3723 = vunpack.c.h.b16 %v1113
        %v3724 = vunpack.c.l.b16 %v1114
        %v3725 = vunpack.c.h.b16 %v1114
        %v3726 = vunpack.c.l.b16 %v1115
        %v3727 = vunpack.c.h.b16 %v1115
        %v3728 = vunpack.c.l.b16 %v1116
        %v3729 = vunpack.c.h.b16 %v1116
        %v3730 = vunpack.c.l.b16 %v1117
        %v3731 = vunpack.c.h.b16 %v1117
        %v3732 = vunpack.c.l.b16 %v1118
        %v3733 = vunpack.c.h.b16 %v1118
        %v3734 = vunpack.c.l.b16 %v1119
        %v3735 = vunpack.c.h.b16 %v1119
        %v3736 = vunpack.c.l.b16 %v1120
        %v3737 = vunpack.c.h.b16 %v1120
        %v3738 = vunpack.c.l.b16 %v1121
        %v3739 = vunpack.c.h.b16 %v1121
        %v3740 = vunpack.c.l.b16 %v1122
        %v3741 = vunpack.c.h.b16 %v1122
        %v3742 = vunpack.c.l.b16 %v1123
        %v3743 = vunpack.c.h.b16 %v1123
        %v3744 = vunpack.c.l.b16 %v1124
        %v3745 = vunpack.c.h.b16 %v1124
        %v3746 = vunpack.c.l.b16 %v1125
        %v3747 = vunpack.c.h.b16 %v1125
        %v3748 = vunpack.c.l.b16 %v1126
        %v3749 = vunpack.c.h.b16 %v1126
        %v3750 = vunpack.c.l.b16 %v1127
        %v3751 = vunpack.c.h.b16 %v1127
        %v3752 = vunpack.c.l.b16 %v1128
        %v3753 = vunpack.c.h.b16 %v1128
        %v3754 = vunpack.c.l.b16 %v1129
        %v3755 = vunpack.c.h.b16 %v1129
        %v3756 = vunpack.c.l.b16 %v1130
        %v3757 = vunpack.c.h.b16 %v1130
        %v3758 = vunpack.c.l.b16 %v1131
        %v3759 = vunpack.c.h.b16 %v1131
        %v3760 = vunpack.c.l.b16 %v1132
        %v3761 = vunpack.c.h.b16 %v1132
        %v3762 = vunpack.c.l.b16 %v1133
        %v3763 = vunpack.c.h.b16 %v1133
        %v3764 = vunpack.c.l.b16 %v1134
        %v3765 = vunpack.c.h.b16 %v1134
        %v3766 = vunpack.c.l.b16 %v1135
        %v3767 = vunpack.c.h.b16 %v1135
        %v3768 = vunpack.c.l.b16 %v1136
        %v3769 = vunpack.c.h.b16 %v1136
        %v3770 = vunpack.c.l.b16 %v1137
        %v3771 = vunpack.c.h.b16 %v1137
        %v3772 = vunpack.c.l.b16 %v1138
        %v3773 = vunpack.c.h.b16 %v1138
        %v3774 = vunpack.c.l.b16 %v1139
        %v3775 = vunpack.c.h.b16 %v1139
        %v3776 = vunpack.c.l.b16 %v1140
        %v3777 = vunpack.c.h.b16 %v1140
        %v3778 = vunpack.c.l.b16 %v1141
        %v3779 = vunpack.c.h.b16 %v1141
        %v3780 = vunpack.c.l.b16 %v1142
        %v3781 = vunpack.c.h.b16 %v1142
        %v3782 = vunpack.c.l.b16 %v1143
        %v3783 = vunpack.c.h.b16 %v1143
        %v3784 = vunpack.c.l.b16 %v1144
        %v3785 = vunpack.c.h.b16 %v1144
        %v3786 = vunpack.c.l.b16 %v1145
        %v3787 = vunpack.c.h.b16 %v1145
        %v3788 = vunpack.c.l.b16 %v1146
        %v3789 = vunpack.c.h.b16 %v1146
        %v3790 = vunpack.c.l.b16 %v1147
        %v3791 = vunpack.c.h.b16 %v1147
        %v3792 = vunpack.c.l.b16 %v1148
        %v3793 = vunpack.c.h.b16 %v1148
        %v3794 = vunpack.c.l.b16 %v1149
        %v3795 = vunpack.c.h.b16 %v1149
        %v3796 = vunpack.c.l.b16 %v1150
        %v3797 = vunpack.c.h.b16 %v1150
        %v3798 = vunpack.c.l.b16 %v1151
        %v3799 = vunpack.c.h.b16 %v1151
        %v3800 = vunpack.c.l.b16 %v1152
        %v3801 = vunpack.c.h.b16 %v1152
        %v3802 = vunpack.c.l.b16 %v1153
        %v3803 = vunpack.c.h.b16 %v1153
        %v3804 = vunpack.c.l.b16 %v1154
        %v3805 = vunpack.c.h.b16 %v1154
        %v3806 = vunpack.c.l.b16 %v1155
        %v3807 = vunpack.c.h.b16 %v1155
        %v3808 = vunpack.c.l.b16 %v1156
        %v3809 = vunpack.c.h.b16 %v1156
        %v3810 = vunpack.c.l.b16 %v1157
        %v3811 = vunpack.c.h.b16 %v1157
        %v3812 = vunpack.c.l.b16 %v1158
        %v3813 = vunpack.c.h.b16 %v1158
        %v3814 = vunpack.c.l.b16 %v1159
        %v3815 = vunpack.c.h.b16 %v1159
        %v3816 = vunpack.c.l.b16 %v1160
        %v3817 = vunpack.c.h.b16 %v1160
        %v3818 = vunpack.c.l.b16 %v1161
        %v3819 = vunpack.c.h.b16 %v1161
        %v3820 = vunpack.c.l.b16 %v1162
        %v3821 = vunpack.c.h.b16 %v1162
        %v3822 = vunpack.c.l.b16 %v1163
        %v3823 = vunpack.c.h.b16 %v1163
        %v3824 = vunpack.c.l.b16 %v1164
        %v3825 = vunpack.c.h.b16 %v1164
        %v3826 = vunpack.c.l.b16 %v1165
        %v3827 = vunpack.c.h.b16 %v1165
        %v3828 = vunpack.c.l.b16 %v1166
        %v3829 = vunpack.c.h.b16 %v1166
        %v3830 = vunpack.c.l.b16 %v1167
        %v3831 = vunpack.c.h.b16 %v1167
        %v3832 = vunpack.c.l.b16 %v1168
        %v3833 = vunpack.c.h.b16 %v1168
        %v3834 = vunpack.c.l.b16 %v1169
        %v3835 = vunpack.c.h.b16 %v1169
        %v3836 = vunpack.c.l.b16 %v1170
        %v3837 = vunpack.c.h.b16 %v1170
        %v3838 = vunpack.c.l.b16 %v1171
        %v3839 = vunpack.c.h.b16 %v1171
        %v3840 = vunpack.c.l.b16 %v1172
        %v3841 = vunpack.c.h.b16 %v1172
        %v3842 = vunpack.c.l.b16 %v1173
        %v3843 = vunpack.c.h.b16 %v1173
        %v3844 = vunpack.c.l.b16 %v1174
        %v3845 = vunpack.c.h.b16 %v1174
        %v3846 = vunpack.c.l.b16 %v1175
        %v3847 = vunpack.c.h.b16 %v1175
        %v3848 = vunpack.c.l.b16 %v1176
        %v3849 = vunpack.c.h.b16 %v1176
        %v3850 = vunpack.c.l.b16 %v1177
        %v3851 = vunpack.c.h.b16 %v1177
        %v3852 = vunpack.c.l.b16 %v1178
        %v3853 = vunpack.c.h.b16 %v1178
        %v3854 = vunpack.c.l.b16 %v1179
        %v3855 = vunpack.c.h.b16 %v1179
        %v3856 = vunpack.c.l.b16 %v1180
        %v3857 = vunpack.c.h.b16 %v1180
        %v3858 = vunpack.c.l.b16 %v1181
        %v3859 = vunpack.c.h.b16 %v1181
        %v3860 = vunpack.c.l.b16 %v1182
        %v3861 = vunpack.c.h.b16 %v1182
        %v3862 = vunpack.c.l.b16 %v1183
        %v3863 = vunpack.c.h.b16 %v1183
        %v3864 = vunpack.c.l.b16 %v1184
        %v3865 = vunpack.c.h.b16 %v1184
        %v3866 = vunpack.c.l.b16 %v1185
        %v3867 = vunpack.c.h.b16 %v1185
        %v3868 = vunpack.c.l.b16 %v1186
        %v3869 = vunpack.c.h.b16 %v1186
        %v3870 = vunpack.c.l.b16 %v1187
        %v3871 = vunpack.c.h.b16 %v1187
        %v3872 = vunpack.c.l.b16 %v1188
        %v3873 = vunpack.c.h.b16 %v1188
        %v3874 = vunpack.c.l.b16 %v1189
        %v3875 = vunpack.c.h.b16 %v1189
        %v3876 = vunpack.c.l.b16 %v1190
        %v3877 = vunpack.c.h.b16 %v1190
        %v3878 = vunpack.c.l.b16 %v1191
        %v3879 = vunpack.c.h.b16 %v1191
        %v3880 = vunpack.c.l.b16 %v1192
        %v3881 = vunpack.c.h.b16 %v1192
        %v3882 = vunpack.c.l.b16 %v1193
        %v3883 = vunpack.c.h.b16 %v1193
        %v3884 = vunpack.c.l.b16 %v1194
        %v3885 = vunpack.c.h.b16 %v1194
        %v3886 = vunpack.c.l.b16 %v1195
        %v3887 = vunpack.c.h.b16 %v1195
        %v3888 = vunpack.c.l.b16 %v1196
        %v3889 = vunpack.c.h.b16 %v1196
        %v3890 = vunpack.c.l.b16 %v1197
        %v3891 = vunpack.c.h.b16 %v1197
        %v3892 = vunpack.c.l.b16 %v1198
        %v3893 = vunpack.c.h.b16 %v1198
        %v3894 = vunpack.c.l.b16 %v1199
        %v3895 = vunpack.c.h.b16 %v1199
        %v3896 = vunpack.c.l.b16 %v1200
        %v3897 = vunpack.c.h.b16 %v1200
        %v3898 = vunpack.c.l.b16 %v1201
        %v3899 = vunpack.c.h.b16 %v1201
        %v3900 = vunpack.c.l.b16 %v1202
        %v3901 = vunpack.c.h.b16 %v1202
        %v3902 = vunpack.c.l.b16 %v1203
        %v3903 = vunpack.c.h.b16 %v1203
        %v3904 = vunpack.c.l.b16 %v1204
        %v3905 = vunpack.c.h.b16 %v1204
        %v3906 = vunpack.c.l.b16 %v1205
        %v3907 = vunpack.c.h.b16 %v1205
        %v3908 = vunpack.c.l.b16 %v1206
        %v3909 = vunpack.c.h.b16 %v1206
        %v3910 = vunpack.c.l.b16 %v1207
        %v3911 = vunpack.c.h.b16 %v1207
        %v3912 = vunpack.c.l.b16 %v1208
        %v3913 = vunpack.c.h.b16 %v1208
        %v3914 = vunpack.c.l.b16 %v1209
        %v3915 = vunpack.c.h.b16 %v1209
        %v3916 = vunpack.c.l.b16 %v1210
        %v3917 = vunpack.c.h.b16 %v1210
        %v3918 = vunpack.c.l.b16 %v1211
        %v3919 = vunpack.c.h.b16 %v1211
        %v3920 = vunpack.c.l.b16 %v1212
        %v3921 = vunpack.c.h.b16 %v1212
        %v3922 = vunpack.c.l.b16 %v1213
        %v3923 = vunpack.c.h.b16 %v1213
        %v3924 = vunpack.c.l.b16 %v1214
        %v3925 = vunpack.c.h.b16 %v1214
        %v3926 = vunpack.c.l.b16 %v1215
        %v3927 = vunpack.c.h.b16 %v1215
        %v3928 = vunpack.c.l.b16 %v1216
        %v3929 = vunpack.c.h.b16 %v1216
        %v3930 = vunpack.c.l.b16 %v1217
        %v3931 = vunpack.c.h.b16 %v1217
        %v3932 = vunpack.c.l.b16 %v1218
        %v3933 = vunpack.c.h.b16 %v1218
        %v3934 = vunpack.c.l.b16 %v1219
        %v3935 = vunpack.c.h.b16 %v1219
        %v3936 = vunpack.c.l.b16 %v1220
        %v3937 = vunpack.c.h.b16 %v1220
        %v3938 = vunpack.c.l.b16 %v1221
        %v3939 = vunpack.c.h.b16 %v1221
        %v3940 = vunpack.c.l.b16 %v1222
        %v3941 = vunpack.c.h.b16 %v1222
        %v3942 = vunpack.c.l.b16 %v1223
        %v3943 = vunpack.c.h.b16 %v1223
        %v3944 = vunpack.c.l.b16 %v1224
        %v3945 = vunpack.c.h.b16 %v1224
        %v3946 = vunpack.c.l.b16 %v1225
        %v3947 = vunpack.c.h.b16 %v1225
        %v3948 = vunpack.c.l.b16 %v1226
        %v3949 = vunpack.c.h.b16 %v1226
        %v3950 = vunpack.c.l.b16 %v1227
        %v3951 = vunpack.c.h.b16 %v1227
        %v3952 = vunpack.c.l.b16 %v1228
        %v3953 = vunpack.c.h.b16 %v1228
        %v3954 = vunpack.c.l.b16 %v1229
        %v3955 = vunpack.c.h.b16 %v1229
        %v3956 = vunpack.c.l.b16 %v1230
        %v3957 = vunpack.c.h.b16 %v1230
        %v3958 = vunpack.c.l.b16 %v1231
        %v3959 = vunpack.c.h.b16 %v1231
        %v3960 = vunpack.c.l.b16 %v1232
        %v3961 = vunpack.c.h.b16 %v1232
        %v3962 = vunpack.c.l.b16 %v1233
        %v3963 = vunpack.c.h.b16 %v1233
        %v3964 = vunpack.c.l.b16 %v1234
        %v3965 = vunpack.c.h.b16 %v1234
        %v3966 = vunpack.c.l.b16 %v1235
        %v3967 = vunpack.c.h.b16 %v1235
        %v3968 = vunpack.c.l.b16 %v1236
        %v3969 = vunpack.c.h.b16 %v1236
        %v3970 = vunpack.c.l.b16 %v1237
        %v3971 = vunpack.c.h.b16 %v1237
        %v3972 = vunpack.c.l.b16 %v1238
        %v3973 = vunpack.c.h.b16 %v1238
        %v3974 = vunpack.c.l.b16 %v1239
        %v3975 = vunpack.c.h.b16 %v1239
        %v3976 = vunpack.c.l.b16 %v1240
        %v3977 = vunpack.c.h.b16 %v1240
        %v3978 = vunpack.c.l.b16 %v1241
        %v3979 = vunpack.c.h.b16 %v1241
        %v3980 = vunpack.c.l.b16 %v1242
        %v3981 = vunpack.c.h.b16 %v1242
        %v3982 = vunpack.c.l.b16 %v1243
        %v3983 = vunpack.c.h.b16 %v1243
        %v3984 = vunpack.c.l.b16 %v1244
        %v3985 = vunpack.c.h.b16 %v1244
        %v3986 = vunpack.c.l.b16 %v1245
        %v3987 = vunpack.c.h.b16 %v1245
        %v3988 = vunpack.c.l.b16 %v1246
        %v3989 = vunpack.c.h.b16 %v1246
        %v3990 = vunpack.c.l.b16 %v1247
        %v3991 = vunpack.c.h.b16 %v1247
        %v3992 = vunpack.c.l.b16 %v1248
        %v3993 = vunpack.c.h.b16 %v1248
        %v3994 = vunpack.c.l.b16 %v1249
        %v3995 = vunpack.c.h.b16 %v1249
        %v3996 = vunpack.c.l.b16 %v1250
        %v3997 = vunpack.c.h.b16 %v1250
        %v3998 = vunpack.c.l.b16 %v1251
        %v3999 = vunpack.c.h.b16 %v1251
        %v4000 = vunpack.c.l.b16 %v1252
        %v4001 = vunpack.c.h.b16 %v1252
        %v4002 = vunpack.c.l.b16 %v1253
        %v4003 = vunpack.c.h.b16 %v1253
        %v4004 = vunpack.c.l.b16 %v1254
        %v4005 = vunpack.c.h.b16 %v1254
        %v4006 = vunpack.c.l.b16 %v1255
        %v4007 = vunpack.c.h.b16 %v1255
        %v4008 = vunpack.c.l.b16 %v1256
        %v4009 = vunpack.c.h.b16 %v1256
        %v4010 = vunpack.c.l.b16 %v1257
        %v4011 = vunpack.c.h.b16 %v1257
        %v4012 = vunpack.c.l.b16 %v1258
        %v4013 = vunpack.c.h.b16 %v1258
        %v4014 = vunpack.c.l.b16 %v1259
        %v4015 = vunpack.c.h.b16 %v1259
        %v4016 = vunpack.c.l.b16 %v1260
        %v4017 = vunpack.c.h.b16 %v1260
        %v4018 = vunpack.c.l.b16 %v1261
        %v4019 = vunpack.c.h.b16 %v1261
        %v4020 = vunpack.c.l.b16 %v1262
        %v4021 = vunpack.c.h.b16 %v1262
        %v4022 = vunpack.c.l.b16 %v1263
        %v4023 = vunpack.c.h.b16 %v1263
        %v4024 = vunpack.c.l.b16 %v1264
        %v4025 = vunpack.c.h.b16 %v1264
        %v4026 = vunpack.c.l.b16 %v1265
        %v4027 = vunpack.c.h.b16 %v1265
        %v4028 = vunpack.c.l.b16 %v1266
        %v4029 = vunpack.c.h.b16 %v1266
        %v4030 = vunpack.c.l.b16 %v1267
        %v4031 = vunpack.c.h.b16 %v1267
        %v4032 = vunpack.c.l.b16 %v1268
        %v4033 = vunpack.c.h.b16 %v1268
        %v4034 = vunpack.c.l.b16 %v1269
        %v4035 = vunpack.c.h.b16 %v1269
        %v4036 = vunpack.c.l.b16 %v1270
        %v4037 = vunpack.c.h.b16 %v1270
        %v4038 = vunpack.c.l.b16 %v1271
        %v4039 = vunpack.c.h.b16 %v1271
        %v4040 = vunpack.c.l.b16 %v1272
        %v4041 = vunpack.c.h.b16 %v1272
        %v4042 = vunpack.c.l.b16 %v1273
        %v4043 = vunpack.c.h.b16 %v1273
        %v4044 = vunpack.c.l.b16 %v1274
        %v4045 = vunpack.c.h.b16 %v1274
        %v4046 = vunpack.c.l.b16 %v1275
        %v4047 = vunpack.c.h.b16 %v1275
        %v4048 = vunpack.c.l.b16 %v1276
        %v4049 = vunpack.c.h.b16 %v1276
        %v4050 = vunpack.c.l.b16 %v1277
        %v4051 = vunpack.c.h.b16 %v1277
        %v4052 = vunpack.c.l.b16 %v1278
        %v4053 = vunpack.c.h.b16 %v1278
        %v4054 = vunpack.c.l.b16 %v1279
        %v4055 = vunpack.c.h.b16 %v1279
        %v4056 = vunpack.c.l.b16 %v1280
        %v4057 = vunpack.c.h.b16 %v1280
        %v4058 = vunpack.c.l.b16 %v1281
        %v4059 = vunpack.c.h.b16 %v1281
        %v4060 = vunpack.c.l.b16 %v1282
        %v4061 = vunpack.c.h.b16 %v1282
        %v4062 = vunpack.c.l.b16 %v1283
        %v4063 = vunpack.c.h.b16 %v1283
        %v4064 = vunpack.c.l.b16 %v1284
        %v4065 = vunpack.c.h.b16 %v1284
        %v4066 = vunpack.c.l.b16 %v1285
        %v4067 = vunpack.c.h.b16 %v1285
        %v4068 = vunpack.c.l.b16 %v1286
        %v4069 = vunpack.c.h.b16 %v1286
        %v4070 = vunpack.c.l.b16 %v1287
        %v4071 = vunpack.c.h.b16 %v1287
        %v4072 = vunpack.c.l.b16 %v1288
        %v4073 = vunpack.c.h.b16 %v1288
        %v4074 = vunpack.c.l.b16 %v1289
        %v4075 = vunpack.c.h.b16 %v1289
        %v4076 = vunpack.c.l.b16 %v1290
        %v4077 = vunpack.c.h.b16 %v1290
        %v4078 = vunpack.c.l.b16 %v1291
        %v4079 = vunpack.c.h.b16 %v1291
        %v4080 = vunpack.c.l.b16 %v1292
        %v4081 = vunpack.c.h.b16 %v1292
        %v4082 = vunpack.c.l.b16 %v1293
        %v4083 = vunpack.c.h.b16 %v1293
        %v4084 = vunpack.c.l.b16 %v1294
        %v4085 = vunpack.c.h.b16 %v1294
        %v4086 = vunpack.c.l.b16 %v1295
        %v4087 = vunpack.c.h.b16 %v1295
        %v4088 = vunpack.c.l.b16 %v1296
        %v4089 = vunpack.c.h.b16 %v1296
        %v4090 = vunpack.c.l.b16 %v1297
        %v4091 = vunpack.c.h.b16 %v1297
        %v4092 = vunpack.c.l.b16 %v1298
        %v4093 = vunpack.c.h.b16 %v1298
        %v4094 = vunpack.c.l.b16 %v1299
        %v4095 = vunpack.c.h.b16 %v1299
        %v4096 = vunpack.c.l.b16 %v1300
        %v4097 = vunpack.c.h.b16 %v1300
        %v4098 = vunpack.c.l.b16 %v1301
        %v4099 = vunpack.c.h.b16 %v1301
        %v4100 = vunpack.c.l.b16 %v1302
        %v4101 = vunpack.c.h.b16 %v1302
        %v4102 = vunpack.c.l.b16 %v1303
        %v4103 = vunpack.c.h.b16 %v1303
        %v4104 = vunpack.c.l.b16 %v1304
        %v4105 = vunpack.c.h.b16 %v1304
        %v4106 = vunpack.c.l.b16 %v1305
        %v4107 = vunpack.c.h.b16 %v1305
        %v4108 = vunpack.c.l.b16 %v1306
        %v4109 = vunpack.c.h.b16 %v1306
        %v4110 = vunpack.c.l.b16 %v1307
        %v4111 = vunpack.c.h.b16 %v1307
        %v4112 = vunpack.c.l.b16 %v1308
        %v4113 = vunpack.c.h.b16 %v1308
        %v4114 = vunpack.c.l.b16 %v1309
        %v4115 = vunpack.c.h.b16 %v1309
        %v4116 = vunpack.c.l.b16 %v1310
        %v4117 = vunpack.c.h.b16 %v1310
        %v4118 = vunpack.c.l.b16 %v1311
        %v4119 = vunpack.c.h.b16 %v1311
        %v4120 = vunpack.c.l.b16 %v1312
        %v4121 = vunpack.c.h.b16 %v1312
        %v4122 = vunpack.c.l.b16 %v1313
        %v4123 = vunpack.c.h.b16 %v1313
        %v4124 = vunpack.c.l.b16 %v1314
        %v4125 = vunpack.c.h.b16 %v1314
        %v4126 = vunpack.c.l.b16 %v1315
        %v4127 = vunpack.c.h.b16 %v1315
        %v4128 = vunpack.c.l.b16 %v1316
        %v4129 = vunpack.c.h.b16 %v1316
        %v4130 = vunpack.c.l.b16 %v1317
        %v4131 = vunpack.c.h.b16 %v1317
        %v4132 = vunpack.c.l.b16 %v1318
        %v4133 = vunpack.c.h.b16 %v1318
        %v4134 = vunpack.c.l.b16 %v1319
        %v4135 = vunpack.c.h.b16 %v1319
        %v4136 = vunpack.c.l.b16 %v1320
        %v4137 = vunpack.c.h.b16 %v1320
        %v4138 = vunpack.c.l.b16 %v1321
        %v4139 = vunpack.c.h.b16 %v1321
        %v4140 = vunpack.c.l.b16 %v1322
        %v4141 = vunpack.c.h.b16 %v1322
        %v4142 = vunpack.c.l.b16 %v1323
        %v4143 = vunpack.c.h.b16 %v1323
        %v4144 = vunpack.c.l.b16 %v1324
        %v4145 = vunpack.c.h.b16 %v1324
        %v4146 = vunpack.c.l.b16 %v1325
        %v4147 = vunpack.c.h.b16 %v1325
        %v4148 = vunpack.c.l.b16 %v1326
        %v4149 = vunpack.c.h.b16 %v1326
        %v4150 = vunpack.c.l.b16 %v1327
        %v4151 = vunpack.c.h.b16 %v1327
        %v4152 = vunpack.c.l.b16 %v1328
        %v4153 = vunpack.c.h.b16 %v1328
        %v4154 = vunpack.c.l.b16 %v1329
        %v4155 = vunpack.c.h.b16 %v1329
        %v4156 = vunpack.c.l.b16 %v1330
        %v4157 = vunpack.c.h.b16 %v1330
        %v4158 = vunpack.c.l.b16 %v1331
        %v4159 = vunpack.c.h.b16 %v1331
        %v4160 = vunpack.c.l.b16 %v1332
        %v4161 = vunpack.c.h.b16 %v1332
        %v4162 = vunpack.c.l.b16 %v1333
        %v4163 = vunpack.c.h.b16 %v1333
        %v4164 = vunpack.c.l.b16 %v1334
        %v4165 = vunpack.c.h.b16 %v1334
        %v4166 = vunpack.c.l.b16 %v1335
        %v4167 = vunpack.c.h.b16 %v1335
        %v4168 = vunpack.c.l.b16 %v1336
        %v4169 = vunpack.c.h.b16 %v1336
        %v4170 = vunpack.c.l.b16 %v1337
        %v4171 = vunpack.c.h.b16 %v1337
        %v4172 = vunpack.c.l.b16 %v1338
        %v4173 = vunpack.c.h.b16 %v1338
        %v4174 = vunpack.c.l.b16 %v1339
        %v4175 = vunpack.c.h.b16 %v1339
        %v4176 = vunpack.c.l.b16 %v1340
        %v4177 = vunpack.c.h.b16 %v1340
        %v4178 = vunpack.c.l.b16 %v1341
        %v4179 = vunpack.c.h.b16 %v1341
        %v4180 = vunpack.c.l.b16 %v1342
        %v4181 = vunpack.c.h.b16 %v1342
        %v4182 = vunpack.c.l.b16 %v1343
        %v4183 = vunpack.c.h.b16 %v1343
        %v4184 = vunpack.c.l.b16 %v1344
        %v4185 = vunpack.c.h.b16 %v1344
        %v4186 = vunpack.c.l.b16 %v1345
        %v4187 = vunpack.c.h.b16 %v1345
        %v4188 = vunpack.c.l.b16 %v1346
        %v4189 = vunpack.c.h.b16 %v1346
        %v4190 = vunpack.c.l.b16 %v1347
        %v4191 = vunpack.c.h.b16 %v1347
        %v4192 = vunpack.c.l.b16 %v1348
        %v4193 = vunpack.c.h.b16 %v1348
        %v4194 = vunpack.c.l.b16 %v1349
        %v4195 = vunpack.c.h.b16 %v1349
        %v4196 = vunpack.c.l.b16 %v1350
        %v4197 = vunpack.c.h.b16 %v1350
        %v4198 = vunpack.c.l.b16 %v1351
        %v4199 = vunpack.c.h.b16 %v1351
        %v4200 = vunpack.c.l.b16 %v1352
        %v4201 = vunpack.c.h.b16 %v1352
        %v4202 = vunpack.c.l.b16 %v1353
        %v4203 = vunpack.c.h.b16 %v1353
        %v4204 = vunpack.c.l.b16 %v1354
        %v4205 = vunpack.c.h.b16 %v1354
        %v4206 = vunpack.c.l.b16 %v1355
        %v4207 = vunpack.c.h.b16 %v1355
        %v4208 = vunpack.c.l.b16 %v1356
        %v4209 = vunpack.c.h.b16 %v1356
        %v4210 = vunpack.c.l.b16 %v1357
        %v4211 = vunpack.c.h.b16 %v1357
        %v4212 = vunpack.c.l.b16 %v1358
        %v4213 = vunpack.c.h.b16 %v1358
        %v4214 = vunpack.c.l.b16 %v1359
        %v4215 = vunpack.c.h.b16 %v1359
        %v4216 = vunpack.c.l.b16 %v1360
        %v4217 = vunpack.c.h.b16 %v1360
        %v4218 = vunpack.c.l.b16 %v1361
        %v4219 = vunpack.c.h.b16 %v1361
        %v4220 = vunpack.c.l.b16 %v1362
        %v4221 = vunpack.c.h.b16 %v1362
        %v4222 = vunpack.c.l.b16 %v1363
        %v4223 = vunpack.c.h.b16 %v1363
        %v4224 = vunpack.c.l.b16 %v1364
        %v4225 = vunpack.c.h.b16 %v1364
        %v4226 = vunpack.c.l.b16 %v1365
        %v4227 = vunpack.c.h.b16 %v1365
        %v4228 = vunpack.c.l.b16 %v1366
        %v4229 = vunpack.c.h.b16 %v1366
        %v4230 = vunpack.c.l.b16 %v1367
        %v4231 = vunpack.c.h.b16 %v1367
        %v4232 = vunpack.c.l.b16 %v1368
        %v4233 = vunpack.c.h.b16 %v1368
        %v4234 = vunpack.c.l.b16 %v1369
        %v4235 = vunpack.c.h.b16 %v1369
        %v4236 = vunpack.c.l.b16 %v1370
        %v4237 = vunpack.c.h.b16 %v1370
        %v4238 = vunpack.c.l.b16 %v1371
        %v4239 = vunpack.c.h.b16 %v1371
        %v4240 = vunpack.c.l.b16 %v1372
        %v4241 = vunpack.c.h.b16 %v1372
        %v4242 = vunpack.c.l.b16 %v1373
        %v4243 = vunpack.c.h.b16 %v1373
        %v4244 = vunpack.c.l.b16 %v1374
        %v4245 = vunpack.c.h.b16 %v1374
        %v4246 = vunpack.c.l.b16 %v1375
        %v4247 = vunpack.c.h.b16 %v1375
        %v4248 = vunpack.c.l.b16 %v1376
        %v4249 = vunpack.c.h.b16 %v1376
        %v4250 = vunpack.c.l.b16 %v1377
        %v4251 = vunpack.c.h.b16 %v1377
        %v4252 = vunpack.c.l.b16 %v1378
        %v4253 = vunpack.c.h.b16 %v1378
        %v4254 = vunpack.c.l.b16 %v1379
        %v4255 = vunpack.c.h.b16 %v1379
        %v4256 = vunpack.c.l.b16 %v1380
        %v4257 = vunpack.c.h.b16 %v1380
        %v4258 = vunpack.c.l.b16 %v1381
        %v4259 = vunpack.c.h.b16 %v1381
        %v4260 = vunpack.c.l.b16 %v1382
        %v4261 = vunpack.c.h.b16 %v1382
        %v4262 = vunpack.c.l.b16 %v1383
        %v4263 = vunpack.c.h.b16 %v1383
        %v4264 = vunpack.c.l.b16 %v1384
        %v4265 = vunpack.c.h.b16 %v1384
        %v4266 = vunpack.c.l.b16 %v1385
        %v4267 = vunpack.c.h.b16 %v1385
        %v4268 = vunpack.c.l.b16 %v1386
        %v4269 = vunpack.c.h.b16 %v1386
        %v4270 = vunpack.c.l.b16 %v1387
        %v4271 = vunpack.c.h.b16 %v1387
        %v4272 = vunpack.c.l.b16 %v1388
        %v4273 = vunpack.c.h.b16 %v1388
        %v4274 = vunpack.c.l.b16 %v1389
        %v4275 = vunpack.c.h.b16 %v1389
        %v4276 = vunpack.c.l.b16 %v1390
        %v4277 = vunpack.c.h.b16 %v1390
        %v4278 = vunpack.c.l.b16 %v1391
        %v4279 = vunpack.c.h.b16 %v1391
        %v4280 = vunpack.c.l.b16 %v1392
        %v4281 = vunpack.c.h.b16 %v1392
        %v4282 = vunpack.c.l.b16 %v1393
        %v4283 = vunpack.c.h.b16 %v1393
        %v4284 = vunpack.c.l.b16 %v1394
        %v4285 = vunpack.c.h.b16 %v1394
        %v4286 = vunpack.c.l.b16 %v1395
        %v4287 = vunpack.c.h.b16 %v1395
        %v4288 = vunpack.c.l.b16 %v1396
        %v4289 = vunpack.c.h.b16 %v1396
        %v4290 = vunpack.c.l.b16 %v1397
        %v4291 = vunpack.c.h.b16 %v1397
        %v4292 = vunpack.c.l.b16 %v1398
        %v4293 = vunpack.c.h.b16 %v1398
        %v4294 = vunpack.c.l.b16 %v1399
        %v4295 = vunpack.c.h.b16 %v1399
        %v4296 = vunpack.c.l.b16 %v1400
        %v4297 = vunpack.c.h.b16 %v1400
        %v4298 = vunpack.c.l.b16 %v1401
        %v4299 = vunpack.c.h.b16 %v1401
        %v4300 = vunpack.c.l.b16 %v1402
        %v4301 = vunpack.c.h.b16 %v1402
        %v4302 = vunpack.c.l.b16 %v1403
        %v4303 = vunpack.c.h.b16 %v1403
        %v4304 = vunpack.c.l.b16 %v1404
        %v4305 = vunpack.c.h.b16 %v1404
        %v4306 = vunpack.c.l.b16 %v1405
        %v4307 = vunpack.c.h.b16 %v1405
        %v4308 = vunpack.c.l.b16 %v1406
        %v4309 = vunpack.c.h.b16 %v1406
        %v4310 = vunpack.c.l.b16 %v1407
        %v4311 = vunpack.c.h.b16 %v1407
        %v4312 = vunpack.c.l.b16 %v1408
        %v4313 = vunpack.c.h.b16 %v1408
        %v4314 = vunpack.c.l.b16 %v1409
        %v4315 = vunpack.c.h.b16 %v1409
        %v4316 = vunpack.c.l.b16 %v1410
        %v4317 = vunpack.c.h.b16 %v1410
        %v4318 = vunpack.c.l.b16 %v1411
        %v4319 = vunpack.c.h.b16 %v1411
        %v4320 = vunpack.c.l.b16 %v1412
        %v4321 = vunpack.c.h.b16 %v1412
        %v4322 = vunpack.c.l.b16 %v1413
        %v4323 = vunpack.c.h.b16 %v1413
        %v4324 = vunpack.c.l.b16 %v1414
        %v4325 = vunpack.c.h.b16 %v1414
        %v4326 = vunpack.c.l.b16 %v1415
        %v4327 = vunpack.c.h.b16 %v1415
        %v4328 = vunpack.c.l.b16 %v1416
        %v4329 = vunpack.c.h.b16 %v1416
        %v4330 = vunpack.c.l.b16 %v1417
        %v4331 = vunpack.c.h.b16 %v1417
        %v4332 = vunpack.c.l.b16 %v1418
        %v4333 = vunpack.c.h.b16 %v1418
        %v4334 = vunpack.c.l.b16 %v1419
        %v4335 = vunpack.c.h.b16 %v1419
        %v4336 = vunpack.c.l.b16 %v1420
        %v4337 = vunpack.c.h.b16 %v1420
        %v4338 = vunpack.c.l.b16 %v1421
        %v4339 = vunpack.c.h.b16 %v1421
        %v4340 = vunpack.c.l.b16 %v1422
        %v4341 = vunpack.c.h.b16 %v1422
        %v4342 = vunpack.c.l.b16 %v1423
        %v4343 = vunpack.c.h.b16 %v1423
        %v4344 = vunpack.c.l.b16 %v1424
        %v4345 = vunpack.c.h.b16 %v1424
        %v4346 = vunpack.c.l.b16 %v1425
        %v4347 = vunpack.c.h.b16 %v1425
        %v4348 = vunpack.c.l.b16 %v1426
        %v4349 = vunpack.c.h.b16 %v1426
        %v4350 = vunpack.c.l.b16 %v1427
        %v4351 = vunpack.c.h.b16 %v1427
        %v4352 = vunpack.c.l.b16 %v1428
        %v4353 = vunpack.c.h.b16 %v1428
        %v4354 = vunpack.c.l.b16 %v1429
        %v4355 = vunpack.c.h.b16 %v1429
        %v4356 = vunpack.c.l.b16 %v1430
        %v4357 = vunpack.c.h.b16 %v1430
        %v4358 = vunpack.c.l.b16 %v1431
        %v4359 = vunpack.c.h.b16 %v1431
        %v4360 = vunpack.c.l.b16 %v1432
        %v4361 = vunpack.c.h.b16 %v1432
        %v4362 = vunpack.c.l.b16 %v1433
        %v4363 = vunpack.c.h.b16 %v1433
        %v4364 = vunpack.c.l.b16 %v1434
        %v4365 = vunpack.c.h.b16 %v1434
        %v4366 = vunpack.c.l.b16 %v1435
        %v4367 = vunpack.c.h.b16 %v1435
        %v4368 = vunpack.c.l.b16 %v1436
        %v4369 = vunpack.c.h.b16 %v1436
        %v4370 = vunpack.c.l.b16 %v1437
        %v4371 = vunpack.c.h.b16 %v1437
        %v4372 = vunpack.c.l.b16 %v1438
        %v4373 = vunpack.c.h.b16 %v1438
        %v4374 = vunpack.c.l.b16 %v1439
        %v4375 = vunpack.c.h.b16 %v1439
        %v4376 = vunpack.c.l.b16 %v1440
        %v4377 = vunpack.c.h.b16 %v1440
        %v4378 = vunpack.c.l.b16 %v1441
        %v4379 = vunpack.c.h.b16 %v1441
        %v4380 = vunpack.c.l.b16 %v1442
        %v4381 = vunpack.c.h.b16 %v1442
        %v4382 = vunpack.c.l.b16 %v1443
        %v4383 = vunpack.c.h.b16 %v1443
        %v4384 = vunpack.c.l.b16 %v1444
        %v4385 = vunpack.c.h.b16 %v1444
        %v4386 = vunpack.c.l.b16 %v1445
        %v4387 = vunpack.c.h.b16 %v1445
        %v4388 = vunpack.c.l.b16 %v1446
        %v4389 = vunpack.c.h.b16 %v1446
        %v4390 = vunpack.c.l.b16 %v1447
        %v4391 = vunpack.c.h.b16 %v1447
        %v4392 = vunpack.c.l.b16 %v1448
        %v4393 = vunpack.c.h.b16 %v1448
        %v4394 = vunpack.c.l.b16 %v1449
        %v4395 = vunpack.c.h.b16 %v1449
        %v4396 = vunpack.c.l.b16 %v1450
        %v4397 = vunpack.c.h.b16 %v1450
        %v4398 = vunpack.c.l.b16 %v1451
        %v4399 = vunpack.c.h.b16 %v1451
        %v4400 = vunpack.c.l.b16 %v1452
        %v4401 = vunpack.c.h.b16 %v1452
        %v4402 = vunpack.c.l.b16 %v1453
        %v4403 = vunpack.c.h.b16 %v1453
        %v4404 = vunpack.c.l.b16 %v1454
        %v4405 = vunpack.c.h.b16 %v1454
        %v4406 = vunpack.c.l.b16 %v1455
        %v4407 = vunpack.c.h.b16 %v1455
        %v4408 = vunpack.c.l.b16 %v1456
        %v4409 = vunpack.c.h.b16 %v1456
        %v4410 = vunpack.c.l.b16 %v1457
        %v4411 = vunpack.c.h.b16 %v1457
        %v4412 = vunpack.c.l.b16 %v1458
        %v4413 = vunpack.c.h.b16 %v1458
        %v4414 = vunpack.c.l.b16 %v1459
        %v4415 = vunpack.c.h.b16 %v1459
        %v4416 = vunpack.c.l.b16 %v1460
        %v4417 = vunpack.c.h.b16 %v1460
        %v4418 = vunpack.c.l.b16 %v1461
        %v4419 = vunpack.c.h.b16 %v1461
        %v4420 = vunpack.c.l.b16 %v1462
        %v4421 = vunpack.c.h.b16 %v1462
        %v4422 = vunpack.c.l.b16 %v1463
        %v4423 = vunpack.c.h.b16 %v1463
        %v4424 = vunpack.c.l.b16 %v1464
        %v4425 = vunpack.c.h.b16 %v1464
        %v4426 = vunpack.c.l.b16 %v1465
        %v4427 = vunpack.c.h.b16 %v1465
        %v4428 = vunpack.c.l.b16 %v1466
        %v4429 = vunpack.c.h.b16 %v1466
        %v4430 = vunpack.c.l.b16 %v1467
        %v4431 = vunpack.c.h.b16 %v1467
        %v4432 = vunpack.c.l.b16 %v1468
        %v4433 = vunpack.c.h.b16 %v1468
        %v4434 = vunpack.c.l.b16 %v1469
        %v4435 = vunpack.c.h.b16 %v1469
        %v4436 = vunpack.c.l.b16 %v1470
        %v4437 = vunpack.c.h.b16 %v1470
        %v4438 = vunpack.c.l.b16 %v1471
        %v4439 = vunpack.c.h.b16 %v1471
        %v4440 = vunpack.c.l.b16 %v1472
        %v4441 = vunpack.c.h.b16 %v1472
        %v4442 = vunpack.c.l.b16 %v1473
        %v4443 = vunpack.c.h.b16 %v1473
        %v4444 = vunpack.c.l.b16 %v1474
        %v4445 = vunpack.c.h.b16 %v1474
        %v4446 = vunpack.c.l.b16 %v1475
        %v4447 = vunpack.c.h.b16 %v1475
        %v4448 = vunpack.c.l.b16 %v1476
        %v4449 = vunpack.c.h.b16 %v1476
        %v4450 = vunpack.c.l.b16 %v1477
        %v4451 = vunpack.c.h.b16 %v1477
        %v4452 = vunpack.c.l.b16 %v1478
        %v4453 = vunpack.c.h.b16 %v1478
        %v4454 = vunpack.c.l.b16 %v1479
        %v4455 = vunpack.c.h.b16 %v1479
        %v4456 = vunpack.c.l.b16 %v1480
        %v4457 = vunpack.c.h.b16 %v1480
        %v4458 = vunpack.c.l.b16 %v1481
        %v4459 = vunpack.c.h.b16 %v1481
        %v4460 = vunpack.c.l.b16 %v1482
        %v4461 = vunpack.c.h.b16 %v1482
        %v4462 = vunpack.c.l.b16 %v1483
        %v4463 = vunpack.c.h.b16 %v1483
        %v4464 = vunpack.c.l.b16 %v1484
        %v4465 = vunpack.c.h.b16 %v1484
        %v4466 = vunpack.c.l.b16 %v1485
        %v4467 = vunpack.c.h.b16 %v1485
        %v4468 = vunpack.c.l.b16 %v1486
        %v4469 = vunpack.c.h.b16 %v1486
        %v4470 = vunpack.c.l.b16 %v1487
        %v4471 = vunpack.c.h.b16 %v1487
        %v4472 = vunpack.c.l.b16 %v1488
        %v4473 = vunpack.c.h.b16 %v1488
        %v4474 = vunpack.c.l.b16 %v1489
        %v4475 = vunpack.c.h.b16 %v1489
        %v4476 = vunpack.c.l.b16 %v1490
        %v4477 = vunpack.c.h.b16 %v1490
        %v4478 = vunpack.c.l.b16 %v1491
        %v4479 = vunpack.c.h.b16 %v1491
        %v4480 = vunpack.c.l.b16 %v1492
        %v4481 = vunpack.c.h.b16 %v1492
        %v4482 = vunpack.c.l.b16 %v1493
        %v4483 = vunpack.c.h.b16 %v1493
        %v4484 = vunpack.c.l.b16 %v1494
        %v4485 = vunpack.c.h.b16 %v1494
        %v4486 = vunpack.c.l.b16 %v1495
        %v4487 = vunpack.c.h.b16 %v1495
        %v4488 = vunpack.c.l.b16 %v1496
        %v4489 = vunpack.c.h.b16 %v1496
        %v4490 = vunpack.c.l.b16 %v1497
        %v4491 = vunpack.c.h.b16 %v1497
        %v4492 = vunpack.c.l.b16 %v1498
        %v4493 = vunpack.c.h.b16 %v1498
        %v4494 = vunpack.c.l.b16 %v1499
        %v4495 = vunpack.c.h.b16 %v1499
        %v4496 = vunpack.c.l.b16 %v1500
        %v4497 = vunpack.c.h.b16 %v1500
        %v4498 = vunpack.c.l.b16 %v1501
        %v4499 = vunpack.c.h.b16 %v1501
        %v4500 = vunpack.c.l.b16 %v1502
        %v4501 = vunpack.c.h.b16 %v1502
        %v4502 = vunpack.c.l.b16 %v1503
        %v4503 = vunpack.c.h.b16 %v1503
        %v4504 = vunpack.c.l.b16 %v1504
        %v4505 = vunpack.c.h.b16 %v1504
        %v4506 = vunpack.c.l.b16 %v1505
        %v4507 = vunpack.c.h.b16 %v1505
        %v4508 = vunpack.c.l.b16 %v1506
        %v4509 = vunpack.c.h.b16 %v1506
        %v4510 = vunpack.c.l.b16 %v1507
        %v4511 = vunpack.c.h.b16 %v1507
        %v4512 = vunpack.c.l.b16 %v1508
        %v4513 = vunpack.c.h.b16 %v1508
        %v4514 = vunpack.c.l.b16 %v1509
        %v4515 = vunpack.c.h.b16 %v1509
        %v4516 = vunpack.c.l.b16 %v1510
        %v4517 = vunpack.c.h.b16 %v1510
        %v4518 = vunpack.c.l.b16 %v1511
        %v4519 = vunpack.c.h.b16 %v1511
        %v4520 = vunpack.c.l.b16 %v1512
        %v4521 = vunpack.c.h.b16 %v1512
        %v4522 = vunpack.c.l.b16 %v1513
        %v4523 = vunpack.c.h.b16 %v1513
        %v4524 = vunpack.c.l.b16 %v1514
        %v4525 = vunpack.c.h.b16 %v1514
        %v4526 = vunpack.c.l.b16 %v1515
        %v4527 = vunpack.c.h.b16 %v1515
        %v4528 = vunpack.c.l.b16 %v1516
        %v4529 = vunpack.c.h.b16 %v1516
        %v4530 = vunpack.c.l.b16 %v1517
        %v4531 = vunpack.c.h.b16 %v1517
        %v4532 = vunpack.c.l.b16 %v1518
        %v4533 = vunpack.c.h.b16 %v1518
        %v4534 = vunpack.c.l.b16 %v1519
        %v4535 = vunpack.c.h.b16 %v1519
        %v4536 = vunpack.c.l.b16 %v1520
        %v4537 = vunpack.c.h.b16 %v1520
        %v4538 = vunpack.c.l.b16 %v1521
        %v4539 = vunpack.c.h.b16 %v1521
        %v4540 = vunpack.c.l.b16 %v1522
        %v4541 = vunpack.c.h.b16 %v1522
        %v4542 = vunpack.c.l.b16 %v1523
        %v4543 = vunpack.c.h.b16 %v1523
        %v4544 = vunpack.c.l.b16 %v1524
        %v4545 = vunpack.c.h.b16 %v1524
        %v4546 = vunpack.c.l.b16 %v1525
        %v4547 = vunpack.c.h.b16 %v1525
        %v4548 = vunpack.c.l.b16 %v1526
        %v4549 = vunpack.c.h.b16 %v1526
        %v4550 = vunpack.c.l.b16 %v1527
        %v4551 = vunpack.c.h.b16 %v1527
        %v4552 = vunpack.c.l.b16 %v1528
        %v4553 = vunpack.c.h.b16 %v1528
        %v4554 = vunpack.c.l.b16 %v1529
        %v4555 = vunpack.c.h.b16 %v1529
        %v4556 = vunpack.c.l.b16 %v1530
        %v4557 = vunpack.c.h.b16 %v1530
        %v4558 = vunpack.c.l.b16 %v1531
        %v4559 = vunpack.c.h.b16 %v1531
        %v4560 = vunpack.c.l.b16 %v1532
        %v4561 = vunpack.c.h.b16 %v1532
        %v4562 = vunpack.c.l.b16 %v1533
        %v4563 = vunpack.c.h.b16 %v1533
        %v4564 = vunpack.c.l.b16 %v1534
        %v4565 = vunpack.c.h.b16 %v1534
        %v4566 = vunpack.c.l.b16 %v1535
        %v4567 = vunpack.c.h.b16 %v1535
        %v4568 = vunpack.c.l.b16 %v1536
        %v4569 = vunpack.c.h.b16 %v1536
        %v4570 = vunpack.c.l.b16 %v1537
        %v4571 = vunpack.c.h.b16 %v1537
        %v4572 = vunpack.c.l.b16 %v1538
        %v4573 = vunpack.c.h.b16 %v1538
        %v4574 = vunpack.c.l.b16 %v1539
        %v4575 = vunpack.c.h.b16 %v1539
        %v4576 = vunpack.c.l.b16 %v1540
        %v4577 = vunpack.c.h.b16 %v1540
        %v4578 = vunpack.c.l.b16 %v1541
        %v4579 = vunpack.c.h.b16 %v1541
        %v4580 = vunpack.c.l.b16 %v1542
        %v4581 = vunpack.c.h.b16 %v1542
        %v4582 = vunpack.c.l.b16 %v1543
        %v4583 = vunpack.c.h.b16 %v1543
        %v4584 = vunpack.c.l.b16 %v1544
        %v4585 = vunpack.c.h.b16 %v1544
        %v4586 = vunpack.c.l.b16 %v1545
        %v4587 = vunpack.c.h.b16 %v1545
        %v4588 = vunpack.c.l.b16 %v1546
        %v4589 = vunpack.c.h.b16 %v1546
        %v4590 = vunpack.c.l.b16 %v1547
        %v4591 = vunpack.c.h.b16 %v1547
        %v4592 = vunpack.c.l.b16 %v1548
        %v4593 = vunpack.c.h.b16 %v1548
        %v4594 = vunpack.c.l.b16 %v1549
        %v4595 = vunpack.c.h.b16 %v1549
        %v4596 = vunpack.c.l.b16 %v1550
        %v4597 = vunpack.c.h.b16 %v1550
        %v4598 = vunpack.c.l.b16 %v1551
        %v4599 = vunpack.c.h.b16 %v1551
        %v4600 = vunpack.c.l.b16 %v1552
        %v4601 = vunpack.c.h.b16 %v1552
        %v4602 = vunpack.c.l.b16 %v1553
        %v4603 = vunpack.c.h.b16 %v1553
        %v4604 = vunpack.c.l.b16 %v1554
        %v4605 = vunpack.c.h.b16 %v1554
        %v4606 = vunpack.c.l.b16 %v1555
        %v4607 = vunpack.c.h.b16 %v1555
        %v4608 = vunpack.c.l.b16 %v1556
        %v4609 = vunpack.c.h.b16 %v1556
        %v4610 = vunpack.c.l.b16 %v1557
        %v4611 = vunpack.c.h.b16 %v1557
        %v4612 = vunpack.c.l.b16 %v1558
        %v4613 = vunpack.c.h.b16 %v1558
        %v4614 = vunpack.c.l.b16 %v1559
        %v4615 = vunpack.c.h.b16 %v1559
        %v4616 = vunpack.c.l.b16 %v1560
        %v4617 = vunpack.c.h.b16 %v1560
        %v4618 = vunpack.c.l.b16 %v1561
        %v4619 = vunpack.c.h.b16 %v1561
        %v4620 = vunpack.c.l.b16 %v1562
        %v4621 = vunpack.c.h.b16 %v1562
        %v4622 = vunpack.c.l.b16 %v1563
        %v4623 = vunpack.c.h.b16 %v1563
        %v4624 = vunpack.c.l.b16 %v1564
        %v4625 = vunpack.c.h.b16 %v1564
        %v4626 = vunpack.c.l.b16 %v1565
        %v4627 = vunpack.c.h.b16 %v1565
        %v4628 = vunpack.c.l.b16 %v1566
        %v4629 = vunpack.c.h.b16 %v1566
        %v4630 = vunpack.c.l.b16 %v1567
        %v4631 = vunpack.c.h.b16 %v1567
        %v4632 = vunpack.c.l.b16 %v1568
        %v4633 = vunpack.c.h.b16 %v1568
        %v4634 = vunpack.c.l.b16 %v1569
        %v4635 = vunpack.c.h.b16 %v1569
        %v4636 = vunpack.c.l.b16 %v1570
        %v4637 = vunpack.c.h.b16 %v1570
        %v4638 = vunpack.c.l.b16 %v1571
        %v4639 = vunpack.c.h.b16 %v1571
        %v4640 = vunpack.c.l.b16 %v1572
        %v4641 = vunpack.c.h.b16 %v1572
        %v4642 = vunpack.c.l.b16 %v1573
        %v4643 = vunpack.c.h.b16 %v1573
        %v4644 = vunpack.c.l.b16 %v1574
        %v4645 = vunpack.c.h.b16 %v1574
        %v4646 = vunpack.c.l.b16 %v1575
        %v4647 = vunpack.c.h.b16 %v1575
        %v4648 = vunpack.c.l.b16 %v1576
        %v4649 = vunpack.c.h.b16 %v1576
        %v4650 = vunpack.c.l.b16 %v1577
        %v4651 = vunpack.c.h.b16 %v1577
        %v4652 = vunpack.c.l.b16 %v1578
        %v4653 = vunpack.c.h.b16 %v1578
        %v4654 = vunpack.c.l.b16 %v1579
        %v4655 = vunpack.c.h.b16 %v1579
        %v4656 = vpack.c.b16 %v2640, %v2608
        %v4657 = vpack.c.b16 %v2641, %v2609
        %v4658 = vpack.c.b16 %v2642, %v2610
        %v4659 = vpack.c.b16 %v2643, %v2611
        %v4660 = vpack.c.b16 %v2644, %v2612
        %v4661 = vpack.c.b16 %v2645, %v2613
        %v4662 = vpack.c.b16 %v2646, %v2614
        %v4663 = vpack.c.b16 %v2647, %v2615
        %v4664 = vpack.c.b16 %v2648, %v2616
        %v4665 = vpack.c.b16 %v2649, %v2617
        %v4666 = vpack.c.b16 %v2650, %v2618
        %v4667 = vpack.c.b16 %v2651, %v2619
        %v4668 = vpack.c.b16 %v2652, %v2620
        %v4669 = vpack.c.b16 %v2653, %v2621
        %v4670 = vpack.c.b16 %v2654, %v2622
        %v4671 = vpack.c.b16 %v2655, %v2623
        %v4672 = vpack.c.b16 %v2656, %v2624
        %v4673 = vpack.c.b16 %v2657, %v2625
        %v4674 = vpack.c.b16 %v2658, %v2626
        %v4675 = vpack.c.b16 %v2659, %v2627
        %v4676 = vpack.c.b16 %v2660, %v2628
        %v4677 = vpack.c.b16 %v2661, %v2629
        %v4678 = vpack.c.b16 %v2662, %v2630
        %v4679 = vpack.c.b16 %v2663, %v2631
        %v4680 = vpack.c.b16 %v2664, %v2632
        %v4681 = vpack.c.b16 %v2665, %v2633
        %v4682 = vpack.c.b16 %v2666, %v2634
        %v4683 = vpack.c.b16 %v2667, %v2635
        %v4684 = vpack.c.b16 %v2668, %v2636
        %v4685 = vpack.c.b16 %v2669, %v2637
        %v4686 = vpack.c.b16 %v2670, %v2638
        %v4687 = vpack.c.b16 %v2671, %v2639
        %v4688 = vpack.c.b16 %v2704, %v2672
        %v4689 = vpack.c.b16 %v2705, %v2673
        %v4690 = vpack.c.b16 %v2706, %v2674
        %v4691 = vpack.c.b16 %v2707, %v2675
        %v4692 = vpack.c.b16 %v2708, %v2676
        %v4693 = vpack.c.b16 %v2709, %v2677
        %v4694 = vpack.c.b16 %v2710, %v2678
        %v4695 = vpack.c.b16 %v2711, %v2679
        %v4696 = vpack.c.b16 %v2712, %v2680
        %v4697 = vpack.c.b16 %v2713, %v2681
        %v4698 = vpack.c.b16 %v2714, %v2682
        %v4699 = vpack.c.b16 %v2715, %v2683
        %v4700 = vpack.c.b16 %v2716, %v2684
        %v4701 = vpack.c.b16 %v2717, %v2685
        %v4702 = vpack.c.b16 %v2718, %v2686
        %v4703 = vpack.c.b16 %v2719, %v2687
        %v4704 = vpack.c.b16 %v2720, %v2688
        %v4705 = vpack.c.b16 %v2721, %v2689
        %v4706 = vpack.c.b16 %v2722, %v2690
        %v4707 = vpack.c.b16 %v2723, %v2691
        %v4708 = vpack.c.b16 %v2724, %v2692
        %v4709 = vpack.c.b16 %v2725, %v2693
        %v4710 = vpack.c.b16 %v2726, %v2694
        %v4711 = vpack.c.b16 %v2727, %v2695
        %v4712 = vpack.c.b16 %v2728, %v2696
        %v4713 = vpack.c.b16 %v2729, %v2697
        %v4714 = vpack.c.b16 %v2730, %v2698
        %v4715 = vpack.c.b16 %v2731, %v2699
        %v4716 = vpack.c.b16 %v2732, %v2700
        %v4717 = vpack.c.b16 %v2733, %v2701
        %v4718 = vpack.c.b16 %v2734, %v2702
        %v4719 = vpack.c.b16 %v2735, %v2703
        %v4720 = vpack.c.b16 %v2768, %v2736
        %v4721 = vpack.c.b16 %v2769, %v2737
        %v4722 = vpack.c.b16 %v2770, %v2738
        %v4723 = vpack.c.b16 %v2771, %v2739
        %v4724 = vpack.c.b16 %v2772, %v2740
        %v4725 = vpack.c.b16 %v2773, %v2741
        %v4726 = vpack.c.b16 %v2774, %v2742
        %v4727 = vpack.c.b16 %v2775, %v2743
        %v4728 = vpack.c.b16 %v2776, %v2744
        %v4729 = vpack.c.b16 %v2777, %v2745
        %v4730 = vpack.c.b16 %v2778, %v2746
        %v4731 = vpack.c.b16 %v2779, %v2747
        %v4732 = vpack.c.b16 %v2780, %v2748
        %v4733 = vpack.c.b16 %v2781, %v2749
        %v4734 = vpack.c.b16 %v2782, %v2750
        %v4735 = vpack.c.b16 %v2783, %v2751
        %v4736 = vpack.c.b16 %v2784, %v2752
        %v4737 = vpack.c.b16 %v2785, %v2753
        %v4738 = vpack.c.b16 %v2786, %v2754
        %v4739 = vpack.c.b16 %v2787, %v2755
        %v4740 = vpack.c.b16 %v2788, %v2756
        %v4741 = vpack.c.b16 %v2789, %v2757
        %v4742 = vpack.c.b16 %v2790, %v2758
        %v4743 = vpack.c.b16 %v2791, %v2759
        %v4744 = vpack.c.b16 %v2792, %v2760
        %v4745 = vpack.c.b16 %v2793, %v2761
        %v4746 = vpack.c.b16 %v2794, %v2762
        %v4747 = vpack.c.b16 %v2795, %v2763
        %v4748 = vpack.c.b16 %v2796, %v2764
        %v4749 = vpack.c.b16 %v2797, %v2765
        %v4750 = vpack.c.b16 %v2798, %v2766
        %v4751 = vpack.c.b16 %v2799, %v2767
        %v4752 = vpack.c.b16 %v2832, %v2800
        %v4753 = vpack.c.b16 %v2833, %v2801
        %v4754 = vpack.c.b16 %v2834, %v2802
        %v4755 = vpack.c.b16 %v2835, %v2803
        %v4756 = vpack.c.b16 %v2836, %v2804
        %v4757 = vpack.c.b16 %v2837, %v2805
        %v4758 = vpack.c.b16 %v2838, %v2806
        %v4759 = vpack.c.b16 %v2839, %v2807
        %v4760 = vpack.c.b16 %v2840, %v2808
        %v4761 = vpack.c.b16 %v2841, %v2809
        %v4762 = vpack.c.b16 %v2842, %v2810
        %v4763 = vpack.c.b16 %v2843, %v2811
        %v4764 = vpack.c.b16 %v2844, %v2812
        %v4765 = vpack.c.b16 %v2845, %v2813
        %v4766 = vpack.c.b16 %v2846, %v2814
        %v4767 = vpack.c.b16 %v2847, %v2815
        %v4768 = vpack.c.b16 %v2848, %v2816
        %v4769 = vpack.c.b16 %v2849, %v2817
        %v4770 = vpack.c.b16 %v2850, %v2818
        %v4771 = vpack.c.b16 %v2851, %v2819
        %v4772 = vpack.c.b16 %v2852, %v2820
        %v4773 = vpack.c.b16 %v2853, %v2821
        %v4774 = vpack.c.b16 %v2854, %v2822
        %v4775 = vpack.c.b16 %v2855, %v2823
        %v4776 = vpack.c.b16 %v2856, %v2824
        %v4777 = vpack.c.b16 %v2857, %v2825
        %v4778 = vpack.c.b16 %v2858, %v2826
        %v4779 = vpack.c.b16 %v2859, %v2827
        %v4780 = vpack.c.b16 %v2860, %v2828
        %v4781 = vpack.c.b16 %v2861, %v2829
        %v4782 = vpack.c.b16 %v2862, %v2830
        %v4783 = vpack.c.b16 %v2863, %v2831
        %v4784 = vpack.c.b16 %v2896, %v2864
        %v4785 = vpack.c.b16 %v2897, %v2865
        %v4786 = vpack.c.b16 %v2898, %v2866
        %v4787 = vpack.c.b16 %v2899, %v2867
        %v4788 = vpack.c.b16 %v2900, %v2868
        %v4789 = vpack.c.b16 %v2901, %v2869
        %v4790 = vpack.c.b16 %v2902, %v2870
        %v4791 = vpack.c.b16 %v2903, %v2871
        %v4792 = vpack.c.b16 %v2904, %v2872
        %v4793 = vpack.c.b16 %v2905, %v2873
        %v4794 = vpack.c.b16 %v2906, %v2874
        %v4795 = vpack.c.b16 %v2907, %v2875
        %v4796 = vpack.c.b16 %v2908, %v2876
        %v4797 = vpack.c.b16 %v2909, %v2877
        %v4798 = vpack.c.b16 %v2910, %v2878
        %v4799 = vpack.c.b16 %v2911, %v2879
        %v4800 = vpack.c.b16 %v2912, %v2880
        %v4801 = vpack.c.b16 %v2913, %v2881
        %v4802 = vpack.c.b16 %v2914, %v2882
        %v4803 = vpack.c.b16 %v2915, %v2883
        %v4804 = vpack.c.b16 %v2916, %v2884
        %v4805 = vpack.c.b16 %v2917, %v2885
        %v4806 = vpack.c.b16 %v2918, %v2886
        %v4807 = vpack.c.b16 %v2919, %v2887
        %v4808 = vpack.c.b16 %v2920, %v2888
        %v4809 = vpack.c.b16 %v2921, %v2889
        %v4810 = vpack.c.b16 %v2922, %v2890
        %v4811 = vpack.c.b16 %v2923, %v2891
        %v4812 = vpack.c.b16 %v2924, %v2892
        %v4813 = vpack.c.b16 %v2925, %v2893
        %v4814 = vpack.c.b16 %v2926, %v2894
        %v4815 = vpack.c.b16 %v2927, %v2895
        %v4816 = vpack.c.b16 %v2960, %v2928
        %v4817 = vpack.c.b16 %v2961, %v2929
        %v4818 = vpack.c.b16 %v2962, %v2930
        %v4819 = vpack.c.b16 %v2963, %v2931
        %v4820 = vpack.c.b16 %v2964, %v2932
        %v4821 = vpack.c.b16 %v2965, %v2933
        %v4822 = vpack.c.b16 %v2966, %v2934
        %v4823 = vpack.c.b16 %v2967, %v2935
        %v4824 = vpack.c.b16 %v2968, %v2936
        %v4825 = vpack.c.b16 %v2969, %v2937
        %v4826 = vpack.c.b16 %v2970, %v2938
        %v4827 = vpack.c.b16 %v2971, %v2939
        %v4828 = vpack.c.b16 %v2972, %v2940
        %v4829 = vpack.c.b16 %v2973, %v2941
        %v4830 = vpack.c.b16 %v2974, %v2942
        %v4831 = vpack.c.b16 %v2975, %v2943
        %v4832 = vpack.c.b16 %v2976, %v2944
        %v4833 = vpack.c.b16 %v2977, %v2945
        %v4834 = vpack.c.b16 %v2978, %v2946
        %v4835 = vpack.c.b16 %v2979, %v2947
        %v4836 = vpack.c.b16 %v2980, %v2948
        %v4837 = vpack.c.b16 %v2981, %v2949
        %v4838 = vpack.c.b16 %v2982, %v2950
        %v4839 = vpack.c.b16 %v2983, %v2951
        %v4840 = vpack.c.b16 %v2984, %v2952
        %v4841 = vpack.c.b16 %v2985, %v2953
        %v4842 = vpack.c.b16 %v2986, %v2954
        %v4843 = vpack.c.b16 %v2987, %v2955
        %v4844 = vpack.c.b16 %v2988, %v2956
        %v4845 = vpack.c.b16 %v2989, %v2957
        %v4846 = vpack.c.b16 %v2990, %v2958
        %v4847 = vpack.c.b16 %v2991, %v2959
        %v4848 = vpack.c.b16 %v3024, %v2992
        %v4849 = vpack.c.b16 %v3025, %v2993
        %v4850 = vpack.c.b16 %v3026, %v2994
        %v4851 = vpack.c.b16 %v3027, %v2995
        %v4852 = vpack.c.b16 %v3028, %v2996
        %v4853 = vpack.c.b16 %v3029, %v2997
        %v4854 = vpack.c.b16 %v3030, %v2998
        %v4855 = vpack.c.b16 %v3031, %v2999
        %v4856 = vpack.c.b16 %v3032, %v3000
        %v4857 = vpack.c.b16 %v3033, %v3001
        %v4858 = vpack.c.b16 %v3034, %v3002
        %v4859 = vpack.c.b16 %v3035, %v3003
        %v4860 = vpack.c.b16 %v3036, %v3004
        %v4861 = vpack.c.b16 %v3037, %v3005
        %v4862 = vpack.c.b16 %v3038, %v3006
        %v4863 = vpack.c.b16 %v3039, %v3007
        %v4864 = vpack.c.b16 %v3040, %v3008
        %v4865 = vpack.c.b16 %v3041, %v3009
        %v4866 = vpack.c.b16 %v3042, %v3010
        %v4867 = vpack.c.b16 %v3043, %v3011
        %v4868 = vpack.c.b16 %v3044, %v3012
        %v4869 = vpack.c.b16 %v3045, %v3013
        %v4870 = vpack.c.b16 %v3046, %v3014
        %v4871 = vpack.c.b16 %v3047, %v3015
        %v4872 = vpack.c.b16 %v3048, %v3016
        %v4873 = vpack.c.b16 %v3049, %v3017
        %v4874 = vpack.c.b16 %v3050, %v3018
        %v4875 = vpack.c.b16 %v3051, %v3019
        %v4876 = vpack.c.b16 %v3052, %v3020
        %v4877 = vpack.c.b16 %v3053, %v3021
        %v4878 = vpack.c.b16 %v3054, %v3022
        %v4879 = vpack.c.b16 %v3055, %v3023
        %v4880 = vpack.c.b16 %v3088, %v3056
        %v4881 = vpack.c.b16 %v3089, %v3057
        %v4882 = vpack.c.b16 %v3090, %v3058
        %v4883 = vpack.c.b16 %v3091, %v3059
        %v4884 = vpack.c.b16 %v3092, %v3060
        %v4885 = vpack.c.b16 %v3093, %v3061
        %v4886 = vpack.c.b16 %v3094, %v3062
        %v4887 = vpack.c.b16 %v3095, %v3063
        %v4888 = vpack.c.b16 %v3096, %v3064
        %v4889 = vpack.c.b16 %v3097, %v3065
        %v4890 = vpack.c.b16 %v3098, %v3066
        %v4891 = vpack.c.b16 %v3099, %v3067
        %v4892 = vpack.c.b16 %v3100, %v3068
        %v4893 = vpack.c.b16 %v3101, %v3069
        %v4894 = vpack.c.b16 %v3102, %v3070
        %v4895 = vpack.c.b16 %v3103, %v3071
        %v4896 = vpack.c.b16 %v3104, %v3072
        %v4897 = vpack.c.b16 %v3105, %v3073
        %v4898 = vpack.c.b16 %v3106, %v3074
        %v4899 = vpack.c.b16 %v3107, %v3075
        %v4900 = vpack.c.b16 %v3108, %v3076
        %v4901 = vpack.c.b16 %v3109, %v3077
        %v4902 = vpack.c.b16 %v3110, %v3078
        %v4903 = vpack.c.b16 %v3111, %v3079
        %v4904 = vpack.c.b16 %v3112, %v3080
        %v4905 = vpack.c.b16 %v3113, %v3081
        %v4906 = vpack.c.b16 %v3114, %v3082
        %v4907 = vpack.c.b16 %v3115, %v3083
        %v4908 = vpack.c.b16 %v3116, %v3084
        %v4909 = vpack.c.b16 %v3117, %v3085
        %v4910 = vpack.c.b16 %v3118, %v3086
        %v4911 = vpack.c.b16 %v3119, %v3087
        %v4912 = vpack.c.b16 %v3152, %v3120
        %v4913 = vpack.c.b16 %v3153, %v3121
        %v4914 = vpack.c.b16 %v3154, %v3122
        %v4915 = vpack.c.b16 %v3155, %v3123
        %v4916 = vpack.c.b16 %v3156, %v3124
        %v4917 = vpack.c.b16 %v3157, %v3125
        %v4918 = vpack.c.b16 %v3158, %v3126
        %v4919 = vpack.c.b16 %v3159, %v3127
        %v4920 = vpack.c.b16 %v3160, %v3128
        %v4921 = vpack.c.b16 %v3161, %v3129
        %v4922 = vpack.c.b16 %v3162, %v3130
        %v4923 = vpack.c.b16 %v3163, %v3131
        %v4924 = vpack.c.b16 %v3164, %v3132
        %v4925 = vpack.c.b16 %v3165, %v3133
        %v4926 = vpack.c.b16 %v3166, %v3134
        %v4927 = vpack.c.b16 %v3167, %v3135
        %v4928 = vpack.c.b16 %v3168, %v3136
        %v4929 = vpack.c.b16 %v3169, %v3137
        %v4930 = vpack.c.b16 %v3170, %v3138
        %v4931 = vpack.c.b16 %v3171, %v3139
        %v4932 = vpack.c.b16 %v3172, %v3140
        %v4933 = vpack.c.b16 %v3173, %v3141
        %v4934 = vpack.c.b16 %v3174, %v3142
        %v4935 = vpack.c.b16 %v3175, %v3143
        %v4936 = vpack.c.b16 %v3176, %v3144
        %v4937 = vpack.c.b16 %v3177, %v3145
        %v4938 = vpack.c.b16 %v3178, %v3146
        %v4939 = vpack.c.b16 %v3179, %v3147
        %v4940 = vpack.c.b16 %v3180, %v3148
        %v4941 = vpack.c.b16 %v3181, %v3149
        %v4942 = vpack.c.b16 %v3182, %v3150
        %v4943 = vpack.c.b16 %v3183, %v3151
        %v4944 = vpack.c.b16 %v3216, %v3184
        %v4945 = vpack.c.b16 %v3217, %v3185
        %v4946 = vpack.c.b16 %v3218, %v3186
        %v4947 = vpack.c.b16 %v3219, %v3187
        %v4948 = vpack.c.b16 %v3220, %v3188
        %v4949 = vpack.c.b16 %v3221, %v3189
        %v4950 = vpack.c.b16 %v3222, %v3190
        %v4951 = vpack.c.b16 %v3223, %v3191
        %v4952 = vpack.c.b16 %v3224, %v3192
        %v4953 = vpack.c.b16 %v3225, %v3193
        %v4954 = vpack.c.b16 %v3226, %v3194
        %v4955 = vpack.c.b16 %v3227, %v3195
        %v4956 = vpack.c.b16 %v3228, %v3196
        %v4957 = vpack.c.b16 %v3229, %v3197
        %v4958 = vpack.c.b16 %v3230, %v3198
        %v4959 = vpack.c.b16 %v3231, %v3199
        %v4960 = vpack.c.b16 %v3232, %v3200
        %v4961 = vpack.c.b16 %v3233, %v3201
        %v4962 = vpack.c.b16 %v3234, %v3202
        %v4963 = vpack.c.b16 %v3235, %v3203
        %v4964 = vpack.c.b16 %v3236, %v3204
        %v4965 = vpack.c.b16 %v3237, %v3205
        %v4966 = vpack.c.b16 %v3238, %v3206
        %v4967 = vpack.c.b16 %v3239, %v3207
        %v4968 = vpack.c.b16 %v3240, %v3208
        %v4969 = vpack.c.b16 %v3241, %v3209
        %v4970 = vpack.c.b16 %v3242, %v3210
        %v4971 = vpack.c.b16 %v3243, %v3211
        %v4972 = vpack.c.b16 %v3244, %v3212
        %v4973 = vpack.c.b16 %v3245, %v3213
        %v4974 = vpack.c.b16 %v3246, %v3214
        %v4975 = vpack.c.b16 %v3247, %v3215
        %v4976 = vpack.c.b16 %v3280, %v3248
        %v4977 = vpack.c.b16 %v3281, %v3249
        %v4978 = vpack.c.b16 %v3282, %v3250
        %v4979 = vpack.c.b16 %v3283, %v3251
        %v4980 = vpack.c.b16 %v3284, %v3252
        %v4981 = vpack.c.b16 %v3285, %v3253
        %v4982 = vpack.c.b16 %v3286, %v3254
        %v4983 = vpack.c.b16 %v3287, %v3255
        %v4984 = vpack.c.b16 %v3288, %v3256
        %v4985 = vpack.c.b16 %v3289, %v3257
        %v4986 = vpack.c.b16 %v3290, %v3258
        %v4987 = vpack.c.b16 %v3291, %v3259
        %v4988 = vpack.c.b16 %v3292, %v3260
        %v4989 = vpack.c.b16 %v3293, %v3261
        %v4990 = vpack.c.b16 %v3294, %v3262
        %v4991 = vpack.c.b16 %v3295, %v3263
        %v4992 = vpack.c.b16 %v3296, %v3264
        %v4993 = vpack.c.b16 %v3297, %v3265
        %v4994 = vpack.c.b16 %v3298, %v3266
        %v4995 = vpack.c.b16 %v3299, %v3267
        %v4996 = vpack.c.b16 %v3300, %v3268
        %v4997 = vpack.c.b16 %v3301, %v3269
        %v4998 = vpack.c.b16 %v3302, %v3270
        %v4999 = vpack.c.b16 %v3303, %v3271
        %v5000 = vpack.c.b16 %v3304, %v3272
        %v5001 = vpack.c.b16 %v3305, %v3273
        %v5002 = vpack.c.b16 %v3306, %v3274
        %v5003 = vpack.c.b16 %v3307, %v3275
        %v5004 = vpack.c.b16 %v3308, %v3276
        %v5005 = vpack.c.b16 %v3309, %v3277
        %v5006 = vpack.c.b16 %v3310, %v3278
        %v5007 = vpack.c.b16 %v3311, %v3279
        %v5008 = vpack.c.b16 %v3344, %v3312
        %v5009 = vpack.c.b16 %v3345, %v3313
        %v5010 = vpack.c.b16 %v3346, %v3314
        %v5011 = vpack.c.b16 %v3347, %v3315
        %v5012 = vpack.c.b16 %v3348, %v3316
        %v5013 = vpack.c.b16 %v3349, %v3317
        %v5014 = vpack.c.b16 %v3350, %v3318
        %v5015 = vpack.c.b16 %v3351, %v3319
        %v5016 = vpack.c.b16 %v3352, %v3320
        %v5017 = vpack.c.b16 %v3353, %v3321
        %v5018 = vpack.c.b16 %v3354, %v3322
        %v5019 = vpack.c.b16 %v3355, %v3323
        %v5020 = vpack.c.b16 %v3356, %v3324
        %v5021 = vpack.c.b16 %v3357, %v3325
        %v5022 = vpack.c.b16 %v3358, %v3326
        %v5023 = vpack.c.b16 %v3359, %v3327
        %v5024 = vpack.c.b16 %v3360, %v3328
        %v5025 = vpack.c.b16 %v3361, %v3329
        %v5026 = vpack.c.b16 %v3362, %v3330
        %v5027 = vpack.c.b16 %v3363, %v3331
        %v5028 = vpack.c.b16 %v3364, %v3332
        %v5029 = vpack.c.b16 %v3365, %v3333
        %v5030 = vpack.c.b16 %v3366, %v3334
        %v5031 = vpack.c.b16 %v3367, %v3335
        %v5032 = vpack.c.b16 %v3368, %v3336
        %v5033 = vpack.c.b16 %v3369, %v3337
        %v5034 = vpack.c.b16 %v3370, %v3338
        %v5035 = vpack.c.b16 %v3371, %v3339
        %v5036 = vpack.c.b16 %v3372, %v3340
        %v5037 = vpack.c.b16 %v3373, %v3341
        %v5038 = vpack.c.b16 %v3374, %v3342
        %v5039 = vpack.c.b16 %v3375, %v3343
        %v5040 = vpack.c.b16 %v3408, %v3376
        %v5041 = vpack.c.b16 %v3409, %v3377
        %v5042 = vpack.c.b16 %v3410, %v3378
        %v5043 = vpack.c.b16 %v3411, %v3379
        %v5044 = vpack.c.b16 %v3412, %v3380
        %v5045 = vpack.c.b16 %v3413, %v3381
        %v5046 = vpack.c.b16 %v3414, %v3382
        %v5047 = vpack.c.b16 %v3415, %v3383
        %v5048 = vpack.c.b16 %v3416, %v3384
        %v5049 = vpack.c.b16 %v3417, %v3385
        %v5050 = vpack.c.b16 %v3418, %v3386
        %v5051 = vpack.c.b16 %v3419, %v3387
        %v5052 = vpack.c.b16 %v3420, %v3388
        %v5053 = vpack.c.b16 %v3421, %v3389
        %v5054 = vpack.c.b16 %v3422, %v3390
        %v5055 = vpack.c.b16 %v3423, %v3391
        %v5056 = vpack.c.b16 %v3424, %v3392
        %v5057 = vpack.c.b16 %v3425, %v3393
        %v5058 = vpack.c.b16 %v3426, %v3394
        %v5059 = vpack.c.b16 %v3427, %v3395
        %v5060 = vpack.c.b16 %v3428, %v3396
        %v5061 = vpack.c.b16 %v3429, %v3397
        %v5062 = vpack.c.b16 %v3430, %v3398
        %v5063 = vpack.c.b16 %v3431, %v3399
        %v5064 = vpack.c.b16 %v3432, %v3400
        %v5065 = vpack.c.b16 %v3433, %v3401
        %v5066 = vpack.c.b16 %v3434, %v3402
        %v5067 = vpack.c.b16 %v3435, %v3403
        %v5068 = vpack.c.b16 %v3436, %v3404
        %v5069 = vpack.c.b16 %v3437, %v3405
        %v5070 = vpack.c.b16 %v3438, %v3406
        %v5071 = vpack.c.b16 %v3439, %v3407
        %v5072 = vpack.c.b16 %v3472, %v3440
        %v5073 = vpack.c.b16 %v3473, %v3441
        %v5074 = vpack.c.b16 %v3474, %v3442
        %v5075 = vpack.c.b16 %v3475, %v3443
        %v5076 = vpack.c.b16 %v3476, %v3444
        %v5077 = vpack.c.b16 %v3477, %v3445
        %v5078 = vpack.c.b16 %v3478, %v3446
        %v5079 = vpack.c.b16 %v3479, %v3447
        %v5080 = vpack.c.b16 %v3480, %v3448
        %v5081 = vpack.c.b16 %v3481, %v3449
        %v5082 = vpack.c.b16 %v3482, %v3450
        %v5083 = vpack.c.b16 %v3483, %v3451
        %v5084 = vpack.c.b16 %v3484, %v3452
        %v5085 = vpack.c.b16 %v3485, %v3453
        %v5086 = vpack.c.b16 %v3486, %v3454
        %v5087 = vpack.c.b16 %v3487, %v3455
        %v5088 = vpack.c.b16 %v3488, %v3456
        %v5089 = vpack.c.b16 %v3489, %v3457
        %v5090 = vpack.c.b16 %v3490, %v3458
        %v5091 = vpack.c.b16 %v3491, %v3459
        %v5092 = vpack.c.b16 %v3492, %v3460
        %v5093 = vpack.c.b16 %v3493, %v3461
        %v5094 = vpack.c.b16 %v3494, %v3462
        %v5095 = vpack.c.b16 %v3495, %v3463
        %v5096 = vpack.c.b16 %v3496, %v3464
        %v5097 = vpack.c.b16 %v3497, %v3465
        %v5098 = vpack.c.b16 %v3498, %v3466
        %v5099 = vpack.c.b16 %v3499, %v3467
        %v5100 = vpack.c.b16 %v3500, %v3468
        %v5101 = vpack.c.b16 %v3501, %v3469
        %v5102 = vpack.c.b16 %v3502, %v3470
        %v5103 = vpack.c.b16 %v3503, %v3471
        %v5104 = vpack.c.b16 %v3536, %v3504
        %v5105 = vpack.c.b16 %v3537, %v3505
        %v5106 = vpack.c.b16 %v3538, %v3506
        %v5107 = vpack.c.b16 %v3539, %v3507
        %v5108 = vpack.c.b16 %v3540, %v3508
        %v5109 = vpack.c.b16 %v3541, %v3509
        %v5110 = vpack.c.b16 %v3542, %v3510
        %v5111 = vpack.c.b16 %v3543, %v3511
        %v5112 = vpack.c.b16 %v3544, %v3512
        %v5113 = vpack.c.b16 %v3545, %v3513
        %v5114 = vpack.c.b16 %v3546, %v3514
        %v5115 = vpack.c.b16 %v3547, %v3515
        %v5116 = vpack.c.b16 %v3548, %v3516
        %v5117 = vpack.c.b16 %v3549, %v3517
        %v5118 = vpack.c.b16 %v3550, %v3518
        %v5119 = vpack.c.b16 %v3551, %v3519
        %v5120 = vpack.c.b16 %v3552, %v3520
        %v5121 = vpack.c.b16 %v3553, %v3521
        %v5122 = vpack.c.b16 %v3554, %v3522
        %v5123 = vpack.c.b16 %v3555, %v3523
        %v5124 = vpack.c.b16 %v3556, %v3524
        %v5125 = vpack.c.b16 %v3557, %v3525
        %v5126 = vpack.c.b16 %v3558, %v3526
        %v5127 = vpack.c.b16 %v3559, %v3527
        %v5128 = vpack.c.b16 %v3560, %v3528
        %v5129 = vpack.c.b16 %v3561, %v3529
        %v5130 = vpack.c.b16 %v3562, %v3530
        %v5131 = vpack.c.b16 %v3563, %v3531
        %v5132 = vpack.c.b16 %v3564, %v3532
        %v5133 = vpack.c.b16 %v3565, %v3533
        %v5134 = vpack.c.b16 %v3566, %v3534
        %v5135 = vpack.c.b16 %v3567, %v3535
        %v5136 = vpack.c.b16 %v3600, %v3568
        %v5137 = vpack.c.b16 %v3601, %v3569
        %v5138 = vpack.c.b16 %v3602, %v3570
        %v5139 = vpack.c.b16 %v3603, %v3571
        %v5140 = vpack.c.b16 %v3604, %v3572
        %v5141 = vpack.c.b16 %v3605, %v3573
        %v5142 = vpack.c.b16 %v3606, %v3574
        %v5143 = vpack.c.b16 %v3607, %v3575
        %v5144 = vpack.c.b16 %v3608, %v3576
        %v5145 = vpack.c.b16 %v3609, %v3577
        %v5146 = vpack.c.b16 %v3610, %v3578
        %v5147 = vpack.c.b16 %v3611, %v3579
        %v5148 = vpack.c.b16 %v3612, %v3580
        %v5149 = vpack.c.b16 %v3613, %v3581
        %v5150 = vpack.c.b16 %v3614, %v3582
        %v5151 = vpack.c.b16 %v3615, %v3583
        %v5152 = vpack.c.b16 %v3616, %v3584
        %v5153 = vpack.c.b16 %v3617, %v3585
        %v5154 = vpack.c.b16 %v3618, %v3586
        %v5155 = vpack.c.b16 %v3619, %v3587
        %v5156 = vpack.c.b16 %v3620, %v3588
        %v5157 = vpack.c.b16 %v3621, %v3589
        %v5158 = vpack.c.b16 %v3622, %v3590
        %v5159 = vpack.c.b16 %v3623, %v3591
        %v5160 = vpack.c.b16 %v3624, %v3592
        %v5161 = vpack.c.b16 %v3625, %v3593
        %v5162 = vpack.c.b16 %v3626, %v3594
        %v5163 = vpack.c.b16 %v3627, %v3595
        %v5164 = vpack.c.b16 %v3628, %v3596
        %v5165 = vpack.c.b16 %v3629, %v3597
        %v5166 = vpack.c.b16 %v3630, %v3598
        %v5167 = vpack.c.b16 %v3631, %v3599
        %v5168 = vpack.c.b16 %v3664, %v3632
        %v5169 = vpack.c.b16 %v3665, %v3633
        %v5170 = vpack.c.b16 %v3666, %v3634
        %v5171 = vpack.c.b16 %v3667, %v3635
        %v5172 = vpack.c.b16 %v3668, %v3636
        %v5173 = vpack.c.b16 %v3669, %v3637
        %v5174 = vpack.c.b16 %v3670, %v3638
        %v5175 = vpack.c.b16 %v3671, %v3639
        %v5176 = vpack.c.b16 %v3672, %v3640
        %v5177 = vpack.c.b16 %v3673, %v3641
        %v5178 = vpack.c.b16 %v3674, %v3642
        %v5179 = vpack.c.b16 %v3675, %v3643
        %v5180 = vpack.c.b16 %v3676, %v3644
        %v5181 = vpack.c.b16 %v3677, %v3645
        %v5182 = vpack.c.b16 %v3678, %v3646
        %v5183 = vpack.c.b16 %v3679, %v3647
        %v5184 = vpack.c.b16 %v3680, %v3648
        %v5185 = vpack.c.b16 %v3681, %v3649
        %v5186 = vpack.c.b16 %v3682, %v3650
        %v5187 = vpack.c.b16 %v3683, %v3651
        %v5188 = vpack.c.b16 %v3684, %v3652
        %v5189 = vpack.c.b16 %v3685, %v3653
        %v5190 = vpack.c.b16 %v3686, %v3654
        %v5191 = vpack.c.b16 %v3687, %v3655
        %v5192 = vpack.c.b16 %v3688, %v3656
        %v5193 = vpack.c.b16 %v3689, %v3657
        %v5194 = vpack.c.b16 %v3690, %v3658
        %v5195 = vpack.c.b16 %v3691, %v3659
        %v5196 = vpack.c.b16 %v3692, %v3660
        %v5197 = vpack.c.b16 %v3693, %v3661
        %v5198 = vpack.c.b16 %v3694, %v3662
        %v5199 = vpack.c.b16 %v3695, %v3663
        %v5200 = vpack.c.b16 %v3728, %v3696
        %v5201 = vpack.c.b16 %v3729, %v3697
        %v5202 = vpack.c.b16 %v3730, %v3698
        %v5203 = vpack.c.b16 %v3731, %v3699
        %v5204 = vpack.c.b16 %v3732, %v3700
        %v5205 = vpack.c.b16 %v3733, %v3701
        %v5206 = vpack.c.b16 %v3734, %v3702
        %v5207 = vpack.c.b16 %v3735, %v3703
        %v5208 = vpack.c.b16 %v3736, %v3704
        %v5209 = vpack.c.b16 %v3737, %v3705
        %v5210 = vpack.c.b16 %v3738, %v3706
        %v5211 = vpack.c.b16 %v3739, %v3707
        %v5212 = vpack.c.b16 %v3740, %v3708
        %v5213 = vpack.c.b16 %v3741, %v3709
        %v5214 = vpack.c.b16 %v3742, %v3710
        %v5215 = vpack.c.b16 %v3743, %v3711
        %v5216 = vpack.c.b16 %v3744, %v3712
        %v5217 = vpack.c.b16 %v3745, %v3713
        %v5218 = vpack.c.b16 %v3746, %v3714
        %v5219 = vpack.c.b16 %v3747, %v3715
        %v5220 = vpack.c.b16 %v3748, %v3716
        %v5221 = vpack.c.b16 %v3749, %v3717
        %v5222 = vpack.c.b16 %v3750, %v3718
        %v5223 = vpack.c.b16 %v3751, %v3719
        %v5224 = vpack.c.b16 %v3752, %v3720
        %v5225 = vpack.c.b16 %v3753, %v3721
        %v5226 = vpack.c.b16 %v3754, %v3722
        %v5227 = vpack.c.b16 %v3755, %v3723
        %v5228 = vpack.c.b16 %v3756, %v3724
        %v5229 = vpack.c.b16 %v3757, %v3725
        %v5230 = vpack.c.b16 %v3758, %v3726
        %v5231 = vpack.c.b16 %v3759, %v3727
        %v5232 = vpack.c.b16 %v3792, %v3760
        %v5233 = vpack.c.b16 %v3793, %v3761
        %v5234 = vpack.c.b16 %v3794, %v3762
        %v5235 = vpack.c.b16 %v3795, %v3763
        %v5236 = vpack.c.b16 %v3796, %v3764
        %v5237 = vpack.c.b16 %v3797, %v3765
        %v5238 = vpack.c.b16 %v3798, %v3766
        %v5239 = vpack.c.b16 %v3799, %v3767
        %v5240 = vpack.c.b16 %v3800, %v3768
        %v5241 = vpack.c.b16 %v3801, %v3769
        %v5242 = vpack.c.b16 %v3802, %v3770
        %v5243 = vpack.c.b16 %v3803, %v3771
        %v5244 = vpack.c.b16 %v3804, %v3772
        %v5245 = vpack.c.b16 %v3805, %v3773
        %v5246 = vpack.c.b16 %v3806, %v3774
        %v5247 = vpack.c.b16 %v3807, %v3775
        %v5248 = vpack.c.b16 %v3808, %v3776
        %v5249 = vpack.c.b16 %v3809, %v3777
        %v5250 = vpack.c.b16 %v3810, %v3778
        %v5251 = vpack.c.b16 %v3811, %v3779
        %v5252 = vpack.c.b16 %v3812, %v3780
        %v5253 = vpack.c.b16 %v3813, %v3781
        %v5254 = vpack.c.b16 %v3814, %v3782
        %v5255 = vpack.c.b16 %v3815, %v3783
        %v5256 = vpack.c.b16 %v3816, %v3784
        %v5257 = vpack.c.b16 %v3817, %v3785
        %v5258 = vpack.c.b16 %v3818, %v3786
        %v5259 = vpack.c.b16 %v3819, %v3787
        %v5260 = vpack.c.b16 %v3820, %v3788
        %v5261 = vpack.c.b16 %v3821, %v3789
        %v5262 = vpack.c.b16 %v3822, %v3790
        %v5263 = vpack.c.b16 %v3823, %v3791
        %v5264 = vpack.c.b16 %v3856, %v3824
        %v5265 = vpack.c.b16 %v3857, %v3825
        %v5266 = vpack.c.b16 %v3858, %v3826
        %v5267 = vpack.c.b16 %v3859, %v3827
        %v5268 = vpack.c.b16 %v3860, %v3828
        %v5269 = vpack.c.b16 %v3861, %v3829
        %v5270 = vpack.c.b16 %v3862, %v3830
        %v5271 = vpack.c.b16 %v3863, %v3831
        %v5272 = vpack.c.b16 %v3864, %v3832
        %v5273 = vpack.c.b16 %v3865, %v3833
        %v5274 = vpack.c.b16 %v3866, %v3834
        %v5275 = vpack.c.b16 %v3867, %v3835
        %v5276 = vpack.c.b16 %v3868, %v3836
        %v5277 = vpack.c.b16 %v3869, %v3837
        %v5278 = vpack.c.b16 %v3870, %v3838
        %v5279 = vpack.c.b16 %v3871, %v3839
        %v5280 = vpack.c.b16 %v3872, %v3840
        %v5281 = vpack.c.b16 %v3873, %v3841
        %v5282 = vpack.c.b16 %v3874, %v3842
        %v5283 = vpack.c.b16 %v3875, %v3843
        %v5284 = vpack.c.b16 %v3876, %v3844
        %v5285 = vpack.c.b16 %v3877, %v3845
        %v5286 = vpack.c.b16 %v3878, %v3846
        %v5287 = vpack.c.b16 %v3879, %v3847
        %v5288 = vpack.c.b16 %v3880, %v3848
        %v5289 = vpack.c.b16 %v3881, %v3849
        %v5290 = vpack.c.b16 %v3882, %v3850
        %v5291 = vpack.c.b16 %v3883, %v3851
        %v5292 = vpack.c.b16 %v3884, %v3852
        %v5293 = vpack.c.b16 %v3885, %v3853
        %v5294 = vpack.c.b16 %v3886, %v3854
        %v5295 = vpack.c.b16 %v3887, %v3855
        %v5296 = vpack.c.b16 %v3920, %v3888
        %v5297 = vpack.c.b16 %v3921, %v3889
        %v5298 = vpack.c.b16 %v3922, %v3890
        %v5299 = vpack.c.b16 %v3923, %v3891
        %v5300 = vpack.c.b16 %v3924, %v3892
        %v5301 = vpack.c.b16 %v3925, %v3893
        %v5302 = vpack.c.b16 %v3926, %v3894
        %v5303 = vpack.c.b16 %v3927, %v3895
        %v5304 = vpack.c.b16 %v3928, %v3896
        %v5305 = vpack.c.b16 %v3929, %v3897
        %v5306 = vpack.c.b16 %v3930, %v3898
        %v5307 = vpack.c.b16 %v3931, %v3899
        %v5308 = vpack.c.b16 %v3932, %v3900
        %v5309 = vpack.c.b16 %v3933, %v3901
        %v5310 = vpack.c.b16 %v3934, %v3902
        %v5311 = vpack.c.b16 %v3935, %v3903
        %v5312 = vpack.c.b16 %v3936, %v3904
        %v5313 = vpack.c.b16 %v3937, %v3905
        %v5314 = vpack.c.b16 %v3938, %v3906
        %v5315 = vpack.c.b16 %v3939, %v3907
        %v5316 = vpack.c.b16 %v3940, %v3908
        %v5317 = vpack.c.b16 %v3941, %v3909
        %v5318 = vpack.c.b16 %v3942, %v3910
        %v5319 = vpack.c.b16 %v3943, %v3911
        %v5320 = vpack.c.b16 %v3944, %v3912
        %v5321 = vpack.c.b16 %v3945, %v3913
        %v5322 = vpack.c.b16 %v3946, %v3914
        %v5323 = vpack.c.b16 %v3947, %v3915
        %v5324 = vpack.c.b16 %v3948, %v3916
        %v5325 = vpack.c.b16 %v3949, %v3917
        %v5326 = vpack.c.b16 %v3950, %v3918
        %v5327 = vpack.c.b16 %v3951, %v3919
        %v5328 = vpack.c.b16 %v3984, %v3952
        %v5329 = vpack.c.b16 %v3985, %v3953
        %v5330 = vpack.c.b16 %v3986, %v3954
        %v5331 = vpack.c.b16 %v3987, %v3955
        %v5332 = vpack.c.b16 %v3988, %v3956
        %v5333 = vpack.c.b16 %v3989, %v3957
        %v5334 = vpack.c.b16 %v3990, %v3958
        %v5335 = vpack.c.b16 %v3991, %v3959
        %v5336 = vpack.c.b16 %v3992, %v3960
        %v5337 = vpack.c.b16 %v3993, %v3961
        %v5338 = vpack.c.b16 %v3994, %v3962
        %v5339 = vpack.c.b16 %v3995, %v3963
        %v5340 = vpack.c.b16 %v3996, %v3964
        %v5341 = vpack.c.b16 %v3997, %v3965
        %v5342 = vpack.c.b16 %v3998, %v3966
        %v5343 = vpack.c.b16 %v3999, %v3967
        %v5344 = vpack.c.b16 %v4000, %v3968
        %v5345 = vpack.c.b16 %v4001, %v3969
        %v5346 = vpack.c.b16 %v4002, %v3970
        %v5347 = vpack.c.b16 %v4003, %v3971
        %v5348 = vpack.c.b16 %v4004, %v3972
        %v5349 = vpack.c.b16 %v4005, %v3973
        %v5350 = vpack.c.b16 %v4006, %v3974
        %v5351 = vpack.c.b16 %v4007, %v3975
        %v5352 = vpack.c.b16 %v4008, %v3976
        %v5353 = vpack.c.b16 %v4009, %v3977
        %v5354 = vpack.c.b16 %v4010, %v3978
        %v5355 = vpack.c.b16 %v4011, %v3979
        %v5356 = vpack.c.b16 %v4012, %v3980
        %v5357 = vpack.c.b16 %v4013, %v3981
        %v5358 = vpack.c.b16 %v4014, %v3982
        %v5359 = vpack.c.b16 %v4015, %v3983
        %v5360 = vpack.c.b16 %v4048, %v4016
        %v5361 = vpack.c.b16 %v4049, %v4017
        %v5362 = vpack.c.b16 %v4050, %v4018
        %v5363 = vpack.c.b16 %v4051, %v4019
        %v5364 = vpack.c.b16 %v4052, %v4020
        %v5365 = vpack.c.b16 %v4053, %v4021
        %v5366 = vpack.c.b16 %v4054, %v4022
        %v5367 = vpack.c.b16 %v4055, %v4023
        %v5368 = vpack.c.b16 %v4056, %v4024
        %v5369 = vpack.c.b16 %v4057, %v4025
        %v5370 = vpack.c.b16 %v4058, %v4026
        %v5371 = vpack.c.b16 %v4059, %v4027
        %v5372 = vpack.c.b16 %v4060, %v4028
        %v5373 = vpack.c.b16 %v4061, %v4029
        %v5374 = vpack.c.b16 %v4062, %v4030
        %v5375 = vpack.c.b16 %v4063, %v4031
        %v5376 = vpack.c.b16 %v4064, %v4032
        %v5377 = vpack.c.b16 %v4065, %v4033
        %v5378 = vpack.c.b16 %v4066, %v4034
        %v5379 = vpack.c.b16 %v4067, %v4035
        %v5380 = vpack.c.b16 %v4068, %v4036
        %v5381 = vpack.c.b16 %v4069, %v4037
        %v5382 = vpack.c.b16 %v4070, %v4038
        %v5383 = vpack.c.b16 %v4071, %v4039
        %v5384 = vpack.c.b16 %v4072, %v4040
        %v5385 = vpack.c.b16 %v4073, %v4041
        %v5386 = vpack.c.b16 %v4074, %v4042
        %v5387 = vpack.c.b16 %v4075, %v4043
        %v5388 = vpack.c.b16 %v4076, %v4044
        %v5389 = vpack.c.b16 %v4077, %v4045
        %v5390 = vpack.c.b16 %v4078, %v4046
        %v5391 = vpack.c.b16 %v4079, %v4047
        %v5392 = vpack.c.b16 %v4112, %v4080
        %v5393 = vpack.c.b16 %v4113, %v4081
        %v5394 = vpack.c.b16 %v4114, %v4082
        %v5395 = vpack.c.b16 %v4115, %v4083
        %v5396 = vpack.c.b16 %v4116, %v4084
        %v5397 = vpack.c.b16 %v4117, %v4085
        %v5398 = vpack.c.b16 %v4118, %v4086
        %v5399 = vpack.c.b16 %v4119, %v4087
        %v5400 = vpack.c.b16 %v4120, %v4088
        %v5401 = vpack.c.b16 %v4121, %v4089
        %v5402 = vpack.c.b16 %v4122, %v4090
        %v5403 = vpack.c.b16 %v4123, %v4091
        %v5404 = vpack.c.b16 %v4124, %v4092
        %v5405 = vpack.c.b16 %v4125, %v4093
        %v5406 = vpack.c.b16 %v4126, %v4094
        %v5407 = vpack.c.b16 %v4127, %v4095
        %v5408 = vpack.c.b16 %v4128, %v4096
        %v5409 = vpack.c.b16 %v4129, %v4097
        %v5410 = vpack.c.b16 %v4130, %v4098
        %v5411 = vpack.c.b16 %v4131, %v4099
        %v5412 = vpack.c.b16 %v4132, %v4100
        %v5413 = vpack.c.b16 %v4133, %v4101
        %v5414 = vpack.c.b16 %v4134, %v4102
        %v5415 = vpack.c.b16 %v4135, %v4103
        %v5416 = vpack.c.b16 %v4136, %v4104
        %v5417 = vpack.c.b16 %v4137, %v4105
        %v5418 = vpack.c.b16 %v4138, %v4106
        %v5419 = vpack.c.b16 %v4139, %v4107
        %v5420 = vpack.c.b16 %v4140, %v4108
        %v5421 = vpack.c.b16 %v4141, %v4109
        %v5422 = vpack.c.b16 %v4142, %v4110
        %v5423 = vpack.c.b16 %v4143, %v4111
        %v5424 = vpack.c.b16 %v4176, %v4144
        %v5425 = vpack.c.b16 %v4177, %v4145
        %v5426 = vpack.c.b16 %v4178, %v4146
        %v5427 = vpack.c.b16 %v4179, %v4147
        %v5428 = vpack.c.b16 %v4180, %v4148
        %v5429 = vpack.c.b16 %v4181, %v4149
        %v5430 = vpack.c.b16 %v4182, %v4150
        %v5431 = vpack.c.b16 %v4183, %v4151
        %v5432 = vpack.c.b16 %v4184, %v4152
        %v5433 = vpack.c.b16 %v4185, %v4153
        %v5434 = vpack.c.b16 %v4186, %v4154
        %v5435 = vpack.c.b16 %v4187, %v4155
        %v5436 = vpack.c.b16 %v4188, %v4156
        %v5437 = vpack.c.b16 %v4189, %v4157
        %v5438 = vpack.c.b16 %v4190, %v4158
        %v5439 = vpack.c.b16 %v4191, %v4159
        %v5440 = vpack.c.b16 %v4192, %v4160
        %v5441 = vpack.c.b16 %v4193, %v4161
        %v5442 = vpack.c.b16 %v4194, %v4162
        %v5443 = vpack.c.b16 %v4195, %v4163
        %v5444 = vpack.c.b16 %v4196, %v4164
        %v5445 = vpack.c.b16 %v4197, %v4165
        %v5446 = vpack.c.b16 %v4198, %v4166
        %v5447 = vpack.c.b16 %v4199, %v4167
        %v5448 = vpack.c.b16 %v4200, %v4168
        %v5449 = vpack.c.b16 %v4201, %v4169
        %v5450 = vpack.c.b16 %v4202, %v4170
        %v5451 = vpack.c.b16 %v4203, %v4171
        %v5452 = vpack.c.b16 %v4204, %v4172
        %v5453 = vpack.c.b16 %v4205, %v4173
        %v5454 = vpack.c.b16 %v4206, %v4174
        %v5455 = vpack.c.b16 %v4207, %v4175
        %v5456 = vpack.c.b16 %v4240, %v4208
        %v5457 = vpack.c.b16 %v4241, %v4209
        %v5458 = vpack.c.b16 %v4242, %v4210
        %v5459 = vpack.c.b16 %v4243, %v4211
        %v5460 = vpack.c.b16 %v4244, %v4212
        %v5461 = vpack.c.b16 %v4245, %v4213
        %v5462 = vpack.c.b16 %v4246, %v4214
        %v5463 = vpack.c.b16 %v4247, %v4215
        %v5464 = vpack.c.b16 %v4248, %v4216
        %v5465 = vpack.c.b16 %v4249, %v4217
        %v5466 = vpack.c.b16 %v4250, %v4218
        %v5467 = vpack.c.b16 %v4251, %v4219
        %v5468 = vpack.c.b16 %v4252, %v4220
        %v5469 = vpack.c.b16 %v4253, %v4221
        %v5470 = vpack.c.b16 %v4254, %v4222
        %v5471 = vpack.c.b16 %v4255, %v4223
        %v5472 = vpack.c.b16 %v4256, %v4224
        %v5473 = vpack.c.b16 %v4257, %v4225
        %v5474 = vpack.c.b16 %v4258, %v4226
        %v5475 = vpack.c.b16 %v4259, %v4227
        %v5476 = vpack.c.b16 %v4260, %v4228
        %v5477 = vpack.c.b16 %v4261, %v4229
        %v5478 = vpack.c.b16 %v4262, %v4230
        %v5479 = vpack.c.b16 %v4263, %v4231
        %v5480 = vpack.c.b16 %v4264, %v4232
        %v5481 = vpack.c.b16 %v4265, %v4233
        %v5482 = vpack.c.b16 %v4266, %v4234
        %v5483 = vpack.c.b16 %v4267, %v4235
        %v5484 = vpack.c.b16 %v4268, %v4236
        %v5485 = vpack.c.b16 %v4269, %v4237
        %v5486 = vpack.c.b16 %v4270, %v4238
        %v5487 = vpack.c.b16 %v4271, %v4239
        %v5488 = vpack.c.b16 %v4304, %v4272
        %v5489 = vpack.c.b16 %v4305, %v4273
        %v5490 = vpack.c.b16 %v4306, %v4274
        %v5491 = vpack.c.b16 %v4307, %v4275
        %v5492 = vpack.c.b16 %v4308, %v4276
        %v5493 = vpack.c.b16 %v4309, %v4277
        %v5494 = vpack.c.b16 %v4310, %v4278
        %v5495 = vpack.c.b16 %v4311, %v4279
        %v5496 = vpack.c.b16 %v4312, %v4280
        %v5497 = vpack.c.b16 %v4313, %v4281
        %v5498 = vpack.c.b16 %v4314, %v4282
        %v5499 = vpack.c.b16 %v4315, %v4283
        %v5500 = vpack.c.b16 %v4316, %v4284
        %v5501 = vpack.c.b16 %v4317, %v4285
        %v5502 = vpack.c.b16 %v4318, %v4286
        %v5503 = vpack.c.b16 %v4319, %v4287
        %v5504 = vpack.c.b16 %v4320, %v4288
        %v5505 = vpack.c.b16 %v4321, %v4289
        %v5506 = vpack.c.b16 %v4322, %v4290
        %v5507 = vpack.c.b16 %v4323, %v4291
        %v5508 = vpack.c.b16 %v4324, %v4292
        %v5509 = vpack.c.b16 %v4325, %v4293
        %v5510 = vpack.c.b16 %v4326, %v4294
        %v5511 = vpack.c.b16 %v4327, %v4295
        %v5512 = vpack.c.b16 %v4328, %v4296
        %v5513 = vpack.c.b16 %v4329, %v4297
        %v5514 = vpack.c.b16 %v4330, %v4298
        %v5515 = vpack.c.b16 %v4331, %v4299
        %v5516 = vpack.c.b16 %v4332, %v4300
        %v5517 = vpack.c.b16 %v4333, %v4301
        %v5518 = vpack.c.b16 %v4334, %v4302
        %v5519 = vpack.c.b16 %v4335, %v4303
        %v5520 = vpack.c.b16 %v4368, %v4336
        %v5521 = vpack.c.b16 %v4369, %v4337
        %v5522 = vpack.c.b16 %v4370, %v4338
        %v5523 = vpack.c.b16 %v4371, %v4339
        %v5524 = vpack.c.b16 %v4372, %v4340
        %v5525 = vpack.c.b16 %v4373, %v4341
        %v5526 = vpack.c.b16 %v4374, %v4342
        %v5527 = vpack.c.b16 %v4375, %v4343
        %v5528 = vpack.c.b16 %v4376, %v4344
        %v5529 = vpack.c.b16 %v4377, %v4345
        %v5530 = vpack.c.b16 %v4378, %v4346
        %v5531 = vpack.c.b16 %v4379, %v4347
        %v5532 = vpack.c.b16 %v4380, %v4348
        %v5533 = vpack.c.b16 %v4381, %v4349
        %v5534 = vpack.c.b16 %v4382, %v4350
        %v5535 = vpack.c.b16 %v4383, %v4351
        %v5536 = vpack.c.b16 %v4384, %v4352
        %v5537 = vpack.c.b16 %v4385, %v4353
        %v5538 = vpack.c.b16 %v4386, %v4354
        %v5539 = vpack.c.b16 %v4387, %v4355
        %v5540 = vpack.c.b16 %v4388, %v4356
        %v5541 = vpack.c.b16 %v4389, %v4357
        %v5542 = vpack.c.b16 %v4390, %v4358
        %v5543 = vpack.c.b16 %v4391, %v4359
        %v5544 = vpack.c.b16 %v4392, %v4360
        %v5545 = vpack.c.b16 %v4393, %v4361
        %v5546 = vpack.c.b16 %v4394, %v4362
        %v5547 = vpack.c.b16 %v4395, %v4363
        %v5548 = vpack.c.b16 %v4396, %v4364
        %v5549 = vpack.c.b16 %v4397, %v4365
        %v5550 = vpack.c.b16 %v4398, %v4366
        %v5551 = vpack.c.b16 %v4399, %v4367
        %v5552 = vpack.c.b16 %v4432, %v4400
        %v5553 = vpack.c.b16 %v4433, %v4401
        %v5554 = vpack.c.b16 %v4434, %v4402
        %v5555 = vpack.c.b16 %v4435, %v4403
        %v5556 = vpack.c.b16 %v4436, %v4404
        %v5557 = vpack.c.b16 %v4437, %v4405
        %v5558 = vpack.c.b16 %v4438, %v4406
        %v5559 = vpack.c.b16 %v4439, %v4407
        %v5560 = vpack.c.b16 %v4440, %v4408
        %v5561 = vpack.c.b16 %v4441, %v4409
        %v5562 = vpack.c.b16 %v4442, %v4410
        %v5563 = vpack.c.b16 %v4443, %v4411
        %v5564 = vpack.c.b16 %v4444, %v4412
        %v5565 = vpack.c.b16 %v4445, %v4413
        %v5566 = vpack.c.b16 %v4446, %v4414
        %v5567 = vpack.c.b16 %v4447, %v4415
        %v5568 = vpack.c.b16 %v4448, %v4416
        %v5569 = vpack.c.b16 %v4449, %v4417
        %v5570 = vpack.c.b16 %v4450, %v4418
        %v5571 = vpack.c.b16 %v4451, %v4419
        %v5572 = vpack.c.b16 %v4452, %v4420
        %v5573 = vpack.c.b16 %v4453, %v4421
        %v5574 = vpack.c.b16 %v4454, %v4422
        %v5575 = vpack.c.b16 %v4455, %v4423
        %v5576 = vpack.c.b16 %v4456, %v4424
        %v5577 = vpack.c.b16 %v4457, %v4425
        %v5578 = vpack.c.b16 %v4458, %v4426
        %v5579 = vpack.c.b16 %v4459, %v4427
        %v5580 = vpack.c.b16 %v4460, %v4428
        %v5581 = vpack.c.b16 %v4461, %v4429
        %v5582 = vpack.c.b16 %v4462, %v4430
        %v5583 = vpack.c.b16 %v4463, %v4431
        %v5584 = vpack.c.b16 %v4496, %v4464
        %v5585 = vpack.c.b16 %v4497, %v4465
        %v5586 = vpack.c.b16 %v4498, %v4466
        %v5587 = vpack.c.b16 %v4499, %v4467
        %v5588 = vpack.c.b16 %v4500, %v4468
        %v5589 = vpack.c.b16 %v4501, %v4469
        %v5590 = vpack.c.b16 %v4502, %v4470
        %v5591 = vpack.c.b16 %v4503, %v4471
        %v5592 = vpack.c.b16 %v4504, %v4472
        %v5593 = vpack.c.b16 %v4505, %v4473
        %v5594 = vpack.c.b16 %v4506, %v4474
        %v5595 = vpack.c.b16 %v4507, %v4475
        %v5596 = vpack.c.b16 %v4508, %v4476
        %v5597 = vpack.c.b16 %v4509, %v4477
        %v5598 = vpack.c.b16 %v4510, %v4478
        %v5599 = vpack.c.b16 %v4511, %v4479
        %v5600 = vpack.c.b16 %v4512, %v4480
        %v5601 = vpack.c.b16 %v4513, %v4481
        %v5602 = vpack.c.b16 %v4514, %v4482
        %v5603 = vpack.c.b16 %v4515, %v4483
        %v5604 = vpack.c.b16 %v4516, %v4484
        %v5605 = vpack.c.b16 %v4517, %v4485
        %v5606 = vpack.c.b16 %v4518, %v4486
        %v5607 = vpack.c.b16 %v4519, %v4487
        %v5608 = vpack.c.b16 %v4520, %v4488
        %v5609 = vpack.c.b16 %v4521, %v4489
        %v5610 = vpack.c.b16 %v4522, %v4490
        %v5611 = vpack.c.b16 %v4523, %v4491
        %v5612 = vpack.c.b16 %v4524, %v4492
        %v5613 = vpack.c.b16 %v4525, %v4493
        %v5614 = vpack.c.b16 %v4526, %v4494
        %v5615 = vpack.c.b16 %v4527, %v4495
        %v5616 = vpack.c.b16 %v4560, %v4528
        %v5617 = vpack.c.b16 %v4561, %v4529
        %v5618 = vpack.c.b16 %v4562, %v4530
        %v5619 = vpack.c.b16 %v4563, %v4531
        %v5620 = vpack.c.b16 %v4564, %v4532
        %v5621 = vpack.c.b16 %v4565, %v4533
        %v5622 = vpack.c.b16 %v4566, %v4534
        %v5623 = vpack.c.b16 %v4567, %v4535
        %v5624 = vpack.c.b16 %v4568, %v4536
        %v5625 = vpack.c.b16 %v4569, %v4537
        %v5626 = vpack.c.b16 %v4570, %v4538
        %v5627 = vpack.c.b16 %v4571, %v4539
        %v5628 = vpack.c.b16 %v4572, %v4540
        %v5629 = vpack.c.b16 %v4573, %v4541
        %v5630 = vpack.c.b16 %v4574, %v4542
        %v5631 = vpack.c.b16 %v4575, %v4543
        %v5632 = vpack.c.b16 %v4576, %v4544
        %v5633 = vpack.c.b16 %v4577, %v4545
        %v5634 = vpack.c.b16 %v4578, %v4546
        %v5635 = vpack.c.b16 %v4579, %v4547
        %v5636 = vpack.c.b16 %v4580, %v4548
        %v5637 = vpack.c.b16 %v4581, %v4549
        %v5638 = vpack.c.b16 %v4582, %v4550
        %v5639 = vpack.c.b16 %v4583, %v4551
        %v5640 = vpack.c.b16 %v4584, %v4552
        %v5641 = vpack.c.b16 %v4585, %v4553
        %v5642 = vpack.c.b16 %v4586, %v4554
        %v5643 = vpack.c.b16 %v4587, %v4555
        %v5644 = vpack.c.b16 %v4588, %v4556
        %v5645 = vpack.c.b16 %v4589, %v4557
        %v5646 = vpack.c.b16 %v4590, %v4558
        %v5647 = vpack.c.b16 %v4591, %v4559
        %v5648 = vpack.c.b16 %v4624, %v4592
        %v5649 = vpack.c.b16 %v4625, %v4593
        %v5650 = vpack.c.b16 %v4626, %v4594
        %v5651 = vpack.c.b16 %v4627, %v4595
        %v5652 = vpack.c.b16 %v4628, %v4596
        %v5653 = vpack.c.b16 %v4629, %v4597
        %v5654 = vpack.c.b16 %v4630, %v4598
        %v5655 = vpack.c.b16 %v4631, %v4599
        %v5656 = vpack.c.b16 %v4632, %v4600
        %v5657 = vpack.c.b16 %v4633, %v4601
        %v5658 = vpack.c.b16 %v4634, %v4602
        %v5659 = vpack.c.b16 %v4635, %v4603
        %v5660 = vpack.c.b16 %v4636, %v4604
        %v5661 = vpack.c.b16 %v4637, %v4605
        %v5662 = vpack.c.b16 %v4638, %v4606
        %v5663 = vpack.c.b16 %v4639, %v4607
        %v5664 = vpack.c.b16 %v4640, %v4608
        %v5665 = vpack.c.b16 %v4641, %v4609
        %v5666 = vpack.c.b16 %v4642, %v4610
        %v5667 = vpack.c.b16 %v4643, %v4611
        %v5668 = vpack.c.b16 %v4644, %v4612
        %v5669 = vpack.c.b16 %v4645, %v4613
        %v5670 = vpack.c.b16 %v4646, %v4614
        %v5671 = vpack.c.b16 %v4647, %v4615
        %v5672 = vpack.c.b16 %v4648, %v4616
        %v5673 = vpack.c.b16 %v4649, %v4617
        %v5674 = vpack.c.b16 %v4650, %v4618
        %v5675 = vpack.c.b16 %v4651, %v4619
        %v5676 = vpack.c.b16 %v4652, %v4620
        %v5677 = vpack.c.b16 %v4653, %v4621
        %v5678 = vpack.c.b16 %v4654, %v4622
        %v5679 = vpack.c.b16 %v4655, %v4623
        %6704 = vmatpush.bf16.msra.mxu0 %v4880
        %6705 = vmatpush.bf16.msra.mxu0 %v4848
        %6706 = vmatpush.bf16.msra.mxu0 %v4816
        %6707 = vmatpush.bf16.msra.mxu0 %v4784
        %6708 = vmatpush.bf16.msra.mxu0 %v4752
        %6709 = vmatpush.bf16.msra.mxu0 %v4720
        %6710 = vmatpush.bf16.msra.mxu0 %v4688
        %6711 = vmatpush.bf16.msra.mxu0 %v4656
        %6712 = vmatmul.bf16.gmra.mxu0 %v1580
        %v6713 = vpop.f32.mrf.mxu0
        %v6714 = vadd.f32 0.0, %v6713
        %v6715 = vpop.f32.mrf.mxu0
        %6716 = vdwg.mxu0
        %6717 = vmatpush.bf16.msra.mxu0 %v5136
        %6718 = vmatpush.bf16.msra.mxu0 %v5104
        %6719 = vmatpush.bf16.msra.mxu0 %v5072
        %6720 = vmatpush.bf16.msra.mxu0 %v5040
        %6721 = vmatpush.bf16.msra.mxu0 %v5008
        %6722 = vmatpush.bf16.msra.mxu0 %v4976
        %6723 = vmatpush.bf16.msra.mxu0 %v4944
        %6724 = vmatpush.bf16.msra.mxu0 %v4912
        %6725 = vmatmul.bf16.gmra.mxu0 %v1581
        %v6726 = vpop.f32.mrf.mxu0
        %v6727 = vadd.f32 %v6714, %v6726
        %v6728 = vpop.f32.mrf.mxu0
        %6729 = vdwg.mxu0
        %6730 = vmatpush.bf16.msra.mxu0 %v5392
        %6731 = vmatpush.bf16.msra.mxu0 %v5360
        %6732 = vmatpush.bf16.msra.mxu0 %v5328
        %6733 = vmatpush.bf16.msra.mxu0 %v5296
        %6734 = vmatpush.bf16.msra.mxu0 %v5264
        %6735 = vmatpush.bf16.msra.mxu0 %v5232
        %6736 = vmatpush.bf16.msra.mxu0 %v5200
        %6737 = vmatpush.bf16.msra.mxu0 %v5168
        %6738 = vmatmul.bf16.gmra.mxu0 %v1582
        %v6739 = vpop.f32.mrf.mxu0
        %v6740 = vadd.f32 %v6727, %v6739
        %v6741 = vpop.f32.mrf.mxu0
        %6742 = vdwg.mxu0
        %6743 = vmatpush.bf16.msra.mxu0 %v5648
        %6744 = vmatpush.bf16.msra.mxu0 %v5616
        %6745 = vmatpush.bf16.msra.mxu0 %v5584
        %6746 = vmatpush.bf16.msra.mxu0 %v5552
        %6747 = vmatpush.bf16.msra.mxu0 %v5520
        %6748 = vmatpush.bf16.msra.mxu0 %v5488
        %6749 = vmatpush.bf16.msra.mxu0 %v5456
        %6750 = vmatpush.bf16.msra.mxu0 %v5424
        %6751 = vmatmul.bf16.gmra.mxu0 %v1583
        %v6752 = vpop.f32.mrf.mxu0
        %v6753 = vadd.f32 %v6740, %v6752
        %v6754 = vpop.f32.mrf.mxu0
        %6755 = vdwg.mxu0
        %6756 = vmatpush.bf16.msra.mxu0 %v4881
        %6757 = vmatpush.bf16.msra.mxu0 %v4849
        %6758 = vmatpush.bf16.msra.mxu0 %v4817
        %6759 = vmatpush.bf16.msra.mxu0 %v4785
        %6760 = vmatpush.bf16.msra.mxu0 %v4753
        %6761 = vmatpush.bf16.msra.mxu0 %v4721
        %6762 = vmatpush.bf16.msra.mxu0 %v4689
        %6763 = vmatpush.bf16.msra.mxu0 %v4657
        %6764 = vmatmul.bf16.gmra.mxu0 %v1580
        %v6765 = vpop.f32.mrf.mxu0
        %v6766 = vadd.f32 0.0, %v6765
        %v6767 = vpop.f32.mrf.mxu0
        %6768 = vdwg.mxu0
        %6769 = vmatpush.bf16.msra.mxu0 %v5137
        %6770 = vmatpush.bf16.msra.mxu0 %v5105
        %6771 = vmatpush.bf16.msra.mxu0 %v5073
        %6772 = vmatpush.bf16.msra.mxu0 %v5041
        %6773 = vmatpush.bf16.msra.mxu0 %v5009
        %6774 = vmatpush.bf16.msra.mxu0 %v4977
        %6775 = vmatpush.bf16.msra.mxu0 %v4945
        %6776 = vmatpush.bf16.msra.mxu0 %v4913
        %6777 = vmatmul.bf16.gmra.mxu0 %v1581
        %v6778 = vpop.f32.mrf.mxu0
        %v6779 = vadd.f32 %v6766, %v6778
        %v6780 = vpop.f32.mrf.mxu0
        %6781 = vdwg.mxu0
        %6782 = vmatpush.bf16.msra.mxu0 %v5393
        %6783 = vmatpush.bf16.msra.mxu0 %v5361
        %6784 = vmatpush.bf16.msra.mxu0 %v5329
        %6785 = vmatpush.bf16.msra.mxu0 %v5297
        %6786 = vmatpush.bf16.msra.mxu0 %v5265
        %6787 = vmatpush.bf16.msra.mxu0 %v5233
        %6788 = vmatpush.bf16.msra.mxu0 %v5201
        %6789 = vmatpush.bf16.msra.mxu0 %v5169
        %6790 = vmatmul.bf16.gmra.mxu0 %v1582
        %v6791 = vpop.f32.mrf.mxu0
        %v6792 = vadd.f32 %v6779, %v6791
        %v6793 = vpop.f32.mrf.mxu0
        %6794 = vdwg.mxu0
        %6795 = vmatpush.bf16.msra.mxu0 %v5649
        %6796 = vmatpush.bf16.msra.mxu0 %v5617
        %6797 = vmatpush.bf16.msra.mxu0 %v5585
        %6798 = vmatpush.bf16.msra.mxu0 %v5553
        %6799 = vmatpush.bf16.msra.mxu0 %v5521
        %6800 = vmatpush.bf16.msra.mxu0 %v5489
        %6801 = vmatpush.bf16.msra.mxu0 %v5457
        %6802 = vmatpush.bf16.msra.mxu0 %v5425
        %6803 = vmatmul.bf16.gmra.mxu0 %v1583
        %v6804 = vpop.f32.mrf.mxu0
        %v6805 = vadd.f32 %v6792, %v6804
        %v6806 = vpop.f32.mrf.mxu0
        %6807 = vdwg.mxu0
        %6808 = vmatpush.bf16.msra.mxu0 %v4882
        %6809 = vmatpush.bf16.msra.mxu0 %v4850
        %6810 = vmatpush.bf16.msra.mxu0 %v4818
        %6811 = vmatpush.bf16.msra.mxu0 %v4786
        %6812 = vmatpush.bf16.msra.mxu0 %v4754
        %6813 = vmatpush.bf16.msra.mxu0 %v4722
        %6814 = vmatpush.bf16.msra.mxu0 %v4690
        %6815 = vmatpush.bf16.msra.mxu0 %v4658
        %6816 = vmatmul.bf16.gmra.mxu0 %v1580
        %v6817 = vpop.f32.mrf.mxu0
        %v6818 = vadd.f32 0.0, %v6817
        %v6819 = vpop.f32.mrf.mxu0
        %6820 = vdwg.mxu0
        %6821 = vmatpush.bf16.msra.mxu0 %v5138
        %6822 = vmatpush.bf16.msra.mxu0 %v5106
        %6823 = vmatpush.bf16.msra.mxu0 %v5074
        %6824 = vmatpush.bf16.msra.mxu0 %v5042
        %6825 = vmatpush.bf16.msra.mxu0 %v5010
        %6826 = vmatpush.bf16.msra.mxu0 %v4978
        %6827 = vmatpush.bf16.msra.mxu0 %v4946
        %6828 = vmatpush.bf16.msra.mxu0 %v4914
        %6829 = vmatmul.bf16.gmra.mxu0 %v1581
        %v6830 = vpop.f32.mrf.mxu0
        %v6831 = vadd.f32 %v6818, %v6830
        %v6832 = vpop.f32.mrf.mxu0
        %6833 = vdwg.mxu0
        %6834 = vmatpush.bf16.msra.mxu0 %v5394
        %6835 = vmatpush.bf16.msra.mxu0 %v5362
        %6836 = vmatpush.bf16.msra.mxu0 %v5330
        %6837 = vmatpush.bf16.msra.mxu0 %v5298
        %6838 = vmatpush.bf16.msra.mxu0 %v5266
        %6839 = vmatpush.bf16.msra.mxu0 %v5234
        %6840 = vmatpush.bf16.msra.mxu0 %v5202
        %6841 = vmatpush.bf16.msra.mxu0 %v5170
        %6842 = vmatmul.bf16.gmra.mxu0 %v1582
        %v6843 = vpop.f32.mrf.mxu0
        %v6844 = vadd.f32 %v6831, %v6843
        %v6845 = vpop.f32.mrf.mxu0
        %6846 = vdwg.mxu0
        %6847 = vmatpush.bf16.msra.mxu0 %v5650
        %6848 = vmatpush.bf16.msra.mxu0 %v5618
        %6849 = vmatpush.bf16.msra.mxu0 %v5586
        %6850 = vmatpush.bf16.msra.mxu0 %v5554
        %6851 = vmatpush.bf16.msra.mxu0 %v5522
        %6852 = vmatpush.bf16.msra.mxu0 %v5490
        %6853 = vmatpush.bf16.msra.mxu0 %v5458
        %6854 = vmatpush.bf16.msra.mxu0 %v5426
        %6855 = vmatmul.bf16.gmra.mxu0 %v1583
        %v6856 = vpop.f32.mrf.mxu0
        %v6857 = vadd.f32 %v6844, %v6856
        %v6858 = vpop.f32.mrf.mxu0
        %6859 = vdwg.mxu0
        %6860 = vmatpush.bf16.msra.mxu0 %v4883
        %6861 = vmatpush.bf16.msra.mxu0 %v4851
        %6862 = vmatpush.bf16.msra.mxu0 %v4819
        %6863 = vmatpush.bf16.msra.mxu0 %v4787
        %6864 = vmatpush.bf16.msra.mxu0 %v4755
        %6865 = vmatpush.bf16.msra.mxu0 %v4723
        %6866 = vmatpush.bf16.msra.mxu0 %v4691
        %6867 = vmatpush.bf16.msra.mxu0 %v4659
        %6868 = vmatmul.bf16.gmra.mxu0 %v1580
        %v6869 = vpop.f32.mrf.mxu0
        %v6870 = vadd.f32 0.0, %v6869
        %v6871 = vpop.f32.mrf.mxu0
        %6872 = vdwg.mxu0
        %6873 = vmatpush.bf16.msra.mxu0 %v5139
        %6874 = vmatpush.bf16.msra.mxu0 %v5107
        %6875 = vmatpush.bf16.msra.mxu0 %v5075
        %6876 = vmatpush.bf16.msra.mxu0 %v5043
        %6877 = vmatpush.bf16.msra.mxu0 %v5011
        %6878 = vmatpush.bf16.msra.mxu0 %v4979
        %6879 = vmatpush.bf16.msra.mxu0 %v4947
        %6880 = vmatpush.bf16.msra.mxu0 %v4915
        %6881 = vmatmul.bf16.gmra.mxu0 %v1581
        %v6882 = vpop.f32.mrf.mxu0
        %v6883 = vadd.f32 %v6870, %v6882
        %v6884 = vpop.f32.mrf.mxu0
        %6885 = vdwg.mxu0
        %6886 = vmatpush.bf16.msra.mxu0 %v5395
        %6887 = vmatpush.bf16.msra.mxu0 %v5363
        %6888 = vmatpush.bf16.msra.mxu0 %v5331
        %6889 = vmatpush.bf16.msra.mxu0 %v5299
        %6890 = vmatpush.bf16.msra.mxu0 %v5267
        %6891 = vmatpush.bf16.msra.mxu0 %v5235
        %6892 = vmatpush.bf16.msra.mxu0 %v5203
        %6893 = vmatpush.bf16.msra.mxu0 %v5171
        %6894 = vmatmul.bf16.gmra.mxu0 %v1582
        %v6895 = vpop.f32.mrf.mxu0
        %v6896 = vadd.f32 %v6883, %v6895
        %v6897 = vpop.f32.mrf.mxu0
        %6898 = vdwg.mxu0
        %6899 = vmatpush.bf16.msra.mxu0 %v5651
        %6900 = vmatpush.bf16.msra.mxu0 %v5619
        %6901 = vmatpush.bf16.msra.mxu0 %v5587
        %6902 = vmatpush.bf16.msra.mxu0 %v5555
        %6903 = vmatpush.bf16.msra.mxu0 %v5523
        %6904 = vmatpush.bf16.msra.mxu0 %v5491
        %6905 = vmatpush.bf16.msra.mxu0 %v5459
        %6906 = vmatpush.bf16.msra.mxu0 %v5427
        %6907 = vmatmul.bf16.gmra.mxu0 %v1583
        %v6908 = vpop.f32.mrf.mxu0
        %v6909 = vadd.f32 %v6896, %v6908
        %v6910 = vpop.f32.mrf.mxu0
        %6911 = vdwg.mxu0
        %6912 = vmatpush.bf16.msra.mxu0 %v4884
        %6913 = vmatpush.bf16.msra.mxu0 %v4852
        %6914 = vmatpush.bf16.msra.mxu0 %v4820
        %6915 = vmatpush.bf16.msra.mxu0 %v4788
        %6916 = vmatpush.bf16.msra.mxu0 %v4756
        %6917 = vmatpush.bf16.msra.mxu0 %v4724
        %6918 = vmatpush.bf16.msra.mxu0 %v4692
        %6919 = vmatpush.bf16.msra.mxu0 %v4660
        %6920 = vmatmul.bf16.gmra.mxu0 %v1580
        %v6921 = vpop.f32.mrf.mxu0
        %v6922 = vadd.f32 0.0, %v6921
        %v6923 = vpop.f32.mrf.mxu0
        %6924 = vdwg.mxu0
        %6925 = vmatpush.bf16.msra.mxu0 %v5140
        %6926 = vmatpush.bf16.msra.mxu0 %v5108
        %6927 = vmatpush.bf16.msra.mxu0 %v5076
        %6928 = vmatpush.bf16.msra.mxu0 %v5044
        %6929 = vmatpush.bf16.msra.mxu0 %v5012
        %6930 = vmatpush.bf16.msra.mxu0 %v4980
        %6931 = vmatpush.bf16.msra.mxu0 %v4948
        %6932 = vmatpush.bf16.msra.mxu0 %v4916
        %6933 = vmatmul.bf16.gmra.mxu0 %v1581
        %v6934 = vpop.f32.mrf.mxu0
        %v6935 = vadd.f32 %v6922, %v6934
        %v6936 = vpop.f32.mrf.mxu0
        %6937 = vdwg.mxu0
        %6938 = vmatpush.bf16.msra.mxu0 %v5396
        %6939 = vmatpush.bf16.msra.mxu0 %v5364
        %6940 = vmatpush.bf16.msra.mxu0 %v5332
        %6941 = vmatpush.bf16.msra.mxu0 %v5300
        %6942 = vmatpush.bf16.msra.mxu0 %v5268
        %6943 = vmatpush.bf16.msra.mxu0 %v5236
        %6944 = vmatpush.bf16.msra.mxu0 %v5204
        %6945 = vmatpush.bf16.msra.mxu0 %v5172
        %6946 = vmatmul.bf16.gmra.mxu0 %v1582
        %v6947 = vpop.f32.mrf.mxu0
        %v6948 = vadd.f32 %v6935, %v6947
        %v6949 = vpop.f32.mrf.mxu0
        %6950 = vdwg.mxu0
        %6951 = vmatpush.bf16.msra.mxu0 %v5652
        %6952 = vmatpush.bf16.msra.mxu0 %v5620
        %6953 = vmatpush.bf16.msra.mxu0 %v5588
        %6954 = vmatpush.bf16.msra.mxu0 %v5556
        %6955 = vmatpush.bf16.msra.mxu0 %v5524
        %6956 = vmatpush.bf16.msra.mxu0 %v5492
        %6957 = vmatpush.bf16.msra.mxu0 %v5460
        %6958 = vmatpush.bf16.msra.mxu0 %v5428
        %6959 = vmatmul.bf16.gmra.mxu0 %v1583
        %v6960 = vpop.f32.mrf.mxu0
        %v6961 = vadd.f32 %v6948, %v6960
        %v6962 = vpop.f32.mrf.mxu0
        %6963 = vdwg.mxu0
        %6964 = vmatpush.bf16.msra.mxu0 %v4885
        %6965 = vmatpush.bf16.msra.mxu0 %v4853
        %6966 = vmatpush.bf16.msra.mxu0 %v4821
        %6967 = vmatpush.bf16.msra.mxu0 %v4789
        %6968 = vmatpush.bf16.msra.mxu0 %v4757
        %6969 = vmatpush.bf16.msra.mxu0 %v4725
        %6970 = vmatpush.bf16.msra.mxu0 %v4693
        %6971 = vmatpush.bf16.msra.mxu0 %v4661
        %6972 = vmatmul.bf16.gmra.mxu0 %v1580
        %v6973 = vpop.f32.mrf.mxu0
        %v6974 = vadd.f32 0.0, %v6973
        %v6975 = vpop.f32.mrf.mxu0
        %6976 = vdwg.mxu0
        %6977 = vmatpush.bf16.msra.mxu0 %v5141
        %6978 = vmatpush.bf16.msra.mxu0 %v5109
        %6979 = vmatpush.bf16.msra.mxu0 %v5077
        %6980 = vmatpush.bf16.msra.mxu0 %v5045
        %6981 = vmatpush.bf16.msra.mxu0 %v5013
        %6982 = vmatpush.bf16.msra.mxu0 %v4981
        %6983 = vmatpush.bf16.msra.mxu0 %v4949
        %6984 = vmatpush.bf16.msra.mxu0 %v4917
        %6985 = vmatmul.bf16.gmra.mxu0 %v1581
        %v6986 = vpop.f32.mrf.mxu0
        %v6987 = vadd.f32 %v6974, %v6986
        %v6988 = vpop.f32.mrf.mxu0
        %6989 = vdwg.mxu0
        %6990 = vmatpush.bf16.msra.mxu0 %v5397
        %6991 = vmatpush.bf16.msra.mxu0 %v5365
        %6992 = vmatpush.bf16.msra.mxu0 %v5333
        %6993 = vmatpush.bf16.msra.mxu0 %v5301
        %6994 = vmatpush.bf16.msra.mxu0 %v5269
        %6995 = vmatpush.bf16.msra.mxu0 %v5237
        %6996 = vmatpush.bf16.msra.mxu0 %v5205
        %6997 = vmatpush.bf16.msra.mxu0 %v5173
        %6998 = vmatmul.bf16.gmra.mxu0 %v1582
        %v6999 = vpop.f32.mrf.mxu0
        %v7000 = vadd.f32 %v6987, %v6999
        %v7001 = vpop.f32.mrf.mxu0
        %7002 = vdwg.mxu0
        %7003 = vmatpush.bf16.msra.mxu0 %v5653
        %7004 = vmatpush.bf16.msra.mxu0 %v5621
        %7005 = vmatpush.bf16.msra.mxu0 %v5589
        %7006 = vmatpush.bf16.msra.mxu0 %v5557
        %7007 = vmatpush.bf16.msra.mxu0 %v5525
        %7008 = vmatpush.bf16.msra.mxu0 %v5493
        %7009 = vmatpush.bf16.msra.mxu0 %v5461
        %7010 = vmatpush.bf16.msra.mxu0 %v5429
        %7011 = vmatmul.bf16.gmra.mxu0 %v1583
        %v7012 = vpop.f32.mrf.mxu0
        %v7013 = vadd.f32 %v7000, %v7012
        %v7014 = vpop.f32.mrf.mxu0
        %7015 = vdwg.mxu0
        %7016 = vmatpush.bf16.msra.mxu0 %v4886
        %7017 = vmatpush.bf16.msra.mxu0 %v4854
        %7018 = vmatpush.bf16.msra.mxu0 %v4822
        %7019 = vmatpush.bf16.msra.mxu0 %v4790
        %7020 = vmatpush.bf16.msra.mxu0 %v4758
        %7021 = vmatpush.bf16.msra.mxu0 %v4726
        %7022 = vmatpush.bf16.msra.mxu0 %v4694
        %7023 = vmatpush.bf16.msra.mxu0 %v4662
        %7024 = vmatmul.bf16.gmra.mxu0 %v1580
        %v7025 = vpop.f32.mrf.mxu0
        %v7026 = vadd.f32 0.0, %v7025
        %v7027 = vpop.f32.mrf.mxu0
        %7028 = vdwg.mxu0
        %7029 = vmatpush.bf16.msra.mxu0 %v5142
        %7030 = vmatpush.bf16.msra.mxu0 %v5110
        %7031 = vmatpush.bf16.msra.mxu0 %v5078
        %7032 = vmatpush.bf16.msra.mxu0 %v5046
        %7033 = vmatpush.bf16.msra.mxu0 %v5014
        %7034 = vmatpush.bf16.msra.mxu0 %v4982
        %7035 = vmatpush.bf16.msra.mxu0 %v4950
        %7036 = vmatpush.bf16.msra.mxu0 %v4918
        %7037 = vmatmul.bf16.gmra.mxu0 %v1581
        %v7038 = vpop.f32.mrf.mxu0
        %v7039 = vadd.f32 %v7026, %v7038
        %v7040 = vpop.f32.mrf.mxu0
        %7041 = vdwg.mxu0
        %7042 = vmatpush.bf16.msra.mxu0 %v5398
        %7043 = vmatpush.bf16.msra.mxu0 %v5366
        %7044 = vmatpush.bf16.msra.mxu0 %v5334
        %7045 = vmatpush.bf16.msra.mxu0 %v5302
        %7046 = vmatpush.bf16.msra.mxu0 %v5270
        %7047 = vmatpush.bf16.msra.mxu0 %v5238
        %7048 = vmatpush.bf16.msra.mxu0 %v5206
        %7049 = vmatpush.bf16.msra.mxu0 %v5174
        %7050 = vmatmul.bf16.gmra.mxu0 %v1582
        %v7051 = vpop.f32.mrf.mxu0
        %v7052 = vadd.f32 %v7039, %v7051
        %v7053 = vpop.f32.mrf.mxu0
        %7054 = vdwg.mxu0
        %7055 = vmatpush.bf16.msra.mxu0 %v5654
        %7056 = vmatpush.bf16.msra.mxu0 %v5622
        %7057 = vmatpush.bf16.msra.mxu0 %v5590
        %7058 = vmatpush.bf16.msra.mxu0 %v5558
        %7059 = vmatpush.bf16.msra.mxu0 %v5526
        %7060 = vmatpush.bf16.msra.mxu0 %v5494
        %7061 = vmatpush.bf16.msra.mxu0 %v5462
        %7062 = vmatpush.bf16.msra.mxu0 %v5430
        %7063 = vmatmul.bf16.gmra.mxu0 %v1583
        %v7064 = vpop.f32.mrf.mxu0
        %v7065 = vadd.f32 %v7052, %v7064
        %v7066 = vpop.f32.mrf.mxu0
        %7067 = vdwg.mxu0
        %7068 = vmatpush.bf16.msra.mxu0 %v4887
        %7069 = vmatpush.bf16.msra.mxu0 %v4855
        %7070 = vmatpush.bf16.msra.mxu0 %v4823
        %7071 = vmatpush.bf16.msra.mxu0 %v4791
        %7072 = vmatpush.bf16.msra.mxu0 %v4759
        %7073 = vmatpush.bf16.msra.mxu0 %v4727
        %7074 = vmatpush.bf16.msra.mxu0 %v4695
        %7075 = vmatpush.bf16.msra.mxu0 %v4663
        %7076 = vmatmul.bf16.gmra.mxu0 %v1580
        %v7077 = vpop.f32.mrf.mxu0
        %v7078 = vadd.f32 0.0, %v7077
        %v7079 = vpop.f32.mrf.mxu0
        %7080 = vdwg.mxu0
        %7081 = vmatpush.bf16.msra.mxu0 %v5143
        %7082 = vmatpush.bf16.msra.mxu0 %v5111
        %7083 = vmatpush.bf16.msra.mxu0 %v5079
        %7084 = vmatpush.bf16.msra.mxu0 %v5047
        %7085 = vmatpush.bf16.msra.mxu0 %v5015
        %7086 = vmatpush.bf16.msra.mxu0 %v4983
        %7087 = vmatpush.bf16.msra.mxu0 %v4951
        %7088 = vmatpush.bf16.msra.mxu0 %v4919
        %7089 = vmatmul.bf16.gmra.mxu0 %v1581
        %v7090 = vpop.f32.mrf.mxu0
        %v7091 = vadd.f32 %v7078, %v7090
        %v7092 = vpop.f32.mrf.mxu0
        %7093 = vdwg.mxu0
        %7094 = vmatpush.bf16.msra.mxu0 %v5399
        %7095 = vmatpush.bf16.msra.mxu0 %v5367
        %7096 = vmatpush.bf16.msra.mxu0 %v5335
        %7097 = vmatpush.bf16.msra.mxu0 %v5303
        %7098 = vmatpush.bf16.msra.mxu0 %v5271
        %7099 = vmatpush.bf16.msra.mxu0 %v5239
        %7100 = vmatpush.bf16.msra.mxu0 %v5207
        %7101 = vmatpush.bf16.msra.mxu0 %v5175
        %7102 = vmatmul.bf16.gmra.mxu0 %v1582
        %v7103 = vpop.f32.mrf.mxu0
        %v7104 = vadd.f32 %v7091, %v7103
        %v7105 = vpop.f32.mrf.mxu0
        %7106 = vdwg.mxu0
        %7107 = vmatpush.bf16.msra.mxu0 %v5655
        %7108 = vmatpush.bf16.msra.mxu0 %v5623
        %7109 = vmatpush.bf16.msra.mxu0 %v5591
        %7110 = vmatpush.bf16.msra.mxu0 %v5559
        %7111 = vmatpush.bf16.msra.mxu0 %v5527
        %7112 = vmatpush.bf16.msra.mxu0 %v5495
        %7113 = vmatpush.bf16.msra.mxu0 %v5463
        %7114 = vmatpush.bf16.msra.mxu0 %v5431
        %7115 = vmatmul.bf16.gmra.mxu0 %v1583
        %v7116 = vpop.f32.mrf.mxu0
        %v7117 = vadd.f32 %v7104, %v7116
        %v7118 = vpop.f32.mrf.mxu0
        %7119 = vdwg.mxu0
        %7120 = vmatpush.bf16.msra.mxu0 %v4888
        %7121 = vmatpush.bf16.msra.mxu0 %v4856
        %7122 = vmatpush.bf16.msra.mxu0 %v4824
        %7123 = vmatpush.bf16.msra.mxu0 %v4792
        %7124 = vmatpush.bf16.msra.mxu0 %v4760
        %7125 = vmatpush.bf16.msra.mxu0 %v4728
        %7126 = vmatpush.bf16.msra.mxu0 %v4696
        %7127 = vmatpush.bf16.msra.mxu0 %v4664
        %7128 = vmatmul.bf16.gmra.mxu0 %v1580
        %v7129 = vpop.f32.mrf.mxu0
        %v7130 = vadd.f32 0.0, %v7129
        %v7131 = vpop.f32.mrf.mxu0
        %7132 = vdwg.mxu0
        %7133 = vmatpush.bf16.msra.mxu0 %v5144
        %7134 = vmatpush.bf16.msra.mxu0 %v5112
        %7135 = vmatpush.bf16.msra.mxu0 %v5080
        %7136 = vmatpush.bf16.msra.mxu0 %v5048
        %7137 = vmatpush.bf16.msra.mxu0 %v5016
        %7138 = vmatpush.bf16.msra.mxu0 %v4984
        %7139 = vmatpush.bf16.msra.mxu0 %v4952
        %7140 = vmatpush.bf16.msra.mxu0 %v4920
        %7141 = vmatmul.bf16.gmra.mxu0 %v1581
        %v7142 = vpop.f32.mrf.mxu0
        %v7143 = vadd.f32 %v7130, %v7142
        %v7144 = vpop.f32.mrf.mxu0
        %7145 = vdwg.mxu0
        %7146 = vmatpush.bf16.msra.mxu0 %v5400
        %7147 = vmatpush.bf16.msra.mxu0 %v5368
        %7148 = vmatpush.bf16.msra.mxu0 %v5336
        %7149 = vmatpush.bf16.msra.mxu0 %v5304
        %7150 = vmatpush.bf16.msra.mxu0 %v5272
        %7151 = vmatpush.bf16.msra.mxu0 %v5240
        %7152 = vmatpush.bf16.msra.mxu0 %v5208
        %7153 = vmatpush.bf16.msra.mxu0 %v5176
        %7154 = vmatmul.bf16.gmra.mxu0 %v1582
        %v7155 = vpop.f32.mrf.mxu0
        %v7156 = vadd.f32 %v7143, %v7155
        %v7157 = vpop.f32.mrf.mxu0
        %7158 = vdwg.mxu0
        %7159 = vmatpush.bf16.msra.mxu0 %v5656
        %7160 = vmatpush.bf16.msra.mxu0 %v5624
        %7161 = vmatpush.bf16.msra.mxu0 %v5592
        %7162 = vmatpush.bf16.msra.mxu0 %v5560
        %7163 = vmatpush.bf16.msra.mxu0 %v5528
        %7164 = vmatpush.bf16.msra.mxu0 %v5496
        %7165 = vmatpush.bf16.msra.mxu0 %v5464
        %7166 = vmatpush.bf16.msra.mxu0 %v5432
        %7167 = vmatmul.bf16.gmra.mxu0 %v1583
        %v7168 = vpop.f32.mrf.mxu0
        %v7169 = vadd.f32 %v7156, %v7168
        %v7170 = vpop.f32.mrf.mxu0
        %7171 = vdwg.mxu0
        %7172 = vmatpush.bf16.msra.mxu0 %v4889
        %7173 = vmatpush.bf16.msra.mxu0 %v4857
        %7174 = vmatpush.bf16.msra.mxu0 %v4825
        %7175 = vmatpush.bf16.msra.mxu0 %v4793
        %7176 = vmatpush.bf16.msra.mxu0 %v4761
        %7177 = vmatpush.bf16.msra.mxu0 %v4729
        %7178 = vmatpush.bf16.msra.mxu0 %v4697
        %7179 = vmatpush.bf16.msra.mxu0 %v4665
        %7180 = vmatmul.bf16.gmra.mxu0 %v1580
        %v7181 = vpop.f32.mrf.mxu0
        %v7182 = vadd.f32 0.0, %v7181
        %v7183 = vpop.f32.mrf.mxu0
        %7184 = vdwg.mxu0
        %7185 = vmatpush.bf16.msra.mxu0 %v5145
        %7186 = vmatpush.bf16.msra.mxu0 %v5113
        %7187 = vmatpush.bf16.msra.mxu0 %v5081
        %7188 = vmatpush.bf16.msra.mxu0 %v5049
        %7189 = vmatpush.bf16.msra.mxu0 %v5017
        %7190 = vmatpush.bf16.msra.mxu0 %v4985
        %7191 = vmatpush.bf16.msra.mxu0 %v4953
        %7192 = vmatpush.bf16.msra.mxu0 %v4921
        %7193 = vmatmul.bf16.gmra.mxu0 %v1581
        %v7194 = vpop.f32.mrf.mxu0
        %v7195 = vadd.f32 %v7182, %v7194
        %v7196 = vpop.f32.mrf.mxu0
        %7197 = vdwg.mxu0
        %7198 = vmatpush.bf16.msra.mxu0 %v5401
        %7199 = vmatpush.bf16.msra.mxu0 %v5369
        %7200 = vmatpush.bf16.msra.mxu0 %v5337
        %7201 = vmatpush.bf16.msra.mxu0 %v5305
        %7202 = vmatpush.bf16.msra.mxu0 %v5273
        %7203 = vmatpush.bf16.msra.mxu0 %v5241
        %7204 = vmatpush.bf16.msra.mxu0 %v5209
        %7205 = vmatpush.bf16.msra.mxu0 %v5177
        %7206 = vmatmul.bf16.gmra.mxu0 %v1582
        %v7207 = vpop.f32.mrf.mxu0
        %v7208 = vadd.f32 %v7195, %v7207
        %v7209 = vpop.f32.mrf.mxu0
        %7210 = vdwg.mxu0
        %7211 = vmatpush.bf16.msra.mxu0 %v5657
        %7212 = vmatpush.bf16.msra.mxu0 %v5625
        %7213 = vmatpush.bf16.msra.mxu0 %v5593
        %7214 = vmatpush.bf16.msra.mxu0 %v5561
        %7215 = vmatpush.bf16.msra.mxu0 %v5529
        %7216 = vmatpush.bf16.msra.mxu0 %v5497
        %7217 = vmatpush.bf16.msra.mxu0 %v5465
        %7218 = vmatpush.bf16.msra.mxu0 %v5433
        %7219 = vmatmul.bf16.gmra.mxu0 %v1583
        %v7220 = vpop.f32.mrf.mxu0
        %v7221 = vadd.f32 %v7208, %v7220
        %v7222 = vpop.f32.mrf.mxu0
        %7223 = vdwg.mxu0
        %7224 = vmatpush.bf16.msra.mxu0 %v4890
        %7225 = vmatpush.bf16.msra.mxu0 %v4858
        %7226 = vmatpush.bf16.msra.mxu0 %v4826
        %7227 = vmatpush.bf16.msra.mxu0 %v4794
        %7228 = vmatpush.bf16.msra.mxu0 %v4762
        %7229 = vmatpush.bf16.msra.mxu0 %v4730
        %7230 = vmatpush.bf16.msra.mxu0 %v4698
        %7231 = vmatpush.bf16.msra.mxu0 %v4666
        %7232 = vmatmul.bf16.gmra.mxu0 %v1580
        %v7233 = vpop.f32.mrf.mxu0
        %v7234 = vadd.f32 0.0, %v7233
        %v7235 = vpop.f32.mrf.mxu0
        %7236 = vdwg.mxu0
        %7237 = vmatpush.bf16.msra.mxu0 %v5146
        %7238 = vmatpush.bf16.msra.mxu0 %v5114
        %7239 = vmatpush.bf16.msra.mxu0 %v5082
        %7240 = vmatpush.bf16.msra.mxu0 %v5050
        %7241 = vmatpush.bf16.msra.mxu0 %v5018
        %7242 = vmatpush.bf16.msra.mxu0 %v4986
        %7243 = vmatpush.bf16.msra.mxu0 %v4954
        %7244 = vmatpush.bf16.msra.mxu0 %v4922
        %7245 = vmatmul.bf16.gmra.mxu0 %v1581
        %v7246 = vpop.f32.mrf.mxu0
        %v7247 = vadd.f32 %v7234, %v7246
        %v7248 = vpop.f32.mrf.mxu0
        %7249 = vdwg.mxu0
        %7250 = vmatpush.bf16.msra.mxu0 %v5402
        %7251 = vmatpush.bf16.msra.mxu0 %v5370
        %7252 = vmatpush.bf16.msra.mxu0 %v5338
        %7253 = vmatpush.bf16.msra.mxu0 %v5306
        %7254 = vmatpush.bf16.msra.mxu0 %v5274
        %7255 = vmatpush.bf16.msra.mxu0 %v5242
        %7256 = vmatpush.bf16.msra.mxu0 %v5210
        %7257 = vmatpush.bf16.msra.mxu0 %v5178
        %7258 = vmatmul.bf16.gmra.mxu0 %v1582
        %v7259 = vpop.f32.mrf.mxu0
        %v7260 = vadd.f32 %v7247, %v7259
        %v7261 = vpop.f32.mrf.mxu0
        %7262 = vdwg.mxu0
        %7263 = vmatpush.bf16.msra.mxu0 %v5658
        %7264 = vmatpush.bf16.msra.mxu0 %v5626
        %7265 = vmatpush.bf16.msra.mxu0 %v5594
        %7266 = vmatpush.bf16.msra.mxu0 %v5562
        %7267 = vmatpush.bf16.msra.mxu0 %v5530
        %7268 = vmatpush.bf16.msra.mxu0 %v5498
        %7269 = vmatpush.bf16.msra.mxu0 %v5466
        %7270 = vmatpush.bf16.msra.mxu0 %v5434
        %7271 = vmatmul.bf16.gmra.mxu0 %v1583
        %v7272 = vpop.f32.mrf.mxu0
        %v7273 = vadd.f32 %v7260, %v7272
        %v7274 = vpop.f32.mrf.mxu0
        %7275 = vdwg.mxu0
        %7276 = vmatpush.bf16.msra.mxu0 %v4891
        %7277 = vmatpush.bf16.msra.mxu0 %v4859
        %7278 = vmatpush.bf16.msra.mxu0 %v4827
        %7279 = vmatpush.bf16.msra.mxu0 %v4795
        %7280 = vmatpush.bf16.msra.mxu0 %v4763
        %7281 = vmatpush.bf16.msra.mxu0 %v4731
        %7282 = vmatpush.bf16.msra.mxu0 %v4699
        %7283 = vmatpush.bf16.msra.mxu0 %v4667
        %7284 = vmatmul.bf16.gmra.mxu0 %v1580
        %v7285 = vpop.f32.mrf.mxu0
        %v7286 = vadd.f32 0.0, %v7285
        %v7287 = vpop.f32.mrf.mxu0
        %7288 = vdwg.mxu0
        %7289 = vmatpush.bf16.msra.mxu0 %v5147
        %7290 = vmatpush.bf16.msra.mxu0 %v5115
        %7291 = vmatpush.bf16.msra.mxu0 %v5083
        %7292 = vmatpush.bf16.msra.mxu0 %v5051
        %7293 = vmatpush.bf16.msra.mxu0 %v5019
        %7294 = vmatpush.bf16.msra.mxu0 %v4987
        %7295 = vmatpush.bf16.msra.mxu0 %v4955
        %7296 = vmatpush.bf16.msra.mxu0 %v4923
        %7297 = vmatmul.bf16.gmra.mxu0 %v1581
        %v7298 = vpop.f32.mrf.mxu0
        %v7299 = vadd.f32 %v7286, %v7298
        %v7300 = vpop.f32.mrf.mxu0
        %7301 = vdwg.mxu0
        %7302 = vmatpush.bf16.msra.mxu0 %v5403
        %7303 = vmatpush.bf16.msra.mxu0 %v5371
        %7304 = vmatpush.bf16.msra.mxu0 %v5339
        %7305 = vmatpush.bf16.msra.mxu0 %v5307
        %7306 = vmatpush.bf16.msra.mxu0 %v5275
        %7307 = vmatpush.bf16.msra.mxu0 %v5243
        %7308 = vmatpush.bf16.msra.mxu0 %v5211
        %7309 = vmatpush.bf16.msra.mxu0 %v5179
        %7310 = vmatmul.bf16.gmra.mxu0 %v1582
        %v7311 = vpop.f32.mrf.mxu0
        %v7312 = vadd.f32 %v7299, %v7311
        %v7313 = vpop.f32.mrf.mxu0
        %7314 = vdwg.mxu0
        %7315 = vmatpush.bf16.msra.mxu0 %v5659
        %7316 = vmatpush.bf16.msra.mxu0 %v5627
        %7317 = vmatpush.bf16.msra.mxu0 %v5595
        %7318 = vmatpush.bf16.msra.mxu0 %v5563
        %7319 = vmatpush.bf16.msra.mxu0 %v5531
        %7320 = vmatpush.bf16.msra.mxu0 %v5499
        %7321 = vmatpush.bf16.msra.mxu0 %v5467
        %7322 = vmatpush.bf16.msra.mxu0 %v5435
        %7323 = vmatmul.bf16.gmra.mxu0 %v1583
        %v7324 = vpop.f32.mrf.mxu0
        %v7325 = vadd.f32 %v7312, %v7324
        %v7326 = vpop.f32.mrf.mxu0
        %7327 = vdwg.mxu0
        %7328 = vmatpush.bf16.msra.mxu0 %v4892
        %7329 = vmatpush.bf16.msra.mxu0 %v4860
        %7330 = vmatpush.bf16.msra.mxu0 %v4828
        %7331 = vmatpush.bf16.msra.mxu0 %v4796
        %7332 = vmatpush.bf16.msra.mxu0 %v4764
        %7333 = vmatpush.bf16.msra.mxu0 %v4732
        %7334 = vmatpush.bf16.msra.mxu0 %v4700
        %7335 = vmatpush.bf16.msra.mxu0 %v4668
        %7336 = vmatmul.bf16.gmra.mxu0 %v1580
        %v7337 = vpop.f32.mrf.mxu0
        %v7338 = vadd.f32 0.0, %v7337
        %v7339 = vpop.f32.mrf.mxu0
        %7340 = vdwg.mxu0
        %7341 = vmatpush.bf16.msra.mxu0 %v5148
        %7342 = vmatpush.bf16.msra.mxu0 %v5116
        %7343 = vmatpush.bf16.msra.mxu0 %v5084
        %7344 = vmatpush.bf16.msra.mxu0 %v5052
        %7345 = vmatpush.bf16.msra.mxu0 %v5020
        %7346 = vmatpush.bf16.msra.mxu0 %v4988
        %7347 = vmatpush.bf16.msra.mxu0 %v4956
        %7348 = vmatpush.bf16.msra.mxu0 %v4924
        %7349 = vmatmul.bf16.gmra.mxu0 %v1581
        %v7350 = vpop.f32.mrf.mxu0
        %v7351 = vadd.f32 %v7338, %v7350
        %v7352 = vpop.f32.mrf.mxu0
        %7353 = vdwg.mxu0
        %7354 = vmatpush.bf16.msra.mxu0 %v5404
        %7355 = vmatpush.bf16.msra.mxu0 %v5372
        %7356 = vmatpush.bf16.msra.mxu0 %v5340
        %7357 = vmatpush.bf16.msra.mxu0 %v5308
        %7358 = vmatpush.bf16.msra.mxu0 %v5276
        %7359 = vmatpush.bf16.msra.mxu0 %v5244
        %7360 = vmatpush.bf16.msra.mxu0 %v5212
        %7361 = vmatpush.bf16.msra.mxu0 %v5180
        %7362 = vmatmul.bf16.gmra.mxu0 %v1582
        %v7363 = vpop.f32.mrf.mxu0
        %v7364 = vadd.f32 %v7351, %v7363
        %v7365 = vpop.f32.mrf.mxu0
        %7366 = vdwg.mxu0
        %7367 = vmatpush.bf16.msra.mxu0 %v5660
        %7368 = vmatpush.bf16.msra.mxu0 %v5628
        %7369 = vmatpush.bf16.msra.mxu0 %v5596
        %7370 = vmatpush.bf16.msra.mxu0 %v5564
        %7371 = vmatpush.bf16.msra.mxu0 %v5532
        %7372 = vmatpush.bf16.msra.mxu0 %v5500
        %7373 = vmatpush.bf16.msra.mxu0 %v5468
        %7374 = vmatpush.bf16.msra.mxu0 %v5436
        %7375 = vmatmul.bf16.gmra.mxu0 %v1583
        %v7376 = vpop.f32.mrf.mxu0
        %v7377 = vadd.f32 %v7364, %v7376
        %v7378 = vpop.f32.mrf.mxu0
        %7379 = vdwg.mxu0
        %7380 = vmatpush.bf16.msra.mxu0 %v4893
        %7381 = vmatpush.bf16.msra.mxu0 %v4861
        %7382 = vmatpush.bf16.msra.mxu0 %v4829
        %7383 = vmatpush.bf16.msra.mxu0 %v4797
        %7384 = vmatpush.bf16.msra.mxu0 %v4765
        %7385 = vmatpush.bf16.msra.mxu0 %v4733
        %7386 = vmatpush.bf16.msra.mxu0 %v4701
        %7387 = vmatpush.bf16.msra.mxu0 %v4669
        %7388 = vmatmul.bf16.gmra.mxu0 %v1580
        %v7389 = vpop.f32.mrf.mxu0
        %v7390 = vadd.f32 0.0, %v7389
        %v7391 = vpop.f32.mrf.mxu0
        %7392 = vdwg.mxu0
        %7393 = vmatpush.bf16.msra.mxu0 %v5149
        %7394 = vmatpush.bf16.msra.mxu0 %v5117
        %7395 = vmatpush.bf16.msra.mxu0 %v5085
        %7396 = vmatpush.bf16.msra.mxu0 %v5053
        %7397 = vmatpush.bf16.msra.mxu0 %v5021
        %7398 = vmatpush.bf16.msra.mxu0 %v4989
        %7399 = vmatpush.bf16.msra.mxu0 %v4957
        %7400 = vmatpush.bf16.msra.mxu0 %v4925
        %7401 = vmatmul.bf16.gmra.mxu0 %v1581
        %v7402 = vpop.f32.mrf.mxu0
        %v7403 = vadd.f32 %v7390, %v7402
        %v7404 = vpop.f32.mrf.mxu0
        %7405 = vdwg.mxu0
        %7406 = vmatpush.bf16.msra.mxu0 %v5405
        %7407 = vmatpush.bf16.msra.mxu0 %v5373
        %7408 = vmatpush.bf16.msra.mxu0 %v5341
        %7409 = vmatpush.bf16.msra.mxu0 %v5309
        %7410 = vmatpush.bf16.msra.mxu0 %v5277
        %7411 = vmatpush.bf16.msra.mxu0 %v5245
        %7412 = vmatpush.bf16.msra.mxu0 %v5213
        %7413 = vmatpush.bf16.msra.mxu0 %v5181
        %7414 = vmatmul.bf16.gmra.mxu0 %v1582
        %v7415 = vpop.f32.mrf.mxu0
        %v7416 = vadd.f32 %v7403, %v7415
        %v7417 = vpop.f32.mrf.mxu0
        %7418 = vdwg.mxu0
        %7419 = vmatpush.bf16.msra.mxu0 %v5661
        %7420 = vmatpush.bf16.msra.mxu0 %v5629
        %7421 = vmatpush.bf16.msra.mxu0 %v5597
        %7422 = vmatpush.bf16.msra.mxu0 %v5565
        %7423 = vmatpush.bf16.msra.mxu0 %v5533
        %7424 = vmatpush.bf16.msra.mxu0 %v5501
        %7425 = vmatpush.bf16.msra.mxu0 %v5469
        %7426 = vmatpush.bf16.msra.mxu0 %v5437
        %7427 = vmatmul.bf16.gmra.mxu0 %v1583
        %v7428 = vpop.f32.mrf.mxu0
        %v7429 = vadd.f32 %v7416, %v7428
        %v7430 = vpop.f32.mrf.mxu0
        %7431 = vdwg.mxu0
        %7432 = vmatpush.bf16.msra.mxu0 %v4894
        %7433 = vmatpush.bf16.msra.mxu0 %v4862
        %7434 = vmatpush.bf16.msra.mxu0 %v4830
        %7435 = vmatpush.bf16.msra.mxu0 %v4798
        %7436 = vmatpush.bf16.msra.mxu0 %v4766
        %7437 = vmatpush.bf16.msra.mxu0 %v4734
        %7438 = vmatpush.bf16.msra.mxu0 %v4702
        %7439 = vmatpush.bf16.msra.mxu0 %v4670
        %7440 = vmatmul.bf16.gmra.mxu0 %v1580
        %v7441 = vpop.f32.mrf.mxu0
        %v7442 = vadd.f32 0.0, %v7441
        %v7443 = vpop.f32.mrf.mxu0
        %7444 = vdwg.mxu0
        %7445 = vmatpush.bf16.msra.mxu0 %v5150
        %7446 = vmatpush.bf16.msra.mxu0 %v5118
        %7447 = vmatpush.bf16.msra.mxu0 %v5086
        %7448 = vmatpush.bf16.msra.mxu0 %v5054
        %7449 = vmatpush.bf16.msra.mxu0 %v5022
        %7450 = vmatpush.bf16.msra.mxu0 %v4990
        %7451 = vmatpush.bf16.msra.mxu0 %v4958
        %7452 = vmatpush.bf16.msra.mxu0 %v4926
        %7453 = vmatmul.bf16.gmra.mxu0 %v1581
        %v7454 = vpop.f32.mrf.mxu0
        %v7455 = vadd.f32 %v7442, %v7454
        %v7456 = vpop.f32.mrf.mxu0
        %7457 = vdwg.mxu0
        %7458 = vmatpush.bf16.msra.mxu0 %v5406
        %7459 = vmatpush.bf16.msra.mxu0 %v5374
        %7460 = vmatpush.bf16.msra.mxu0 %v5342
        %7461 = vmatpush.bf16.msra.mxu0 %v5310
        %7462 = vmatpush.bf16.msra.mxu0 %v5278
        %7463 = vmatpush.bf16.msra.mxu0 %v5246
        %7464 = vmatpush.bf16.msra.mxu0 %v5214
        %7465 = vmatpush.bf16.msra.mxu0 %v5182
        %7466 = vmatmul.bf16.gmra.mxu0 %v1582
        %v7467 = vpop.f32.mrf.mxu0
        %v7468 = vadd.f32 %v7455, %v7467
        %v7469 = vpop.f32.mrf.mxu0
        %7470 = vdwg.mxu0
        %7471 = vmatpush.bf16.msra.mxu0 %v5662
        %7472 = vmatpush.bf16.msra.mxu0 %v5630
        %7473 = vmatpush.bf16.msra.mxu0 %v5598
        %7474 = vmatpush.bf16.msra.mxu0 %v5566
        %7475 = vmatpush.bf16.msra.mxu0 %v5534
        %7476 = vmatpush.bf16.msra.mxu0 %v5502
        %7477 = vmatpush.bf16.msra.mxu0 %v5470
        %7478 = vmatpush.bf16.msra.mxu0 %v5438
        %7479 = vmatmul.bf16.gmra.mxu0 %v1583
        %v7480 = vpop.f32.mrf.mxu0
        %v7481 = vadd.f32 %v7468, %v7480
        %v7482 = vpop.f32.mrf.mxu0
        %7483 = vdwg.mxu0
        %7484 = vmatpush.bf16.msra.mxu0 %v4895
        %7485 = vmatpush.bf16.msra.mxu0 %v4863
        %7486 = vmatpush.bf16.msra.mxu0 %v4831
        %7487 = vmatpush.bf16.msra.mxu0 %v4799
        %7488 = vmatpush.bf16.msra.mxu0 %v4767
        %7489 = vmatpush.bf16.msra.mxu0 %v4735
        %7490 = vmatpush.bf16.msra.mxu0 %v4703
        %7491 = vmatpush.bf16.msra.mxu0 %v4671
        %7492 = vmatmul.bf16.gmra.mxu0 %v1580
        %v7493 = vpop.f32.mrf.mxu0
        %v7494 = vadd.f32 0.0, %v7493
        %v7495 = vpop.f32.mrf.mxu0
        %7496 = vdwg.mxu0
        %7497 = vmatpush.bf16.msra.mxu0 %v5151
        %7498 = vmatpush.bf16.msra.mxu0 %v5119
        %7499 = vmatpush.bf16.msra.mxu0 %v5087
        %7500 = vmatpush.bf16.msra.mxu0 %v5055
        %7501 = vmatpush.bf16.msra.mxu0 %v5023
        %7502 = vmatpush.bf16.msra.mxu0 %v4991
        %7503 = vmatpush.bf16.msra.mxu0 %v4959
        %7504 = vmatpush.bf16.msra.mxu0 %v4927
        %7505 = vmatmul.bf16.gmra.mxu0 %v1581
        %v7506 = vpop.f32.mrf.mxu0
        %v7507 = vadd.f32 %v7494, %v7506
        %v7508 = vpop.f32.mrf.mxu0
        %7509 = vdwg.mxu0
        %7510 = vmatpush.bf16.msra.mxu0 %v5407
        %7511 = vmatpush.bf16.msra.mxu0 %v5375
        %7512 = vmatpush.bf16.msra.mxu0 %v5343
        %7513 = vmatpush.bf16.msra.mxu0 %v5311
        %7514 = vmatpush.bf16.msra.mxu0 %v5279
        %7515 = vmatpush.bf16.msra.mxu0 %v5247
        %7516 = vmatpush.bf16.msra.mxu0 %v5215
        %7517 = vmatpush.bf16.msra.mxu0 %v5183
        %7518 = vmatmul.bf16.gmra.mxu0 %v1582
        %v7519 = vpop.f32.mrf.mxu0
        %v7520 = vadd.f32 %v7507, %v7519
        %v7521 = vpop.f32.mrf.mxu0
        %7522 = vdwg.mxu0
        %7523 = vmatpush.bf16.msra.mxu0 %v5663
        %7524 = vmatpush.bf16.msra.mxu0 %v5631
        %7525 = vmatpush.bf16.msra.mxu0 %v5599
        %7526 = vmatpush.bf16.msra.mxu0 %v5567
        %7527 = vmatpush.bf16.msra.mxu0 %v5535
        %7528 = vmatpush.bf16.msra.mxu0 %v5503
        %7529 = vmatpush.bf16.msra.mxu0 %v5471
        %7530 = vmatpush.bf16.msra.mxu0 %v5439
        %7531 = vmatmul.bf16.gmra.mxu0 %v1583
        %v7532 = vpop.f32.mrf.mxu0
        %v7533 = vadd.f32 %v7520, %v7532
        %v7534 = vpop.f32.mrf.mxu0
        %7535 = vdwg.mxu0
        %7536 = vmatpush.bf16.msra.mxu0 %v4896
        %7537 = vmatpush.bf16.msra.mxu0 %v4864
        %7538 = vmatpush.bf16.msra.mxu0 %v4832
        %7539 = vmatpush.bf16.msra.mxu0 %v4800
        %7540 = vmatpush.bf16.msra.mxu0 %v4768
        %7541 = vmatpush.bf16.msra.mxu0 %v4736
        %7542 = vmatpush.bf16.msra.mxu0 %v4704
        %7543 = vmatpush.bf16.msra.mxu0 %v4672
        %7544 = vmatmul.bf16.gmra.mxu0 %v1580
        %v7545 = vpop.f32.mrf.mxu0
        %v7546 = vadd.f32 0.0, %v7545
        %v7547 = vpop.f32.mrf.mxu0
        %7548 = vdwg.mxu0
        %7549 = vmatpush.bf16.msra.mxu0 %v5152
        %7550 = vmatpush.bf16.msra.mxu0 %v5120
        %7551 = vmatpush.bf16.msra.mxu0 %v5088
        %7552 = vmatpush.bf16.msra.mxu0 %v5056
        %7553 = vmatpush.bf16.msra.mxu0 %v5024
        %7554 = vmatpush.bf16.msra.mxu0 %v4992
        %7555 = vmatpush.bf16.msra.mxu0 %v4960
        %7556 = vmatpush.bf16.msra.mxu0 %v4928
        %7557 = vmatmul.bf16.gmra.mxu0 %v1581
        %v7558 = vpop.f32.mrf.mxu0
        %v7559 = vadd.f32 %v7546, %v7558
        %v7560 = vpop.f32.mrf.mxu0
        %7561 = vdwg.mxu0
        %7562 = vmatpush.bf16.msra.mxu0 %v5408
        %7563 = vmatpush.bf16.msra.mxu0 %v5376
        %7564 = vmatpush.bf16.msra.mxu0 %v5344
        %7565 = vmatpush.bf16.msra.mxu0 %v5312
        %7566 = vmatpush.bf16.msra.mxu0 %v5280
        %7567 = vmatpush.bf16.msra.mxu0 %v5248
        %7568 = vmatpush.bf16.msra.mxu0 %v5216
        %7569 = vmatpush.bf16.msra.mxu0 %v5184
        %7570 = vmatmul.bf16.gmra.mxu0 %v1582
        %v7571 = vpop.f32.mrf.mxu0
        %v7572 = vadd.f32 %v7559, %v7571
        %v7573 = vpop.f32.mrf.mxu0
        %7574 = vdwg.mxu0
        %7575 = vmatpush.bf16.msra.mxu0 %v5664
        %7576 = vmatpush.bf16.msra.mxu0 %v5632
        %7577 = vmatpush.bf16.msra.mxu0 %v5600
        %7578 = vmatpush.bf16.msra.mxu0 %v5568
        %7579 = vmatpush.bf16.msra.mxu0 %v5536
        %7580 = vmatpush.bf16.msra.mxu0 %v5504
        %7581 = vmatpush.bf16.msra.mxu0 %v5472
        %7582 = vmatpush.bf16.msra.mxu0 %v5440
        %7583 = vmatmul.bf16.gmra.mxu0 %v1583
        %v7584 = vpop.f32.mrf.mxu0
        %v7585 = vadd.f32 %v7572, %v7584
        %v7586 = vpop.f32.mrf.mxu0
        %7587 = vdwg.mxu0
        %7588 = vmatpush.bf16.msra.mxu0 %v4897
        %7589 = vmatpush.bf16.msra.mxu0 %v4865
        %7590 = vmatpush.bf16.msra.mxu0 %v4833
        %7591 = vmatpush.bf16.msra.mxu0 %v4801
        %7592 = vmatpush.bf16.msra.mxu0 %v4769
        %7593 = vmatpush.bf16.msra.mxu0 %v4737
        %7594 = vmatpush.bf16.msra.mxu0 %v4705
        %7595 = vmatpush.bf16.msra.mxu0 %v4673
        %7596 = vmatmul.bf16.gmra.mxu0 %v1580
        %v7597 = vpop.f32.mrf.mxu0
        %v7598 = vadd.f32 0.0, %v7597
        %v7599 = vpop.f32.mrf.mxu0
        %7600 = vdwg.mxu0
        %7601 = vmatpush.bf16.msra.mxu0 %v5153
        %7602 = vmatpush.bf16.msra.mxu0 %v5121
        %7603 = vmatpush.bf16.msra.mxu0 %v5089
        %7604 = vmatpush.bf16.msra.mxu0 %v5057
        %7605 = vmatpush.bf16.msra.mxu0 %v5025
        %7606 = vmatpush.bf16.msra.mxu0 %v4993
        %7607 = vmatpush.bf16.msra.mxu0 %v4961
        %7608 = vmatpush.bf16.msra.mxu0 %v4929
        %7609 = vmatmul.bf16.gmra.mxu0 %v1581
        %v7610 = vpop.f32.mrf.mxu0
        %v7611 = vadd.f32 %v7598, %v7610
        %v7612 = vpop.f32.mrf.mxu0
        %7613 = vdwg.mxu0
        %7614 = vmatpush.bf16.msra.mxu0 %v5409
        %7615 = vmatpush.bf16.msra.mxu0 %v5377
        %7616 = vmatpush.bf16.msra.mxu0 %v5345
        %7617 = vmatpush.bf16.msra.mxu0 %v5313
        %7618 = vmatpush.bf16.msra.mxu0 %v5281
        %7619 = vmatpush.bf16.msra.mxu0 %v5249
        %7620 = vmatpush.bf16.msra.mxu0 %v5217
        %7621 = vmatpush.bf16.msra.mxu0 %v5185
        %7622 = vmatmul.bf16.gmra.mxu0 %v1582
        %v7623 = vpop.f32.mrf.mxu0
        %v7624 = vadd.f32 %v7611, %v7623
        %v7625 = vpop.f32.mrf.mxu0
        %7626 = vdwg.mxu0
        %7627 = vmatpush.bf16.msra.mxu0 %v5665
        %7628 = vmatpush.bf16.msra.mxu0 %v5633
        %7629 = vmatpush.bf16.msra.mxu0 %v5601
        %7630 = vmatpush.bf16.msra.mxu0 %v5569
        %7631 = vmatpush.bf16.msra.mxu0 %v5537
        %7632 = vmatpush.bf16.msra.mxu0 %v5505
        %7633 = vmatpush.bf16.msra.mxu0 %v5473
        %7634 = vmatpush.bf16.msra.mxu0 %v5441
        %7635 = vmatmul.bf16.gmra.mxu0 %v1583
        %v7636 = vpop.f32.mrf.mxu0
        %v7637 = vadd.f32 %v7624, %v7636
        %v7638 = vpop.f32.mrf.mxu0
        %7639 = vdwg.mxu0
        %7640 = vmatpush.bf16.msra.mxu0 %v4898
        %7641 = vmatpush.bf16.msra.mxu0 %v4866
        %7642 = vmatpush.bf16.msra.mxu0 %v4834
        %7643 = vmatpush.bf16.msra.mxu0 %v4802
        %7644 = vmatpush.bf16.msra.mxu0 %v4770
        %7645 = vmatpush.bf16.msra.mxu0 %v4738
        %7646 = vmatpush.bf16.msra.mxu0 %v4706
        %7647 = vmatpush.bf16.msra.mxu0 %v4674
        %7648 = vmatmul.bf16.gmra.mxu0 %v1580
        %v7649 = vpop.f32.mrf.mxu0
        %v7650 = vadd.f32 0.0, %v7649
        %v7651 = vpop.f32.mrf.mxu0
        %7652 = vdwg.mxu0
        %7653 = vmatpush.bf16.msra.mxu0 %v5154
        %7654 = vmatpush.bf16.msra.mxu0 %v5122
        %7655 = vmatpush.bf16.msra.mxu0 %v5090
        %7656 = vmatpush.bf16.msra.mxu0 %v5058
        %7657 = vmatpush.bf16.msra.mxu0 %v5026
        %7658 = vmatpush.bf16.msra.mxu0 %v4994
        %7659 = vmatpush.bf16.msra.mxu0 %v4962
        %7660 = vmatpush.bf16.msra.mxu0 %v4930
        %7661 = vmatmul.bf16.gmra.mxu0 %v1581
        %v7662 = vpop.f32.mrf.mxu0
        %v7663 = vadd.f32 %v7650, %v7662
        %v7664 = vpop.f32.mrf.mxu0
        %7665 = vdwg.mxu0
        %7666 = vmatpush.bf16.msra.mxu0 %v5410
        %7667 = vmatpush.bf16.msra.mxu0 %v5378
        %7668 = vmatpush.bf16.msra.mxu0 %v5346
        %7669 = vmatpush.bf16.msra.mxu0 %v5314
        %7670 = vmatpush.bf16.msra.mxu0 %v5282
        %7671 = vmatpush.bf16.msra.mxu0 %v5250
        %7672 = vmatpush.bf16.msra.mxu0 %v5218
        %7673 = vmatpush.bf16.msra.mxu0 %v5186
        %7674 = vmatmul.bf16.gmra.mxu0 %v1582
        %v7675 = vpop.f32.mrf.mxu0
        %v7676 = vadd.f32 %v7663, %v7675
        %v7677 = vpop.f32.mrf.mxu0
        %7678 = vdwg.mxu0
        %7679 = vmatpush.bf16.msra.mxu0 %v5666
        %7680 = vmatpush.bf16.msra.mxu0 %v5634
        %7681 = vmatpush.bf16.msra.mxu0 %v5602
        %7682 = vmatpush.bf16.msra.mxu0 %v5570
        %7683 = vmatpush.bf16.msra.mxu0 %v5538
        %7684 = vmatpush.bf16.msra.mxu0 %v5506
        %7685 = vmatpush.bf16.msra.mxu0 %v5474
        %7686 = vmatpush.bf16.msra.mxu0 %v5442
        %7687 = vmatmul.bf16.gmra.mxu0 %v1583
        %v7688 = vpop.f32.mrf.mxu0
        %v7689 = vadd.f32 %v7676, %v7688
        %v7690 = vpop.f32.mrf.mxu0
        %7691 = vdwg.mxu0
        %7692 = vmatpush.bf16.msra.mxu0 %v4899
        %7693 = vmatpush.bf16.msra.mxu0 %v4867
        %7694 = vmatpush.bf16.msra.mxu0 %v4835
        %7695 = vmatpush.bf16.msra.mxu0 %v4803
        %7696 = vmatpush.bf16.msra.mxu0 %v4771
        %7697 = vmatpush.bf16.msra.mxu0 %v4739
        %7698 = vmatpush.bf16.msra.mxu0 %v4707
        %7699 = vmatpush.bf16.msra.mxu0 %v4675
        %7700 = vmatmul.bf16.gmra.mxu0 %v1580
        %v7701 = vpop.f32.mrf.mxu0
        %v7702 = vadd.f32 0.0, %v7701
        %v7703 = vpop.f32.mrf.mxu0
        %7704 = vdwg.mxu0
        %7705 = vmatpush.bf16.msra.mxu0 %v5155
        %7706 = vmatpush.bf16.msra.mxu0 %v5123
        %7707 = vmatpush.bf16.msra.mxu0 %v5091
        %7708 = vmatpush.bf16.msra.mxu0 %v5059
        %7709 = vmatpush.bf16.msra.mxu0 %v5027
        %7710 = vmatpush.bf16.msra.mxu0 %v4995
        %7711 = vmatpush.bf16.msra.mxu0 %v4963
        %7712 = vmatpush.bf16.msra.mxu0 %v4931
        %7713 = vmatmul.bf16.gmra.mxu0 %v1581
        %v7714 = vpop.f32.mrf.mxu0
        %v7715 = vadd.f32 %v7702, %v7714
        %v7716 = vpop.f32.mrf.mxu0
        %7717 = vdwg.mxu0
        %7718 = vmatpush.bf16.msra.mxu0 %v5411
        %7719 = vmatpush.bf16.msra.mxu0 %v5379
        %7720 = vmatpush.bf16.msra.mxu0 %v5347
        %7721 = vmatpush.bf16.msra.mxu0 %v5315
        %7722 = vmatpush.bf16.msra.mxu0 %v5283
        %7723 = vmatpush.bf16.msra.mxu0 %v5251
        %7724 = vmatpush.bf16.msra.mxu0 %v5219
        %7725 = vmatpush.bf16.msra.mxu0 %v5187
        %7726 = vmatmul.bf16.gmra.mxu0 %v1582
        %v7727 = vpop.f32.mrf.mxu0
        %v7728 = vadd.f32 %v7715, %v7727
        %v7729 = vpop.f32.mrf.mxu0
        %7730 = vdwg.mxu0
        %7731 = vmatpush.bf16.msra.mxu0 %v5667
        %7732 = vmatpush.bf16.msra.mxu0 %v5635
        %7733 = vmatpush.bf16.msra.mxu0 %v5603
        %7734 = vmatpush.bf16.msra.mxu0 %v5571
        %7735 = vmatpush.bf16.msra.mxu0 %v5539
        %7736 = vmatpush.bf16.msra.mxu0 %v5507
        %7737 = vmatpush.bf16.msra.mxu0 %v5475
        %7738 = vmatpush.bf16.msra.mxu0 %v5443
        %7739 = vmatmul.bf16.gmra.mxu0 %v1583
        %v7740 = vpop.f32.mrf.mxu0
        %v7741 = vadd.f32 %v7728, %v7740
        %v7742 = vpop.f32.mrf.mxu0
        %7743 = vdwg.mxu0
        %7744 = vmatpush.bf16.msra.mxu0 %v4900
        %7745 = vmatpush.bf16.msra.mxu0 %v4868
        %7746 = vmatpush.bf16.msra.mxu0 %v4836
        %7747 = vmatpush.bf16.msra.mxu0 %v4804
        %7748 = vmatpush.bf16.msra.mxu0 %v4772
        %7749 = vmatpush.bf16.msra.mxu0 %v4740
        %7750 = vmatpush.bf16.msra.mxu0 %v4708
        %7751 = vmatpush.bf16.msra.mxu0 %v4676
        %7752 = vmatmul.bf16.gmra.mxu0 %v1580
        %v7753 = vpop.f32.mrf.mxu0
        %v7754 = vadd.f32 0.0, %v7753
        %v7755 = vpop.f32.mrf.mxu0
        %7756 = vdwg.mxu0
        %7757 = vmatpush.bf16.msra.mxu0 %v5156
        %7758 = vmatpush.bf16.msra.mxu0 %v5124
        %7759 = vmatpush.bf16.msra.mxu0 %v5092
        %7760 = vmatpush.bf16.msra.mxu0 %v5060
        %7761 = vmatpush.bf16.msra.mxu0 %v5028
        %7762 = vmatpush.bf16.msra.mxu0 %v4996
        %7763 = vmatpush.bf16.msra.mxu0 %v4964
        %7764 = vmatpush.bf16.msra.mxu0 %v4932
        %7765 = vmatmul.bf16.gmra.mxu0 %v1581
        %v7766 = vpop.f32.mrf.mxu0
        %v7767 = vadd.f32 %v7754, %v7766
        %v7768 = vpop.f32.mrf.mxu0
        %7769 = vdwg.mxu0
        %7770 = vmatpush.bf16.msra.mxu0 %v5412
        %7771 = vmatpush.bf16.msra.mxu0 %v5380
        %7772 = vmatpush.bf16.msra.mxu0 %v5348
        %7773 = vmatpush.bf16.msra.mxu0 %v5316
        %7774 = vmatpush.bf16.msra.mxu0 %v5284
        %7775 = vmatpush.bf16.msra.mxu0 %v5252
        %7776 = vmatpush.bf16.msra.mxu0 %v5220
        %7777 = vmatpush.bf16.msra.mxu0 %v5188
        %7778 = vmatmul.bf16.gmra.mxu0 %v1582
        %v7779 = vpop.f32.mrf.mxu0
        %v7780 = vadd.f32 %v7767, %v7779
        %v7781 = vpop.f32.mrf.mxu0
        %7782 = vdwg.mxu0
        %7783 = vmatpush.bf16.msra.mxu0 %v5668
        %7784 = vmatpush.bf16.msra.mxu0 %v5636
        %7785 = vmatpush.bf16.msra.mxu0 %v5604
        %7786 = vmatpush.bf16.msra.mxu0 %v5572
        %7787 = vmatpush.bf16.msra.mxu0 %v5540
        %7788 = vmatpush.bf16.msra.mxu0 %v5508
        %7789 = vmatpush.bf16.msra.mxu0 %v5476
        %7790 = vmatpush.bf16.msra.mxu0 %v5444
        %7791 = vmatmul.bf16.gmra.mxu0 %v1583
        %v7792 = vpop.f32.mrf.mxu0
        %v7793 = vadd.f32 %v7780, %v7792
        %v7794 = vpop.f32.mrf.mxu0
        %7795 = vdwg.mxu0
        %7796 = vmatpush.bf16.msra.mxu0 %v4901
        %7797 = vmatpush.bf16.msra.mxu0 %v4869
        %7798 = vmatpush.bf16.msra.mxu0 %v4837
        %7799 = vmatpush.bf16.msra.mxu0 %v4805
        %7800 = vmatpush.bf16.msra.mxu0 %v4773
        %7801 = vmatpush.bf16.msra.mxu0 %v4741
        %7802 = vmatpush.bf16.msra.mxu0 %v4709
        %7803 = vmatpush.bf16.msra.mxu0 %v4677
        %7804 = vmatmul.bf16.gmra.mxu0 %v1580
        %v7805 = vpop.f32.mrf.mxu0
        %v7806 = vadd.f32 0.0, %v7805
        %v7807 = vpop.f32.mrf.mxu0
        %7808 = vdwg.mxu0
        %7809 = vmatpush.bf16.msra.mxu0 %v5157
        %7810 = vmatpush.bf16.msra.mxu0 %v5125
        %7811 = vmatpush.bf16.msra.mxu0 %v5093
        %7812 = vmatpush.bf16.msra.mxu0 %v5061
        %7813 = vmatpush.bf16.msra.mxu0 %v5029
        %7814 = vmatpush.bf16.msra.mxu0 %v4997
        %7815 = vmatpush.bf16.msra.mxu0 %v4965
        %7816 = vmatpush.bf16.msra.mxu0 %v4933
        %7817 = vmatmul.bf16.gmra.mxu0 %v1581
        %v7818 = vpop.f32.mrf.mxu0
        %v7819 = vadd.f32 %v7806, %v7818
        %v7820 = vpop.f32.mrf.mxu0
        %7821 = vdwg.mxu0
        %7822 = vmatpush.bf16.msra.mxu0 %v5413
        %7823 = vmatpush.bf16.msra.mxu0 %v5381
        %7824 = vmatpush.bf16.msra.mxu0 %v5349
        %7825 = vmatpush.bf16.msra.mxu0 %v5317
        %7826 = vmatpush.bf16.msra.mxu0 %v5285
        %7827 = vmatpush.bf16.msra.mxu0 %v5253
        %7828 = vmatpush.bf16.msra.mxu0 %v5221
        %7829 = vmatpush.bf16.msra.mxu0 %v5189
        %7830 = vmatmul.bf16.gmra.mxu0 %v1582
        %v7831 = vpop.f32.mrf.mxu0
        %v7832 = vadd.f32 %v7819, %v7831
        %v7833 = vpop.f32.mrf.mxu0
        %7834 = vdwg.mxu0
        %7835 = vmatpush.bf16.msra.mxu0 %v5669
        %7836 = vmatpush.bf16.msra.mxu0 %v5637
        %7837 = vmatpush.bf16.msra.mxu0 %v5605
        %7838 = vmatpush.bf16.msra.mxu0 %v5573
        %7839 = vmatpush.bf16.msra.mxu0 %v5541
        %7840 = vmatpush.bf16.msra.mxu0 %v5509
        %7841 = vmatpush.bf16.msra.mxu0 %v5477
        %7842 = vmatpush.bf16.msra.mxu0 %v5445
        %7843 = vmatmul.bf16.gmra.mxu0 %v1583
        %v7844 = vpop.f32.mrf.mxu0
        %v7845 = vadd.f32 %v7832, %v7844
        %v7846 = vpop.f32.mrf.mxu0
        %7847 = vdwg.mxu0
        %7848 = vmatpush.bf16.msra.mxu0 %v4902
        %7849 = vmatpush.bf16.msra.mxu0 %v4870
        %7850 = vmatpush.bf16.msra.mxu0 %v4838
        %7851 = vmatpush.bf16.msra.mxu0 %v4806
        %7852 = vmatpush.bf16.msra.mxu0 %v4774
        %7853 = vmatpush.bf16.msra.mxu0 %v4742
        %7854 = vmatpush.bf16.msra.mxu0 %v4710
        %7855 = vmatpush.bf16.msra.mxu0 %v4678
        %7856 = vmatmul.bf16.gmra.mxu0 %v1580
        %v7857 = vpop.f32.mrf.mxu0
        %v7858 = vadd.f32 0.0, %v7857
        %v7859 = vpop.f32.mrf.mxu0
        %7860 = vdwg.mxu0
        %7861 = vmatpush.bf16.msra.mxu0 %v5158
        %7862 = vmatpush.bf16.msra.mxu0 %v5126
        %7863 = vmatpush.bf16.msra.mxu0 %v5094
        %7864 = vmatpush.bf16.msra.mxu0 %v5062
        %7865 = vmatpush.bf16.msra.mxu0 %v5030
        %7866 = vmatpush.bf16.msra.mxu0 %v4998
        %7867 = vmatpush.bf16.msra.mxu0 %v4966
        %7868 = vmatpush.bf16.msra.mxu0 %v4934
        %7869 = vmatmul.bf16.gmra.mxu0 %v1581
        %v7870 = vpop.f32.mrf.mxu0
        %v7871 = vadd.f32 %v7858, %v7870
        %v7872 = vpop.f32.mrf.mxu0
        %7873 = vdwg.mxu0
        %7874 = vmatpush.bf16.msra.mxu0 %v5414
        %7875 = vmatpush.bf16.msra.mxu0 %v5382
        %7876 = vmatpush.bf16.msra.mxu0 %v5350
        %7877 = vmatpush.bf16.msra.mxu0 %v5318
        %7878 = vmatpush.bf16.msra.mxu0 %v5286
        %7879 = vmatpush.bf16.msra.mxu0 %v5254
        %7880 = vmatpush.bf16.msra.mxu0 %v5222
        %7881 = vmatpush.bf16.msra.mxu0 %v5190
        %7882 = vmatmul.bf16.gmra.mxu0 %v1582
        %v7883 = vpop.f32.mrf.mxu0
        %v7884 = vadd.f32 %v7871, %v7883
        %v7885 = vpop.f32.mrf.mxu0
        %7886 = vdwg.mxu0
        %7887 = vmatpush.bf16.msra.mxu0 %v5670
        %7888 = vmatpush.bf16.msra.mxu0 %v5638
        %7889 = vmatpush.bf16.msra.mxu0 %v5606
        %7890 = vmatpush.bf16.msra.mxu0 %v5574
        %7891 = vmatpush.bf16.msra.mxu0 %v5542
        %7892 = vmatpush.bf16.msra.mxu0 %v5510
        %7893 = vmatpush.bf16.msra.mxu0 %v5478
        %7894 = vmatpush.bf16.msra.mxu0 %v5446
        %7895 = vmatmul.bf16.gmra.mxu0 %v1583
        %v7896 = vpop.f32.mrf.mxu0
        %v7897 = vadd.f32 %v7884, %v7896
        %v7898 = vpop.f32.mrf.mxu0
        %7899 = vdwg.mxu0
        %7900 = vmatpush.bf16.msra.mxu0 %v4903
        %7901 = vmatpush.bf16.msra.mxu0 %v4871
        %7902 = vmatpush.bf16.msra.mxu0 %v4839
        %7903 = vmatpush.bf16.msra.mxu0 %v4807
        %7904 = vmatpush.bf16.msra.mxu0 %v4775
        %7905 = vmatpush.bf16.msra.mxu0 %v4743
        %7906 = vmatpush.bf16.msra.mxu0 %v4711
        %7907 = vmatpush.bf16.msra.mxu0 %v4679
        %7908 = vmatmul.bf16.gmra.mxu0 %v1580
        %v7909 = vpop.f32.mrf.mxu0
        %v7910 = vadd.f32 0.0, %v7909
        %v7911 = vpop.f32.mrf.mxu0
        %7912 = vdwg.mxu0
        %7913 = vmatpush.bf16.msra.mxu0 %v5159
        %7914 = vmatpush.bf16.msra.mxu0 %v5127
        %7915 = vmatpush.bf16.msra.mxu0 %v5095
        %7916 = vmatpush.bf16.msra.mxu0 %v5063
        %7917 = vmatpush.bf16.msra.mxu0 %v5031
        %7918 = vmatpush.bf16.msra.mxu0 %v4999
        %7919 = vmatpush.bf16.msra.mxu0 %v4967
        %7920 = vmatpush.bf16.msra.mxu0 %v4935
        %7921 = vmatmul.bf16.gmra.mxu0 %v1581
        %v7922 = vpop.f32.mrf.mxu0
        %v7923 = vadd.f32 %v7910, %v7922
        %v7924 = vpop.f32.mrf.mxu0
        %7925 = vdwg.mxu0
        %7926 = vmatpush.bf16.msra.mxu0 %v5415
        %7927 = vmatpush.bf16.msra.mxu0 %v5383
        %7928 = vmatpush.bf16.msra.mxu0 %v5351
        %7929 = vmatpush.bf16.msra.mxu0 %v5319
        %7930 = vmatpush.bf16.msra.mxu0 %v5287
        %7931 = vmatpush.bf16.msra.mxu0 %v5255
        %7932 = vmatpush.bf16.msra.mxu0 %v5223
        %7933 = vmatpush.bf16.msra.mxu0 %v5191
        %7934 = vmatmul.bf16.gmra.mxu0 %v1582
        %v7935 = vpop.f32.mrf.mxu0
        %v7936 = vadd.f32 %v7923, %v7935
        %v7937 = vpop.f32.mrf.mxu0
        %7938 = vdwg.mxu0
        %7939 = vmatpush.bf16.msra.mxu0 %v5671
        %7940 = vmatpush.bf16.msra.mxu0 %v5639
        %7941 = vmatpush.bf16.msra.mxu0 %v5607
        %7942 = vmatpush.bf16.msra.mxu0 %v5575
        %7943 = vmatpush.bf16.msra.mxu0 %v5543
        %7944 = vmatpush.bf16.msra.mxu0 %v5511
        %7945 = vmatpush.bf16.msra.mxu0 %v5479
        %7946 = vmatpush.bf16.msra.mxu0 %v5447
        %7947 = vmatmul.bf16.gmra.mxu0 %v1583
        %v7948 = vpop.f32.mrf.mxu0
        %v7949 = vadd.f32 %v7936, %v7948
        %v7950 = vpop.f32.mrf.mxu0
        %7951 = vdwg.mxu0
        %7952 = vmatpush.bf16.msra.mxu0 %v4904
        %7953 = vmatpush.bf16.msra.mxu0 %v4872
        %7954 = vmatpush.bf16.msra.mxu0 %v4840
        %7955 = vmatpush.bf16.msra.mxu0 %v4808
        %7956 = vmatpush.bf16.msra.mxu0 %v4776
        %7957 = vmatpush.bf16.msra.mxu0 %v4744
        %7958 = vmatpush.bf16.msra.mxu0 %v4712
        %7959 = vmatpush.bf16.msra.mxu0 %v4680
        %7960 = vmatmul.bf16.gmra.mxu0 %v1580
        %v7961 = vpop.f32.mrf.mxu0
        %v7962 = vadd.f32 0.0, %v7961
        %v7963 = vpop.f32.mrf.mxu0
        %7964 = vdwg.mxu0
        %7965 = vmatpush.bf16.msra.mxu0 %v5160
        %7966 = vmatpush.bf16.msra.mxu0 %v5128
        %7967 = vmatpush.bf16.msra.mxu0 %v5096
        %7968 = vmatpush.bf16.msra.mxu0 %v5064
        %7969 = vmatpush.bf16.msra.mxu0 %v5032
        %7970 = vmatpush.bf16.msra.mxu0 %v5000
        %7971 = vmatpush.bf16.msra.mxu0 %v4968
        %7972 = vmatpush.bf16.msra.mxu0 %v4936
        %7973 = vmatmul.bf16.gmra.mxu0 %v1581
        %v7974 = vpop.f32.mrf.mxu0
        %v7975 = vadd.f32 %v7962, %v7974
        %v7976 = vpop.f32.mrf.mxu0
        %7977 = vdwg.mxu0
        %7978 = vmatpush.bf16.msra.mxu0 %v5416
        %7979 = vmatpush.bf16.msra.mxu0 %v5384
        %7980 = vmatpush.bf16.msra.mxu0 %v5352
        %7981 = vmatpush.bf16.msra.mxu0 %v5320
        %7982 = vmatpush.bf16.msra.mxu0 %v5288
        %7983 = vmatpush.bf16.msra.mxu0 %v5256
        %7984 = vmatpush.bf16.msra.mxu0 %v5224
        %7985 = vmatpush.bf16.msra.mxu0 %v5192
        %7986 = vmatmul.bf16.gmra.mxu0 %v1582
        %v7987 = vpop.f32.mrf.mxu0
        %v7988 = vadd.f32 %v7975, %v7987
        %v7989 = vpop.f32.mrf.mxu0
        %7990 = vdwg.mxu0
        %7991 = vmatpush.bf16.msra.mxu0 %v5672
        %7992 = vmatpush.bf16.msra.mxu0 %v5640
        %7993 = vmatpush.bf16.msra.mxu0 %v5608
        %7994 = vmatpush.bf16.msra.mxu0 %v5576
        %7995 = vmatpush.bf16.msra.mxu0 %v5544
        %7996 = vmatpush.bf16.msra.mxu0 %v5512
        %7997 = vmatpush.bf16.msra.mxu0 %v5480
        %7998 = vmatpush.bf16.msra.mxu0 %v5448
        %7999 = vmatmul.bf16.gmra.mxu0 %v1583
        %v8000 = vpop.f32.mrf.mxu0
        %v8001 = vadd.f32 %v7988, %v8000
        %v8002 = vpop.f32.mrf.mxu0
        %8003 = vdwg.mxu0
        %8004 = vmatpush.bf16.msra.mxu0 %v4905
        %8005 = vmatpush.bf16.msra.mxu0 %v4873
        %8006 = vmatpush.bf16.msra.mxu0 %v4841
        %8007 = vmatpush.bf16.msra.mxu0 %v4809
        %8008 = vmatpush.bf16.msra.mxu0 %v4777
        %8009 = vmatpush.bf16.msra.mxu0 %v4745
        %8010 = vmatpush.bf16.msra.mxu0 %v4713
        %8011 = vmatpush.bf16.msra.mxu0 %v4681
        %8012 = vmatmul.bf16.gmra.mxu0 %v1580
        %v8013 = vpop.f32.mrf.mxu0
        %v8014 = vadd.f32 0.0, %v8013
        %v8015 = vpop.f32.mrf.mxu0
        %8016 = vdwg.mxu0
        %8017 = vmatpush.bf16.msra.mxu0 %v5161
        %8018 = vmatpush.bf16.msra.mxu0 %v5129
        %8019 = vmatpush.bf16.msra.mxu0 %v5097
        %8020 = vmatpush.bf16.msra.mxu0 %v5065
        %8021 = vmatpush.bf16.msra.mxu0 %v5033
        %8022 = vmatpush.bf16.msra.mxu0 %v5001
        %8023 = vmatpush.bf16.msra.mxu0 %v4969
        %8024 = vmatpush.bf16.msra.mxu0 %v4937
        %8025 = vmatmul.bf16.gmra.mxu0 %v1581
        %v8026 = vpop.f32.mrf.mxu0
        %v8027 = vadd.f32 %v8014, %v8026
        %v8028 = vpop.f32.mrf.mxu0
        %8029 = vdwg.mxu0
        %8030 = vmatpush.bf16.msra.mxu0 %v5417
        %8031 = vmatpush.bf16.msra.mxu0 %v5385
        %8032 = vmatpush.bf16.msra.mxu0 %v5353
        %8033 = vmatpush.bf16.msra.mxu0 %v5321
        %8034 = vmatpush.bf16.msra.mxu0 %v5289
        %8035 = vmatpush.bf16.msra.mxu0 %v5257
        %8036 = vmatpush.bf16.msra.mxu0 %v5225
        %8037 = vmatpush.bf16.msra.mxu0 %v5193
        %8038 = vmatmul.bf16.gmra.mxu0 %v1582
        %v8039 = vpop.f32.mrf.mxu0
        %v8040 = vadd.f32 %v8027, %v8039
        %v8041 = vpop.f32.mrf.mxu0
        %8042 = vdwg.mxu0
        %8043 = vmatpush.bf16.msra.mxu0 %v5673
        %8044 = vmatpush.bf16.msra.mxu0 %v5641
        %8045 = vmatpush.bf16.msra.mxu0 %v5609
        %8046 = vmatpush.bf16.msra.mxu0 %v5577
        %8047 = vmatpush.bf16.msra.mxu0 %v5545
        %8048 = vmatpush.bf16.msra.mxu0 %v5513
        %8049 = vmatpush.bf16.msra.mxu0 %v5481
        %8050 = vmatpush.bf16.msra.mxu0 %v5449
        %8051 = vmatmul.bf16.gmra.mxu0 %v1583
        %v8052 = vpop.f32.mrf.mxu0
        %v8053 = vadd.f32 %v8040, %v8052
        %v8054 = vpop.f32.mrf.mxu0
        %8055 = vdwg.mxu0
        %8056 = vmatpush.bf16.msra.mxu0 %v4906
        %8057 = vmatpush.bf16.msra.mxu0 %v4874
        %8058 = vmatpush.bf16.msra.mxu0 %v4842
        %8059 = vmatpush.bf16.msra.mxu0 %v4810
        %8060 = vmatpush.bf16.msra.mxu0 %v4778
        %8061 = vmatpush.bf16.msra.mxu0 %v4746
        %8062 = vmatpush.bf16.msra.mxu0 %v4714
        %8063 = vmatpush.bf16.msra.mxu0 %v4682
        %8064 = vmatmul.bf16.gmra.mxu0 %v1580
        %v8065 = vpop.f32.mrf.mxu0
        %v8066 = vadd.f32 0.0, %v8065
        %v8067 = vpop.f32.mrf.mxu0
        %8068 = vdwg.mxu0
        %8069 = vmatpush.bf16.msra.mxu0 %v5162
        %8070 = vmatpush.bf16.msra.mxu0 %v5130
        %8071 = vmatpush.bf16.msra.mxu0 %v5098
        %8072 = vmatpush.bf16.msra.mxu0 %v5066
        %8073 = vmatpush.bf16.msra.mxu0 %v5034
        %8074 = vmatpush.bf16.msra.mxu0 %v5002
        %8075 = vmatpush.bf16.msra.mxu0 %v4970
        %8076 = vmatpush.bf16.msra.mxu0 %v4938
        %8077 = vmatmul.bf16.gmra.mxu0 %v1581
        %v8078 = vpop.f32.mrf.mxu0
        %v8079 = vadd.f32 %v8066, %v8078
        %v8080 = vpop.f32.mrf.mxu0
        %8081 = vdwg.mxu0
        %8082 = vmatpush.bf16.msra.mxu0 %v5418
        %8083 = vmatpush.bf16.msra.mxu0 %v5386
        %8084 = vmatpush.bf16.msra.mxu0 %v5354
        %8085 = vmatpush.bf16.msra.mxu0 %v5322
        %8086 = vmatpush.bf16.msra.mxu0 %v5290
        %8087 = vmatpush.bf16.msra.mxu0 %v5258
        %8088 = vmatpush.bf16.msra.mxu0 %v5226
        %8089 = vmatpush.bf16.msra.mxu0 %v5194
        %8090 = vmatmul.bf16.gmra.mxu0 %v1582
        %v8091 = vpop.f32.mrf.mxu0
        %v8092 = vadd.f32 %v8079, %v8091
        %v8093 = vpop.f32.mrf.mxu0
        %8094 = vdwg.mxu0
        %8095 = vmatpush.bf16.msra.mxu0 %v5674
        %8096 = vmatpush.bf16.msra.mxu0 %v5642
        %8097 = vmatpush.bf16.msra.mxu0 %v5610
        %8098 = vmatpush.bf16.msra.mxu0 %v5578
        %8099 = vmatpush.bf16.msra.mxu0 %v5546
        %8100 = vmatpush.bf16.msra.mxu0 %v5514
        %8101 = vmatpush.bf16.msra.mxu0 %v5482
        %8102 = vmatpush.bf16.msra.mxu0 %v5450
        %8103 = vmatmul.bf16.gmra.mxu0 %v1583
        %v8104 = vpop.f32.mrf.mxu0
        %v8105 = vadd.f32 %v8092, %v8104
        %v8106 = vpop.f32.mrf.mxu0
        %8107 = vdwg.mxu0
        %8108 = vmatpush.bf16.msra.mxu0 %v4907
        %8109 = vmatpush.bf16.msra.mxu0 %v4875
        %8110 = vmatpush.bf16.msra.mxu0 %v4843
        %8111 = vmatpush.bf16.msra.mxu0 %v4811
        %8112 = vmatpush.bf16.msra.mxu0 %v4779
        %8113 = vmatpush.bf16.msra.mxu0 %v4747
        %8114 = vmatpush.bf16.msra.mxu0 %v4715
        %8115 = vmatpush.bf16.msra.mxu0 %v4683
        %8116 = vmatmul.bf16.gmra.mxu0 %v1580
        %v8117 = vpop.f32.mrf.mxu0
        %v8118 = vadd.f32 0.0, %v8117
        %v8119 = vpop.f32.mrf.mxu0
        %8120 = vdwg.mxu0
        %8121 = vmatpush.bf16.msra.mxu0 %v5163
        %8122 = vmatpush.bf16.msra.mxu0 %v5131
        %8123 = vmatpush.bf16.msra.mxu0 %v5099
        %8124 = vmatpush.bf16.msra.mxu0 %v5067
        %8125 = vmatpush.bf16.msra.mxu0 %v5035
        %8126 = vmatpush.bf16.msra.mxu0 %v5003
        %8127 = vmatpush.bf16.msra.mxu0 %v4971
        %8128 = vmatpush.bf16.msra.mxu0 %v4939
        %8129 = vmatmul.bf16.gmra.mxu0 %v1581
        %v8130 = vpop.f32.mrf.mxu0
        %v8131 = vadd.f32 %v8118, %v8130
        %v8132 = vpop.f32.mrf.mxu0
        %8133 = vdwg.mxu0
        %8134 = vmatpush.bf16.msra.mxu0 %v5419
        %8135 = vmatpush.bf16.msra.mxu0 %v5387
        %8136 = vmatpush.bf16.msra.mxu0 %v5355
        %8137 = vmatpush.bf16.msra.mxu0 %v5323
        %8138 = vmatpush.bf16.msra.mxu0 %v5291
        %8139 = vmatpush.bf16.msra.mxu0 %v5259
        %8140 = vmatpush.bf16.msra.mxu0 %v5227
        %8141 = vmatpush.bf16.msra.mxu0 %v5195
        %8142 = vmatmul.bf16.gmra.mxu0 %v1582
        %v8143 = vpop.f32.mrf.mxu0
        %v8144 = vadd.f32 %v8131, %v8143
        %v8145 = vpop.f32.mrf.mxu0
        %8146 = vdwg.mxu0
        %8147 = vmatpush.bf16.msra.mxu0 %v5675
        %8148 = vmatpush.bf16.msra.mxu0 %v5643
        %8149 = vmatpush.bf16.msra.mxu0 %v5611
        %8150 = vmatpush.bf16.msra.mxu0 %v5579
        %8151 = vmatpush.bf16.msra.mxu0 %v5547
        %8152 = vmatpush.bf16.msra.mxu0 %v5515
        %8153 = vmatpush.bf16.msra.mxu0 %v5483
        %8154 = vmatpush.bf16.msra.mxu0 %v5451
        %8155 = vmatmul.bf16.gmra.mxu0 %v1583
        %v8156 = vpop.f32.mrf.mxu0
        %v8157 = vadd.f32 %v8144, %v8156
        %v8158 = vpop.f32.mrf.mxu0
        %8159 = vdwg.mxu0
        %8160 = vmatpush.bf16.msra.mxu0 %v4908
        %8161 = vmatpush.bf16.msra.mxu0 %v4876
        %8162 = vmatpush.bf16.msra.mxu0 %v4844
        %8163 = vmatpush.bf16.msra.mxu0 %v4812
        %8164 = vmatpush.bf16.msra.mxu0 %v4780
        %8165 = vmatpush.bf16.msra.mxu0 %v4748
        %8166 = vmatpush.bf16.msra.mxu0 %v4716
        %8167 = vmatpush.bf16.msra.mxu0 %v4684
        %8168 = vmatmul.bf16.gmra.mxu0 %v1580
        %v8169 = vpop.f32.mrf.mxu0
        %v8170 = vadd.f32 0.0, %v8169
        %v8171 = vpop.f32.mrf.mxu0
        %8172 = vdwg.mxu0
        %8173 = vmatpush.bf16.msra.mxu0 %v5164
        %8174 = vmatpush.bf16.msra.mxu0 %v5132
        %8175 = vmatpush.bf16.msra.mxu0 %v5100
        %8176 = vmatpush.bf16.msra.mxu0 %v5068
        %8177 = vmatpush.bf16.msra.mxu0 %v5036
        %8178 = vmatpush.bf16.msra.mxu0 %v5004
        %8179 = vmatpush.bf16.msra.mxu0 %v4972
        %8180 = vmatpush.bf16.msra.mxu0 %v4940
        %8181 = vmatmul.bf16.gmra.mxu0 %v1581
        %v8182 = vpop.f32.mrf.mxu0
        %v8183 = vadd.f32 %v8170, %v8182
        %v8184 = vpop.f32.mrf.mxu0
        %8185 = vdwg.mxu0
        %8186 = vmatpush.bf16.msra.mxu0 %v5420
        %8187 = vmatpush.bf16.msra.mxu0 %v5388
        %8188 = vmatpush.bf16.msra.mxu0 %v5356
        %8189 = vmatpush.bf16.msra.mxu0 %v5324
        %8190 = vmatpush.bf16.msra.mxu0 %v5292
        %8191 = vmatpush.bf16.msra.mxu0 %v5260
        %8192 = vmatpush.bf16.msra.mxu0 %v5228
        %8193 = vmatpush.bf16.msra.mxu0 %v5196
        %8194 = vmatmul.bf16.gmra.mxu0 %v1582
        %v8195 = vpop.f32.mrf.mxu0
        %v8196 = vadd.f32 %v8183, %v8195
        %v8197 = vpop.f32.mrf.mxu0
        %8198 = vdwg.mxu0
        %8199 = vmatpush.bf16.msra.mxu0 %v5676
        %8200 = vmatpush.bf16.msra.mxu0 %v5644
        %8201 = vmatpush.bf16.msra.mxu0 %v5612
        %8202 = vmatpush.bf16.msra.mxu0 %v5580
        %8203 = vmatpush.bf16.msra.mxu0 %v5548
        %8204 = vmatpush.bf16.msra.mxu0 %v5516
        %8205 = vmatpush.bf16.msra.mxu0 %v5484
        %8206 = vmatpush.bf16.msra.mxu0 %v5452
        %8207 = vmatmul.bf16.gmra.mxu0 %v1583
        %v8208 = vpop.f32.mrf.mxu0
        %v8209 = vadd.f32 %v8196, %v8208
        %v8210 = vpop.f32.mrf.mxu0
        %8211 = vdwg.mxu0
        %8212 = vmatpush.bf16.msra.mxu0 %v4909
        %8213 = vmatpush.bf16.msra.mxu0 %v4877
        %8214 = vmatpush.bf16.msra.mxu0 %v4845
        %8215 = vmatpush.bf16.msra.mxu0 %v4813
        %8216 = vmatpush.bf16.msra.mxu0 %v4781
        %8217 = vmatpush.bf16.msra.mxu0 %v4749
        %8218 = vmatpush.bf16.msra.mxu0 %v4717
        %8219 = vmatpush.bf16.msra.mxu0 %v4685
        %8220 = vmatmul.bf16.gmra.mxu0 %v1580
        %v8221 = vpop.f32.mrf.mxu0
        %v8222 = vadd.f32 0.0, %v8221
        %v8223 = vpop.f32.mrf.mxu0
        %8224 = vdwg.mxu0
        %8225 = vmatpush.bf16.msra.mxu0 %v5165
        %8226 = vmatpush.bf16.msra.mxu0 %v5133
        %8227 = vmatpush.bf16.msra.mxu0 %v5101
        %8228 = vmatpush.bf16.msra.mxu0 %v5069
        %8229 = vmatpush.bf16.msra.mxu0 %v5037
        %8230 = vmatpush.bf16.msra.mxu0 %v5005
        %8231 = vmatpush.bf16.msra.mxu0 %v4973
        %8232 = vmatpush.bf16.msra.mxu0 %v4941
        %8233 = vmatmul.bf16.gmra.mxu0 %v1581
        %v8234 = vpop.f32.mrf.mxu0
        %v8235 = vadd.f32 %v8222, %v8234
        %v8236 = vpop.f32.mrf.mxu0
        %8237 = vdwg.mxu0
        %8238 = vmatpush.bf16.msra.mxu0 %v5421
        %8239 = vmatpush.bf16.msra.mxu0 %v5389
        %8240 = vmatpush.bf16.msra.mxu0 %v5357
        %8241 = vmatpush.bf16.msra.mxu0 %v5325
        %8242 = vmatpush.bf16.msra.mxu0 %v5293
        %8243 = vmatpush.bf16.msra.mxu0 %v5261
        %8244 = vmatpush.bf16.msra.mxu0 %v5229
        %8245 = vmatpush.bf16.msra.mxu0 %v5197
        %8246 = vmatmul.bf16.gmra.mxu0 %v1582
        %v8247 = vpop.f32.mrf.mxu0
        %v8248 = vadd.f32 %v8235, %v8247
        %v8249 = vpop.f32.mrf.mxu0
        %8250 = vdwg.mxu0
        %8251 = vmatpush.bf16.msra.mxu0 %v5677
        %8252 = vmatpush.bf16.msra.mxu0 %v5645
        %8253 = vmatpush.bf16.msra.mxu0 %v5613
        %8254 = vmatpush.bf16.msra.mxu0 %v5581
        %8255 = vmatpush.bf16.msra.mxu0 %v5549
        %8256 = vmatpush.bf16.msra.mxu0 %v5517
        %8257 = vmatpush.bf16.msra.mxu0 %v5485
        %8258 = vmatpush.bf16.msra.mxu0 %v5453
        %8259 = vmatmul.bf16.gmra.mxu0 %v1583
        %v8260 = vpop.f32.mrf.mxu0
        %v8261 = vadd.f32 %v8248, %v8260
        %v8262 = vpop.f32.mrf.mxu0
        %8263 = vdwg.mxu0
        %8264 = vmatpush.bf16.msra.mxu0 %v4910
        %8265 = vmatpush.bf16.msra.mxu0 %v4878
        %8266 = vmatpush.bf16.msra.mxu0 %v4846
        %8267 = vmatpush.bf16.msra.mxu0 %v4814
        %8268 = vmatpush.bf16.msra.mxu0 %v4782
        %8269 = vmatpush.bf16.msra.mxu0 %v4750
        %8270 = vmatpush.bf16.msra.mxu0 %v4718
        %8271 = vmatpush.bf16.msra.mxu0 %v4686
        %8272 = vmatmul.bf16.gmra.mxu0 %v1580
        %v8273 = vpop.f32.mrf.mxu0
        %v8274 = vadd.f32 0.0, %v8273
        %v8275 = vpop.f32.mrf.mxu0
        %8276 = vdwg.mxu0
        %8277 = vmatpush.bf16.msra.mxu0 %v5166
        %8278 = vmatpush.bf16.msra.mxu0 %v5134
        %8279 = vmatpush.bf16.msra.mxu0 %v5102
        %8280 = vmatpush.bf16.msra.mxu0 %v5070
        %8281 = vmatpush.bf16.msra.mxu0 %v5038
        %8282 = vmatpush.bf16.msra.mxu0 %v5006
        %8283 = vmatpush.bf16.msra.mxu0 %v4974
        %8284 = vmatpush.bf16.msra.mxu0 %v4942
        %8285 = vmatmul.bf16.gmra.mxu0 %v1581
        %v8286 = vpop.f32.mrf.mxu0
        %v8287 = vadd.f32 %v8274, %v8286
        %v8288 = vpop.f32.mrf.mxu0
        %8289 = vdwg.mxu0
        %8290 = vmatpush.bf16.msra.mxu0 %v5422
        %8291 = vmatpush.bf16.msra.mxu0 %v5390
        %8292 = vmatpush.bf16.msra.mxu0 %v5358
        %8293 = vmatpush.bf16.msra.mxu0 %v5326
        %8294 = vmatpush.bf16.msra.mxu0 %v5294
        %8295 = vmatpush.bf16.msra.mxu0 %v5262
        %8296 = vmatpush.bf16.msra.mxu0 %v5230
        %8297 = vmatpush.bf16.msra.mxu0 %v5198
        %8298 = vmatmul.bf16.gmra.mxu0 %v1582
        %v8299 = vpop.f32.mrf.mxu0
        %v8300 = vadd.f32 %v8287, %v8299
        %v8301 = vpop.f32.mrf.mxu0
        %8302 = vdwg.mxu0
        %8303 = vmatpush.bf16.msra.mxu0 %v5678
        %8304 = vmatpush.bf16.msra.mxu0 %v5646
        %8305 = vmatpush.bf16.msra.mxu0 %v5614
        %8306 = vmatpush.bf16.msra.mxu0 %v5582
        %8307 = vmatpush.bf16.msra.mxu0 %v5550
        %8308 = vmatpush.bf16.msra.mxu0 %v5518
        %8309 = vmatpush.bf16.msra.mxu0 %v5486
        %8310 = vmatpush.bf16.msra.mxu0 %v5454
        %8311 = vmatmul.bf16.gmra.mxu0 %v1583
        %v8312 = vpop.f32.mrf.mxu0
        %v8313 = vadd.f32 %v8300, %v8312
        %v8314 = vpop.f32.mrf.mxu0
        %8315 = vdwg.mxu0
        %8316 = vmatpush.bf16.msra.mxu0 %v4911
        %8317 = vmatpush.bf16.msra.mxu0 %v4879
        %8318 = vmatpush.bf16.msra.mxu0 %v4847
        %8319 = vmatpush.bf16.msra.mxu0 %v4815
        %8320 = vmatpush.bf16.msra.mxu0 %v4783
        %8321 = vmatpush.bf16.msra.mxu0 %v4751
        %8322 = vmatpush.bf16.msra.mxu0 %v4719
        %8323 = vmatpush.bf16.msra.mxu0 %v4687
        %8324 = vmatmul.bf16.gmra.mxu0 %v1580
        %v8325 = vpop.f32.mrf.mxu0
        %v8326 = vadd.f32 0.0, %v8325
        %v8327 = vpop.f32.mrf.mxu0
        %8328 = vdwg.mxu0
        %8329 = vmatpush.bf16.msra.mxu0 %v5167
        %8330 = vmatpush.bf16.msra.mxu0 %v5135
        %8331 = vmatpush.bf16.msra.mxu0 %v5103
        %8332 = vmatpush.bf16.msra.mxu0 %v5071
        %8333 = vmatpush.bf16.msra.mxu0 %v5039
        %8334 = vmatpush.bf16.msra.mxu0 %v5007
        %8335 = vmatpush.bf16.msra.mxu0 %v4975
        %8336 = vmatpush.bf16.msra.mxu0 %v4943
        %8337 = vmatmul.bf16.gmra.mxu0 %v1581
        %v8338 = vpop.f32.mrf.mxu0
        %v8339 = vadd.f32 %v8326, %v8338
        %v8340 = vpop.f32.mrf.mxu0
        %8341 = vdwg.mxu0
        %8342 = vmatpush.bf16.msra.mxu0 %v5423
        %8343 = vmatpush.bf16.msra.mxu0 %v5391
        %8344 = vmatpush.bf16.msra.mxu0 %v5359
        %8345 = vmatpush.bf16.msra.mxu0 %v5327
        %8346 = vmatpush.bf16.msra.mxu0 %v5295
        %8347 = vmatpush.bf16.msra.mxu0 %v5263
        %8348 = vmatpush.bf16.msra.mxu0 %v5231
        %8349 = vmatpush.bf16.msra.mxu0 %v5199
        %8350 = vmatmul.bf16.gmra.mxu0 %v1582
        %v8351 = vpop.f32.mrf.mxu0
        %v8352 = vadd.f32 %v8339, %v8351
        %v8353 = vpop.f32.mrf.mxu0
        %8354 = vdwg.mxu0
        %8355 = vmatpush.bf16.msra.mxu0 %v5679
        %8356 = vmatpush.bf16.msra.mxu0 %v5647
        %8357 = vmatpush.bf16.msra.mxu0 %v5615
        %8358 = vmatpush.bf16.msra.mxu0 %v5583
        %8359 = vmatpush.bf16.msra.mxu0 %v5551
        %8360 = vmatpush.bf16.msra.mxu0 %v5519
        %8361 = vmatpush.bf16.msra.mxu0 %v5487
        %8362 = vmatpush.bf16.msra.mxu0 %v5455
        %8363 = vmatmul.bf16.gmra.mxu0 %v1583
        %v8364 = vpop.f32.mrf.mxu0
        %v8365 = vadd.f32 %v8352, %v8364
        %v8366 = vpop.f32.mrf.mxu0
        %8367 = vdwg.mxu0
        %v8368 = vld [vmem:[%s343] sm:$0xff]
        %v8369 = vld [vmem:[%s343 + $0x8] sm:$0xff]
        %v8370 = vld [vmem:[%s343 + $0x10] sm:$0xff]
        %v8371 = vld [vmem:[%s343 + $0x18] sm:$0xff]
        %v8376 = vperm.slane %v8368, 0
        %v8377 = vperm.slane %v8368, 1
        %v8378 = vperm.slane %v8368, 2
        %v8379 = vperm.slane %v8368, 3
        %v8380 = vperm.slane %v8368, 4
        %v8381 = vperm.slane %v8368, 5
        %v8382 = vperm.slane %v8368, 6
        %v8383 = vperm.slane %v8368, 7
        %v8384 = vperm.slane %v8369, 0
        %v8385 = vperm.slane %v8369, 1
        %v8386 = vperm.slane %v8369, 2
        %v8387 = vperm.slane %v8369, 3
        %v8388 = vperm.slane %v8369, 4
        %v8389 = vperm.slane %v8369, 5
        %v8390 = vperm.slane %v8369, 6
        %v8391 = vperm.slane %v8369, 7
        %v8392 = vperm.slane %v8370, 0
        %v8393 = vperm.slane %v8370, 1
        %v8394 = vperm.slane %v8370, 2
        %v8395 = vperm.slane %v8370, 3
        %v8396 = vperm.slane %v8370, 4
        %v8397 = vperm.slane %v8370, 5
        %v8398 = vperm.slane %v8370, 6
        %v8399 = vperm.slane %v8370, 7
        %v8400 = vperm.slane %v8371, 0
        %v8401 = vperm.slane %v8371, 1
        %v8402 = vperm.slane %v8371, 2
        %v8403 = vperm.slane %v8371, 3
        %v8404 = vperm.slane %v8371, 4
        %v8405 = vperm.slane %v8371, 5
        %v8406 = vperm.slane %v8371, 6
        %v8407 = vperm.slane %v8371, 7
        %v8440 = vmul.f32 %v6753, %v8376
        %v8441 = vmul.f32 %v6805, %v8377
        %v8442 = vmul.f32 %v6857, %v8378
        %v8443 = vmul.f32 %v6909, %v8379
        %v8444 = vmul.f32 %v6961, %v8380
        %v8445 = vmul.f32 %v7013, %v8381
        %v8446 = vmul.f32 %v7065, %v8382
        %v8447 = vmul.f32 %v7117, %v8383
        %v8448 = vmul.f32 %v7169, %v8384
        %v8449 = vmul.f32 %v7221, %v8385
        %v8450 = vmul.f32 %v7273, %v8386
        %v8451 = vmul.f32 %v7325, %v8387
        %v8452 = vmul.f32 %v7377, %v8388
        %v8453 = vmul.f32 %v7429, %v8389
        %v8454 = vmul.f32 %v7481, %v8390
        %v8455 = vmul.f32 %v7533, %v8391
        %v8456 = vmul.f32 %v7585, %v8392
        %v8457 = vmul.f32 %v7637, %v8393
        %v8458 = vmul.f32 %v7689, %v8394
        %v8459 = vmul.f32 %v7741, %v8395
        %v8460 = vmul.f32 %v7793, %v8396
        %v8461 = vmul.f32 %v7845, %v8397
        %v8462 = vmul.f32 %v7897, %v8398
        %v8463 = vmul.f32 %v7949, %v8399
        %v8464 = vmul.f32 %v8001, %v8400
        %v8465 = vmul.f32 %v8053, %v8401
        %v8466 = vmul.f32 %v8105, %v8402
        %v8467 = vmul.f32 %v8157, %v8403
        %v8468 = vmul.f32 %v8209, %v8404
        %v8469 = vmul.f32 %v8261, %v8405
        %v8470 = vmul.f32 %v8313, %v8406
        %v8471 = vmul.f32 %v8365, %v8407
        %v8472 = vld [vmem:[%s353] sm:$0xff]
        %v8473 = vld [vmem:[%s353 + $0x8] sm:$0xff]
        %v8474 = vld [vmem:[%s353 + $0x10] sm:$0xff]
        %v8475 = vld [vmem:[%s353 + $0x18] sm:$0xff]
        %v8480 = vperm.slane %v8472, 0
        %v8481 = vperm.slane %v8472, 1
        %v8482 = vperm.slane %v8472, 2
        %v8483 = vperm.slane %v8472, 3
        %v8484 = vperm.slane %v8472, 4
        %v8485 = vperm.slane %v8472, 5
        %v8486 = vperm.slane %v8472, 6
        %v8487 = vperm.slane %v8472, 7
        %v8488 = vperm.slane %v8473, 0
        %v8489 = vperm.slane %v8473, 1
        %v8490 = vperm.slane %v8473, 2
        %v8491 = vperm.slane %v8473, 3
        %v8492 = vperm.slane %v8473, 4
        %v8493 = vperm.slane %v8473, 5
        %v8494 = vperm.slane %v8473, 6
        %v8495 = vperm.slane %v8473, 7
        %v8496 = vperm.slane %v8474, 0
        %v8497 = vperm.slane %v8474, 1
        %v8498 = vperm.slane %v8474, 2
        %v8499 = vperm.slane %v8474, 3
        %v8500 = vperm.slane %v8474, 4
        %v8501 = vperm.slane %v8474, 5
        %v8502 = vperm.slane %v8474, 6
        %v8503 = vperm.slane %v8474, 7
        %v8504 = vperm.slane %v8475, 0
        %v8505 = vperm.slane %v8475, 1
        %v8506 = vperm.slane %v8475, 2
        %v8507 = vperm.slane %v8475, 3
        %v8508 = vperm.slane %v8475, 4
        %v8509 = vperm.slane %v8475, 5
        %v8510 = vperm.slane %v8475, 6
        %v8511 = vperm.slane %v8475, 7
        %v8544 = vadd.f32 %v8440, %v8480
        %v8545 = vadd.f32 %v8441, %v8481
        %v8546 = vadd.f32 %v8442, %v8482
        %v8547 = vadd.f32 %v8443, %v8483
        %v8548 = vadd.f32 %v8444, %v8484
        %v8549 = vadd.f32 %v8445, %v8485
        %v8550 = vadd.f32 %v8446, %v8486
        %v8551 = vadd.f32 %v8447, %v8487
        %v8552 = vadd.f32 %v8448, %v8488
        %v8553 = vadd.f32 %v8449, %v8489
        %v8554 = vadd.f32 %v8450, %v8490
        %v8555 = vadd.f32 %v8451, %v8491
        %v8556 = vadd.f32 %v8452, %v8492
        %v8557 = vadd.f32 %v8453, %v8493
        %v8558 = vadd.f32 %v8454, %v8494
        %v8559 = vadd.f32 %v8455, %v8495
        %v8560 = vadd.f32 %v8456, %v8496
        %v8561 = vadd.f32 %v8457, %v8497
        %v8562 = vadd.f32 %v8458, %v8498
        %v8563 = vadd.f32 %v8459, %v8499
        %v8564 = vadd.f32 %v8460, %v8500
        %v8565 = vadd.f32 %v8461, %v8501
        %v8566 = vadd.f32 %v8462, %v8502
        %v8567 = vadd.f32 %v8463, %v8503
        %v8568 = vadd.f32 %v8464, %v8504
        %v8569 = vadd.f32 %v8465, %v8505
        %v8570 = vadd.f32 %v8466, %v8506
        %v8571 = vadd.f32 %v8467, %v8507
        %v8572 = vadd.f32 %v8468, %v8508
        %v8573 = vadd.f32 %v8469, %v8509
        %v8574 = vadd.f32 %v8470, %v8510
        %v8575 = vadd.f32 %v8471, %v8511
        %v8576 = vxor.u32 %v8544, 2147483648
        %v8577 = vxor.u32 %v8545, 2147483648
        %v8578 = vxor.u32 %v8546, 2147483648
        %v8579 = vxor.u32 %v8547, 2147483648
        %v8580 = vxor.u32 %v8548, 2147483648
        %v8581 = vxor.u32 %v8549, 2147483648
        %v8582 = vxor.u32 %v8550, 2147483648
        %v8583 = vxor.u32 %v8551, 2147483648
        %v8584 = vxor.u32 %v8552, 2147483648
        %v8585 = vxor.u32 %v8553, 2147483648
        %v8586 = vxor.u32 %v8554, 2147483648
        %v8587 = vxor.u32 %v8555, 2147483648
        %v8588 = vxor.u32 %v8556, 2147483648
        %v8589 = vxor.u32 %v8557, 2147483648
        %v8590 = vxor.u32 %v8558, 2147483648
        %v8591 = vxor.u32 %v8559, 2147483648
        %v8592 = vxor.u32 %v8560, 2147483648
        %v8593 = vxor.u32 %v8561, 2147483648
        %v8594 = vxor.u32 %v8562, 2147483648
        %v8595 = vxor.u32 %v8563, 2147483648
        %v8596 = vxor.u32 %v8564, 2147483648
        %v8597 = vxor.u32 %v8565, 2147483648
        %v8598 = vxor.u32 %v8566, 2147483648
        %v8599 = vxor.u32 %v8567, 2147483648
        %v8600 = vxor.u32 %v8568, 2147483648
        %v8601 = vxor.u32 %v8569, 2147483648
        %v8602 = vxor.u32 %v8570, 2147483648
        %v8603 = vxor.u32 %v8571, 2147483648
        %v8604 = vxor.u32 %v8572, 2147483648
        %v8605 = vxor.u32 %v8573, 2147483648
        %v8606 = vxor.u32 %v8574, 2147483648
        %v8607 = vxor.u32 %v8575, 2147483648
        %v8608 = vmul.f32 %v8576, 1.442695
        %v8609 = vpow.pop %v8608
        %v8610 = vmul.f32 %v8577, 1.442695
        %v8611 = vpow.pop %v8610
        %v8612 = vmul.f32 %v8578, 1.442695
        %v8613 = vpow.pop %v8612
        %v8614 = vmul.f32 %v8579, 1.442695
        %v8615 = vpow.pop %v8614
        %v8616 = vmul.f32 %v8580, 1.442695
        %v8617 = vpow.pop %v8616
        %v8618 = vmul.f32 %v8581, 1.442695
        %v8619 = vpow.pop %v8618
        %v8620 = vmul.f32 %v8582, 1.442695
        %v8621 = vpow.pop %v8620
        %v8622 = vmul.f32 %v8583, 1.442695
        %v8623 = vpow.pop %v8622
        %v8624 = vmul.f32 %v8584, 1.442695
        %v8625 = vpow.pop %v8624
        %v8626 = vmul.f32 %v8585, 1.442695
        %v8627 = vpow.pop %v8626
        %v8628 = vmul.f32 %v8586, 1.442695
        %v8629 = vpow.pop %v8628
        %v8630 = vmul.f32 %v8587, 1.442695
        %v8631 = vpow.pop %v8630
        %v8632 = vmul.f32 %v8588, 1.442695
        %v8633 = vpow.pop %v8632
        %v8634 = vmul.f32 %v8589, 1.442695
        %v8635 = vpow.pop %v8634
        %v8636 = vmul.f32 %v8590, 1.442695
        %v8637 = vpow.pop %v8636
        %v8638 = vmul.f32 %v8591, 1.442695
        %v8639 = vpow.pop %v8638
        %v8640 = vmul.f32 %v8592, 1.442695
        %v8641 = vpow.pop %v8640
        %v8642 = vmul.f32 %v8593, 1.442695
        %v8643 = vpow.pop %v8642
        %v8644 = vmul.f32 %v8594, 1.442695
        %v8645 = vpow.pop %v8644
        %v8646 = vmul.f32 %v8595, 1.442695
        %v8647 = vpow.pop %v8646
        %v8648 = vmul.f32 %v8596, 1.442695
        %v8649 = vpow.pop %v8648
        %v8650 = vmul.f32 %v8597, 1.442695
        %v8651 = vpow.pop %v8650
        %v8652 = vmul.f32 %v8598, 1.442695
        %v8653 = vpow.pop %v8652
        %v8654 = vmul.f32 %v8599, 1.442695
        %v8655 = vpow.pop %v8654
        %v8656 = vmul.f32 %v8600, 1.442695
        %v8657 = vpow.pop %v8656
        %v8658 = vmul.f32 %v8601, 1.442695
        %v8659 = vpow.pop %v8658
        %v8660 = vmul.f32 %v8602, 1.442695
        %v8661 = vpow.pop %v8660
        %v8662 = vmul.f32 %v8603, 1.442695
        %v8663 = vpow.pop %v8662
        %v8664 = vmul.f32 %v8604, 1.442695
        %v8665 = vpow.pop %v8664
        %v8666 = vmul.f32 %v8605, 1.442695
        %v8667 = vpow.pop %v8666
        %v8668 = vmul.f32 %v8606, 1.442695
        %v8669 = vpow.pop %v8668
        %v8670 = vmul.f32 %v8607, 1.442695
        %v8671 = vpow.pop %v8670
        %v8672 = vadd.f32 %v8609, 1.0
        %v8673 = vadd.f32 %v8611, 1.0
        %v8674 = vadd.f32 %v8613, 1.0
        %v8675 = vadd.f32 %v8615, 1.0
        %v8676 = vadd.f32 %v8617, 1.0
        %v8677 = vadd.f32 %v8619, 1.0
        %v8678 = vadd.f32 %v8621, 1.0
        %v8679 = vadd.f32 %v8623, 1.0
        %v8680 = vadd.f32 %v8625, 1.0
        %v8681 = vadd.f32 %v8627, 1.0
        %v8682 = vadd.f32 %v8629, 1.0
        %v8683 = vadd.f32 %v8631, 1.0
        %v8684 = vadd.f32 %v8633, 1.0
        %v8685 = vadd.f32 %v8635, 1.0
        %v8686 = vadd.f32 %v8637, 1.0
        %v8687 = vadd.f32 %v8639, 1.0
        %v8688 = vadd.f32 %v8641, 1.0
        %v8689 = vadd.f32 %v8643, 1.0
        %v8690 = vadd.f32 %v8645, 1.0
        %v8691 = vadd.f32 %v8647, 1.0
        %v8692 = vadd.f32 %v8649, 1.0
        %v8693 = vadd.f32 %v8651, 1.0
        %v8694 = vadd.f32 %v8653, 1.0
        %v8695 = vadd.f32 %v8655, 1.0
        %v8696 = vadd.f32 %v8657, 1.0
        %v8697 = vadd.f32 %v8659, 1.0
        %v8698 = vadd.f32 %v8661, 1.0
        %v8699 = vadd.f32 %v8663, 1.0
        %v8700 = vadd.f32 %v8665, 1.0
        %v8701 = vadd.f32 %v8667, 1.0
        %v8702 = vadd.f32 %v8669, 1.0
        %v8703 = vadd.f32 %v8671, 1.0
        %v8704 = vrcp.pop %v8672
        %v8705 = vmul.f32 %v8672, %v8704
        %v8706 = vsub.f32 1.0, %v8705
        %v8707 = vmul.f32 %v8704, %v8706
        %v8708 = vadd.f32 %v8704, %v8707
        %vm8709 = vweird.f32 %v8672
        %vm8710 = vweird.f32 %v8704
        %vm8711 = vmor %vm8709, %vm8710
        %v8712 = vsel %vm8711, %v8704, %v8708
        %v8713 = vand.u32 2147483647, %v8672
        %vm8714 = vcmp.eq.f32.partialorder %v8713, 8.507059e+37
        %v8715 = vand.u32 %v8672, 2147483648
        %v8716 = vor.u32 1.1754944e-38, %v8715
        %v8717 = vsel %vm8714, %v8716, %v8712
        %v8718 = vmul.f32 1.0, %v8717
        %v8719 = vrcp.pop %v8673
        %v8720 = vmul.f32 %v8673, %v8719
        %v8721 = vsub.f32 1.0, %v8720
        %v8722 = vmul.f32 %v8719, %v8721
        %v8723 = vadd.f32 %v8719, %v8722
        %vm8724 = vweird.f32 %v8673
        %vm8725 = vweird.f32 %v8719
        %vm8726 = vmor %vm8724, %vm8725
        %v8727 = vsel %vm8726, %v8719, %v8723
        %v8728 = vand.u32 2147483647, %v8673
        %vm8729 = vcmp.eq.f32.partialorder %v8728, 8.507059e+37
        %v8730 = vand.u32 %v8673, 2147483648
        %v8731 = vor.u32 1.1754944e-38, %v8730
        %v8732 = vsel %vm8729, %v8731, %v8727
        %v8733 = vmul.f32 1.0, %v8732
        %v8734 = vrcp.pop %v8674
        %v8735 = vmul.f32 %v8674, %v8734
        %v8736 = vsub.f32 1.0, %v8735
        %v8737 = vmul.f32 %v8734, %v8736
        %v8738 = vadd.f32 %v8734, %v8737
        %vm8739 = vweird.f32 %v8674
        %vm8740 = vweird.f32 %v8734
        %vm8741 = vmor %vm8739, %vm8740
        %v8742 = vsel %vm8741, %v8734, %v8738
        %v8743 = vand.u32 2147483647, %v8674
        %vm8744 = vcmp.eq.f32.partialorder %v8743, 8.507059e+37
        %v8745 = vand.u32 %v8674, 2147483648
        %v8746 = vor.u32 1.1754944e-38, %v8745
        %v8747 = vsel %vm8744, %v8746, %v8742
        %v8748 = vmul.f32 1.0, %v8747
        %v8749 = vrcp.pop %v8675
        %v8750 = vmul.f32 %v8675, %v8749
        %v8751 = vsub.f32 1.0, %v8750
        %v8752 = vmul.f32 %v8749, %v8751
        %v8753 = vadd.f32 %v8749, %v8752
        %vm8754 = vweird.f32 %v8675
        %vm8755 = vweird.f32 %v8749
        %vm8756 = vmor %vm8754, %vm8755
        %v8757 = vsel %vm8756, %v8749, %v8753
        %v8758 = vand.u32 2147483647, %v8675
        %vm8759 = vcmp.eq.f32.partialorder %v8758, 8.507059e+37
        %v8760 = vand.u32 %v8675, 2147483648
        %v8761 = vor.u32 1.1754944e-38, %v8760
        %v8762 = vsel %vm8759, %v8761, %v8757
        %v8763 = vmul.f32 1.0, %v8762
        %v8764 = vrcp.pop %v8676
        %v8765 = vmul.f32 %v8676, %v8764
        %v8766 = vsub.f32 1.0, %v8765
        %v8767 = vmul.f32 %v8764, %v8766
        %v8768 = vadd.f32 %v8764, %v8767
        %vm8769 = vweird.f32 %v8676
        %vm8770 = vweird.f32 %v8764
        %vm8771 = vmor %vm8769, %vm8770
        %v8772 = vsel %vm8771, %v8764, %v8768
        %v8773 = vand.u32 2147483647, %v8676
        %vm8774 = vcmp.eq.f32.partialorder %v8773, 8.507059e+37
        %v8775 = vand.u32 %v8676, 2147483648
        %v8776 = vor.u32 1.1754944e-38, %v8775
        %v8777 = vsel %vm8774, %v8776, %v8772
        %v8778 = vmul.f32 1.0, %v8777
        %v8779 = vrcp.pop %v8677
        %v8780 = vmul.f32 %v8677, %v8779
        %v8781 = vsub.f32 1.0, %v8780
        %v8782 = vmul.f32 %v8779, %v8781
        %v8783 = vadd.f32 %v8779, %v8782
        %vm8784 = vweird.f32 %v8677
        %vm8785 = vweird.f32 %v8779
        %vm8786 = vmor %vm8784, %vm8785
        %v8787 = vsel %vm8786, %v8779, %v8783
        %v8788 = vand.u32 2147483647, %v8677
        %vm8789 = vcmp.eq.f32.partialorder %v8788, 8.507059e+37
        %v8790 = vand.u32 %v8677, 2147483648
        %v8791 = vor.u32 1.1754944e-38, %v8790
        %v8792 = vsel %vm8789, %v8791, %v8787
        %v8793 = vmul.f32 1.0, %v8792
        %v8794 = vrcp.pop %v8678
        %v8795 = vmul.f32 %v8678, %v8794
        %v8796 = vsub.f32 1.0, %v8795
        %v8797 = vmul.f32 %v8794, %v8796
        %v8798 = vadd.f32 %v8794, %v8797
        %vm8799 = vweird.f32 %v8678
        %vm8800 = vweird.f32 %v8794
        %vm8801 = vmor %vm8799, %vm8800
        %v8802 = vsel %vm8801, %v8794, %v8798
        %v8803 = vand.u32 2147483647, %v8678
        %vm8804 = vcmp.eq.f32.partialorder %v8803, 8.507059e+37
        %v8805 = vand.u32 %v8678, 2147483648
        %v8806 = vor.u32 1.1754944e-38, %v8805
        %v8807 = vsel %vm8804, %v8806, %v8802
        %v8808 = vmul.f32 1.0, %v8807
        %v8809 = vrcp.pop %v8679
        %v8810 = vmul.f32 %v8679, %v8809
        %v8811 = vsub.f32 1.0, %v8810
        %v8812 = vmul.f32 %v8809, %v8811
        %v8813 = vadd.f32 %v8809, %v8812
        %vm8814 = vweird.f32 %v8679
        %vm8815 = vweird.f32 %v8809
        %vm8816 = vmor %vm8814, %vm8815
        %v8817 = vsel %vm8816, %v8809, %v8813
        %v8818 = vand.u32 2147483647, %v8679
        %vm8819 = vcmp.eq.f32.partialorder %v8818, 8.507059e+37
        %v8820 = vand.u32 %v8679, 2147483648
        %v8821 = vor.u32 1.1754944e-38, %v8820
        %v8822 = vsel %vm8819, %v8821, %v8817
        %v8823 = vmul.f32 1.0, %v8822
        %v8824 = vrcp.pop %v8680
        %v8825 = vmul.f32 %v8680, %v8824
        %v8826 = vsub.f32 1.0, %v8825
        %v8827 = vmul.f32 %v8824, %v8826
        %v8828 = vadd.f32 %v8824, %v8827
        %vm8829 = vweird.f32 %v8680
        %vm8830 = vweird.f32 %v8824
        %vm8831 = vmor %vm8829, %vm8830
        %v8832 = vsel %vm8831, %v8824, %v8828
        %v8833 = vand.u32 2147483647, %v8680
        %vm8834 = vcmp.eq.f32.partialorder %v8833, 8.507059e+37
        %v8835 = vand.u32 %v8680, 2147483648
        %v8836 = vor.u32 1.1754944e-38, %v8835
        %v8837 = vsel %vm8834, %v8836, %v8832
        %v8838 = vmul.f32 1.0, %v8837
        %v8839 = vrcp.pop %v8681
        %v8840 = vmul.f32 %v8681, %v8839
        %v8841 = vsub.f32 1.0, %v8840
        %v8842 = vmul.f32 %v8839, %v8841
        %v8843 = vadd.f32 %v8839, %v8842
        %vm8844 = vweird.f32 %v8681
        %vm8845 = vweird.f32 %v8839
        %vm8846 = vmor %vm8844, %vm8845
        %v8847 = vsel %vm8846, %v8839, %v8843
        %v8848 = vand.u32 2147483647, %v8681
        %vm8849 = vcmp.eq.f32.partialorder %v8848, 8.507059e+37
        %v8850 = vand.u32 %v8681, 2147483648
        %v8851 = vor.u32 1.1754944e-38, %v8850
        %v8852 = vsel %vm8849, %v8851, %v8847
        %v8853 = vmul.f32 1.0, %v8852
        %v8854 = vrcp.pop %v8682
        %v8855 = vmul.f32 %v8682, %v8854
        %v8856 = vsub.f32 1.0, %v8855
        %v8857 = vmul.f32 %v8854, %v8856
        %v8858 = vadd.f32 %v8854, %v8857
        %vm8859 = vweird.f32 %v8682
        %vm8860 = vweird.f32 %v8854
        %vm8861 = vmor %vm8859, %vm8860
        %v8862 = vsel %vm8861, %v8854, %v8858
        %v8863 = vand.u32 2147483647, %v8682
        %vm8864 = vcmp.eq.f32.partialorder %v8863, 8.507059e+37
        %v8865 = vand.u32 %v8682, 2147483648
        %v8866 = vor.u32 1.1754944e-38, %v8865
        %v8867 = vsel %vm8864, %v8866, %v8862
        %v8868 = vmul.f32 1.0, %v8867
        %v8869 = vrcp.pop %v8683
        %v8870 = vmul.f32 %v8683, %v8869
        %v8871 = vsub.f32 1.0, %v8870
        %v8872 = vmul.f32 %v8869, %v8871
        %v8873 = vadd.f32 %v8869, %v8872
        %vm8874 = vweird.f32 %v8683
        %vm8875 = vweird.f32 %v8869
        %vm8876 = vmor %vm8874, %vm8875
        %v8877 = vsel %vm8876, %v8869, %v8873
        %v8878 = vand.u32 2147483647, %v8683
        %vm8879 = vcmp.eq.f32.partialorder %v8878, 8.507059e+37
        %v8880 = vand.u32 %v8683, 2147483648
        %v8881 = vor.u32 1.1754944e-38, %v8880
        %v8882 = vsel %vm8879, %v8881, %v8877
        %v8883 = vmul.f32 1.0, %v8882
        %v8884 = vrcp.pop %v8684
        %v8885 = vmul.f32 %v8684, %v8884
        %v8886 = vsub.f32 1.0, %v8885
        %v8887 = vmul.f32 %v8884, %v8886
        %v8888 = vadd.f32 %v8884, %v8887
        %vm8889 = vweird.f32 %v8684
        %vm8890 = vweird.f32 %v8884
        %vm8891 = vmor %vm8889, %vm8890
        %v8892 = vsel %vm8891, %v8884, %v8888
        %v8893 = vand.u32 2147483647, %v8684
        %vm8894 = vcmp.eq.f32.partialorder %v8893, 8.507059e+37
        %v8895 = vand.u32 %v8684, 2147483648
        %v8896 = vor.u32 1.1754944e-38, %v8895
        %v8897 = vsel %vm8894, %v8896, %v8892
        %v8898 = vmul.f32 1.0, %v8897
        %v8899 = vrcp.pop %v8685
        %v8900 = vmul.f32 %v8685, %v8899
        %v8901 = vsub.f32 1.0, %v8900
        %v8902 = vmul.f32 %v8899, %v8901
        %v8903 = vadd.f32 %v8899, %v8902
        %vm8904 = vweird.f32 %v8685
        %vm8905 = vweird.f32 %v8899
        %vm8906 = vmor %vm8904, %vm8905
        %v8907 = vsel %vm8906, %v8899, %v8903
        %v8908 = vand.u32 2147483647, %v8685
        %vm8909 = vcmp.eq.f32.partialorder %v8908, 8.507059e+37
        %v8910 = vand.u32 %v8685, 2147483648
        %v8911 = vor.u32 1.1754944e-38, %v8910
        %v8912 = vsel %vm8909, %v8911, %v8907
        %v8913 = vmul.f32 1.0, %v8912
        %v8914 = vrcp.pop %v8686
        %v8915 = vmul.f32 %v8686, %v8914
        %v8916 = vsub.f32 1.0, %v8915
        %v8917 = vmul.f32 %v8914, %v8916
        %v8918 = vadd.f32 %v8914, %v8917
        %vm8919 = vweird.f32 %v8686
        %vm8920 = vweird.f32 %v8914
        %vm8921 = vmor %vm8919, %vm8920
        %v8922 = vsel %vm8921, %v8914, %v8918
        %v8923 = vand.u32 2147483647, %v8686
        %vm8924 = vcmp.eq.f32.partialorder %v8923, 8.507059e+37
        %v8925 = vand.u32 %v8686, 2147483648
        %v8926 = vor.u32 1.1754944e-38, %v8925
        %v8927 = vsel %vm8924, %v8926, %v8922
        %v8928 = vmul.f32 1.0, %v8927
        %v8929 = vrcp.pop %v8687
        %v8930 = vmul.f32 %v8687, %v8929
        %v8931 = vsub.f32 1.0, %v8930
        %v8932 = vmul.f32 %v8929, %v8931
        %v8933 = vadd.f32 %v8929, %v8932
        %vm8934 = vweird.f32 %v8687
        %vm8935 = vweird.f32 %v8929
        %vm8936 = vmor %vm8934, %vm8935
        %v8937 = vsel %vm8936, %v8929, %v8933
        %v8938 = vand.u32 2147483647, %v8687
        %vm8939 = vcmp.eq.f32.partialorder %v8938, 8.507059e+37
        %v8940 = vand.u32 %v8687, 2147483648
        %v8941 = vor.u32 1.1754944e-38, %v8940
        %v8942 = vsel %vm8939, %v8941, %v8937
        %v8943 = vmul.f32 1.0, %v8942
        %v8944 = vrcp.pop %v8688
        %v8945 = vmul.f32 %v8688, %v8944
        %v8946 = vsub.f32 1.0, %v8945
        %v8947 = vmul.f32 %v8944, %v8946
        %v8948 = vadd.f32 %v8944, %v8947
        %vm8949 = vweird.f32 %v8688
        %vm8950 = vweird.f32 %v8944
        %vm8951 = vmor %vm8949, %vm8950
        %v8952 = vsel %vm8951, %v8944, %v8948
        %v8953 = vand.u32 2147483647, %v8688
        %vm8954 = vcmp.eq.f32.partialorder %v8953, 8.507059e+37
        %v8955 = vand.u32 %v8688, 2147483648
        %v8956 = vor.u32 1.1754944e-38, %v8955
        %v8957 = vsel %vm8954, %v8956, %v8952
        %v8958 = vmul.f32 1.0, %v8957
        %v8959 = vrcp.pop %v8689
        %v8960 = vmul.f32 %v8689, %v8959
        %v8961 = vsub.f32 1.0, %v8960
        %v8962 = vmul.f32 %v8959, %v8961
        %v8963 = vadd.f32 %v8959, %v8962
        %vm8964 = vweird.f32 %v8689
        %vm8965 = vweird.f32 %v8959
        %vm8966 = vmor %vm8964, %vm8965
        %v8967 = vsel %vm8966, %v8959, %v8963
        %v8968 = vand.u32 2147483647, %v8689
        %vm8969 = vcmp.eq.f32.partialorder %v8968, 8.507059e+37
        %v8970 = vand.u32 %v8689, 2147483648
        %v8971 = vor.u32 1.1754944e-38, %v8970
        %v8972 = vsel %vm8969, %v8971, %v8967
        %v8973 = vmul.f32 1.0, %v8972
        %v8974 = vrcp.pop %v8690
        %v8975 = vmul.f32 %v8690, %v8974
        %v8976 = vsub.f32 1.0, %v8975
        %v8977 = vmul.f32 %v8974, %v8976
        %v8978 = vadd.f32 %v8974, %v8977
        %vm8979 = vweird.f32 %v8690
        %vm8980 = vweird.f32 %v8974
        %vm8981 = vmor %vm8979, %vm8980
        %v8982 = vsel %vm8981, %v8974, %v8978
        %v8983 = vand.u32 2147483647, %v8690
        %vm8984 = vcmp.eq.f32.partialorder %v8983, 8.507059e+37
        %v8985 = vand.u32 %v8690, 2147483648
        %v8986 = vor.u32 1.1754944e-38, %v8985
        %v8987 = vsel %vm8984, %v8986, %v8982
        %v8988 = vmul.f32 1.0, %v8987
        %v8989 = vrcp.pop %v8691
        %v8990 = vmul.f32 %v8691, %v8989
        %v8991 = vsub.f32 1.0, %v8990
        %v8992 = vmul.f32 %v8989, %v8991
        %v8993 = vadd.f32 %v8989, %v8992
        %vm8994 = vweird.f32 %v8691
        %vm8995 = vweird.f32 %v8989
        %vm8996 = vmor %vm8994, %vm8995
        %v8997 = vsel %vm8996, %v8989, %v8993
        %v8998 = vand.u32 2147483647, %v8691
        %vm8999 = vcmp.eq.f32.partialorder %v8998, 8.507059e+37
        %v9000 = vand.u32 %v8691, 2147483648
        %v9001 = vor.u32 1.1754944e-38, %v9000
        %v9002 = vsel %vm8999, %v9001, %v8997
        %v9003 = vmul.f32 1.0, %v9002
        %v9004 = vrcp.pop %v8692
        %v9005 = vmul.f32 %v8692, %v9004
        %v9006 = vsub.f32 1.0, %v9005
        %v9007 = vmul.f32 %v9004, %v9006
        %v9008 = vadd.f32 %v9004, %v9007
        %vm9009 = vweird.f32 %v8692
        %vm9010 = vweird.f32 %v9004
        %vm9011 = vmor %vm9009, %vm9010
        %v9012 = vsel %vm9011, %v9004, %v9008
        %v9013 = vand.u32 2147483647, %v8692
        %vm9014 = vcmp.eq.f32.partialorder %v9013, 8.507059e+37
        %v9015 = vand.u32 %v8692, 2147483648
        %v9016 = vor.u32 1.1754944e-38, %v9015
        %v9017 = vsel %vm9014, %v9016, %v9012
        %v9018 = vmul.f32 1.0, %v9017
        %v9019 = vrcp.pop %v8693
        %v9020 = vmul.f32 %v8693, %v9019
        %v9021 = vsub.f32 1.0, %v9020
        %v9022 = vmul.f32 %v9019, %v9021
        %v9023 = vadd.f32 %v9019, %v9022
        %vm9024 = vweird.f32 %v8693
        %vm9025 = vweird.f32 %v9019
        %vm9026 = vmor %vm9024, %vm9025
        %v9027 = vsel %vm9026, %v9019, %v9023
        %v9028 = vand.u32 2147483647, %v8693
        %vm9029 = vcmp.eq.f32.partialorder %v9028, 8.507059e+37
        %v9030 = vand.u32 %v8693, 2147483648
        %v9031 = vor.u32 1.1754944e-38, %v9030
        %v9032 = vsel %vm9029, %v9031, %v9027
        %v9033 = vmul.f32 1.0, %v9032
        %v9034 = vrcp.pop %v8694
        %v9035 = vmul.f32 %v8694, %v9034
        %v9036 = vsub.f32 1.0, %v9035
        %v9037 = vmul.f32 %v9034, %v9036
        %v9038 = vadd.f32 %v9034, %v9037
        %vm9039 = vweird.f32 %v8694
        %vm9040 = vweird.f32 %v9034
        %vm9041 = vmor %vm9039, %vm9040
        %v9042 = vsel %vm9041, %v9034, %v9038
        %v9043 = vand.u32 2147483647, %v8694
        %vm9044 = vcmp.eq.f32.partialorder %v9043, 8.507059e+37
        %v9045 = vand.u32 %v8694, 2147483648
        %v9046 = vor.u32 1.1754944e-38, %v9045
        %v9047 = vsel %vm9044, %v9046, %v9042
        %v9048 = vmul.f32 1.0, %v9047
        %v9049 = vrcp.pop %v8695
        %v9050 = vmul.f32 %v8695, %v9049
        %v9051 = vsub.f32 1.0, %v9050
        %v9052 = vmul.f32 %v9049, %v9051
        %v9053 = vadd.f32 %v9049, %v9052
        %vm9054 = vweird.f32 %v8695
        %vm9055 = vweird.f32 %v9049
        %vm9056 = vmor %vm9054, %vm9055
        %v9057 = vsel %vm9056, %v9049, %v9053
        %v9058 = vand.u32 2147483647, %v8695
        %vm9059 = vcmp.eq.f32.partialorder %v9058, 8.507059e+37
        %v9060 = vand.u32 %v8695, 2147483648
        %v9061 = vor.u32 1.1754944e-38, %v9060
        %v9062 = vsel %vm9059, %v9061, %v9057
        %v9063 = vmul.f32 1.0, %v9062
        %v9064 = vrcp.pop %v8696
        %v9065 = vmul.f32 %v8696, %v9064
        %v9066 = vsub.f32 1.0, %v9065
        %v9067 = vmul.f32 %v9064, %v9066
        %v9068 = vadd.f32 %v9064, %v9067
        %vm9069 = vweird.f32 %v8696
        %vm9070 = vweird.f32 %v9064
        %vm9071 = vmor %vm9069, %vm9070
        %v9072 = vsel %vm9071, %v9064, %v9068
        %v9073 = vand.u32 2147483647, %v8696
        %vm9074 = vcmp.eq.f32.partialorder %v9073, 8.507059e+37
        %v9075 = vand.u32 %v8696, 2147483648
        %v9076 = vor.u32 1.1754944e-38, %v9075
        %v9077 = vsel %vm9074, %v9076, %v9072
        %v9078 = vmul.f32 1.0, %v9077
        %v9079 = vrcp.pop %v8697
        %v9080 = vmul.f32 %v8697, %v9079
        %v9081 = vsub.f32 1.0, %v9080
        %v9082 = vmul.f32 %v9079, %v9081
        %v9083 = vadd.f32 %v9079, %v9082
        %vm9084 = vweird.f32 %v8697
        %vm9085 = vweird.f32 %v9079
        %vm9086 = vmor %vm9084, %vm9085
        %v9087 = vsel %vm9086, %v9079, %v9083
        %v9088 = vand.u32 2147483647, %v8697
        %vm9089 = vcmp.eq.f32.partialorder %v9088, 8.507059e+37
        %v9090 = vand.u32 %v8697, 2147483648
        %v9091 = vor.u32 1.1754944e-38, %v9090
        %v9092 = vsel %vm9089, %v9091, %v9087
        %v9093 = vmul.f32 1.0, %v9092
        %v9094 = vrcp.pop %v8698
        %v9095 = vmul.f32 %v8698, %v9094
        %v9096 = vsub.f32 1.0, %v9095
        %v9097 = vmul.f32 %v9094, %v9096
        %v9098 = vadd.f32 %v9094, %v9097
        %vm9099 = vweird.f32 %v8698
        %vm9100 = vweird.f32 %v9094
        %vm9101 = vmor %vm9099, %vm9100
        %v9102 = vsel %vm9101, %v9094, %v9098
        %v9103 = vand.u32 2147483647, %v8698
        %vm9104 = vcmp.eq.f32.partialorder %v9103, 8.507059e+37
        %v9105 = vand.u32 %v8698, 2147483648
        %v9106 = vor.u32 1.1754944e-38, %v9105
        %v9107 = vsel %vm9104, %v9106, %v9102
        %v9108 = vmul.f32 1.0, %v9107
        %v9109 = vrcp.pop %v8699
        %v9110 = vmul.f32 %v8699, %v9109
        %v9111 = vsub.f32 1.0, %v9110
        %v9112 = vmul.f32 %v9109, %v9111
        %v9113 = vadd.f32 %v9109, %v9112
        %vm9114 = vweird.f32 %v8699
        %vm9115 = vweird.f32 %v9109
        %vm9116 = vmor %vm9114, %vm9115
        %v9117 = vsel %vm9116, %v9109, %v9113
        %v9118 = vand.u32 2147483647, %v8699
        %vm9119 = vcmp.eq.f32.partialorder %v9118, 8.507059e+37
        %v9120 = vand.u32 %v8699, 2147483648
        %v9121 = vor.u32 1.1754944e-38, %v9120
        %v9122 = vsel %vm9119, %v9121, %v9117
        %v9123 = vmul.f32 1.0, %v9122
        %v9124 = vrcp.pop %v8700
        %v9125 = vmul.f32 %v8700, %v9124
        %v9126 = vsub.f32 1.0, %v9125
        %v9127 = vmul.f32 %v9124, %v9126
        %v9128 = vadd.f32 %v9124, %v9127
        %vm9129 = vweird.f32 %v8700
        %vm9130 = vweird.f32 %v9124
        %vm9131 = vmor %vm9129, %vm9130
        %v9132 = vsel %vm9131, %v9124, %v9128
        %v9133 = vand.u32 2147483647, %v8700
        %vm9134 = vcmp.eq.f32.partialorder %v9133, 8.507059e+37
        %v9135 = vand.u32 %v8700, 2147483648
        %v9136 = vor.u32 1.1754944e-38, %v9135
        %v9137 = vsel %vm9134, %v9136, %v9132
        %v9138 = vmul.f32 1.0, %v9137
        %v9139 = vrcp.pop %v8701
        %v9140 = vmul.f32 %v8701, %v9139
        %v9141 = vsub.f32 1.0, %v9140
        %v9142 = vmul.f32 %v9139, %v9141
        %v9143 = vadd.f32 %v9139, %v9142
        %vm9144 = vweird.f32 %v8701
        %vm9145 = vweird.f32 %v9139
        %vm9146 = vmor %vm9144, %vm9145
        %v9147 = vsel %vm9146, %v9139, %v9143
        %v9148 = vand.u32 2147483647, %v8701
        %vm9149 = vcmp.eq.f32.partialorder %v9148, 8.507059e+37
        %v9150 = vand.u32 %v8701, 2147483648
        %v9151 = vor.u32 1.1754944e-38, %v9150
        %v9152 = vsel %vm9149, %v9151, %v9147
        %v9153 = vmul.f32 1.0, %v9152
        %v9154 = vrcp.pop %v8702
        %v9155 = vmul.f32 %v8702, %v9154
        %v9156 = vsub.f32 1.0, %v9155
        %v9157 = vmul.f32 %v9154, %v9156
        %v9158 = vadd.f32 %v9154, %v9157
        %vm9159 = vweird.f32 %v8702
        %vm9160 = vweird.f32 %v9154
        %vm9161 = vmor %vm9159, %vm9160
        %v9162 = vsel %vm9161, %v9154, %v9158
        %v9163 = vand.u32 2147483647, %v8702
        %vm9164 = vcmp.eq.f32.partialorder %v9163, 8.507059e+37
        %v9165 = vand.u32 %v8702, 2147483648
        %v9166 = vor.u32 1.1754944e-38, %v9165
        %v9167 = vsel %vm9164, %v9166, %v9162
        %v9168 = vmul.f32 1.0, %v9167
        %v9169 = vrcp.pop %v8703
        %v9170 = vmul.f32 %v8703, %v9169
        %v9171 = vsub.f32 1.0, %v9170
        %v9172 = vmul.f32 %v9169, %v9171
        %v9173 = vadd.f32 %v9169, %v9172
        %vm9174 = vweird.f32 %v8703
        %vm9175 = vweird.f32 %v9169
        %vm9176 = vmor %vm9174, %vm9175
        %v9177 = vsel %vm9176, %v9169, %v9173
        %v9178 = vand.u32 2147483647, %v8703
        %vm9179 = vcmp.eq.f32.partialorder %v9178, 8.507059e+37
        %v9180 = vand.u32 %v8703, 2147483648
        %v9181 = vor.u32 1.1754944e-38, %v9180
        %v9182 = vsel %vm9179, %v9181, %v9177
        %v9183 = vmul.f32 1.0, %v9182
        %9184 = vst [vmem:[%s392] sm:$0xff] %v8718
        %9185 = vst [vmem:[%s392 + $0x8] sm:$0xff] %v8733
        %9186 = vst [vmem:[%s392 + $0x10] sm:$0xff] %v8748
        %9187 = vst [vmem:[%s392 + $0x18] sm:$0xff] %v8763
        %9188 = vst [vmem:[%s392 + $0x20] sm:$0xff] %v8778
        %9189 = vst [vmem:[%s392 + $0x28] sm:$0xff] %v8793
        %9190 = vst [vmem:[%s392 + $0x30] sm:$0xff] %v8808
        %9191 = vst [vmem:[%s392 + $0x38] sm:$0xff] %v8823
        %9192 = vst [vmem:[%s392 + $0x40] sm:$0xff] %v8838
        %9193 = vst [vmem:[%s392 + $0x48] sm:$0xff] %v8853
        %9194 = vst [vmem:[%s392 + $0x50] sm:$0xff] %v8868
        %9195 = vst [vmem:[%s392 + $0x58] sm:$0xff] %v8883
        %9196 = vst [vmem:[%s392 + $0x60] sm:$0xff] %v8898
        %9197 = vst [vmem:[%s392 + $0x68] sm:$0xff] %v8913
        %9198 = vst [vmem:[%s392 + $0x70] sm:$0xff] %v8928
        %9199 = vst [vmem:[%s392 + $0x78] sm:$0xff] %v8943
        %9200 = vst [vmem:[%s392 + $0x80] sm:$0xff] %v8958
        %9201 = vst [vmem:[%s392 + $0x88] sm:$0xff] %v8973
        %9202 = vst [vmem:[%s392 + $0x90] sm:$0xff] %v8988
        %9203 = vst [vmem:[%s392 + $0x98] sm:$0xff] %v9003
        %9204 = vst [vmem:[%s392 + $0xa0] sm:$0xff] %v9018
        %9205 = vst [vmem:[%s392 + $0xa8] sm:$0xff] %v9033
        %9206 = vst [vmem:[%s392 + $0xb0] sm:$0xff] %v9048
        %9207 = vst [vmem:[%s392 + $0xb8] sm:$0xff] %v9063
        %9208 = vst [vmem:[%s392 + $0xc0] sm:$0xff] %v9078
        %9209 = vst [vmem:[%s392 + $0xc8] sm:$0xff] %v9093
        %9210 = vst [vmem:[%s392 + $0xd0] sm:$0xff] %v9108
        %9211 = vst [vmem:[%s392 + $0xd8] sm:$0xff] %v9123
        %9212 = vst [vmem:[%s392 + $0xe0] sm:$0xff] %v9138
        %9213 = vst [vmem:[%s392 + $0xe8] sm:$0xff] %v9153
        %9214 = vst [vmem:[%s392 + $0xf0] sm:$0xff] %v9168
        %9215 = vst [vmem:[%s392 + $0xf8] sm:$0xff] %v9183
        %s9216 = sand.u32 %s177, 1
        %s9217 = scalar_lea.sflag [#allocation4], %s9216
        %s9218 = sand.u32 %s177, 1
        %s9219 = smul.addr %s9218, 256
        %s9220 = scalar_lea.vmem [#allocation13], %s9219
        // Predicated region
        $region69: #{tpu_custom_call.1} parent=43 // pred_check
          %p9221 = pneg %p187
        $region70: #{tpu_custom_call.1} parent=43 // pred_check_branch
          %9223 = sbr.rel (%p9221) target = $region72
        $region71: #{tpu_custom_call.1} parent=43 // pred_region
          %s9224 = smul.u32 32, %s28
          %9226 = vsyncadd %s9217, 0
          %s9227 = smul.addr %s9224, 8
          %s9228 = scalar_lea.hbm %s6, %s9227
          %s9230 = sshll.u32 %s9220, 4
          %s9231 = int_to_ptr.vmem [resolvable:$true] %s9230
          %s9232 = sshll.u32 %s9228, 4
          %s9233 = int_to_ptr.hbm [resolvable:$true] %s9232
          %9235 = dma.vmem_to_hbm [thread:$0]  %s9231, 4096, %s9233, %s9217
        $region72: #{tpu_custom_call.1} parent=43 // pred_fallthru
          _
      $region44: #{tpu_custom_call.1} parent=5 // pred_fallthru
        _
      %p9236 = scmp.le.s32.totalorder 2, %s23
      // Predicated region
      $region73: #{tpu_custom_call.1} parent=5 // pred_check
        %p9237 = pneg %p9236
      $region74: #{tpu_custom_call.1} parent=5 // pred_check_branch
        %9239 = sbr.rel (%p9237) target = $region76
      $region75: #{tpu_custom_call.1} parent=5 // pred_region
        %s9240 = ssub.s32 %s23, 2
        // Predicated region
        $region77: #{tpu_custom_call.1} parent=75 // pred_check
          %p9241 = pneg %p193
        $region78: #{tpu_custom_call.1} parent=75 // pred_check_branch
          %9243 = sbr.rel (%p9241) target = $region80
        $region79: #{tpu_custom_call.1} parent=75 // pred_region
          %s9244 = sand.u32 %s178, 1
          %s9245 = scalar_lea.sflag [#allocation4], %s9244
          %s9246 = sand.u32 %s178, 1
          %s9247 = smul.addr %s9246, 256
          %s9248 = scalar_lea.vmem [#allocation13], %s9247
          %9250 = dma.done %s9245, 4096
        $region80: #{tpu_custom_call.1} parent=75 // pred_fallthru
          _
      $region76: #{tpu_custom_call.1} parent=5 // pred_fallthru
        _
    $region6: #{tpu_custom_call.1} parent=1 // loop_footer
      %s27 = sadd.s32 1, %s23
    $region7: #{tpu_custom_call.1} parent=1 // loop_footer_branch
      %22 = sbr.rel target = $region3
    $region8: #{tpu_custom_call.1} parent=1 // loop_exit
      _
    %9251 = vsyncpa [#allocation3], 1
    %s9252 = scalar_lea.sflag [#allocation3], 1
    %9253 = vsyncpa %s9252, 1
    %9254 = vsyncpa [#allocation6], 1
    %9255 = vsyncpa [#allocation9], 1
    %s9256 = scalar_lea.sflag [#allocation9], 1
    %9257 = vsyncpa %s9256, 1
    %9258 = vsyncpa [#allocation12], 1
    %s9259 = scalar_lea.sflag [#allocation12], 1
    %9260 = vsyncpa %s9259, 1
    %9261 = vsyncpa [#allocation4], 1
    %s9262 = scalar_lea.sflag [#allocation4], 1
    %9263 = vsyncpa %s9262, 1

</llo_original>
